<compile_context>
chip_gen: v7x
topology: tpu7x:2x2x1
jax: 0.10.0
libtpu: 0.0.40
codegen_flags: <defaults>
</compile_context>

<pallas_src>
import functools
import math

import jax
import jax.numpy as jnp
from jax import lax
from jax.experimental import pallas as pl
from jax.experimental.pallas import tpu as pltpu


def _round_up(x, m):
    return (x + m - 1) // m * m


def _pick_row_tile(H, W, cin_major, tn, budget_bytes=6 << 20):
    """Pick a row tile so the per-step working set stays ~budget_bytes (v7x-safe)."""
    Wp8 = _round_up(W + 2, 8)
    per_row = Wp8 * (3 * cin_major * 2      # input body + halos (bf16, double buffered)
                     + 2 * tn * 2           # bf16 output block (double buffered)
                     + 3 * cin_major * 2    # dw-folded slab scratch
                     + tn * 4               # f32 accumulator
                     + cin_major * 2)       # guarded slab scratch
    th_cap = max(4, budget_bytes // max(per_row, 1))
    th_target = int(min(th_cap, max(8, (H + 3) // 2)))   # >=2 row tiles when possible
    ht = max(1, -(-(H + 2) // th_target))
    th = -(-(H + 2) // ht)
    return th, ht, th * ht, Wp8


# ----------------------------------------------------------------------------
# Kernel: implicit-GEMM 3x3 conv (stride 1, pad 1) + bias, optional fused
#         input-side BN+ReLU, fused per-tile BatchNorm sum / sumsq partials.
# ----------------------------------------------------------------------------

def _conv3x3_kernel(x_ref, xlo_ref, xhi_ref, w_ref, b_ref, sc_ref, sh_ref,
                    y_ref, s_ref, ss_ref, vs_ref, xs_ref, acc_ref, *,
                    th, Wp8, H, W, cin, apply_input_act):
    # x_ref  : (1, th, Wp8, cin) bf16   body rows [i*th, i*th+th) of the padded slab
    # xlo/xhi: (1, 1, Wp8, cin)  bf16   halo rows i*th-1 / i*th+th (clamped at the ends)
    # w_ref  : (3, 3*cin, tn)    bf16   kh-major weights, kw folded into K
    # b_ref  : (1, tn)           f32    conv bias
    # sc/sh  : (1, cin)          f32    input-side BN scale/shift (used iff apply_input_act)
    # y_ref  : (1, th, Wp8, tn)  bf16   pre-BN conv output (padded layout, borders = 0)
    # s_ref, ss_ref: (1,1,1,tn)  f32    per-tile per-channel sum / sumsq (BN stats)
    # vs_ref : (th+2, Wp8+16, cin) bf16 guard-padded row slab scratch
    # xs_ref : (th+2, Wp8, 3*cin)  bf16 kw-folded slab scratch
    # acc_ref: (th*Wp8, tn)        f32  accumulator scratch
    i = pl.program_id(2)
    base = i * th - 1                     # global padded row of slab row 0

    def transform(piece, row0):
        # Fused BN1+ReLU on conv2's input; halo/border positions forced back to zero
        # so the zero-padding semantics of the conv are preserved.
        if not apply_input_act:
            return piece
        p = jnp.maximum(piece.astype(jnp.float32) * sc_ref[0] + sh_ref[0], 0.0)
        rows = lax.broadcasted_iota(jnp.int32, (p.shape[0], Wp8, 1), 0) + row0
        cols = lax.broadcasted_iota(jnp.int32, (p.shape[0], Wp8, 1), 1)
        inside = (rows >= 1) & (rows <= H) & (cols >= 1) & (cols <= W)
        return jnp.where(inside, p, 0.0).astype(jnp.bfloat16)

    # Assemble the halo'd slab (rows [i*th-1, i*th+th+1)) at sublane offset 8 of the
    # guarded scratch: all stores are tile-aligned, and the kw = -1 tap gets a valid
    # (junk, harmless -- only feeds border columns that are zeroed) source column.
    vs_ref[0:1, 8:8 + Wp8, :] = transform(xlo_ref[0], base)
    vs_ref[1:th + 1, 8:8 + Wp8, :] = transform(x_ref[0], base + 1)
    vs_ref[th + 1:th + 2, 8:8 + Wp8, :] = transform(xhi_ref[0], base + th + 1)

    # Fold the three kw taps into the contraction dim:
    #   xs[p, c, kw*cin + ci] = slab[p, c + kw - 1, ci]
    xs_ref[...] = jnp.concatenate(
        [vs_ref[:, 7 + dw:7 + dw + Wp8, :] for dw in range(3)], axis=-1)

    # 3 MXU matmuls (one per kh), K = 3*cin; first tap writes the accumulator.
    for dh in range(3):
        lhs = xs_ref[dh:dh + th, :, :].reshape(th * Wp8, 3 * cin)
        contrib = jnp.dot(lhs, w_ref[dh], preferred_element_type=jnp.float32)
        if dh == 0:
            acc_ref[...] = contrib
        else:
            acc_ref[...] += contrib

    # Epilogue: + bias, zero everything outside the real HxW interior (keeps the
    # padded layout ready to be the next conv's input and makes the stats exact),
    # emit bf16 y and the f32 sum / sumsq partials.
    rows = lax.broadcasted_iota(jnp.int32, (th, Wp8, 1), 0) + i * th
    cols = lax.broadcasted_iota(jnp.int32, (th, Wp8, 1), 1)
    keep = ((rows >= 1) & (rows <= H) & (cols >= 1) & (cols <= W)).reshape(th * Wp8, 1)
    acc = jnp.where(keep, acc_ref[...] + b_ref[...], 0.0)
    y_ref[0] = acc.reshape(th, Wp8, -1).astype(y_ref.dtype)
    s_ref[0, 0] = jnp.sum(acc, axis=0, keepdims=True)
    ss_ref[0, 0] = jnp.sum(acc * acc, axis=0, keepdims=True)


def conv3x3_bias_bnstats(x_pad, w, b, cout_pad, *, H, W, th, tn=128,
                         scale_in=None, shift_in=None):
    """3x3 conv + bias over the padded NHWC slab, with optional fused input BN+ReLU.

    x_pad: (N, HP, Wp8, Cin) bf16, zero outside the real padded image.
    Returns y (padded layout, bf16, borders zeroed) and per-(image, row-tile) BN partials.
    """
    N, HP, Wp8, Cin = x_pad.shape
    assert HP % th == 0 and cout_pad % tn == 0
    HT = HP // th
    Cout, Cw = w.shape[0], w.shape[1]
    apply_input_act = scale_in is not None
    if scale_in is None:
        scale_in = jnp.zeros((1, Cin), jnp.float32)
        shift_in = jnp.zeros((1, Cin), jnp.float32)
    else:
        scale_in = scale_in.reshape(1, Cin).astype(jnp.float32)
        shift_in = shift_in.reshape(1, Cin).astype(jnp.float32)

    # Pad only the tiny weight/bias tensors to lane-aligned channel counts.
    wt = jnp.transpose(w, (2, 3, 1, 0))                                  # (kh, kw, ci, co)
    w4 = jnp.zeros((3, 3, Cin, cout_pad), jnp.float32).at[:, :, :Cw, :Cout].set(wt)
    w3 = w4.reshape(3, 3 * Cin, cout_pad).astype(jnp.bfloat16)           # K = kw*Cin + ci
    b_p = jnp.zeros((1, cout_pad), jnp.float32).at[0, :Cout].set(b.astype(jnp.float32))

    grid = (cout_pad // tn, N, HT)                     # cout tile outermost -> weights
    kern = functools.partial(_conv3x3_kernel, th=th, Wp8=Wp8, H=H, W=W, cin=Cin,
                             apply_input_act=apply_input_act)

    blk_bytes = (th * Wp8 * Cin * 2 + 2 * Wp8 * Cin * 2 + 9 * Cin * tn * 2 + tn * 4
                 + 2 * Cin * 4 + th * Wp8 * tn * 2 + 2 * tn * 4)
    scratch_bytes = ((th + 2) * (Wp8 + 16) * Cin * 2 + (th + 2) * Wp8 * 3 * Cin * 2
                     + th * Wp8 * tn * 4)
    vmem_limit = int(min(48 << 20, max(32 << 20, 2 * (2 * blk_bytes + scratch_bytes))))

    y, s, ss = pl.pallas_call(
        kern,
        out_shape=(jax.ShapeDtypeStruct((N, HP, Wp8, cout_pad), jnp.bfloat16),
                   jax.ShapeDtypeStruct((N, HT, 1, cout_pad), jnp.float32),
                   jax.ShapeDtypeStruct((N, HT, 1, cout_pad), jnp.float32)),
        grid_spec=pltpu.PrefetchScalarGridSpec(
            num_scalar_prefetch=0,
            grid=grid,
            in_specs=[
                pl.BlockSpec((1, th, Wp8, Cin), lambda j, n, i: (n, i, 0, 0)),
                pl.BlockSpec((1, 1, Wp8, Cin),
                             lambda j, n, i: (n, jnp.maximum(i * th - 1, 0), 0, 0)),
                pl.BlockSpec((1, 1, Wp8, Cin),
                             lambda j, n, i: (n, jnp.minimum(i * th + th, HP - 1), 0, 0)),
                pl.BlockSpec((3, 3 * Cin, tn), lambda j, n, i: (0, 0, j)),
                pl.BlockSpec((1, tn), lambda j, n, i: (0, j)),
                pl.BlockSpec((1, Cin), lambda j, n, i: (0, 0)),
                pl.BlockSpec((1, Cin), lambda j, n, i: (0, 0)),
            ],
            out_specs=(
                pl.BlockSpec((1, th, Wp8, tn), lambda j, n, i: (n, i, 0, j)),
                pl.BlockSpec((1, 1, 1, tn), lambda j, n, i: (n, i, 0, j)),
                pl.BlockSpec((1, 1, 1, tn), lambda j, n, i: (n, i, 0, j)),
            ),
            scratch_shapes=[
                pltpu.VMEM((th + 2, Wp8 + 16, Cin), jnp.bfloat16),
                pltpu.VMEM((th + 2, Wp8, 3 * Cin), jnp.bfloat16),
                pltpu.VMEM((th * Wp8, tn), jnp.float32),
            ],
        ),
        compiler_params=pltpu.CompilerParams(
            dimension_semantics=("parallel", "parallel", "parallel"),
            vmem_limit_bytes=vmem_limit),
    )(x_pad, x_pad, x_pad, w3, b_p, scale_in, shift_in)
    return y, s, ss


def _bn_scale_shift(s, ss, gamma, beta, cout_pad, count, eps=1e-5):
    # Finish training-mode BN statistics from the fused partial sums (tiny reduction).
    tot = jnp.sum(s, axis=(0, 1, 2))
    tot2 = jnp.sum(ss, axis=(0, 1, 2))
    mean = tot / count
    var = jnp.maximum(tot2 / count - mean * mean, 0.0)      # biased variance (PyTorch)
    g = jnp.zeros((cout_pad,), jnp.float32).at[:gamma.shape[0]].set(gamma.astype(jnp.float32))
    bt = jnp.zeros((cout_pad,), jnp.float32).at[:beta.shape[0]].set(beta.astype(jnp.float32))
    scale = g * lax.rsqrt(var + eps)
    shift = bt - mean * scale
    return scale, shift


# ----------------------------------------------------------------------------
# double_conv forward
# ----------------------------------------------------------------------------

def double_conv_forward(params, x_nchw, eps=1e-5, row_tile=None, tn=128):
    """Conv3x3(pad1)+bias -> BN(batch stats) -> ReLU, twice.  Input/output NCHW f32."""
    N, _, H, W = x_nchw.shape
    count = float(N * H * W)

    cout1 = params["conv1"]["w"].shape[0]
    cout2 = params["conv2"]["w"].shape[0]
    cp1 = _round_up(cout1, 128)
    cp2 = _round_up(cout2, 128)
    # TODO(synk): on v6e/v7x tn=256 (when cout_pad % 256 == 0) is preferable; keep the
    # v5e-safe tn=128 default since chip kind is not auto-detected here.
    if row_tile is None:
        th, _, HP, Wp8 = _pick_row_tile(H, W, cp1, tn)
    else:
        th = row_tile
        Wp8 = _round_up(W + 2, 8)
        HP = _round_up(H + 2, th)

    # One NCHW->NHWC transpose + bf16 cast + spatial pad at the boundary (the raw input
    # is tiny); everything downstream stays in the shared padded NHWC layout.
    x = jnp.transpose(x_nchw, (0, 2, 3, 1)).astype(jnp.bfloat16)
    x_pad = jnp.pad(x, ((0, 0), (1, HP - H - 1), (1, Wp8 - W - 1), (0, 0)))

    # Block 1: conv + bias, fused BN batch-stat partials.
    y1, s1, ss1 = conv3x3_bias_bnstats(x_pad, params["conv1"]["w"], params["conv1"]["b"],
                                       cp1, H=H, W=W, th=th, tn=tn)
    scale1, shift1 = _bn_scale_shift(s1, ss1, params["bn1"]["gamma"], params["bn1"]["beta"],
                                     cp1, count, eps)

    # Block 2: BN1+ReLU fused into the conv's input path; y1 is already pre-padded so
    # there is no jnp.pad round trip and no standalone BN/ReLU pass.
    y2, s2, ss2 = conv3x3_bias_bnstats(y1, params["conv2"]["w"], params["conv2"]["b"],
                                       cp2, H=H, W=W, th=th, tn=tn,
                                       scale_in=scale1, shift_in=shift1)
    scale2, shift2 = _bn_scale_shift(s2, ss2, params["bn2"]["gamma"], params["bn2"]["beta"],
                                     cp2, count, eps)

    # Final BN2+ReLU fused (by XLA) with the interior slice + NHWC->NCHW writeback.
    y2i = y2[:, 1:H + 1, 1:W + 1, :cout2].astype(jnp.float32)
    out = jnp.maximum(y2i * scale2[:cout2] + shift2[:cout2], 0.0)
    return jnp.transpose(out, (0, 3, 1, 2))


# ----------------------------------------------------------------------------
# Params + pure-JAX reference
# ----------------------------------------------------------------------------

def init_double_conv_params(key, in_ch, out_ch):
    k1, k2 = jax.random.split(key)

    def conv_p(k, cout, cin):
        std = math.sqrt(2.0 / (cin * 9))
        return {"w": jax.random.normal(k, (cout, cin, 3, 3), jnp.float32) * std,
                "b": jnp.zeros((cout,), jnp.float32)}

    def bn_p(c):
        return {"gamma": jnp.ones((c,), jnp.float32), "beta": jnp.zeros((c,), jnp.float32)}

    return {"conv1": conv_p(k1, out_ch, in_ch), "bn1": bn_p(out_ch),
            "conv2": conv_p(k2, out_ch, out_ch), "bn2": bn_p(out_ch)}


def double_conv_reference(params, x, eps=1e-5):
    def conv(x, w, b):
        y = lax.conv_general_dilated(x, w, (1, 1), ((1, 1), (1, 1)),
                                     dimension_numbers=("NCHW", "OIHW", "NCHW"))
        return y + b[None, :, None, None]

    def bn_relu(x, gamma, beta):
        mean = jnp.mean(x, axis=(0, 2, 3), keepdims=True)
        var = jnp.mean((x - mean) ** 2, axis=(0, 2, 3), keepdims=True)
        y = (x - mean) * lax.rsqrt(var + eps)
        y = y * gamma[None, :, None, None] + beta[None, :, None, None]
        return jnp.maximum(y, 0.0)

    x = bn_relu(conv(x, params["conv1"]["w"], params["conv1"]["b"]),
                params["bn1"]["gamma"], params["bn1"]["beta"])
    x = bn_relu(conv(x, params["conv2"]["w"], params["conv2"]["b"]),
                params["bn2"]["gamma"], params["bn2"]["beta"])
    return x


# ----------------------------------------------------------------------------
# Main
# ----------------------------------------------------------------------------

if __name__ == "__main__":
    B, C, H, W = 2, 4, 16, 16
    OUT_CH = 32

    key = jax.random.PRNGKey(0)
    k_param, k_x = jax.random.split(key)
    params = init_double_conv_params(k_param, C, OUT_CH)
    x = jax.random.normal(k_x, (B, C, H, W), jnp.float32)

    fwd = jax.jit(double_conv_forward)
    out = fwd(params, x)
    jax.block_until_ready(out)

    assert out.shape == (B, OUT_CH, H, W)
    assert bool(jnp.all(jnp.isfinite(out)))
    assert bool(jnp.all(out >= 0.0))                       # ReLU output

    ref = double_conv_reference(params, x)
    err = float(jnp.max(jnp.abs(out - ref)))
    assert err < 1e-1, f"mismatch vs reference: max abs err {err}"  # bf16 MXU tolerance

    print("KERNEL_OK")
</pallas_src>

<mosaic_0001>
module attributes {stable_mosaic.version = 11 : i64} {
  func.func @_conv3x3_kernel(%arg0: i32, %arg1: i32, %arg2: i32, %arg3: memref<1x9x24x4xbf16, #tpu.memory_space<vmem>>, %arg4: memref<1x1x24x4xbf16, #tpu.memory_space<vmem>>, %arg5: memref<1x1x24x4xbf16, #tpu.memory_space<vmem>>, %arg6: memref<3x12x128xbf16, #tpu.memory_space<vmem>>, %arg7: memref<1x128xf32, #tpu.memory_space<vmem>>, %arg8: memref<1x4xf32, #tpu.memory_space<vmem>>, %arg9: memref<1x4xf32, #tpu.memory_space<vmem>>, %arg10: memref<1x9x24x128xbf16, #tpu.memory_space<vmem>>, %arg11: memref<1x1x1x128xf32, #tpu.memory_space<vmem>>, %arg12: memref<1x1x1x128xf32, #tpu.memory_space<vmem>>, %arg13: memref<11x40x4xbf16, #tpu.memory_space<vmem>>, %arg14: memref<11x24x12xbf16, #tpu.memory_space<vmem>>, %arg15: memref<216x128xf32, #tpu.memory_space<vmem>>) attributes {dimension_semantics = [#tpu.dimension_semantics<parallel>, #tpu.dimension_semantics<parallel>, #tpu.dimension_semantics<parallel>], iteration_bounds = array<i64: 1, 2, 2>, scalar_prefetch = 0 : i64, scratch_operands = 3 : i64, tpu.core_type = #tpu.core_type<tc>, window_params = [{transform_indices = @transform_0, window_bounds = array<i64: 1, 9, 24, 4>}, {transform_indices = @transform_1, window_bounds = array<i64: 1, 1, 24, 4>}, {transform_indices = @transform_2, window_bounds = array<i64: 1, 1, 24, 4>}, {transform_indices = @transform_3, window_bounds = array<i64: 3, 12, 128>}, {transform_indices = @transform_4, window_bounds = array<i64: 1, 128>}, {pipeline_mode = #tpu.pipeline_mode<synchronous>, transform_indices = @transform_5, window_bounds = array<i64: 1, 4>}, {pipeline_mode = #tpu.pipeline_mode<synchronous>, transform_indices = @transform_6, window_bounds = array<i64: 1, 4>}, {transform_indices = @transform_7, window_bounds = array<i64: 1, 9, 24, 128>}, {transform_indices = @transform_8, window_bounds = array<i64: 1, 1, 1, 128>}, {transform_indices = @transform_9, window_bounds = array<i64: 1, 1, 1, 128>}]} {
    %c0 = arith.constant 0 : index
    %c0_0 = arith.constant 0 : index
    %c0_1 = arith.constant 0 : index
    %c0_2 = arith.constant 0 : index
    %0 = vector.load %arg4[%c0, %c0_0, %c0_1, %c0_2] : memref<1x1x24x4xbf16, #tpu.memory_space<vmem>>, vector<1x1x24x4xbf16>
    %1 = vector.shape_cast %0 : vector<1x1x24x4xbf16> to vector<1x24x4xbf16>
    %c0_3 = arith.constant 0 : index
    %c8 = arith.constant 8 : index
    %c0_4 = arith.constant 0 : index
    %2 = vector.load %arg13[%c0_3, %c8, %c0_4] : memref<11x40x4xbf16, #tpu.memory_space<vmem>>, vector<1x24x4xbf16>
    tpu.vector_store %arg13[%c0_3, %c8, %c0_4], %1 {strides = array<i32>} : memref<11x40x4xbf16, #tpu.memory_space<vmem>>, vector<1x24x4xbf16>,
    %c0_5 = arith.constant 0 : index
    %c0_6 = arith.constant 0 : index
    %c0_7 = arith.constant 0 : index
    %c0_8 = arith.constant 0 : index
    %3 = vector.load %arg3[%c0_5, %c0_6, %c0_7, %c0_8] : memref<1x9x24x4xbf16, #tpu.memory_space<vmem>>, vector<1x9x24x4xbf16>
    %4 = vector.shape_cast %3 : vector<1x9x24x4xbf16> to vector<9x24x4xbf16>
    %c1 = arith.constant 1 : index
    %c8_9 = arith.constant 8 : index
    %c0_10 = arith.constant 0 : index
    %5 = vector.load %arg13[%c1, %c8_9, %c0_10] : memref<11x40x4xbf16, #tpu.memory_space<vmem>>, vector<9x24x4xbf16>
    tpu.vector_store %arg13[%c1, %c8_9, %c0_10], %4 {strides = array<i32>} : memref<11x40x4xbf16, #tpu.memory_space<vmem>>, vector<9x24x4xbf16>,
    %c0_11 = arith.constant 0 : index
    %c0_12 = arith.constant 0 : index
    %c0_13 = arith.constant 0 : index
    %c0_14 = arith.constant 0 : index
    %6 = vector.load %arg5[%c0_11, %c0_12, %c0_13, %c0_14] : memref<1x1x24x4xbf16, #tpu.memory_space<vmem>>, vector<1x1x24x4xbf16>
    %7 = vector.shape_cast %6 : vector<1x1x24x4xbf16> to vector<1x24x4xbf16>
    %c10 = arith.constant 10 : index
    %c8_15 = arith.constant 8 : index
    %c0_16 = arith.constant 0 : index
    %8 = vector.load %arg13[%c10, %c8_15, %c0_16] : memref<11x40x4xbf16, #tpu.memory_space<vmem>>, vector<1x24x4xbf16>
    tpu.vector_store %arg13[%c10, %c8_15, %c0_16], %7 {strides = array<i32>} : memref<11x40x4xbf16, #tpu.memory_space<vmem>>, vector<1x24x4xbf16>,
    %c0_17 = arith.constant 0 : index
    %c7 = arith.constant 7 : index
    %c0_18 = arith.constant 0 : index
    %9 = vector.load %arg13[%c0_17, %c7, %c0_18] : memref<11x40x4xbf16, #tpu.memory_space<vmem>>, vector<11x24x4xbf16>
    %c0_19 = arith.constant 0 : index
    %c8_20 = arith.constant 8 : index
    %c0_21 = arith.constant 0 : index
    %10 = vector.load %arg13[%c0_19, %c8_20, %c0_21] : memref<11x40x4xbf16, #tpu.memory_space<vmem>>, vector<11x24x4xbf16>
    %c0_22 = arith.constant 0 : index
    %c9 = arith.constant 9 : index
    %c0_23 = arith.constant 0 : index
    %11 = vector.load %arg13[%c0_22, %c9, %c0_23] : memref<11x40x4xbf16, #tpu.memory_space<vmem>>, vector<11x24x4xbf16>
    %12 = tpu.concatenate %9, %10, %11 in 2 : vector<11x24x4xbf16>, vector<11x24x4xbf16>, vector<11x24x4xbf16> -> vector<11x24x12xbf16>
    %c0_24 = arith.constant 0 : index
    %c0_25 = arith.constant 0 : index
    %c0_26 = arith.constant 0 : index
    %13 = vector.load %arg14[%c0_24, %c0_25, %c0_26] : memref<11x24x12xbf16, #tpu.memory_space<vmem>>, vector<11x24x12xbf16>
    tpu.vector_store %arg14[%c0_24, %c0_25, %c0_26], %12 {strides = array<i32>} : memref<11x24x12xbf16, #tpu.memory_space<vmem>>, vector<11x24x12xbf16>,
    %c0_27 = arith.constant 0 : index
    %c0_28 = arith.constant 0 : index
    %c0_29 = arith.constant 0 : index
    %14 = vector.load %arg14[%c0_27, %c0_28, %c0_29] : memref<11x24x12xbf16, #tpu.memory_space<vmem>>, vector<9x24x12xbf16>
    %15 = vector.shape_cast %14 : vector<9x24x12xbf16> to vector<216x12xbf16>
    %c0_30 = arith.constant 0 : index
    %c0_31 = arith.constant 0 : index
    %c0_32 = arith.constant 0 : index
    %16 = vector.load %arg6[%c0_30, %c0_31, %c0_32] : memref<3x12x128xbf16, #tpu.memory_space<vmem>>, vector<1x12x128xbf16>
    %17 = vector.shape_cast %16 : vector<1x12x128xbf16> to vector<12x128xbf16>
    %cst = arith.constant dense<0.000000e+00> : vector<216x128xf32>
    %18 = tpu.matmul %15, %17, %cst {dimension_numbers = #tpu.dot_dimension_numbers<[1], [0], [0], [1], [0, 0, 1, 1], [], []>} : vector<216x12xbf16>, vector<12x128xbf16>, vector<216x128xf32> -> vector<216x128xf32>
    %c0_33 = arith.constant 0 : index
    %c0_34 = arith.constant 0 : index
    %19 = vector.load %arg15[%c0_33, %c0_34] : memref<216x128xf32, #tpu.memory_space<vmem>>, vector<216x128xf32>
    tpu.vector_store %arg15[%c0_33, %c0_34], %18 {strides = array<i32>} : memref<216x128xf32, #tpu.memory_space<vmem>>, vector<216x128xf32>,
    %c1_35 = arith.constant 1 : index
    %c0_36 = arith.constant 0 : index
    %c0_37 = arith.constant 0 : index
    %20 = vector.load %arg14[%c1_35, %c0_36, %c0_37] : memref<11x24x12xbf16, #tpu.memory_space<vmem>>, vector<9x24x12xbf16>
    %21 = vector.shape_cast %20 : vector<9x24x12xbf16> to vector<216x12xbf16>
    %c1_38 = arith.constant 1 : index
    %c0_39 = arith.constant 0 : index
    %c0_40 = arith.constant 0 : index
    %22 = vector.load %arg6[%c1_38, %c0_39, %c0_40] : memref<3x12x128xbf16, #tpu.memory_space<vmem>>, vector<1x12x128xbf16>
    %23 = vector.shape_cast %22 : vector<1x12x128xbf16> to vector<12x128xbf16>
    %cst_41 = arith.constant dense<0.000000e+00> : vector<216x128xf32>
    %24 = tpu.matmul %21, %23, %cst_41 {dimension_numbers = #tpu.dot_dimension_numbers<[1], [0], [0], [1], [0, 0, 1, 1], [], []>} : vector<216x12xbf16>, vector<12x128xbf16>, vector<216x128xf32> -> vector<216x128xf32>
    %c0_42 = arith.constant 0 : index
    %c0_43 = arith.constant 0 : index
    %25 = vector.load %arg15[%c0_42, %c0_43] : memref<216x128xf32, #tpu.memory_space<vmem>>, vector<216x128xf32>
    %26 = arith.addf %25, %24 : vector<216x128xf32>
    %c0_44 = arith.constant 0 : index
    %c0_45 = arith.constant 0 : index
    %27 = vector.load %arg15[%c0_44, %c0_45] : memref<216x128xf32, #tpu.memory_space<vmem>>, vector<216x128xf32>
    tpu.vector_store %arg15[%c0_44, %c0_45], %26 {strides = array<i32>} : memref<216x128xf32, #tpu.memory_space<vmem>>, vector<216x128xf32>,
    %c2 = arith.constant 2 : index
    %c0_46 = arith.constant 0 : index
    %c0_47 = arith.constant 0 : index
    %28 = vector.load %arg14[%c2, %c0_46, %c0_47] : memref<11x24x12xbf16, #tpu.memory_space<vmem>>, vector<9x24x12xbf16>
    %29 = vector.shape_cast %28 : vector<9x24x12xbf16> to vector<216x12xbf16>
    %c2_48 = arith.constant 2 : index
    %c0_49 = arith.constant 0 : index
    %c0_50 = arith.constant 0 : index
    %30 = vector.load %arg6[%c2_48, %c0_49, %c0_50] : memref<3x12x128xbf16, #tpu.memory_space<vmem>>, vector<1x12x128xbf16>
    %31 = vector.shape_cast %30 : vector<1x12x128xbf16> to vector<12x128xbf16>
    %cst_51 = arith.constant dense<0.000000e+00> : vector<216x128xf32>
    %32 = tpu.matmul %29, %31, %cst_51 {dimension_numbers = #tpu.dot_dimension_numbers<[1], [0], [0], [1], [0, 0, 1, 1], [], []>} : vector<216x12xbf16>, vector<12x128xbf16>, vector<216x128xf32> -> vector<216x128xf32>
    %c0_52 = arith.constant 0 : index
    %c0_53 = arith.constant 0 : index
    %33 = vector.load %arg15[%c0_52, %c0_53] : memref<216x128xf32, #tpu.memory_space<vmem>>, vector<216x128xf32>
    %34 = arith.addf %33, %32 : vector<216x128xf32>
    %c0_54 = arith.constant 0 : index
    %c0_55 = arith.constant 0 : index
    %35 = vector.load %arg15[%c0_54, %c0_55] : memref<216x128xf32, #tpu.memory_space<vmem>>, vector<216x128xf32>
    tpu.vector_store %arg15[%c0_54, %c0_55], %34 {strides = array<i32>} : memref<216x128xf32, #tpu.memory_space<vmem>>, vector<216x128xf32>,
    %36 = tpu.iota {dimensions = array<i32: 0>} : vector<9x24x1xi32>
    %c9_i32 = arith.constant 9 : i32
    %37 = arith.muli %arg2, %c9_i32 : i32
    %38 = vector.broadcast %37 : i32 to vector<9x24x1xi32>
    %39 = arith.addi %36, %38 : vector<9x24x1xi32>
    %40 = tpu.iota {dimensions = array<i32: 1>} : vector<9x24x1xi32>
    %c1_i32 = arith.constant 1 : i32
    %41 = vector.broadcast %c1_i32 : i32 to vector<9x24x1xi32>
    %42 = arith.cmpi sge, %39, %41 : vector<9x24x1xi32>
    %c16_i32 = arith.constant 16 : i32
    %43 = vector.broadcast %c16_i32 : i32 to vector<9x24x1xi32>
    %44 = arith.cmpi sle, %39, %43 : vector<9x24x1xi32>
    %45 = arith.andi %42, %44 : vector<9x24x1xi1>
    %c1_i32_56 = arith.constant 1 : i32
    %46 = vector.broadcast %c1_i32_56 : i32 to vector<9x24x1xi32>
    %47 = arith.cmpi sge, %40, %46 : vector<9x24x1xi32>
    %48 = arith.andi %45, %47 : vector<9x24x1xi1>
    %c16_i32_57 = arith.constant 16 : i32
    %49 = vector.broadcast %c16_i32_57 : i32 to vector<9x24x1xi32>
    %50 = arith.cmpi sle, %40, %49 : vector<9x24x1xi32>
    %51 = arith.andi %48, %50 : vector<9x24x1xi1>
    %52 = vector.shape_cast %51 : vector<9x24x1xi1> to vector<216x1xi1>
    %c0_58 = arith.constant 0 : index
    %c0_59 = arith.constant 0 : index
    %53 = vector.load %arg15[%c0_58, %c0_59] : memref<216x128xf32, #tpu.memory_space<vmem>>, vector<216x128xf32>
    %c0_60 = arith.constant 0 : index
    %c0_61 = arith.constant 0 : index
    %54 = vector.load %arg7[%c0_60, %c0_61] : memref<1x128xf32, #tpu.memory_space<vmem>>, vector<1x128xf32>
    %55 = vector.broadcast %54 : vector<1x128xf32> to vector<216x128xf32>
    %56 = arith.addf %53, %55 : vector<216x128xf32>
    %cst_62 = arith.constant 0.000000e+00 : f32
    %57 = vector.shape_cast %52 : vector<216x1xi1> to vector<216x1xi1>
    %58 = vector.broadcast %57 : vector<216x1xi1> to vector<216x128xi1>
    %59 = vector.broadcast %cst_62 : f32 to vector<216x128xf32>
    %60 = arith.select %58, %56, %59 : vector<216x128xi1>, vector<216x128xf32>
    %61 = vector.shape_cast %60 : vector<216x128xf32> to vector<9x24x128xf32>
    %62 = arith.truncf %61 : vector<9x24x128xf32> to vector<9x24x128xbf16>
    %c0_63 = arith.constant 0 : index
    %c0_64 = arith.constant 0 : index
    %c0_65 = arith.constant 0 : index
    %c0_66 = arith.constant 0 : index
    %63 = vector.load %arg10[%c0_63, %c0_64, %c0_65, %c0_66] : memref<1x9x24x128xbf16, #tpu.memory_space<vmem>>, vector<1x9x24x128xbf16>
    %64 = vector.shape_cast %63 : vector<1x9x24x128xbf16> to vector<9x24x128xbf16>
    %65 = vector.shape_cast %62 : vector<9x24x128xbf16> to vector<1x9x24x128xbf16>
    tpu.vector_store %arg10[%c0_63, %c0_64, %c0_65, %c0_66], %65 {strides = array<i32>} : memref<1x9x24x128xbf16, #tpu.memory_space<vmem>>, vector<1x9x24x128xbf16>,
    %cst_67 = arith.constant dense<0.000000e+00> : vector<128xf32>
    %66 = vector.multi_reduction <add>, %60, %cst_67 [0] : vector<216x128xf32> to vector<128xf32>
    %67 = vector.shape_cast %66 : vector<128xf32> to vector<1x128xf32>
    %c0_68 = arith.constant 0 : index
    %c0_69 = arith.constant 0 : index
    %c0_70 = arith.constant 0 : index
    %c0_71 = arith.constant 0 : index
    %68 = vector.load %arg11[%c0_68, %c0_69, %c0_70, %c0_71] : memref<1x1x1x128xf32, #tpu.memory_space<vmem>>, vector<1x1x1x128xf32>
    %69 = vector.shape_cast %68 : vector<1x1x1x128xf32> to vector<1x128xf32>
    %70 = vector.shape_cast %67 : vector<1x128xf32> to vector<1x1x1x128xf32>
    tpu.vector_store %arg11[%c0_68, %c0_69, %c0_70, %c0_71], %70 {strides = array<i32>} : memref<1x1x1x128xf32, #tpu.memory_space<vmem>>, vector<1x1x1x128xf32>,
    %71 = arith.mulf %60, %60 : vector<216x128xf32>
    %cst_72 = arith.constant dense<0.000000e+00> : vector<128xf32>
    %72 = vector.multi_reduction <add>, %71, %cst_72 [0] : vector<216x128xf32> to vector<128xf32>
    %73 = vector.shape_cast %72 : vector<128xf32> to vector<1x128xf32>
    %c0_73 = arith.constant 0 : index
    %c0_74 = arith.constant 0 : index
    %c0_75 = arith.constant 0 : index
    %c0_76 = arith.constant 0 : index
    %74 = vector.load %arg12[%c0_73, %c0_74, %c0_75, %c0_76] : memref<1x1x1x128xf32, #tpu.memory_space<vmem>>, vector<1x1x1x128xf32>
    %75 = vector.shape_cast %74 : vector<1x1x1x128xf32> to vector<1x128xf32>
    %76 = vector.shape_cast %73 : vector<1x128xf32> to vector<1x1x1x128xf32>
    tpu.vector_store %arg12[%c0_73, %c0_74, %c0_75, %c0_76], %76 {strides = array<i32>} : memref<1x1x1x128xf32, #tpu.memory_space<vmem>>, vector<1x1x1x128xf32>,
    return
  }
  func.func @transform_0(%arg0: i32, %arg1: i32, %arg2: i32) -> (i32, i32, i32, i32) {
    %c0_i32 = arith.constant 0 : i32
    %c0_i32_0 = arith.constant 0 : i32
    %c0_i32_1 = arith.constant 0 : i32
    return %arg1, %arg2, %c0_i32, %c0_i32_0 : i32, i32, i32, i32
  }
  func.func @transform_1(%arg0: i32, %arg1: i32, %arg2: i32) -> (i32, i32, i32, i32) {
    %c9_i32 = arith.constant 9 : i32
    %0 = arith.muli %arg2, %c9_i32 : i32
    %c1_i32 = arith.constant 1 : i32
    %1 = arith.subi %0, %c1_i32 : i32
    %c0_i32 = arith.constant 0 : i32
    %2 = arith.maxsi %1, %c0_i32 : i32
    %c0_i32_0 = arith.constant 0 : i32
    %c0_i32_1 = arith.constant 0 : i32
    %c0_i32_2 = arith.constant 0 : i32
    return %arg1, %2, %c0_i32_0, %c0_i32_1 : i32, i32, i32, i32
  }
  func.func @transform_2(%arg0: i32, %arg1: i32, %arg2: i32) -> (i32, i32, i32, i32) {
    %c9_i32 = arith.constant 9 : i32
    %0 = arith.muli %arg2, %c9_i32 : i32
    %c9_i32_0 = arith.constant 9 : i32
    %1 = arith.addi %0, %c9_i32_0 : i32
    %c17_i32 = arith.constant 17 : i32
    %2 = arith.minsi %1, %c17_i32 : i32
    %c0_i32 = arith.constant 0 : i32
    %c0_i32_1 = arith.constant 0 : i32
    %c0_i32_2 = arith.constant 0 : i32
    return %arg1, %2, %c0_i32, %c0_i32_1 : i32, i32, i32, i32
  }
  func.func @transform_3(%arg0: i32, %arg1: i32, %arg2: i32) -> (i32, i32, i32) {
    %c0_i32 = arith.constant 0 : i32
    %c0_i32_0 = arith.constant 0 : i32
    %c0_i32_1 = arith.constant 0 : i32
    return %c0_i32, %c0_i32_0, %arg0 : i32, i32, i32
  }
  func.func @transform_4(%arg0: i32, %arg1: i32, %arg2: i32) -> (i32, i32) {
    %c0_i32 = arith.constant 0 : i32
    %c0_i32_0 = arith.constant 0 : i32
    return %c0_i32, %arg0 : i32, i32
  }
  func.func @transform_5(%arg0: i32, %arg1: i32, %arg2: i32) -> (i32, i32) {
    %c0_i32 = arith.constant 0 : i32
    %c0_i32_0 = arith.constant 0 : i32
    %c0_i32_1 = arith.constant 0 : i32
    return %c0_i32, %c0_i32_0 : i32, i32
  }
  func.func @transform_6(%arg0: i32, %arg1: i32, %arg2: i32) -> (i32, i32) {
    %c0_i32 = arith.constant 0 : i32
    %c0_i32_0 = arith.constant 0 : i32
    %c0_i32_1 = arith.constant 0 : i32
    return %c0_i32, %c0_i32_0 : i32, i32
  }
  func.func @transform_7(%arg0: i32, %arg1: i32, %arg2: i32) -> (i32, i32, i32, i32) {
    %c0_i32 = arith.constant 0 : i32
    %c0_i32_0 = arith.constant 0 : i32
    return %arg1, %arg2, %c0_i32, %arg0 : i32, i32, i32, i32
  }
  func.func @transform_8(%arg0: i32, %arg1: i32, %arg2: i32) -> (i32, i32, i32, i32) {
    %c0_i32 = arith.constant 0 : i32
    %c0_i32_0 = arith.constant 0 : i32
    return %arg1, %arg2, %c0_i32, %arg0 : i32, i32, i32, i32
  }
  func.func @transform_9(%arg0: i32, %arg1: i32, %arg2: i32) -> (i32, i32, i32, i32) {
    %c0_i32 = arith.constant 0 : i32
    %c0_i32_0 = arith.constant 0 : i32
    return %arg1, %arg2, %c0_i32, %arg0 : i32, i32, i32, i32
  }
}

module attributes {stable_mosaic.version = 11 : i64} {
  func.func @_conv3x3_kernel(%arg0: i32, %arg1: i32, %arg2: i32, %arg3: memref<1x9x24x128xbf16, #tpu.memory_space<vmem>>, %arg4: memref<1x1x24x128xbf16, #tpu.memory_space<vmem>>, %arg5: memref<1x1x24x128xbf16, #tpu.memory_space<vmem>>, %arg6: memref<3x384x128xbf16, #tpu.memory_space<vmem>>, %arg7: memref<1x128xf32, #tpu.memory_space<vmem>>, %arg8: memref<1x128xf32, #tpu.memory_space<vmem>>, %arg9: memref<1x128xf32, #tpu.memory_space<vmem>>, %arg10: memref<1x9x24x128xbf16, #tpu.memory_space<vmem>>, %arg11: memref<1x1x1x128xf32, #tpu.memory_space<vmem>>, %arg12: memref<1x1x1x128xf32, #tpu.memory_space<vmem>>, %arg13: memref<11x40x128xbf16, #tpu.memory_space<vmem>>, %arg14: memref<11x24x384xbf16, #tpu.memory_space<vmem>>, %arg15: memref<216x128xf32, #tpu.memory_space<vmem>>) attributes {dimension_semantics = [#tpu.dimension_semantics<parallel>, #tpu.dimension_semantics<parallel>, #tpu.dimension_semantics<parallel>], iteration_bounds = array<i64: 1, 2, 2>, scalar_prefetch = 0 : i64, scratch_operands = 3 : i64, tpu.core_type = #tpu.core_type<tc>, window_params = [{transform_indices = @transform_0, window_bounds = array<i64: 1, 9, 24, 128>}, {transform_indices = @transform_1, window_bounds = array<i64: 1, 1, 24, 128>}, {transform_indices = @transform_2, window_bounds = array<i64: 1, 1, 24, 128>}, {transform_indices = @transform_3, window_bounds = array<i64: 3, 384, 128>}, {transform_indices = @transform_4, window_bounds = array<i64: 1, 128>}, {pipeline_mode = #tpu.pipeline_mode<synchronous>, transform_indices = @transform_5, window_bounds = array<i64: 1, 128>}, {pipeline_mode = #tpu.pipeline_mode<synchronous>, transform_indices = @transform_6, window_bounds = array<i64: 1, 128>}, {transform_indices = @transform_7, window_bounds = array<i64: 1, 9, 24, 128>}, {transform_indices = @transform_8, window_bounds = array<i64: 1, 1, 1, 128>}, {transform_indices = @transform_9, window_bounds = array<i64: 1, 1, 1, 128>}]} {
    %c9_i32 = arith.constant 9 : i32
    %0 = arith.muli %arg2, %c9_i32 : i32
    %c1_i32 = arith.constant 1 : i32
    %1 = arith.subi %0, %c1_i32 : i32
    %c0 = arith.constant 0 : index
    %c0_0 = arith.constant 0 : index
    %c0_1 = arith.constant 0 : index
    %c0_2 = arith.constant 0 : index
    %2 = vector.load %arg4[%c0, %c0_0, %c0_1, %c0_2] : memref<1x1x24x128xbf16, #tpu.memory_space<vmem>>, vector<1x1x24x128xbf16>
    %3 = vector.shape_cast %2 : vector<1x1x24x128xbf16> to vector<1x24x128xbf16>
    %4 = arith.extf %3 : vector<1x24x128xbf16> to vector<1x24x128xf32>
    %c0_3 = arith.constant 0 : index
    %c0_4 = arith.constant 0 : index
    %5 = vector.load %arg8[%c0_3, %c0_4] : memref<1x128xf32, #tpu.memory_space<vmem>>, vector<1x128xf32>
    %6 = vector.shape_cast %5 : vector<1x128xf32> to vector<128xf32>
    %7 = vector.shape_cast %6 : vector<128xf32> to vector<1x1x128xf32>
    %8 = vector.broadcast %7 : vector<1x1x128xf32> to vector<1x24x128xf32>
    %9 = arith.mulf %4, %8 : vector<1x24x128xf32>
    %c0_5 = arith.constant 0 : index
    %c0_6 = arith.constant 0 : index
    %10 = vector.load %arg9[%c0_5, %c0_6] : memref<1x128xf32, #tpu.memory_space<vmem>>, vector<1x128xf32>
    %11 = vector.shape_cast %10 : vector<1x128xf32> to vector<128xf32>
    %12 = vector.shape_cast %11 : vector<128xf32> to vector<1x1x128xf32>
    %13 = vector.broadcast %12 : vector<1x1x128xf32> to vector<1x24x128xf32>
    %14 = arith.addf %9, %13 : vector<1x24x128xf32>
    %cst = arith.constant 0.000000e+00 : f32
    %15 = vector.broadcast %cst : f32 to vector<1x24x128xf32>
    %16 = arith.maximumf %14, %15 : vector<1x24x128xf32>
    %17 = tpu.iota {dimensions = array<i32: 0>} : vector<1x24x1xi32>
    %18 = vector.broadcast %1 : i32 to vector<1x24x1xi32>
    %19 = arith.addi %17, %18 : vector<1x24x1xi32>
    %20 = tpu.iota {dimensions = array<i32: 1>} : vector<1x24x1xi32>
    %c1_i32_7 = arith.constant 1 : i32
    %21 = vector.broadcast %c1_i32_7 : i32 to vector<1x24x1xi32>
    %22 = arith.cmpi sge, %19, %21 : vector<1x24x1xi32>
    %c16_i32 = arith.constant 16 : i32
    %23 = vector.broadcast %c16_i32 : i32 to vector<1x24x1xi32>
    %24 = arith.cmpi sle, %19, %23 : vector<1x24x1xi32>
    %25 = arith.andi %22, %24 : vector<1x24x1xi1>
    %c1_i32_8 = arith.constant 1 : i32
    %26 = vector.broadcast %c1_i32_8 : i32 to vector<1x24x1xi32>
    %27 = arith.cmpi sge, %20, %26 : vector<1x24x1xi32>
    %28 = arith.andi %25, %27 : vector<1x24x1xi1>
    %c16_i32_9 = arith.constant 16 : i32
    %29 = vector.broadcast %c16_i32_9 : i32 to vector<1x24x1xi32>
    %30 = arith.cmpi sle, %20, %29 : vector<1x24x1xi32>
    %31 = arith.andi %28, %30 : vector<1x24x1xi1>
    %cst_10 = arith.constant 0.000000e+00 : f32
    %32 = vector.shape_cast %31 : vector<1x24x1xi1> to vector<1x24x1xi1>
    %33 = vector.broadcast %32 : vector<1x24x1xi1> to vector<1x24x128xi1>
    %34 = vector.broadcast %cst_10 : f32 to vector<1x24x128xf32>
    %35 = arith.select %33, %16, %34 : vector<1x24x128xi1>, vector<1x24x128xf32>
    %36 = arith.truncf %35 : vector<1x24x128xf32> to vector<1x24x128xbf16>
    %c0_11 = arith.constant 0 : index
    %c8 = arith.constant 8 : index
    %c0_12 = arith.constant 0 : index
    %37 = vector.load %arg13[%c0_11, %c8, %c0_12] : memref<11x40x128xbf16, #tpu.memory_space<vmem>>, vector<1x24x128xbf16>
    tpu.vector_store %arg13[%c0_11, %c8, %c0_12], %36 {strides = array<i32>} : memref<11x40x128xbf16, #tpu.memory_space<vmem>>, vector<1x24x128xbf16>,
    %c0_13 = arith.constant 0 : index
    %c0_14 = arith.constant 0 : index
    %c0_15 = arith.constant 0 : index
    %c0_16 = arith.constant 0 : index
    %38 = vector.load %arg3[%c0_13, %c0_14, %c0_15, %c0_16] : memref<1x9x24x128xbf16, #tpu.memory_space<vmem>>, vector<1x9x24x128xbf16>
    %39 = vector.shape_cast %38 : vector<1x9x24x128xbf16> to vector<9x24x128xbf16>
    %c1_i32_17 = arith.constant 1 : i32
    %40 = arith.addi %1, %c1_i32_17 : i32
    %41 = arith.extf %39 : vector<9x24x128xbf16> to vector<9x24x128xf32>
    %c0_18 = arith.constant 0 : index
    %c0_19 = arith.constant 0 : index
    %42 = vector.load %arg8[%c0_18, %c0_19] : memref<1x128xf32, #tpu.memory_space<vmem>>, vector<1x128xf32>
    %43 = vector.shape_cast %42 : vector<1x128xf32> to vector<128xf32>
    %44 = vector.shape_cast %43 : vector<128xf32> to vector<1x1x128xf32>
    %45 = vector.broadcast %44 : vector<1x1x128xf32> to vector<9x24x128xf32>
    %46 = arith.mulf %41, %45 : vector<9x24x128xf32>
    %c0_20 = arith.constant 0 : index
    %c0_21 = arith.constant 0 : index
    %47 = vector.load %arg9[%c0_20, %c0_21] : memref<1x128xf32, #tpu.memory_space<vmem>>, vector<1x128xf32>
    %48 = vector.shape_cast %47 : vector<1x128xf32> to vector<128xf32>
    %49 = vector.shape_cast %48 : vector<128xf32> to vector<1x1x128xf32>
    %50 = vector.broadcast %49 : vector<1x1x128xf32> to vector<9x24x128xf32>
    %51 = arith.addf %46, %50 : vector<9x24x128xf32>
    %cst_22 = arith.constant 0.000000e+00 : f32
    %52 = vector.broadcast %cst_22 : f32 to vector<9x24x128xf32>
    %53 = arith.maximumf %51, %52 : vector<9x24x128xf32>
    %54 = tpu.iota {dimensions = array<i32: 0>} : vector<9x24x1xi32>
    %55 = vector.broadcast %40 : i32 to vector<9x24x1xi32>
    %56 = arith.addi %54, %55 : vector<9x24x1xi32>
    %57 = tpu.iota {dimensions = array<i32: 1>} : vector<9x24x1xi32>
    %c1_i32_23 = arith.constant 1 : i32
    %58 = vector.broadcast %c1_i32_23 : i32 to vector<9x24x1xi32>
    %59 = arith.cmpi sge, %56, %58 : vector<9x24x1xi32>
    %c16_i32_24 = arith.constant 16 : i32
    %60 = vector.broadcast %c16_i32_24 : i32 to vector<9x24x1xi32>
    %61 = arith.cmpi sle, %56, %60 : vector<9x24x1xi32>
    %62 = arith.andi %59, %61 : vector<9x24x1xi1>
    %c1_i32_25 = arith.constant 1 : i32
    %63 = vector.broadcast %c1_i32_25 : i32 to vector<9x24x1xi32>
    %64 = arith.cmpi sge, %57, %63 : vector<9x24x1xi32>
    %65 = arith.andi %62, %64 : vector<9x24x1xi1>
    %c16_i32_26 = arith.constant 16 : i32
    %66 = vector.broadcast %c16_i32_26 : i32 to vector<9x24x1xi32>
    %67 = arith.cmpi sle, %57, %66 : vector<9x24x1xi32>
    %68 = arith.andi %65, %67 : vector<9x24x1xi1>
    %cst_27 = arith.constant 0.000000e+00 : f32
    %69 = vector.shape_cast %68 : vector<9x24x1xi1> to vector<9x24x1xi1>
    %70 = vector.broadcast %69 : vector<9x24x1xi1> to vector<9x24x128xi1>
    %71 = vector.broadcast %cst_27 : f32 to vector<9x24x128xf32>
    %72 = arith.select %70, %53, %71 : vector<9x24x128xi1>, vector<9x24x128xf32>
    %73 = arith.truncf %72 : vector<9x24x128xf32> to vector<9x24x128xbf16>
    %c1 = arith.constant 1 : index
    %c8_28 = arith.constant 8 : index
    %c0_29 = arith.constant 0 : index
    %74 = vector.load %arg13[%c1, %c8_28, %c0_29] : memref<11x40x128xbf16, #tpu.memory_space<vmem>>, vector<9x24x128xbf16>
    tpu.vector_store %arg13[%c1, %c8_28, %c0_29], %73 {strides = array<i32>} : memref<11x40x128xbf16, #tpu.memory_space<vmem>>, vector<9x24x128xbf16>,
    %c0_30 = arith.constant 0 : index
    %c0_31 = arith.constant 0 : index
    %c0_32 = arith.constant 0 : index
    %c0_33 = arith.constant 0 : index
    %75 = vector.load %arg5[%c0_30, %c0_31, %c0_32, %c0_33] : memref<1x1x24x128xbf16, #tpu.memory_space<vmem>>, vector<1x1x24x128xbf16>
    %76 = vector.shape_cast %75 : vector<1x1x24x128xbf16> to vector<1x24x128xbf16>
    %c9_i32_34 = arith.constant 9 : i32
    %77 = arith.addi %1, %c9_i32_34 : i32
    %c1_i32_35 = arith.constant 1 : i32
    %78 = arith.addi %77, %c1_i32_35 : i32
    %79 = arith.extf %76 : vector<1x24x128xbf16> to vector<1x24x128xf32>
    %c0_36 = arith.constant 0 : index
    %c0_37 = arith.constant 0 : index
    %80 = vector.load %arg8[%c0_36, %c0_37] : memref<1x128xf32, #tpu.memory_space<vmem>>, vector<1x128xf32>
    %81 = vector.shape_cast %80 : vector<1x128xf32> to vector<128xf32>
    %82 = vector.shape_cast %81 : vector<128xf32> to vector<1x1x128xf32>
    %83 = vector.broadcast %82 : vector<1x1x128xf32> to vector<1x24x128xf32>
    %84 = arith.mulf %79, %83 : vector<1x24x128xf32>
    %c0_38 = arith.constant 0 : index
    %c0_39 = arith.constant 0 : index
    %85 = vector.load %arg9[%c0_38, %c0_39] : memref<1x128xf32, #tpu.memory_space<vmem>>, vector<1x128xf32>
    %86 = vector.shape_cast %85 : vector<1x128xf32> to vector<128xf32>
    %87 = vector.shape_cast %86 : vector<128xf32> to vector<1x1x128xf32>
    %88 = vector.broadcast %87 : vector<1x1x128xf32> to vector<1x24x128xf32>
    %89 = arith.addf %84, %88 : vector<1x24x128xf32>
    %cst_40 = arith.constant 0.000000e+00 : f32
    %90 = vector.broadcast %cst_40 : f32 to vector<1x24x128xf32>
    %91 = arith.maximumf %89, %90 : vector<1x24x128xf32>
    %92 = tpu.iota {dimensions = array<i32: 0>} : vector<1x24x1xi32>
    %93 = vector.broadcast %78 : i32 to vector<1x24x1xi32>
    %94 = arith.addi %92, %93 : vector<1x24x1xi32>
    %95 = tpu.iota {dimensions = array<i32: 1>} : vector<1x24x1xi32>
    %c1_i32_41 = arith.constant 1 : i32
    %96 = vector.broadcast %c1_i32_41 : i32 to vector<1x24x1xi32>
    %97 = arith.cmpi sge, %94, %96 : vector<1x24x1xi32>
    %c16_i32_42 = arith.constant 16 : i32
    %98 = vector.broadcast %c16_i32_42 : i32 to vector<1x24x1xi32>
    %99 = arith.cmpi sle, %94, %98 : vector<1x24x1xi32>
    %100 = arith.andi %97, %99 : vector<1x24x1xi1>
    %c1_i32_43 = arith.constant 1 : i32
    %101 = vector.broadcast %c1_i32_43 : i32 to vector<1x24x1xi32>
    %102 = arith.cmpi sge, %95, %101 : vector<1x24x1xi32>
    %103 = arith.andi %100, %102 : vector<1x24x1xi1>
    %c16_i32_44 = arith.constant 16 : i32
    %104 = vector.broadcast %c16_i32_44 : i32 to vector<1x24x1xi32>
    %105 = arith.cmpi sle, %95, %104 : vector<1x24x1xi32>
    %106 = arith.andi %103, %105 : vector<1x24x1xi1>
    %cst_45 = arith.constant 0.000000e+00 : f32
    %107 = vector.shape_cast %106 : vector<1x24x1xi1> to vector<1x24x1xi1>
    %108 = vector.broadcast %107 : vector<1x24x1xi1> to vector<1x24x128xi1>
    %109 = vector.broadcast %cst_45 : f32 to vector<1x24x128xf32>
    %110 = arith.select %108, %91, %109 : vector<1x24x128xi1>, vector<1x24x128xf32>
    %111 = arith.truncf %110 : vector<1x24x128xf32> to vector<1x24x128xbf16>
    %c10 = arith.constant 10 : index
    %c8_46 = arith.constant 8 : index
    %c0_47 = arith.constant 0 : index
    %112 = vector.load %arg13[%c10, %c8_46, %c0_47] : memref<11x40x128xbf16, #tpu.memory_space<vmem>>, vector<1x24x128xbf16>
    tpu.vector_store %arg13[%c10, %c8_46, %c0_47], %111 {strides = array<i32>} : memref<11x40x128xbf16, #tpu.memory_space<vmem>>, vector<1x24x128xbf16>,
    %c0_48 = arith.constant 0 : index
    %c7 = arith.constant 7 : index
    %c0_49 = arith.constant 0 : index
    %113 = vector.load %arg13[%c0_48, %c7, %c0_49] : memref<11x40x128xbf16, #tpu.memory_space<vmem>>, vector<11x24x128xbf16>
    %c0_50 = arith.constant 0 : index
    %c8_51 = arith.constant 8 : index
    %c0_52 = arith.constant 0 : index
    %114 = vector.load %arg13[%c0_50, %c8_51, %c0_52] : memref<11x40x128xbf16, #tpu.memory_space<vmem>>, vector<11x24x128xbf16>
    %c0_53 = arith.constant 0 : index
    %c9 = arith.constant 9 : index
    %c0_54 = arith.constant 0 : index
    %115 = vector.load %arg13[%c0_53, %c9, %c0_54] : memref<11x40x128xbf16, #tpu.memory_space<vmem>>, vector<11x24x128xbf16>
    %116 = tpu.concatenate %113, %114, %115 in 2 : vector<11x24x128xbf16>, vector<11x24x128xbf16>, vector<11x24x128xbf16> -> vector<11x24x384xbf16>
    %c0_55 = arith.constant 0 : index
    %c0_56 = arith.constant 0 : index
    %c0_57 = arith.constant 0 : index
    %117 = vector.load %arg14[%c0_55, %c0_56, %c0_57] : memref<11x24x384xbf16, #tpu.memory_space<vmem>>, vector<11x24x384xbf16>
    tpu.vector_store %arg14[%c0_55, %c0_56, %c0_57], %116 {strides = array<i32>} : memref<11x24x384xbf16, #tpu.memory_space<vmem>>, vector<11x24x384xbf16>,
    %c0_58 = arith.constant 0 : index
    %c0_59 = arith.constant 0 : index
    %c0_60 = arith.constant 0 : index
    %118 = vector.load %arg14[%c0_58, %c0_59, %c0_60] : memref<11x24x384xbf16, #tpu.memory_space<vmem>>, vector<9x24x384xbf16>
    %119 = vector.shape_cast %118 : vector<9x24x384xbf16> to vector<216x384xbf16>
    %c0_61 = arith.constant 0 : index
    %c0_62 = arith.constant 0 : index
    %c0_63 = arith.constant 0 : index
    %120 = vector.load %arg6[%c0_61, %c0_62, %c0_63] : memref<3x384x128xbf16, #tpu.memory_space<vmem>>, vector<1x384x128xbf16>
    %121 = vector.shape_cast %120 : vector<1x384x128xbf16> to vector<384x128xbf16>
    %cst_64 = arith.constant dense<0.000000e+00> : vector<216x128xf32>
    %122 = tpu.matmul %119, %121, %cst_64 {dimension_numbers = #tpu.dot_dimension_numbers<[1], [0], [0], [1], [0, 0, 1, 1], [], []>} : vector<216x384xbf16>, vector<384x128xbf16>, vector<216x128xf32> -> vector<216x128xf32>
    %c0_65 = arith.constant 0 : index
    %c0_66 = arith.constant 0 : index
    %123 = vector.load %arg15[%c0_65, %c0_66] : memref<216x128xf32, #tpu.memory_space<vmem>>, vector<216x128xf32>
    tpu.vector_store %arg15[%c0_65, %c0_66], %122 {strides = array<i32>} : memref<216x128xf32, #tpu.memory_space<vmem>>, vector<216x128xf32>,
    %c1_67 = arith.constant 1 : index
    %c0_68 = arith.constant 0 : index
    %c0_69 = arith.constant 0 : index
    %124 = vector.load %arg14[%c1_67, %c0_68, %c0_69] : memref<11x24x384xbf16, #tpu.memory_space<vmem>>, vector<9x24x384xbf16>
    %125 = vector.shape_cast %124 : vector<9x24x384xbf16> to vector<216x384xbf16>
    %c1_70 = arith.constant 1 : index
    %c0_71 = arith.constant 0 : index
    %c0_72 = arith.constant 0 : index
    %126 = vector.load %arg6[%c1_70, %c0_71, %c0_72] : memref<3x384x128xbf16, #tpu.memory_space<vmem>>, vector<1x384x128xbf16>
    %127 = vector.shape_cast %126 : vector<1x384x128xbf16> to vector<384x128xbf16>
    %cst_73 = arith.constant dense<0.000000e+00> : vector<216x128xf32>
    %128 = tpu.matmul %125, %127, %cst_73 {dimension_numbers = #tpu.dot_dimension_numbers<[1], [0], [0], [1], [0, 0, 1, 1], [], []>} : vector<216x384xbf16>, vector<384x128xbf16>, vector<216x128xf32> -> vector<216x128xf32>
    %c0_74 = arith.constant 0 : index
    %c0_75 = arith.constant 0 : index
    %129 = vector.load %arg15[%c0_74, %c0_75] : memref<216x128xf32, #tpu.memory_space<vmem>>, vector<216x128xf32>
    %130 = arith.addf %129, %128 : vector<216x128xf32>
    %c0_76 = arith.constant 0 : index
    %c0_77 = arith.constant 0 : index
    %131 = vector.load %arg15[%c0_76, %c0_77] : memref<216x128xf32, #tpu.memory_space<vmem>>, vector<216x128xf32>
    tpu.vector_store %arg15[%c0_76, %c0_77], %130 {strides = array<i32>} : memref<216x128xf32, #tpu.memory_space<vmem>>, vector<216x128xf32>,
    %c2 = arith.constant 2 : index
    %c0_78 = arith.constant 0 : index
    %c0_79 = arith.constant 0 : index
    %132 = vector.load %arg14[%c2, %c0_78, %c0_79] : memref<11x24x384xbf16, #tpu.memory_space<vmem>>, vector<9x24x384xbf16>
    %133 = vector.shape_cast %132 : vector<9x24x384xbf16> to vector<216x384xbf16>
    %c2_80 = arith.constant 2 : index
    %c0_81 = arith.constant 0 : index
    %c0_82 = arith.constant 0 : index
    %134 = vector.load %arg6[%c2_80, %c0_81, %c0_82] : memref<3x384x128xbf16, #tpu.memory_space<vmem>>, vector<1x384x128xbf16>
    %135 = vector.shape_cast %134 : vector<1x384x128xbf16> to vector<384x128xbf16>
    %cst_83 = arith.constant dense<0.000000e+00> : vector<216x128xf32>
    %136 = tpu.matmul %133, %135, %cst_83 {dimension_numbers = #tpu.dot_dimension_numbers<[1], [0], [0], [1], [0, 0, 1, 1], [], []>} : vector<216x384xbf16>, vector<384x128xbf16>, vector<216x128xf32> -> vector<216x128xf32>
    %c0_84 = arith.constant 0 : index
    %c0_85 = arith.constant 0 : index
    %137 = vector.load %arg15[%c0_84, %c0_85] : memref<216x128xf32, #tpu.memory_space<vmem>>, vector<216x128xf32>
    %138 = arith.addf %137, %136 : vector<216x128xf32>
    %c0_86 = arith.constant 0 : index
    %c0_87 = arith.constant 0 : index
    %139 = vector.load %arg15[%c0_86, %c0_87] : memref<216x128xf32, #tpu.memory_space<vmem>>, vector<216x128xf32>
    tpu.vector_store %arg15[%c0_86, %c0_87], %138 {strides = array<i32>} : memref<216x128xf32, #tpu.memory_space<vmem>>, vector<216x128xf32>,
    %140 = tpu.iota {dimensions = array<i32: 0>} : vector<9x24x1xi32>
    %c9_i32_88 = arith.constant 9 : i32
    %141 = arith.muli %arg2, %c9_i32_88 : i32
    %142 = vector.broadcast %141 : i32 to vector<9x24x1xi32>
    %143 = arith.addi %140, %142 : vector<9x24x1xi32>
    %144 = tpu.iota {dimensions = array<i32: 1>} : vector<9x24x1xi32>
    %c1_i32_89 = arith.constant 1 : i32
    %145 = vector.broadcast %c1_i32_89 : i32 to vector<9x24x1xi32>
    %146 = arith.cmpi sge, %143, %145 : vector<9x24x1xi32>
    %c16_i32_90 = arith.constant 16 : i32
    %147 = vector.broadcast %c16_i32_90 : i32 to vector<9x24x1xi32>
    %148 = arith.cmpi sle, %143, %147 : vector<9x24x1xi32>
    %149 = arith.andi %146, %148 : vector<9x24x1xi1>
    %c1_i32_91 = arith.constant 1 : i32
    %150 = vector.broadcast %c1_i32_91 : i32 to vector<9x24x1xi32>
    %151 = arith.cmpi sge, %144, %150 : vector<9x24x1xi32>
    %152 = arith.andi %149, %151 : vector<9x24x1xi1>
    %c16_i32_92 = arith.constant 16 : i32
    %153 = vector.broadcast %c16_i32_92 : i32 to vector<9x24x1xi32>
    %154 = arith.cmpi sle, %144, %153 : vector<9x24x1xi32>
    %155 = arith.andi %152, %154 : vector<9x24x1xi1>
    %156 = vector.shape_cast %155 : vector<9x24x1xi1> to vector<216x1xi1>
    %c0_93 = arith.constant 0 : index
    %c0_94 = arith.constant 0 : index
    %157 = vector.load %arg15[%c0_93, %c0_94] : memref<216x128xf32, #tpu.memory_space<vmem>>, vector<216x128xf32>
    %c0_95 = arith.constant 0 : index
    %c0_96 = arith.constant 0 : index
    %158 = vector.load %arg7[%c0_95, %c0_96] : memref<1x128xf32, #tpu.memory_space<vmem>>, vector<1x128xf32>
    %159 = vector.broadcast %158 : vector<1x128xf32> to vector<216x128xf32>
    %160 = arith.addf %157, %159 : vector<216x128xf32>
    %cst_97 = arith.constant 0.000000e+00 : f32
    %161 = vector.shape_cast %156 : vector<216x1xi1> to vector<216x1xi1>
    %162 = vector.broadcast %161 : vector<216x1xi1> to vector<216x128xi1>
    %163 = vector.broadcast %cst_97 : f32 to vector<216x128xf32>
    %164 = arith.select %162, %160, %163 : vector<216x128xi1>, vector<216x128xf32>
    %165 = vector.shape_cast %164 : vector<216x128xf32> to vector<9x24x128xf32>
    %166 = arith.truncf %165 : vector<9x24x128xf32> to vector<9x24x128xbf16>
    %c0_98 = arith.constant 0 : index
    %c0_99 = arith.constant 0 : index
    %c0_100 = arith.constant 0 : index
    %c0_101 = arith.constant 0 : index
    %167 = vector.load %arg10[%c0_98, %c0_99, %c0_100, %c0_101] : memref<1x9x24x128xbf16, #tpu.memory_space<vmem>>, vector<1x9x24x128xbf16>
    %168 = vector.shape_cast %167 : vector<1x9x24x128xbf16> to vector<9x24x128xbf16>
    %169 = vector.shape_cast %166 : vector<9x24x128xbf16> to vector<1x9x24x128xbf16>
    tpu.vector_store %arg10[%c0_98, %c0_99, %c0_100, %c0_101], %169 {strides = array<i32>} : memref<1x9x24x128xbf16, #tpu.memory_space<vmem>>, vector<1x9x24x128xbf16>,
    %cst_102 = arith.constant dense<0.000000e+00> : vector<128xf32>
    %170 = vector.multi_reduction <add>, %164, %cst_102 [0] : vector<216x128xf32> to vector<128xf32>
    %171 = vector.shape_cast %170 : vector<128xf32> to vector<1x128xf32>
    %c0_103 = arith.constant 0 : index
    %c0_104 = arith.constant 0 : index
    %c0_105 = arith.constant 0 : index
    %c0_106 = arith.constant 0 : index
    %172 = vector.load %arg11[%c0_103, %c0_104, %c0_105, %c0_106] : memref<1x1x1x128xf32, #tpu.memory_space<vmem>>, vector<1x1x1x128xf32>
    %173 = vector.shape_cast %172 : vector<1x1x1x128xf32> to vector<1x128xf32>
    %174 = vector.shape_cast %171 : vector<1x128xf32> to vector<1x1x1x128xf32>
    tpu.vector_store %arg11[%c0_103, %c0_104, %c0_105, %c0_106], %174 {strides = array<i32>} : memref<1x1x1x128xf32, #tpu.memory_space<vmem>>, vector<1x1x1x128xf32>,
    %175 = arith.mulf %164, %164 : vector<216x128xf32>
    %cst_107 = arith.constant dense<0.000000e+00> : vector<128xf32>
    %176 = vector.multi_reduction <add>, %175, %cst_107 [0] : vector<216x128xf32> to vector<128xf32>
    %177 = vector.shape_cast %176 : vector<128xf32> to vector<1x128xf32>
    %c0_108 = arith.constant 0 : index
    %c0_109 = arith.constant 0 : index
    %c0_110 = arith.constant 0 : index
    %c0_111 = arith.constant 0 : index
    %178 = vector.load %arg12[%c0_108, %c0_109, %c0_110, %c0_111] : memref<1x1x1x128xf32, #tpu.memory_space<vmem>>, vector<1x1x1x128xf32>
    %179 = vector.shape_cast %178 : vector<1x1x1x128xf32> to vector<1x128xf32>
    %180 = vector.shape_cast %177 : vector<1x128xf32> to vector<1x1x1x128xf32>
    tpu.vector_store %arg12[%c0_108, %c0_109, %c0_110, %c0_111], %180 {strides = array<i32>} : memref<1x1x1x128xf32, #tpu.memory_space<vmem>>, vector<1x1x1x128xf32>,
    return
  }
  func.func @transform_0(%arg0: i32, %arg1: i32, %arg2: i32) -> (i32, i32, i32, i32) {
    %c0_i32 = arith.constant 0 : i32
    %c0_i32_0 = arith.constant 0 : i32
    %c0_i32_1 = arith.constant 0 : i32
    return %arg1, %arg2, %c0_i32, %c0_i32_0 : i32, i32, i32, i32
  }
  func.func @transform_1(%arg0: i32, %arg1: i32, %arg2: i32) -> (i32, i32, i32, i32) {
    %c9_i32 = arith.constant 9 : i32
    %0 = arith.muli %arg2, %c9_i32 : i32
    %c1_i32 = arith.constant 1 : i32
    %1 = arith.subi %0, %c1_i32 : i32
    %c0_i32 = arith.constant 0 : i32
    %2 = arith.maxsi %1, %c0_i32 : i32
    %c0_i32_0 = arith.constant 0 : i32
    %c0_i32_1 = arith.constant 0 : i32
    %c0_i32_2 = arith.constant 0 : i32
    return %arg1, %2, %c0_i32_0, %c0_i32_1 : i32, i32, i32, i32
  }
  func.func @transform_2(%arg0: i32, %arg1: i32, %arg2: i32) -> (i32, i32, i32, i32) {
    %c9_i32 = arith.constant 9 : i32
    %0 = arith.muli %arg2, %c9_i32 : i32
    %c9_i32_0 = arith.constant 9 : i32
    %1 = arith.addi %0, %c9_i32_0 : i32
    %c17_i32 = arith.constant 17 : i32
    %2 = arith.minsi %1, %c17_i32 : i32
    %c0_i32 = arith.constant 0 : i32
    %c0_i32_1 = arith.constant 0 : i32
    %c0_i32_2 = arith.constant 0 : i32
    return %arg1, %2, %c0_i32, %c0_i32_1 : i32, i32, i32, i32
  }
  func.func @transform_3(%arg0: i32, %arg1: i32, %arg2: i32) -> (i32, i32, i32) {
    %c0_i32 = arith.constant 0 : i32
    %c0_i32_0 = arith.constant 0 : i32
    %c0_i32_1 = arith.constant 0 : i32
    return %c0_i32, %c0_i32_0, %arg0 : i32, i32, i32
  }
  func.func @transform_4(%arg0: i32, %arg1: i32, %arg2: i32) -> (i32, i32) {
    %c0_i32 = arith.constant 0 : i32
    %c0_i32_0 = arith.constant 0 : i32
    return %c0_i32, %arg0 : i32, i32
  }
  func.func @transform_5(%arg0: i32, %arg1: i32, %arg2: i32) -> (i32, i32) {
    %c0_i32 = arith.constant 0 : i32
    %c0_i32_0 = arith.constant 0 : i32
    %c0_i32_1 = arith.constant 0 : i32
    return %c0_i32, %c0_i32_0 : i32, i32
  }
  func.func @transform_6(%arg0: i32, %arg1: i32, %arg2: i32) -> (i32, i32) {
    %c0_i32 = arith.constant 0 : i32
    %c0_i32_0 = arith.constant 0 : i32
    %c0_i32_1 = arith.constant 0 : i32
    return %c0_i32, %c0_i32_0 : i32, i32
  }
  func.func @transform_7(%arg0: i32, %arg1: i32, %arg2: i32) -> (i32, i32, i32, i32) {
    %c0_i32 = arith.constant 0 : i32
    %c0_i32_0 = arith.constant 0 : i32
    return %arg1, %arg2, %c0_i32, %arg0 : i32, i32, i32, i32
  }
  func.func @transform_8(%arg0: i32, %arg1: i32, %arg2: i32) -> (i32, i32, i32, i32) {
    %c0_i32 = arith.constant 0 : i32
    %c0_i32_0 = arith.constant 0 : i32
    return %arg1, %arg2, %c0_i32, %arg0 : i32, i32, i32, i32
  }
  func.func @transform_9(%arg0: i32, %arg1: i32, %arg2: i32) -> (i32, i32, i32, i32) {
    %c0_i32 = arith.constant 0 : i32
    %c0_i32_0 = arith.constant 0 : i32
    return %arg1, %arg2, %c0_i32, %arg0 : i32, i32, i32, i32
  }
}

</mosaic_0001>

<llo_original>
// kernel: double_conv_forward.2
$region0: #{double_conv_forward.2}
  #allocation0 [shape = 'u32[]', space=smem, size = 0x4, offset = 0x4, fixed_abs, tag = 'smem constant byte address 0x4 - core index']
  #allocation1 [shape = 'u32[144,128]{1,0:T(1,128)}', space=vmem, size = 0x12000, scoped, tag = 'internal scratch']
  #allocation2 [shape = 'bf16[11,40,4]{2,1,0:T(8,128)(2,1)}', space=vmem, size = 0x1b800, scoped, tag = 'scratch operand']
  #allocation3 [shape = 'bf16[11,24,12]{2,1,0:T(8,128)(2,1)}', space=vmem, size = 0x10800, scoped, tag = 'scratch operand']
  #allocation4 [shape = 'f32[216,128]{1,0:T(8,128)}', space=vmem, size = 0x1b000, scoped, tag = 'scratch operand']
  %s0 = inlined_call_operand.vmem [shape: bf16[2,18,24,4], index: 0, kind: input, shape index: {}, may-alias: {0,1,2}]
  %s1 = inlined_call_operand.vmem [shape: bf16[2,18,24,4], index: 1, kind: input, shape index: {}, may-alias: {0,1,2}]
  %s2 = inlined_call_operand.vmem [shape: bf16[2,18,24,4], index: 2, kind: input, shape index: {}, may-alias: {0,1,2}]
  %s3 = inlined_call_operand.vmem [shape: bf16[3,12,128], index: 3, kind: input, shape index: {}]
  %s4 = inlined_call_operand.vmem [shape: f32[1,128], index: 4, kind: input, shape index: {}]
  %s5 = inlined_call_operand.vmem [shape: f32[1,4], index: 5, kind: input, shape index: {}, may-alias: {5,6}]
  %s6 = inlined_call_operand.vmem [shape: f32[1,4], index: 6, kind: input, shape index: {}, may-alias: {5,6}]
  %s7 = inlined_call_operand.vmem [shape: bf16[2,18,24,128], index: 7, kind: output, shape index: {0}]
  %s8 = inlined_call_operand.vmem [shape: f32[2,2,1,128], index: 8, kind: output, shape index: {1}]
  %s9 = inlined_call_operand.vmem [shape: f32[2,2,1,128], index: 9, kind: output, shape index: {2}]
  %10 = xla_tuple %s7, %s8, %s9
  %s11 = sld [smem:[#allocation0]]
  $region77: #{double_conv_forward.2} parent=0
    _
  %s13 = ssub.s32 1, %s11
  %s14 = scalar_select 0, %s13, %s11
  loop: start=0, step=1, limit=6
  $region2: #{double_conv_forward.2} parent=0 // loop_pre_header
    _
  $region3: #{double_conv_forward.2} parent=0 // loop_header
    %s16 = sphi 0, %s20
    %p17 = scmp.ge.s32.totalorder %s16, 6
    %s23 = sphi 0, %s42
    %s24 = sphi 0, %s38
    %s25 = sphi 0, %s34
    %s26 = sphi 0, %s23
    %s27 = sphi 0, %s24
    %s28 = sphi 0, %s25
    %s29 = sphi 0, %s26
    %s30 = sphi 0, %s27
    %s31 = sphi 0, %s28
    %s47 = sphi 0, %s49
    %s50 = sphi 0, %s47
    %s51 = sphi 0, %s50
    %s67 = sphi 0, %s51
    %s83 = sphi 0, %s85
    %s86 = sphi 0, %s83
    %s87 = sphi 0, %s86
    %s103 = sphi 0, %s87
    %s119 = sphi 0, %s121
    %s122 = sphi 0, %s119
    %s123 = sphi 0, %s122
    %s139 = sphi 0, %s123
    %s145 = sphi 0, %s147
    %s148 = sphi 0, %s145
    %s149 = sphi 0, %s148
    %s165 = sphi 0, %s149
    %s171 = sphi 0, %s173
    %s174 = sphi 0, %s171
    %s175 = sphi 0, %s174
    %s191 = sphi 0, %s175
    %s195 = sphi 0, %s195
    %s197 = sphi 0, %s195
    %s198 = sphi 0, %s197
    %s212 = sphi 0, %s198
    %s216 = sphi 0, %s216
    %s218 = sphi 0, %s216
    %s219 = sphi 0, %s218
    %s233 = sphi 0, %s219
    %s243 = sphi 0, %s245
    %s246 = sphi 0, %s243
    %s247 = sphi 0, %s246
    %s263 = sphi 0, %s247
    %s273 = sphi 0, %s275
    %s276 = sphi 0, %s273
    %s277 = sphi 0, %s276
    %s293 = sphi 0, %s277
    %s303 = sphi 0, %s305
    %s306 = sphi 0, %s303
    %s307 = sphi 0, %s306
    %s323 = sphi 0, %s307
  $region4: #{double_conv_forward.2} parent=0 // loop_header_branch
    %19 = sbr.rel (%p17) target = $region8
  $region5: #{double_conv_forward.2} parent=0 // loop_body
    %s21 = ssub.s32 %s16, 1
    %s22 = ssub.s32 %s16, 2
    %s32 = sadd.s32 1, %s25
    %p33 = scmp.ge.s32.totalorder %s32, 2
    %s34 = scalar_select %p33, 0, %s32
    %s35 = sadd.s32 1, %s24
    %s36 = scalar_select %p33, %s35, %s24
    %p37 = scmp.ge.s32.totalorder %s36, 2
    %s38 = scalar_select %p37, 0, %s36
    %s39 = sadd.s32 1, %s23
    %s40 = scalar_select %p37, %s39, %s23
    %p41 = scmp.ge.s32.totalorder %s40, 1
    %s42 = scalar_select %p41, 0, %s40
    %s43 = ssub.s32 %s24, %s38
    %s44 = ssub.s32 %s25, %s34
    %s45 = sor.u32 %s43, %s44
    %p46 = scmp.eq.s32.totalorder %s45, 0
    %s48 = sadd.s32 %s47, 1
    %s49 = scalar_select %p46, %s47, %s48
    %p52 = pneg %p46
    %p53 = scmp.eq.s32.totalorder %s16, 3
    %p54 = por %p52, %p53
    %p55 = scmp.ne.s32.totalorder %s47, %s50
    %p56 = scmp.eq.s32.totalorder %s16, 0
    %p57 = por %p55, %p56
    %p58 = scmp.ne.s32.totalorder %s47, %s50
    %p59 = scmp.eq.s32.totalorder %s21, 3
    %p60 = por %p58, %p59
    %p61 = scmp.ne.s32.totalorder %s50, %s51
    %p62 = scmp.eq.s32.totalorder %s21, 0
    %p63 = por %p61, %p62
    %p64 = scmp.ne.s32.totalorder %s50, %s51
    %p65 = scmp.eq.s32.totalorder %s22, 3
    %p66 = por %p64, %p65
    %p68 = scmp.ne.s32.totalorder %s51, %s67
    %p69 = scmp.eq.s32.totalorder %s22, 0
    %p70 = por %p68, %p69
    %s71 = smul.u32 %s25, 9
    %s72 = ssub.s32 %s71, 1
    %p73 = scmp.gt.s32.totalorder %s72, 0
    %s74 = scalar_select %p73, %s72, 0
    %s75 = smul.u32 %s34, 9
    %s76 = ssub.s32 %s75, 1
    %p77 = scmp.gt.s32.totalorder %s76, 0
    %s78 = scalar_select %p77, %s76, 0
    %s79 = ssub.s32 %s24, %s38
    %s80 = ssub.s32 %s74, %s78
    %s81 = sor.u32 %s79, %s80
    %p82 = scmp.eq.s32.totalorder %s81, 0
    %s84 = sadd.s32 %s83, 1
    %s85 = scalar_select %p82, %s83, %s84
    %p88 = pneg %p82
    %p89 = scmp.eq.s32.totalorder %s16, 3
    %p90 = por %p88, %p89
    %p91 = scmp.ne.s32.totalorder %s83, %s86
    %p92 = scmp.eq.s32.totalorder %s16, 0
    %p93 = por %p91, %p92
    %p94 = scmp.ne.s32.totalorder %s83, %s86
    %p95 = scmp.eq.s32.totalorder %s21, 3
    %p96 = por %p94, %p95
    %p97 = scmp.ne.s32.totalorder %s86, %s87
    %p98 = scmp.eq.s32.totalorder %s21, 0
    %p99 = por %p97, %p98
    %p100 = scmp.ne.s32.totalorder %s86, %s87
    %p101 = scmp.eq.s32.totalorder %s22, 3
    %p102 = por %p100, %p101
    %p104 = scmp.ne.s32.totalorder %s87, %s103
    %p105 = scmp.eq.s32.totalorder %s22, 0
    %p106 = por %p104, %p105
    %s107 = smul.u32 %s25, 9
    %s108 = sadd.s32 %s107, 9
    %p109 = scmp.lt.s32.totalorder %s108, 17
    %s110 = scalar_select %p109, %s108, 17
    %s111 = smul.u32 %s34, 9
    %s112 = sadd.s32 %s111, 9
    %p113 = scmp.lt.s32.totalorder %s112, 17
    %s114 = scalar_select %p113, %s112, 17
    %s115 = ssub.s32 %s24, %s38
    %s116 = ssub.s32 %s110, %s114
    %s117 = sor.u32 %s115, %s116
    %p118 = scmp.eq.s32.totalorder %s117, 0
    %s120 = sadd.s32 %s119, 1
    %s121 = scalar_select %p118, %s119, %s120
    %p124 = pneg %p118
    %p125 = scmp.eq.s32.totalorder %s16, 3
    %p126 = por %p124, %p125
    %p127 = scmp.ne.s32.totalorder %s119, %s122
    %p128 = scmp.eq.s32.totalorder %s16, 0
    %p129 = por %p127, %p128
    %p130 = scmp.ne.s32.totalorder %s119, %s122
    %p131 = scmp.eq.s32.totalorder %s21, 3
    %p132 = por %p130, %p131
    %p133 = scmp.ne.s32.totalorder %s122, %s123
    %p134 = scmp.eq.s32.totalorder %s21, 0
    %p135 = por %p133, %p134
    %p136 = scmp.ne.s32.totalorder %s122, %s123
    %p137 = scmp.eq.s32.totalorder %s22, 3
    %p138 = por %p136, %p137
    %p140 = scmp.ne.s32.totalorder %s123, %s139
    %p141 = scmp.eq.s32.totalorder %s22, 0
    %p142 = por %p140, %p141
    %s143 = ssub.s32 %s23, %s42
    %p144 = scmp.eq.s32.totalorder %s143, 0
    %s146 = sadd.s32 %s145, 1
    %s147 = scalar_select %p144, %s145, %s146
    %p150 = pneg %p144
    %p151 = scmp.eq.s32.totalorder %s16, 3
    %p152 = por %p150, %p151
    %p153 = scmp.ne.s32.totalorder %s145, %s148
    %p154 = scmp.eq.s32.totalorder %s16, 0
    %p155 = por %p153, %p154
    %p156 = scmp.ne.s32.totalorder %s145, %s148
    %p157 = scmp.eq.s32.totalorder %s21, 3
    %p158 = por %p156, %p157
    %p159 = scmp.ne.s32.totalorder %s148, %s149
    %p160 = scmp.eq.s32.totalorder %s21, 0
    %p161 = por %p159, %p160
    %p162 = scmp.ne.s32.totalorder %s148, %s149
    %p163 = scmp.eq.s32.totalorder %s22, 3
    %p164 = por %p162, %p163
    %p166 = scmp.ne.s32.totalorder %s149, %s165
    %p167 = scmp.eq.s32.totalorder %s22, 0
    %p168 = por %p166, %p167
    %s169 = ssub.s32 %s23, %s42
    %p170 = scmp.eq.s32.totalorder %s169, 0
    %s172 = sadd.s32 %s171, 1
    %s173 = scalar_select %p170, %s171, %s172
    %p176 = pneg %p170
    %p177 = scmp.eq.s32.totalorder %s16, 3
    %p178 = por %p176, %p177
    %p179 = scmp.ne.s32.totalorder %s171, %s174
    %p180 = scmp.eq.s32.totalorder %s16, 0
    %p181 = por %p179, %p180
    %p182 = scmp.ne.s32.totalorder %s171, %s174
    %p183 = scmp.eq.s32.totalorder %s21, 3
    %p184 = por %p182, %p183
    %p185 = scmp.ne.s32.totalorder %s174, %s175
    %p186 = scmp.eq.s32.totalorder %s21, 0
    %p187 = por %p185, %p186
    %p188 = scmp.ne.s32.totalorder %s174, %s175
    %p189 = scmp.eq.s32.totalorder %s22, 3
    %p190 = por %p188, %p189
    %p192 = scmp.ne.s32.totalorder %s175, %s191
    %p193 = scmp.eq.s32.totalorder %s22, 0
    %p194 = por %p192, %p193
    %s196 = sadd.s32 %s195, 1
    %p199 = scmp.eq.s32.totalorder %s16, 3
    %p200 = scmp.ne.s32.totalorder %s195, %s197
    %p201 = scmp.eq.s32.totalorder %s16, 0
    %p202 = por %p200, %p201
    %p203 = scmp.ne.s32.totalorder %s195, %s197
    %p204 = scmp.eq.s32.totalorder %s21, 3
    %p205 = por %p203, %p204
    %p206 = scmp.ne.s32.totalorder %s197, %s198
    %p207 = scmp.eq.s32.totalorder %s21, 0
    %p208 = por %p206, %p207
    %p209 = scmp.ne.s32.totalorder %s197, %s198
    %p210 = scmp.eq.s32.totalorder %s22, 3
    %p211 = por %p209, %p210
    %p213 = scmp.ne.s32.totalorder %s198, %s212
    %p214 = scmp.eq.s32.totalorder %s22, 0
    %p215 = por %p213, %p214
    %s217 = sadd.s32 %s216, 1
    %p220 = scmp.eq.s32.totalorder %s16, 3
    %p221 = scmp.ne.s32.totalorder %s216, %s218
    %p222 = scmp.eq.s32.totalorder %s16, 0
    %p223 = por %p221, %p222
    %p224 = scmp.ne.s32.totalorder %s216, %s218
    %p225 = scmp.eq.s32.totalorder %s21, 3
    %p226 = por %p224, %p225
    %p227 = scmp.ne.s32.totalorder %s218, %s219
    %p228 = scmp.eq.s32.totalorder %s21, 0
    %p229 = por %p227, %p228
    %p230 = scmp.ne.s32.totalorder %s218, %s219
    %p231 = scmp.eq.s32.totalorder %s22, 3
    %p232 = por %p230, %p231
    %p234 = scmp.ne.s32.totalorder %s219, %s233
    %p235 = scmp.eq.s32.totalorder %s22, 0
    %p236 = por %p234, %p235
    %s237 = ssub.s32 %s24, %s38
    %s238 = ssub.s32 %s25, %s34
    %s239 = sor.u32 %s237, %s238
    %s240 = ssub.s32 %s23, %s42
    %s241 = sor.u32 %s239, %s240
    %p242 = scmp.eq.s32.totalorder %s241, 0
    %s244 = sadd.s32 %s243, 1
    %s245 = scalar_select %p242, %s243, %s244
    %p248 = pneg %p242
    %p249 = scmp.eq.s32.totalorder %s16, 3
    %p250 = por %p248, %p249
    %p251 = scmp.ne.s32.totalorder %s243, %s246
    %p252 = scmp.eq.s32.totalorder %s16, 0
    %p253 = por %p251, %p252
    %p254 = scmp.ne.s32.totalorder %s243, %s246
    %p255 = scmp.eq.s32.totalorder %s21, 3
    %p256 = por %p254, %p255
    %p257 = scmp.ne.s32.totalorder %s246, %s247
    %p258 = scmp.eq.s32.totalorder %s21, 0
    %p259 = por %p257, %p258
    %p260 = scmp.ne.s32.totalorder %s246, %s247
    %p261 = scmp.eq.s32.totalorder %s22, 3
    %p262 = por %p260, %p261
    %p264 = scmp.ne.s32.totalorder %s247, %s263
    %p265 = scmp.eq.s32.totalorder %s22, 0
    %p266 = por %p264, %p265
    %s267 = ssub.s32 %s24, %s38
    %s268 = ssub.s32 %s25, %s34
    %s269 = sor.u32 %s267, %s268
    %s270 = ssub.s32 %s23, %s42
    %s271 = sor.u32 %s269, %s270
    %p272 = scmp.eq.s32.totalorder %s271, 0
    %s274 = sadd.s32 %s273, 1
    %s275 = scalar_select %p272, %s273, %s274
    %p278 = pneg %p272
    %p279 = scmp.eq.s32.totalorder %s16, 3
    %p280 = por %p278, %p279
    %p281 = scmp.ne.s32.totalorder %s273, %s276
    %p282 = scmp.eq.s32.totalorder %s16, 0
    %p283 = por %p281, %p282
    %p284 = scmp.ne.s32.totalorder %s273, %s276
    %p285 = scmp.eq.s32.totalorder %s21, 3
    %p286 = por %p284, %p285
    %p287 = scmp.ne.s32.totalorder %s276, %s277
    %p288 = scmp.eq.s32.totalorder %s21, 0
    %p289 = por %p287, %p288
    %p290 = scmp.ne.s32.totalorder %s276, %s277
    %p291 = scmp.eq.s32.totalorder %s22, 3
    %p292 = por %p290, %p291
    %p294 = scmp.ne.s32.totalorder %s277, %s293
    %p295 = scmp.eq.s32.totalorder %s22, 0
    %p296 = por %p294, %p295
    %s297 = ssub.s32 %s24, %s38
    %s298 = ssub.s32 %s25, %s34
    %s299 = sor.u32 %s297, %s298
    %s300 = ssub.s32 %s23, %s42
    %s301 = sor.u32 %s299, %s300
    %p302 = scmp.eq.s32.totalorder %s301, 0
    %s304 = sadd.s32 %s303, 1
    %s305 = scalar_select %p302, %s303, %s304
    %p308 = pneg %p302
    %p309 = scmp.eq.s32.totalorder %s16, 3
    %p310 = por %p308, %p309
    %p311 = scmp.ne.s32.totalorder %s303, %s306
    %p312 = scmp.eq.s32.totalorder %s16, 0
    %p313 = por %p311, %p312
    %p314 = scmp.ne.s32.totalorder %s303, %s306
    %p315 = scmp.eq.s32.totalorder %s21, 3
    %p316 = por %p314, %p315
    %p317 = scmp.ne.s32.totalorder %s306, %s307
    %p318 = scmp.eq.s32.totalorder %s21, 0
    %p319 = por %p317, %p318
    %p320 = scmp.ne.s32.totalorder %s306, %s307
    %p321 = scmp.eq.s32.totalorder %s22, 3
    %p322 = por %p320, %p321
    %p324 = scmp.ne.s32.totalorder %s307, %s323
    %p325 = scmp.eq.s32.totalorder %s22, 0
    %p326 = por %p324, %p325
    %p327 = scmp.le.s32.totalorder 1, %s16
    %p328 = scmp.lt.s32.totalorder %s16, 5
    %p329 = pnand %p327, %p328
    %p330 = pneg %p329
    // Predicated region
    $region9: #{double_conv_forward.2} parent=5 // pred_check
      _
    $region10: #{double_conv_forward.2} parent=5 // pred_check_branch
      %332 = sbr.rel (%p329) target = $region12
    $region11: #{double_conv_forward.2} parent=5 // pred_region
      %s333 = ssub.s32 %s16, 1
      // Predicated region
      $region13: #{double_conv_forward.2} parent=11 // pred_check
        %p334 = pneg %p161
      $region14: #{double_conv_forward.2} parent=11 // pred_check_branch
        %336 = sbr.rel (%p334) target = $region16
      $region15: #{double_conv_forward.2} parent=11 // pred_region
        %p337 = scmp.lt.s32.totalorder %s26, 0
        %s338 = scalar_select %p337, %s26, 0
        %s339 = smul.addr %s338, 4
        %s340 = scalar_lea.vmem %s3, %s339
      $region16: #{double_conv_forward.2} parent=11 // pred_fallthru
        _
      // Predicated region
      $region17: #{double_conv_forward.2} parent=11 // pred_check
        %p341 = pneg %p187
      $region18: #{double_conv_forward.2} parent=11 // pred_check_branch
        %343 = sbr.rel (%p341) target = $region20
      $region19: #{double_conv_forward.2} parent=11 // pred_region
        %p344 = scmp.lt.s32.totalorder %s26, 0
        %s345 = scalar_select %p344, %s26, 0
        %s346 = scalar_lea.vmem %s4, %s345
      $region20: #{double_conv_forward.2} parent=11 // pred_fallthru
        _
      // Predicated region
      $region21: #{double_conv_forward.2} parent=11 // pred_check
        %p347 = pneg %p208
      $region22: #{double_conv_forward.2} parent=11 // pred_check_branch
        %349 = sbr.rel (%p347) target = $region24
      $region23: #{double_conv_forward.2} parent=11 // pred_region
        _
      $region24: #{double_conv_forward.2} parent=11 // pred_fallthru
        _
      // Predicated region
      $region25: #{double_conv_forward.2} parent=11 // pred_check
        %p350 = pneg %p229
      $region26: #{double_conv_forward.2} parent=11 // pred_check_branch
        %352 = sbr.rel (%p350) target = $region28
      $region27: #{double_conv_forward.2} parent=11 // pred_region
        _
      $region28: #{double_conv_forward.2} parent=11 // pred_fallthru
        _
    $region12: #{double_conv_forward.2} parent=5 // pred_fallthru
      _
    %p353 = scmp.lt.s32.totalorder %s16, 4
    // Predicated region
    $region29: #{double_conv_forward.2} parent=5 // pred_check
      %p354 = pneg %p353
    $region30: #{double_conv_forward.2} parent=5 // pred_check_branch
      %356 = sbr.rel (%p354) target = $region32
    $region31: #{double_conv_forward.2} parent=5 // pred_region
      // Predicated region
      $region33: #{double_conv_forward.2} parent=31 // pred_check
        %p357 = pneg %p57
      $region34: #{double_conv_forward.2} parent=31 // pred_check_branch
        %359 = sbr.rel (%p357) target = $region36
      $region35: #{double_conv_forward.2} parent=31 // pred_region
        %s360 = smul.u32 9, %s25
        %p361 = scmp.lt.s32.totalorder %s24, 1
        %s362 = scalar_select %p361, %s24, 1
        %p363 = scmp.lt.s32.totalorder %s360, 17
        %s364 = scalar_select %p363, %s360, 17
        %s365 = smul.addr %s364, 3
        %s366 = smul.addr %s362, 54
        %s367 = sadd.s32 %s365, %s366
        %s368 = smul.addr %s367, 4
        %s369 = scalar_lea.vmem %s0, %s368
        %s370 = smul.u32 9, %s25
      $region36: #{double_conv_forward.2} parent=31 // pred_fallthru
        _
      // Predicated region
      $region37: #{double_conv_forward.2} parent=31 // pred_check
        %p371 = pneg %p93
      $region38: #{double_conv_forward.2} parent=31 // pred_check_branch
        %373 = sbr.rel (%p371) target = $region40
      $region39: #{double_conv_forward.2} parent=31 // pred_region
        %s374 = smul.u32 %s25, 9
        %s375 = ssub.s32 %s374, 1
        %p376 = scmp.gt.s32.totalorder %s375, 0
        %s377 = scalar_select %p376, %s375, 0
        %p378 = scmp.lt.s32.totalorder %s24, 1
        %s379 = scalar_select %p378, %s24, 1
        %p380 = scmp.lt.s32.totalorder %s377, 17
        %s381 = scalar_select %p380, %s377, 17
        %s382 = smul.addr %s381, 3
        %s383 = smul.addr %s379, 54
        %s384 = sadd.s32 %s382, %s383
        %s385 = smul.addr %s384, 4
        %s386 = scalar_lea.vmem %s1, %s385
        %s387 = smul.u32 %s25, 9
        %s388 = ssub.s32 %s387, 1
        %p389 = scmp.gt.s32.totalorder %s388, 0
        %s390 = scalar_select %p389, %s388, 0
      $region40: #{double_conv_forward.2} parent=31 // pred_fallthru
        _
      // Predicated region
      $region41: #{double_conv_forward.2} parent=31 // pred_check
        %p391 = pneg %p129
      $region42: #{double_conv_forward.2} parent=31 // pred_check_branch
        %393 = sbr.rel (%p391) target = $region44
      $region43: #{double_conv_forward.2} parent=31 // pred_region
        %s394 = smul.u32 %s25, 9
        %s395 = sadd.s32 %s394, 9
        %p396 = scmp.lt.s32.totalorder %s395, 17
        %s397 = scalar_select %p396, %s395, 17
        %p398 = scmp.lt.s32.totalorder %s24, 1
        %s399 = scalar_select %p398, %s24, 1
        %p400 = scmp.lt.s32.totalorder %s397, 17
        %s401 = scalar_select %p400, %s397, 17
        %s402 = smul.addr %s401, 3
        %s403 = smul.addr %s399, 54
        %s404 = sadd.s32 %s402, %s403
        %s405 = smul.addr %s404, 4
        %s406 = scalar_lea.vmem %s2, %s405
        %s407 = smul.u32 %s25, 9
        %s408 = sadd.s32 %s407, 9
        %p409 = scmp.lt.s32.totalorder %s408, 17
        %s410 = scalar_select %p409, %s408, 17
      $region44: #{double_conv_forward.2} parent=31 // pred_fallthru
        _
    $region32: #{double_conv_forward.2} parent=5 // pred_fallthru
      _
    %p411 = scmp.le.s32.totalorder 1, %s16
    %p412 = scmp.lt.s32.totalorder %s16, 5
    %p413 = pnand %p411, %p412
    %p414 = pneg %p413
    // Predicated region
    $region45: #{double_conv_forward.2} parent=5 // pred_check
      _
    $region46: #{double_conv_forward.2} parent=5 // pred_check_branch
      %416 = sbr.rel (%p413) target = $region48
    $region47: #{double_conv_forward.2} parent=5 // pred_region
      %s417 = ssub.s32 %s16, 1
      %s418 = smul.u32 9, %s28
      %p419 = scmp.lt.s32.totalorder %s27, 1
      %s420 = scalar_select %p419, %s27, 1
      %p421 = scmp.lt.s32.totalorder %s418, 17
      %s422 = scalar_select %p421, %s418, 17
      %s423 = smul.addr %s422, 3
      %s424 = smul.addr %s420, 54
      %s425 = sadd.s32 %s423, %s424
      %s426 = smul.addr %s425, 4
      %s427 = scalar_lea.vmem %s0, %s426
      %p428 = pneg %p63
      %p429 = pneg %p60
      %s430 = smul.u32 %s28, 9
      %s431 = ssub.s32 %s430, 1
      %p432 = scmp.gt.s32.totalorder %s431, 0
      %s433 = scalar_select %p432, %s431, 0
      %p434 = scmp.lt.s32.totalorder %s27, 1
      %s435 = scalar_select %p434, %s27, 1
      %p436 = scmp.lt.s32.totalorder %s433, 17
      %s437 = scalar_select %p436, %s433, 17
      %s438 = smul.addr %s437, 3
      %s439 = smul.addr %s435, 54
      %s440 = sadd.s32 %s438, %s439
      %s441 = smul.addr %s440, 4
      %s442 = scalar_lea.vmem %s1, %s441
      %p443 = pneg %p99
      %p444 = pneg %p96
      %s445 = smul.u32 %s28, 9
      %s446 = sadd.s32 %s445, 9
      %p447 = scmp.lt.s32.totalorder %s446, 17
      %s448 = scalar_select %p447, %s446, 17
      %p449 = scmp.lt.s32.totalorder %s27, 1
      %s450 = scalar_select %p449, %s27, 1
      %p451 = scmp.lt.s32.totalorder %s448, 17
      %s452 = scalar_select %p451, %s448, 17
      %s453 = smul.addr %s452, 3
      %s454 = smul.addr %s450, 54
      %s455 = sadd.s32 %s453, %s454
      %s456 = smul.addr %s455, 4
      %s457 = scalar_lea.vmem %s2, %s456
      %p458 = pneg %p135
      %p459 = pneg %p132
      %p460 = scmp.lt.s32.totalorder %s26, 0
      %s461 = scalar_select %p460, %s26, 0
      %s462 = smul.addr %s461, 4
      %s463 = scalar_lea.vmem %s3, %s462
      %p464 = pneg %p161
      %p465 = pneg %p158
      %p466 = scmp.lt.s32.totalorder %s26, 0
      %s467 = scalar_select %p466, %s26, 0
      %s468 = scalar_lea.vmem %s4, %s467
      %p469 = pneg %p187
      %p470 = pneg %p184
      %p471 = pneg %p208
      %p472 = pneg %p205
      %p473 = pneg %p229
      %p474 = pneg %p226
      %p475 = pneg %p259
      %p476 = pneg %p256
      %s477 = smul.u32 9, %s28
      %p478 = scmp.lt.s32.totalorder %s27, 1
      %s479 = scalar_select %p478, %s27, 1
      %p480 = scmp.lt.s32.totalorder %s477, 17
      %s481 = scalar_select %p480, %s477, 17
      %p482 = scmp.lt.s32.totalorder %s26, 0
      %s483 = scalar_select %p482, %s26, 0
      %s484 = smul.addr %s481, 3
      %s485 = sadd.s32 %s483, %s484
      %s486 = smul.addr %s479, 54
      %s487 = sadd.s32 %s485, %s486
      %s488 = smul.addr %s487, 4
      %s489 = scalar_lea.vmem %s7, %s488
      %p490 = pneg %p289
      %p491 = pneg %p286
      %p492 = scmp.lt.s32.totalorder %s27, 1
      %s493 = scalar_select %p492, %s27, 1
      %p494 = scmp.lt.s32.totalorder %s28, 1
      %s495 = scalar_select %p494, %s28, 1
      %p496 = scmp.lt.s32.totalorder %s26, 0
      %s497 = scalar_select %p496, %s26, 0
      %s498 = sadd.s32 %s497, %s495
      %s499 = smul.addr %s493, 2
      %s500 = sadd.s32 %s498, %s499
      %s501 = scalar_lea.vmem %s8, %s500
      %p502 = pneg %p319
      %p503 = pneg %p316
      %p504 = scmp.lt.s32.totalorder %s27, 1
      %s505 = scalar_select %p504, %s27, 1
      %p506 = scmp.lt.s32.totalorder %s28, 1
      %s507 = scalar_select %p506, %s28, 1
      %p508 = scmp.lt.s32.totalorder %s26, 0
      %s509 = scalar_select %p508, %s26, 0
      %s510 = sadd.s32 %s509, %s507
      %s511 = smul.addr %s505, 2
      %s512 = sadd.s32 %s510, %s511
      %s513 = scalar_lea.vmem %s9, %s512
      %s514 = smul.u32 9, %s28
      %p515 = scmp.lt.s32.totalorder %s27, 1
      %s516 = scalar_select %p515, %s27, 1
      %p517 = scmp.lt.s32.totalorder %s514, 17
      %s518 = scalar_select %p517, %s514, 17
      %s519 = smul.addr %s518, 3
      %s520 = smul.addr %s516, 54
      %s521 = sadd.s32 %s519, %s520
      %s522 = smul.addr %s521, 4
      %s523 = scalar_lea.vmem %s0, %s522
      %s524 = smul.u32 9, %s28
      %s525 = smul.u32 %s28, 9
      %s526 = ssub.s32 %s525, 1
      %p527 = scmp.gt.s32.totalorder %s526, 0
      %s528 = scalar_select %p527, %s526, 0
      %p529 = scmp.lt.s32.totalorder %s27, 1
      %s530 = scalar_select %p529, %s27, 1
      %p531 = scmp.lt.s32.totalorder %s528, 17
      %s532 = scalar_select %p531, %s528, 17
      %s533 = smul.addr %s532, 3
      %s534 = smul.addr %s530, 54
      %s535 = sadd.s32 %s533, %s534
      %s536 = smul.addr %s535, 4
      %s537 = scalar_lea.vmem %s1, %s536
      %s538 = smul.u32 %s28, 9
      %s539 = ssub.s32 %s538, 1
      %p540 = scmp.gt.s32.totalorder %s539, 0
      %s541 = scalar_select %p540, %s539, 0
      %s542 = smul.u32 %s28, 9
      %s543 = sadd.s32 %s542, 9
      %p544 = scmp.lt.s32.totalorder %s543, 17
      %s545 = scalar_select %p544, %s543, 17
      %p546 = scmp.lt.s32.totalorder %s27, 1
      %s547 = scalar_select %p546, %s27, 1
      %p548 = scmp.lt.s32.totalorder %s545, 17
      %s549 = scalar_select %p548, %s545, 17
      %s550 = smul.addr %s549, 3
      %s551 = smul.addr %s547, 54
      %s552 = sadd.s32 %s550, %s551
      %s553 = smul.addr %s552, 4
      %s554 = scalar_lea.vmem %s2, %s553
      %s555 = smul.u32 %s28, 9
      %s556 = sadd.s32 %s555, 9
      %p557 = scmp.lt.s32.totalorder %s556, 17
      %s558 = scalar_select %p557, %s556, 17
      %p559 = scmp.lt.s32.totalorder %s26, 0
      %s560 = scalar_select %p559, %s26, 0
      %s561 = smul.addr %s560, 4
      %s562 = scalar_lea.vmem %s3, %s561
      %p563 = scmp.lt.s32.totalorder %s26, 0
      %s564 = scalar_select %p563, %s26, 0
      %s565 = scalar_lea.vmem %s4, %s564
      %s566 = smul.u32 9, %s28
      %p567 = scmp.lt.s32.totalorder %s27, 1
      %s568 = scalar_select %p567, %s27, 1
      %p569 = scmp.lt.s32.totalorder %s566, 17
      %s570 = scalar_select %p569, %s566, 17
      %p571 = scmp.lt.s32.totalorder %s26, 0
      %s572 = scalar_select %p571, %s26, 0
      %s573 = smul.addr %s570, 3
      %s574 = sadd.s32 %s572, %s573
      %s575 = smul.addr %s568, 54
      %s576 = sadd.s32 %s574, %s575
      %s577 = smul.addr %s576, 4
      %s578 = scalar_lea.vmem %s7, %s577
      %s579 = smul.u32 9, %s28
      %p580 = scmp.lt.s32.totalorder %s27, 1
      %s581 = scalar_select %p580, %s27, 1
      %p582 = scmp.lt.s32.totalorder %s28, 1
      %s583 = scalar_select %p582, %s28, 1
      %p584 = scmp.lt.s32.totalorder %s26, 0
      %s585 = scalar_select %p584, %s26, 0
      %s586 = sadd.s32 %s585, %s583
      %s587 = smul.addr %s581, 2
      %s588 = sadd.s32 %s586, %s587
      %s589 = scalar_lea.vmem %s8, %s588
      %p590 = scmp.lt.s32.totalorder %s27, 1
      %s591 = scalar_select %p590, %s27, 1
      %p592 = scmp.lt.s32.totalorder %s28, 1
      %s593 = scalar_select %p592, %s28, 1
      %p594 = scmp.lt.s32.totalorder %s26, 0
      %s595 = scalar_select %p594, %s26, 0
      %s596 = sadd.s32 %s595, %s593
      %s597 = smul.addr %s591, 2
      %s598 = sadd.s32 %s596, %s597
      %s599 = scalar_lea.vmem %s9, %s598
      %v601 = vld [vmem:[%s537] sm:$0xf]
      %v602 = vld [vmem:[%s537 + $0x4] sm:$0xf]
      %v603 = vld [vmem:[%s537 + $0x8] sm:$0xf]
      %vm604 = vcmask 27648
      %605 = vst.msk [vmem:[#allocation2 + $0x4] sm:$0xf] %vm604, %v601
      %606 = vst.msk [vmem:[#allocation2 + $0x8] sm:$0xf] %vm604, %v602
      %607 = vst.msk [vmem:[#allocation2 + $0xc] sm:$0xf] %vm604, %v603
      %v608 = vld [vmem:[%s523] sm:$0xf]
      %v609 = vld [vmem:[%s523 + $0x4] sm:$0xf]
      %v610 = vld [vmem:[%s523 + $0x8] sm:$0xf]
      %v611 = vld [vmem:[%s523 + $0xc] sm:$0xf]
      %v612 = vld [vmem:[%s523 + $0x10] sm:$0xf]
      %v613 = vld [vmem:[%s523 + $0x14] sm:$0xf]
      %v614 = vld [vmem:[%s523 + $0x18] sm:$0xf]
      %v615 = vld [vmem:[%s523 + $0x1c] sm:$0xf]
      %v616 = vld [vmem:[%s523 + $0x20] sm:$0xf]
      %v617 = vld [vmem:[%s523 + $0x24] sm:$0xf]
      %v618 = vld [vmem:[%s523 + $0x28] sm:$0xf]
      %v619 = vld [vmem:[%s523 + $0x2c] sm:$0xf]
      %v620 = vld [vmem:[%s523 + $0x30] sm:$0xf]
      %v621 = vld [vmem:[%s523 + $0x34] sm:$0xf]
      %v622 = vld [vmem:[%s523 + $0x38] sm:$0xf]
      %v623 = vld [vmem:[%s523 + $0x3c] sm:$0xf]
      %v624 = vld [vmem:[%s523 + $0x40] sm:$0xf]
      %v625 = vld [vmem:[%s523 + $0x44] sm:$0xf]
      %v626 = vld [vmem:[%s523 + $0x48] sm:$0xf]
      %v627 = vld [vmem:[%s523 + $0x4c] sm:$0xf]
      %v628 = vld [vmem:[%s523 + $0x50] sm:$0xf]
      %v629 = vld [vmem:[%s523 + $0x54] sm:$0xf]
      %v630 = vld [vmem:[%s523 + $0x58] sm:$0xf]
      %v631 = vld [vmem:[%s523 + $0x5c] sm:$0xf]
      %v632 = vld [vmem:[%s523 + $0x60] sm:$0xf]
      %v633 = vld [vmem:[%s523 + $0x64] sm:$0xf]
      %v634 = vld [vmem:[%s523 + $0x68] sm:$0xf]
      %s635 = scalar_lea.vmem [#allocation2], 20
      %636 = vst.msk [vmem:[%s635 + $0x4] sm:$0xf] %vm604, %v608
      %637 = vst.msk [vmem:[%s635 + $0x8] sm:$0xf] %vm604, %v609
      %638 = vst.msk [vmem:[%s635 + $0xc] sm:$0xf] %vm604, %v610
      %639 = vst.msk [vmem:[%s635 + $0x18] sm:$0xf] %vm604, %v611
      %640 = vst.msk [vmem:[%s635 + $0x1c] sm:$0xf] %vm604, %v612
      %641 = vst.msk [vmem:[%s635 + $0x20] sm:$0xf] %vm604, %v613
      %642 = vst.msk [vmem:[%s635 + $0x2c] sm:$0xf] %vm604, %v614
      %643 = vst.msk [vmem:[%s635 + $0x30] sm:$0xf] %vm604, %v615
      %644 = vst.msk [vmem:[%s635 + $0x34] sm:$0xf] %vm604, %v616
      %645 = vst.msk [vmem:[%s635 + $0x40] sm:$0xf] %vm604, %v617
      %646 = vst.msk [vmem:[%s635 + $0x44] sm:$0xf] %vm604, %v618
      %647 = vst.msk [vmem:[%s635 + $0x48] sm:$0xf] %vm604, %v619
      %648 = vst.msk [vmem:[%s635 + $0x54] sm:$0xf] %vm604, %v620
      %649 = vst.msk [vmem:[%s635 + $0x58] sm:$0xf] %vm604, %v621
      %650 = vst.msk [vmem:[%s635 + $0x5c] sm:$0xf] %vm604, %v622
      %651 = vst.msk [vmem:[%s635 + $0x68] sm:$0xf] %vm604, %v623
      %652 = vst.msk [vmem:[%s635 + $0x6c] sm:$0xf] %vm604, %v624
      %653 = vst.msk [vmem:[%s635 + $0x70] sm:$0xf] %vm604, %v625
      %654 = vst.msk [vmem:[%s635 + $0x7c] sm:$0xf] %vm604, %v626
      %655 = vst.msk [vmem:[%s635 + $0x80] sm:$0xf] %vm604, %v627
      %656 = vst.msk [vmem:[%s635 + $0x84] sm:$0xf] %vm604, %v628
      %657 = vst.msk [vmem:[%s635 + $0x90] sm:$0xf] %vm604, %v629
      %658 = vst.msk [vmem:[%s635 + $0x94] sm:$0xf] %vm604, %v630
      %659 = vst.msk [vmem:[%s635 + $0x98] sm:$0xf] %vm604, %v631
      %660 = vst.msk [vmem:[%s635 + $0xa4] sm:$0xf] %vm604, %v632
      %661 = vst.msk [vmem:[%s635 + $0xa8] sm:$0xf] %vm604, %v633
      %662 = vst.msk [vmem:[%s635 + $0xac] sm:$0xf] %vm604, %v634
      %v663 = vld [vmem:[%s554] sm:$0xf]
      %v664 = vld [vmem:[%s554 + $0x4] sm:$0xf]
      %v665 = vld [vmem:[%s554 + $0x8] sm:$0xf]
      %s666 = scalar_lea.vmem [#allocation2], 200
      %667 = vst.msk [vmem:[%s666 + $0x4] sm:$0xf] %vm604, %v663
      %668 = vst.msk [vmem:[%s666 + $0x8] sm:$0xf] %vm604, %v664
      %669 = vst.msk [vmem:[%s666 + $0xc] sm:$0xf] %vm604, %v665
      %v670 = vld [vmem:[#allocation2] sm:$0x8]
      %v671 = vld [vmem:[#allocation2 + $0x4] sm:$0xf]
      %v672 = vld [vmem:[#allocation2 + $0x8] sm:$0xf]
      %v673 = vld [vmem:[#allocation2 + $0xc] sm:$0xf]
      %v674 = vld [vmem:[#allocation2 + $0x14] sm:$0x8]
      %v675 = vld [vmem:[#allocation2 + $0x18] sm:$0xf]
      %v676 = vld [vmem:[#allocation2 + $0x1c] sm:$0xf]
      %v677 = vld [vmem:[#allocation2 + $0x20] sm:$0xf]
      %v678 = vld [vmem:[#allocation2 + $0x28] sm:$0x8]
      %v679 = vld [vmem:[#allocation2 + $0x2c] sm:$0xf]
      %v680 = vld [vmem:[#allocation2 + $0x30] sm:$0xf]
      %v681 = vld [vmem:[#allocation2 + $0x34] sm:$0xf]
      %v682 = vld [vmem:[#allocation2 + $0x3c] sm:$0x8]
      %v683 = vld [vmem:[#allocation2 + $0x40] sm:$0xf]
      %v684 = vld [vmem:[#allocation2 + $0x44] sm:$0xf]
      %v685 = vld [vmem:[#allocation2 + $0x48] sm:$0xf]
      %v686 = vld [vmem:[#allocation2 + $0x50] sm:$0x8]
      %v687 = vld [vmem:[#allocation2 + $0x54] sm:$0xf]
      %v688 = vld [vmem:[#allocation2 + $0x58] sm:$0xf]
      %v689 = vld [vmem:[#allocation2 + $0x5c] sm:$0xf]
      %v690 = vld [vmem:[#allocation2 + $0x64] sm:$0x8]
      %v691 = vld [vmem:[#allocation2 + $0x68] sm:$0xf]
      %v692 = vld [vmem:[#allocation2 + $0x6c] sm:$0xf]
      %v693 = vld [vmem:[#allocation2 + $0x70] sm:$0xf]
      %v694 = vld [vmem:[#allocation2 + $0x78] sm:$0x8]
      %v695 = vld [vmem:[#allocation2 + $0x7c] sm:$0xf]
      %v696 = vld [vmem:[#allocation2 + $0x80] sm:$0xf]
      %v697 = vld [vmem:[#allocation2 + $0x84] sm:$0xf]
      %v698 = vld [vmem:[#allocation2 + $0x8c] sm:$0x8]
      %v699 = vld [vmem:[#allocation2 + $0x90] sm:$0xf]
      %v700 = vld [vmem:[#allocation2 + $0x94] sm:$0xf]
      %v701 = vld [vmem:[#allocation2 + $0x98] sm:$0xf]
      %v702 = vld [vmem:[#allocation2 + $0xa0] sm:$0x8]
      %v703 = vld [vmem:[#allocation2 + $0xa4] sm:$0xf]
      %v704 = vld [vmem:[#allocation2 + $0xa8] sm:$0xf]
      %v705 = vld [vmem:[#allocation2 + $0xac] sm:$0xf]
      %v706 = vld [vmem:[#allocation2 + $0xb4] sm:$0x8]
      %v707 = vld [vmem:[#allocation2 + $0xb8] sm:$0xf]
      %v708 = vld [vmem:[#allocation2 + $0xbc] sm:$0xf]
      %v709 = vld [vmem:[#allocation2 + $0xc0] sm:$0xf]
      %v710 = vld [vmem:[#allocation2 + $0xc8] sm:$0x8]
      %v711 = vld [vmem:[#allocation2 + $0xcc] sm:$0xf]
      %v712 = vld [vmem:[#allocation2 + $0xd0] sm:$0xf]
      %v713 = vld [vmem:[#allocation2 + $0xd4] sm:$0xf]
      %v714 = vld [vmem:[#allocation2 + $0x10] sm:$0x1]
      %v715 = vld [vmem:[#allocation2 + $0x24] sm:$0x1]
      %v716 = vld [vmem:[#allocation2 + $0x38] sm:$0x1]
      %v717 = vld [vmem:[#allocation2 + $0x4c] sm:$0x1]
      %v718 = vld [vmem:[#allocation2 + $0x60] sm:$0x1]
      %v719 = vld [vmem:[#allocation2 + $0x74] sm:$0x1]
      %v720 = vld [vmem:[#allocation2 + $0x88] sm:$0x1]
      %v721 = vld [vmem:[#allocation2 + $0x9c] sm:$0x1]
      %v722 = vld [vmem:[#allocation2 + $0xb0] sm:$0x1]
      %v723 = vld [vmem:[#allocation2 + $0xc4] sm:$0x1]
      %v724 = vld [vmem:[#allocation2 + $0xd8] sm:$0x1]
      %v769 = vunpack.c.l.b16 %v670
      %v770 = vunpack.c.l.b16 %v671
      %v771 = vunpack.c.l.b16 %v672
      %v772 = vunpack.c.l.b16 %v673
      %v773 = vunpack.c.l.b16 %v674
      %v774 = vunpack.c.l.b16 %v675
      %v775 = vunpack.c.l.b16 %v676
      %v776 = vunpack.c.l.b16 %v677
      %v777 = vunpack.c.l.b16 %v678
      %v778 = vunpack.c.l.b16 %v679
      %v779 = vunpack.c.l.b16 %v680
      %v780 = vunpack.c.l.b16 %v681
      %v781 = vunpack.c.l.b16 %v682
      %v782 = vunpack.c.l.b16 %v683
      %v783 = vunpack.c.l.b16 %v684
      %v784 = vunpack.c.l.b16 %v685
      %v785 = vunpack.c.l.b16 %v686
      %v786 = vunpack.c.l.b16 %v687
      %v787 = vunpack.c.l.b16 %v688
      %v788 = vunpack.c.l.b16 %v689
      %v789 = vunpack.c.l.b16 %v690
      %v790 = vunpack.c.l.b16 %v691
      %v791 = vunpack.c.l.b16 %v692
      %v792 = vunpack.c.l.b16 %v693
      %v793 = vunpack.c.l.b16 %v694
      %v794 = vunpack.c.l.b16 %v695
      %v795 = vunpack.c.l.b16 %v696
      %v796 = vunpack.c.l.b16 %v697
      %v797 = vunpack.c.l.b16 %v698
      %v798 = vunpack.c.l.b16 %v699
      %v799 = vunpack.c.l.b16 %v700
      %v800 = vunpack.c.l.b16 %v701
      %v801 = vunpack.c.l.b16 %v702
      %v802 = vunpack.c.l.b16 %v703
      %v803 = vunpack.c.l.b16 %v704
      %v804 = vunpack.c.l.b16 %v705
      %v805 = vunpack.c.l.b16 %v706
      %v806 = vunpack.c.l.b16 %v707
      %v807 = vunpack.c.l.b16 %v708
      %v808 = vunpack.c.l.b16 %v709
      %v809 = vunpack.c.l.b16 %v710
      %v810 = vunpack.c.l.b16 %v711
      %v811 = vunpack.c.l.b16 %v712
      %v812 = vunpack.c.l.b16 %v713
      %v813 = vpack.c.b16 %v770, %v769
      %v814 = vpack.c.b16 %v772, %v771
      %v815 = vpack.c.b16 %v774, %v773
      %v816 = vpack.c.b16 %v776, %v775
      %v817 = vpack.c.b16 %v778, %v777
      %v818 = vpack.c.b16 %v780, %v779
      %v819 = vpack.c.b16 %v782, %v781
      %v820 = vpack.c.b16 %v784, %v783
      %v821 = vpack.c.b16 %v786, %v785
      %v822 = vpack.c.b16 %v788, %v787
      %v823 = vpack.c.b16 %v790, %v789
      %v824 = vpack.c.b16 %v792, %v791
      %v825 = vpack.c.b16 %v794, %v793
      %v826 = vpack.c.b16 %v796, %v795
      %v827 = vpack.c.b16 %v798, %v797
      %v828 = vpack.c.b16 %v800, %v799
      %v829 = vpack.c.b16 %v802, %v801
      %v830 = vpack.c.b16 %v804, %v803
      %v831 = vpack.c.b16 %v806, %v805
      %v832 = vpack.c.b16 %v808, %v807
      %v833 = vpack.c.b16 %v810, %v809
      %v834 = vpack.c.b16 %v812, %v811
      %v835 = vpack.c.b16 %v771, %v770
      %v836 = vpack.c.b16 %v772, %v772
      %v837 = vpack.c.b16 %v775, %v774
      %v838 = vpack.c.b16 %v776, %v776
      %v839 = vpack.c.b16 %v779, %v778
      %v840 = vpack.c.b16 %v780, %v780
      %v841 = vpack.c.b16 %v783, %v782
      %v842 = vpack.c.b16 %v784, %v784
      %v843 = vpack.c.b16 %v787, %v786
      %v844 = vpack.c.b16 %v788, %v788
      %v845 = vpack.c.b16 %v791, %v790
      %v846 = vpack.c.b16 %v792, %v792
      %v847 = vpack.c.b16 %v795, %v794
      %v848 = vpack.c.b16 %v796, %v796
      %v849 = vpack.c.b16 %v799, %v798
      %v850 = vpack.c.b16 %v800, %v800
      %v851 = vpack.c.b16 %v803, %v802
      %v852 = vpack.c.b16 %v804, %v804
      %v853 = vpack.c.b16 %v807, %v806
      %v854 = vpack.c.b16 %v808, %v808
      %v855 = vpack.c.b16 %v811, %v810
      %v856 = vpack.c.b16 %v812, %v812
      %vm857 = vsmask.f32 3328
      %v859 = vshrl.u32 %v835, 16
      %v861 = vrot.slane %v859, 4
      %v862 = vshll.u32 %v835, 16
      %v864 = vrot.slane %v862, 5
      %v865 = vor.u32 %v861, %v864
      %v867 = vshrl.u32 %v836, 16
      %v869 = vrot.slane %v867, 4
      %v870 = vshll.u32 %v836, 16
      %v872 = vrot.slane %v870, 5
      %v873 = vor.u32 %v869, %v872
      %v874 = vsel %vm857, %v865, %v873
      %v876 = vshrl.u32 %v837, 16
      %v878 = vrot.slane %v876, 4
      %v879 = vshll.u32 %v837, 16
      %v881 = vrot.slane %v879, 5
      %v882 = vor.u32 %v878, %v881
      %v884 = vshrl.u32 %v838, 16
      %v886 = vrot.slane %v884, 4
      %v887 = vshll.u32 %v838, 16
      %v889 = vrot.slane %v887, 5
      %v890 = vor.u32 %v886, %v889
      %v891 = vsel %vm857, %v882, %v890
      %v893 = vshrl.u32 %v839, 16
      %v895 = vrot.slane %v893, 4
      %v896 = vshll.u32 %v839, 16
      %v898 = vrot.slane %v896, 5
      %v899 = vor.u32 %v895, %v898
      %v901 = vshrl.u32 %v840, 16
      %v903 = vrot.slane %v901, 4
      %v904 = vshll.u32 %v840, 16
      %v906 = vrot.slane %v904, 5
      %v907 = vor.u32 %v903, %v906
      %v908 = vsel %vm857, %v899, %v907
      %v910 = vshrl.u32 %v841, 16
      %v912 = vrot.slane %v910, 4
      %v913 = vshll.u32 %v841, 16
      %v915 = vrot.slane %v913, 5
      %v916 = vor.u32 %v912, %v915
      %v918 = vshrl.u32 %v842, 16
      %v920 = vrot.slane %v918, 4
      %v921 = vshll.u32 %v842, 16
      %v923 = vrot.slane %v921, 5
      %v924 = vor.u32 %v920, %v923
      %v925 = vsel %vm857, %v916, %v924
      %v927 = vshrl.u32 %v843, 16
      %v929 = vrot.slane %v927, 4
      %v930 = vshll.u32 %v843, 16
      %v932 = vrot.slane %v930, 5
      %v933 = vor.u32 %v929, %v932
      %v935 = vshrl.u32 %v844, 16
      %v937 = vrot.slane %v935, 4
      %v938 = vshll.u32 %v844, 16
      %v940 = vrot.slane %v938, 5
      %v941 = vor.u32 %v937, %v940
      %v942 = vsel %vm857, %v933, %v941
      %v944 = vshrl.u32 %v845, 16
      %v946 = vrot.slane %v944, 4
      %v947 = vshll.u32 %v845, 16
      %v949 = vrot.slane %v947, 5
      %v950 = vor.u32 %v946, %v949
      %v952 = vshrl.u32 %v846, 16
      %v954 = vrot.slane %v952, 4
      %v955 = vshll.u32 %v846, 16
      %v957 = vrot.slane %v955, 5
      %v958 = vor.u32 %v954, %v957
      %v959 = vsel %vm857, %v950, %v958
      %v961 = vshrl.u32 %v847, 16
      %v963 = vrot.slane %v961, 4
      %v964 = vshll.u32 %v847, 16
      %v966 = vrot.slane %v964, 5
      %v967 = vor.u32 %v963, %v966
      %v969 = vshrl.u32 %v848, 16
      %v971 = vrot.slane %v969, 4
      %v972 = vshll.u32 %v848, 16
      %v974 = vrot.slane %v972, 5
      %v975 = vor.u32 %v971, %v974
      %v976 = vsel %vm857, %v967, %v975
      %v978 = vshrl.u32 %v849, 16
      %v980 = vrot.slane %v978, 4
      %v981 = vshll.u32 %v849, 16
      %v983 = vrot.slane %v981, 5
      %v984 = vor.u32 %v980, %v983
      %v986 = vshrl.u32 %v850, 16
      %v988 = vrot.slane %v986, 4
      %v989 = vshll.u32 %v850, 16
      %v991 = vrot.slane %v989, 5
      %v992 = vor.u32 %v988, %v991
      %v993 = vsel %vm857, %v984, %v992
      %v995 = vshrl.u32 %v851, 16
      %v997 = vrot.slane %v995, 4
      %v998 = vshll.u32 %v851, 16
      %v1000 = vrot.slane %v998, 5
      %v1001 = vor.u32 %v997, %v1000
      %v1003 = vshrl.u32 %v852, 16
      %v1005 = vrot.slane %v1003, 4
      %v1006 = vshll.u32 %v852, 16
      %v1008 = vrot.slane %v1006, 5
      %v1009 = vor.u32 %v1005, %v1008
      %v1010 = vsel %vm857, %v1001, %v1009
      %v1012 = vshrl.u32 %v853, 16
      %v1014 = vrot.slane %v1012, 4
      %v1015 = vshll.u32 %v853, 16
      %v1017 = vrot.slane %v1015, 5
      %v1018 = vor.u32 %v1014, %v1017
      %v1020 = vshrl.u32 %v854, 16
      %v1022 = vrot.slane %v1020, 4
      %v1023 = vshll.u32 %v854, 16
      %v1025 = vrot.slane %v1023, 5
      %v1026 = vor.u32 %v1022, %v1025
      %v1027 = vsel %vm857, %v1018, %v1026
      %v1029 = vshrl.u32 %v855, 16
      %v1031 = vrot.slane %v1029, 4
      %v1032 = vshll.u32 %v855, 16
      %v1034 = vrot.slane %v1032, 5
      %v1035 = vor.u32 %v1031, %v1034
      %v1037 = vshrl.u32 %v856, 16
      %v1039 = vrot.slane %v1037, 4
      %v1040 = vshll.u32 %v856, 16
      %v1042 = vrot.slane %v1040, 5
      %v1043 = vor.u32 %v1039, %v1042
      %v1044 = vsel %vm857, %v1035, %v1043
      %1045 = vrot.lane.b32.xlu0 %v865, 4
      %v1046 = vpop.permute.xlu0 %1045
      %1047 = vrot.lane.b32.xlu0 %v874, 4
      %v1048 = vpop.permute.xlu0 %1047
      %1049 = vrot.lane.b32.xlu0 %v882, 4
      %v1050 = vpop.permute.xlu0 %1049
      %1051 = vrot.lane.b32.xlu0 %v891, 4
      %v1052 = vpop.permute.xlu0 %1051
      %1053 = vrot.lane.b32.xlu0 %v899, 4
      %v1054 = vpop.permute.xlu0 %1053
      %1055 = vrot.lane.b32.xlu0 %v908, 4
      %v1056 = vpop.permute.xlu0 %1055
      %1057 = vrot.lane.b32.xlu0 %v916, 4
      %v1058 = vpop.permute.xlu0 %1057
      %1059 = vrot.lane.b32.xlu0 %v925, 4
      %v1060 = vpop.permute.xlu0 %1059
      %1061 = vrot.lane.b32.xlu0 %v933, 4
      %v1062 = vpop.permute.xlu0 %1061
      %1063 = vrot.lane.b32.xlu0 %v942, 4
      %v1064 = vpop.permute.xlu0 %1063
      %1065 = vrot.lane.b32.xlu0 %v950, 4
      %v1066 = vpop.permute.xlu0 %1065
      %1067 = vrot.lane.b32.xlu0 %v959, 4
      %v1068 = vpop.permute.xlu0 %1067
      %1069 = vrot.lane.b32.xlu0 %v967, 4
      %v1070 = vpop.permute.xlu0 %1069
      %1071 = vrot.lane.b32.xlu0 %v976, 4
      %v1072 = vpop.permute.xlu0 %1071
      %1073 = vrot.lane.b32.xlu0 %v984, 4
      %v1074 = vpop.permute.xlu0 %1073
      %1075 = vrot.lane.b32.xlu0 %v993, 4
      %v1076 = vpop.permute.xlu0 %1075
      %1077 = vrot.lane.b32.xlu0 %v1001, 4
      %v1078 = vpop.permute.xlu0 %1077
      %1079 = vrot.lane.b32.xlu0 %v1010, 4
      %v1080 = vpop.permute.xlu0 %1079
      %1081 = vrot.lane.b32.xlu0 %v1018, 4
      %v1082 = vpop.permute.xlu0 %1081
      %1083 = vrot.lane.b32.xlu0 %v1027, 4
      %v1084 = vpop.permute.xlu0 %1083
      %1085 = vrot.lane.b32.xlu0 %v1035, 4
      %v1086 = vpop.permute.xlu0 %1085
      %1087 = vrot.lane.b32.xlu0 %v1044, 4
      %v1088 = vpop.permute.xlu0 %1087
      %v1100 = vunpack.c.l.b16 %v714
      %v1101 = vunpack.c.l.b16 %v715
      %v1102 = vunpack.c.l.b16 %v716
      %v1103 = vunpack.c.l.b16 %v717
      %v1104 = vunpack.c.l.b16 %v718
      %v1105 = vunpack.c.l.b16 %v719
      %v1106 = vunpack.c.l.b16 %v720
      %v1107 = vunpack.c.l.b16 %v721
      %v1108 = vunpack.c.l.b16 %v722
      %v1109 = vunpack.c.l.b16 %v723
      %v1110 = vunpack.c.l.b16 %v724
      %v1111 = vpack.c.b16 %v1100, %v772
      %v1112 = vpack.c.b16 %v1101, %v776
      %v1113 = vpack.c.b16 %v1102, %v780
      %v1114 = vpack.c.b16 %v1103, %v784
      %v1115 = vpack.c.b16 %v1104, %v788
      %v1116 = vpack.c.b16 %v1105, %v792
      %v1117 = vpack.c.b16 %v1106, %v796
      %v1118 = vpack.c.b16 %v1107, %v800
      %v1119 = vpack.c.b16 %v1108, %v804
      %v1120 = vpack.c.b16 %v1109, %v808
      %v1121 = vpack.c.b16 %v1110, %v812
      %vm1122 = vcmask 1042432
      %v1123 = vrot.slane %v835, 5
      %v1124 = vrot.slane %v1111, 5
      %v1125 = vsel %vm1122, %v1123, %v1124
      %v1126 = vrot.slane %v837, 5
      %v1127 = vrot.slane %v1112, 5
      %v1128 = vsel %vm1122, %v1126, %v1127
      %v1129 = vrot.slane %v839, 5
      %v1130 = vrot.slane %v1113, 5
      %v1131 = vsel %vm1122, %v1129, %v1130
      %v1132 = vrot.slane %v841, 5
      %v1133 = vrot.slane %v1114, 5
      %v1134 = vsel %vm1122, %v1132, %v1133
      %v1135 = vrot.slane %v843, 5
      %v1136 = vrot.slane %v1115, 5
      %v1137 = vsel %vm1122, %v1135, %v1136
      %v1138 = vrot.slane %v845, 5
      %v1139 = vrot.slane %v1116, 5
      %v1140 = vsel %vm1122, %v1138, %v1139
      %v1141 = vrot.slane %v847, 5
      %v1142 = vrot.slane %v1117, 5
      %v1143 = vsel %vm1122, %v1141, %v1142
      %v1144 = vrot.slane %v849, 5
      %v1145 = vrot.slane %v1118, 5
      %v1146 = vsel %vm1122, %v1144, %v1145
      %v1147 = vrot.slane %v851, 5
      %v1148 = vrot.slane %v1119, 5
      %v1149 = vsel %vm1122, %v1147, %v1148
      %v1150 = vrot.slane %v853, 5
      %v1151 = vrot.slane %v1120, 5
      %v1152 = vsel %vm1122, %v1150, %v1151
      %v1153 = vrot.slane %v855, 5
      %v1154 = vrot.slane %v1121, 5
      %v1155 = vsel %vm1122, %v1153, %v1154
      %1156 = vrot.lane.b32.xlu0 %v1123, 8
      %v1157 = vpop.permute.xlu0 %1156
      %1158 = vrot.lane.b32.xlu0 %v1125, 8
      %v1159 = vpop.permute.xlu0 %1158
      %1160 = vrot.lane.b32.xlu0 %v1126, 8
      %v1161 = vpop.permute.xlu0 %1160
      %1162 = vrot.lane.b32.xlu0 %v1128, 8
      %v1163 = vpop.permute.xlu0 %1162
      %1164 = vrot.lane.b32.xlu0 %v1129, 8
      %v1165 = vpop.permute.xlu0 %1164
      %1166 = vrot.lane.b32.xlu0 %v1131, 8
      %v1167 = vpop.permute.xlu0 %1166
      %1168 = vrot.lane.b32.xlu0 %v1132, 8
      %v1169 = vpop.permute.xlu0 %1168
      %1170 = vrot.lane.b32.xlu0 %v1134, 8
      %v1171 = vpop.permute.xlu0 %1170
      %1172 = vrot.lane.b32.xlu0 %v1135, 8
      %v1173 = vpop.permute.xlu0 %1172
      %1174 = vrot.lane.b32.xlu0 %v1137, 8
      %v1175 = vpop.permute.xlu0 %1174
      %1176 = vrot.lane.b32.xlu0 %v1138, 8
      %v1177 = vpop.permute.xlu0 %1176
      %1178 = vrot.lane.b32.xlu0 %v1140, 8
      %v1179 = vpop.permute.xlu0 %1178
      %1180 = vrot.lane.b32.xlu0 %v1141, 8
      %v1181 = vpop.permute.xlu0 %1180
      %1182 = vrot.lane.b32.xlu0 %v1143, 8
      %v1183 = vpop.permute.xlu0 %1182
      %1184 = vrot.lane.b32.xlu0 %v1144, 8
      %v1185 = vpop.permute.xlu0 %1184
      %1186 = vrot.lane.b32.xlu0 %v1146, 8
      %v1187 = vpop.permute.xlu0 %1186
      %1188 = vrot.lane.b32.xlu0 %v1147, 8
      %v1189 = vpop.permute.xlu0 %1188
      %1190 = vrot.lane.b32.xlu0 %v1149, 8
      %v1191 = vpop.permute.xlu0 %1190
      %1192 = vrot.lane.b32.xlu0 %v1150, 8
      %v1193 = vpop.permute.xlu0 %1192
      %1194 = vrot.lane.b32.xlu0 %v1152, 8
      %v1195 = vpop.permute.xlu0 %1194
      %1196 = vrot.lane.b32.xlu0 %v1153, 8
      %v1197 = vpop.permute.xlu0 %1196
      %1198 = vrot.lane.b32.xlu0 %v1155, 8
      %v1199 = vpop.permute.xlu0 %1198
      %vm1200 = vcmask 31744
      %v1203 = vsel %vm1200, %v813, %v1046
      %v1206 = vsel %vm1200, %v814, %v1048
      %v1209 = vsel %vm1200, %v815, %v1050
      %v1212 = vsel %vm1200, %v816, %v1052
      %v1215 = vsel %vm1200, %v817, %v1054
      %v1218 = vsel %vm1200, %v818, %v1056
      %v1221 = vsel %vm1200, %v819, %v1058
      %v1224 = vsel %vm1200, %v820, %v1060
      %v1227 = vsel %vm1200, %v821, %v1062
      %v1230 = vsel %vm1200, %v822, %v1064
      %v1233 = vsel %vm1200, %v823, %v1066
      %v1236 = vsel %vm1200, %v824, %v1068
      %v1239 = vsel %vm1200, %v825, %v1070
      %v1242 = vsel %vm1200, %v826, %v1072
      %v1245 = vsel %vm1200, %v827, %v1074
      %v1248 = vsel %vm1200, %v828, %v1076
      %v1251 = vsel %vm1200, %v829, %v1078
      %v1254 = vsel %vm1200, %v830, %v1080
      %v1257 = vsel %vm1200, %v831, %v1082
      %v1260 = vsel %vm1200, %v832, %v1084
      %v1263 = vsel %vm1200, %v833, %v1086
      %v1266 = vsel %vm1200, %v834, %v1088
      %vm1267 = vcmask 64512
      %v1269 = vsel %vm1267, %v1203, %v1157
      %v1271 = vsel %vm1267, %v1206, %v1159
      %v1273 = vsel %vm1267, %v1209, %v1161
      %v1275 = vsel %vm1267, %v1212, %v1163
      %v1277 = vsel %vm1267, %v1215, %v1165
      %v1279 = vsel %vm1267, %v1218, %v1167
      %v1281 = vsel %vm1267, %v1221, %v1169
      %v1283 = vsel %vm1267, %v1224, %v1171
      %v1285 = vsel %vm1267, %v1227, %v1173
      %v1287 = vsel %vm1267, %v1230, %v1175
      %v1289 = vsel %vm1267, %v1233, %v1177
      %v1291 = vsel %vm1267, %v1236, %v1179
      %v1293 = vsel %vm1267, %v1239, %v1181
      %v1295 = vsel %vm1267, %v1242, %v1183
      %v1297 = vsel %vm1267, %v1245, %v1185
      %v1299 = vsel %vm1267, %v1248, %v1187
      %v1301 = vsel %vm1267, %v1251, %v1189
      %v1303 = vsel %vm1267, %v1254, %v1191
      %v1305 = vsel %vm1267, %v1257, %v1193
      %v1307 = vsel %vm1267, %v1260, %v1195
      %v1309 = vsel %vm1267, %v1263, %v1197
      %v1311 = vsel %vm1267, %v1266, %v1199
      %v1334 = vunpack.c.l.b16 %v1269
      %v1335 = vunpack.c.h.b16 %v1269
      %v1336 = vunpack.c.l.b16 %v1271
      %v1337 = vunpack.c.h.b16 %v1271
      %v1338 = vunpack.c.l.b16 %v1273
      %v1339 = vunpack.c.h.b16 %v1273
      %v1340 = vunpack.c.l.b16 %v1275
      %v1341 = vunpack.c.h.b16 %v1275
      %v1342 = vunpack.c.l.b16 %v1277
      %v1343 = vunpack.c.h.b16 %v1277
      %v1344 = vunpack.c.l.b16 %v1279
      %v1345 = vunpack.c.h.b16 %v1279
      %v1346 = vunpack.c.l.b16 %v1281
      %v1347 = vunpack.c.h.b16 %v1281
      %v1348 = vunpack.c.l.b16 %v1283
      %v1349 = vunpack.c.h.b16 %v1283
      %v1350 = vunpack.c.l.b16 %v1285
      %v1351 = vunpack.c.h.b16 %v1285
      %v1352 = vunpack.c.l.b16 %v1287
      %v1353 = vunpack.c.h.b16 %v1287
      %v1354 = vunpack.c.l.b16 %v1289
      %v1355 = vunpack.c.h.b16 %v1289
      %v1356 = vunpack.c.l.b16 %v1291
      %v1357 = vunpack.c.h.b16 %v1291
      %v1358 = vunpack.c.l.b16 %v1293
      %v1359 = vunpack.c.h.b16 %v1293
      %v1360 = vunpack.c.l.b16 %v1295
      %v1361 = vunpack.c.h.b16 %v1295
      %v1362 = vunpack.c.l.b16 %v1297
      %v1363 = vunpack.c.h.b16 %v1297
      %v1364 = vunpack.c.l.b16 %v1299
      %v1365 = vunpack.c.h.b16 %v1299
      %v1366 = vunpack.c.l.b16 %v1301
      %v1367 = vunpack.c.h.b16 %v1301
      %v1368 = vunpack.c.l.b16 %v1303
      %v1369 = vunpack.c.h.b16 %v1303
      %v1370 = vunpack.c.l.b16 %v1305
      %v1371 = vunpack.c.h.b16 %v1305
      %v1372 = vunpack.c.l.b16 %v1307
      %v1373 = vunpack.c.h.b16 %v1307
      %v1374 = vunpack.c.l.b16 %v1309
      %v1375 = vunpack.c.h.b16 %v1309
      %v1376 = vunpack.c.l.b16 %v1311
      %v1377 = vunpack.c.h.b16 %v1311
      %v1378 = vpack.c.b16 %v1334, %v1334
      %v1379 = vpack.c.b16 %v1335, %v1335
      %v1380 = vpack.c.b16 %v1336, %v1336
      %v1381 = vpack.c.b16 %v1337, %v1337
      %v1382 = vpack.c.b16 %v1338, %v1338
      %v1383 = vpack.c.b16 %v1339, %v1339
      %v1384 = vpack.c.b16 %v1340, %v1340
      %v1385 = vpack.c.b16 %v1341, %v1341
      %v1386 = vpack.c.b16 %v1342, %v1342
      %v1387 = vpack.c.b16 %v1343, %v1343
      %v1388 = vpack.c.b16 %v1344, %v1344
      %v1389 = vpack.c.b16 %v1345, %v1345
      %v1390 = vpack.c.b16 %v1346, %v1346
      %v1391 = vpack.c.b16 %v1347, %v1347
      %v1392 = vpack.c.b16 %v1348, %v1348
      %v1393 = vpack.c.b16 %v1349, %v1349
      %v1394 = vpack.c.b16 %v1350, %v1350
      %v1395 = vpack.c.b16 %v1351, %v1351
      %v1396 = vpack.c.b16 %v1352, %v1352
      %v1397 = vpack.c.b16 %v1353, %v1353
      %v1398 = vpack.c.b16 %v1354, %v1354
      %v1399 = vpack.c.b16 %v1355, %v1355
      %v1400 = vpack.c.b16 %v1356, %v1356
      %v1401 = vpack.c.b16 %v1357, %v1357
      %v1402 = vpack.c.b16 %v1358, %v1358
      %v1403 = vpack.c.b16 %v1359, %v1359
      %v1404 = vpack.c.b16 %v1360, %v1360
      %v1405 = vpack.c.b16 %v1361, %v1361
      %v1406 = vpack.c.b16 %v1362, %v1362
      %v1407 = vpack.c.b16 %v1363, %v1363
      %v1408 = vpack.c.b16 %v1364, %v1364
      %v1409 = vpack.c.b16 %v1365, %v1365
      %v1410 = vpack.c.b16 %v1366, %v1366
      %v1411 = vpack.c.b16 %v1367, %v1367
      %v1412 = vpack.c.b16 %v1368, %v1368
      %v1413 = vpack.c.b16 %v1369, %v1369
      %v1414 = vpack.c.b16 %v1370, %v1370
      %v1415 = vpack.c.b16 %v1371, %v1371
      %v1416 = vpack.c.b16 %v1372, %v1372
      %v1417 = vpack.c.b16 %v1373, %v1373
      %v1418 = vpack.c.b16 %v1374, %v1374
      %v1419 = vpack.c.b16 %v1375, %v1375
      %v1420 = vpack.c.b16 %v1376, %v1376
      %v1421 = vpack.c.b16 %v1377, %v1377
      %vm1422 = vsmask.f32 256
      %vm1423 = vsmask.f32 4368
      %vm1424 = vmor %vm1422, %vm1423
      %v1426 = vshrl.u32 %v1378, 16
      %v1428 = vrot.slane %v1426, 7
      %v1429 = vrot.slane %v1428, 4
      %v1431 = vshrl.u32 %v1379, 16
      %v1433 = vrot.slane %v1431, 7
      %v1434 = vshll.u32 %v1379, 16
      %v1436 = vor.u32 %v1433, %v1434
      %v1437 = vsel %vm1424, %v1429, %v1436
      %v1438 = vrot.slane %v1433, 4
      %v1440 = vshrl.u32 %v1380, 16
      %v1442 = vrot.slane %v1440, 7
      %v1443 = vshll.u32 %v1380, 16
      %v1445 = vor.u32 %v1442, %v1443
      %v1446 = vsel %vm1424, %v1438, %v1445
      %v1447 = vrot.slane %v1442, 4
      %v1449 = vshrl.u32 %v1381, 16
      %v1451 = vrot.slane %v1449, 7
      %v1452 = vshll.u32 %v1381, 16
      %v1454 = vor.u32 %v1451, %v1452
      %v1455 = vsel %vm1424, %v1447, %v1454
      %v1457 = vshrl.u32 %v1382, 16
      %v1459 = vrot.slane %v1457, 7
      %v1460 = vrot.slane %v1459, 4
      %v1462 = vshrl.u32 %v1383, 16
      %v1464 = vrot.slane %v1462, 7
      %v1465 = vshll.u32 %v1383, 16
      %v1467 = vor.u32 %v1464, %v1465
      %v1468 = vsel %vm1424, %v1460, %v1467
      %v1469 = vrot.slane %v1464, 4
      %v1471 = vshrl.u32 %v1384, 16
      %v1473 = vrot.slane %v1471, 7
      %v1474 = vshll.u32 %v1384, 16
      %v1476 = vor.u32 %v1473, %v1474
      %v1477 = vsel %vm1424, %v1469, %v1476
      %v1478 = vrot.slane %v1473, 4
      %v1480 = vshrl.u32 %v1385, 16
      %v1482 = vrot.slane %v1480, 7
      %v1483 = vshll.u32 %v1385, 16
      %v1485 = vor.u32 %v1482, %v1483
      %v1486 = vsel %vm1424, %v1478, %v1485
      %v1488 = vshrl.u32 %v1386, 16
      %v1490 = vrot.slane %v1488, 7
      %v1491 = vrot.slane %v1490, 4
      %v1493 = vshrl.u32 %v1387, 16
      %v1495 = vrot.slane %v1493, 7
      %v1496 = vshll.u32 %v1387, 16
      %v1498 = vor.u32 %v1495, %v1496
      %v1499 = vsel %vm1424, %v1491, %v1498
      %v1500 = vrot.slane %v1495, 4
      %v1502 = vshrl.u32 %v1388, 16
      %v1504 = vrot.slane %v1502, 7
      %v1505 = vshll.u32 %v1388, 16
      %v1507 = vor.u32 %v1504, %v1505
      %v1508 = vsel %vm1424, %v1500, %v1507
      %v1509 = vrot.slane %v1504, 4
      %v1511 = vshrl.u32 %v1389, 16
      %v1513 = vrot.slane %v1511, 7
      %v1514 = vshll.u32 %v1389, 16
      %v1516 = vor.u32 %v1513, %v1514
      %v1517 = vsel %vm1424, %v1509, %v1516
      %v1519 = vshrl.u32 %v1390, 16
      %v1521 = vrot.slane %v1519, 7
      %v1522 = vrot.slane %v1521, 4
      %v1524 = vshrl.u32 %v1391, 16
      %v1526 = vrot.slane %v1524, 7
      %v1527 = vshll.u32 %v1391, 16
      %v1529 = vor.u32 %v1526, %v1527
      %v1530 = vsel %vm1424, %v1522, %v1529
      %v1531 = vrot.slane %v1526, 4
      %v1533 = vshrl.u32 %v1392, 16
      %v1535 = vrot.slane %v1533, 7
      %v1536 = vshll.u32 %v1392, 16
      %v1538 = vor.u32 %v1535, %v1536
      %v1539 = vsel %vm1424, %v1531, %v1538
      %v1540 = vrot.slane %v1535, 4
      %v1542 = vshrl.u32 %v1393, 16
      %v1544 = vrot.slane %v1542, 7
      %v1545 = vshll.u32 %v1393, 16
      %v1547 = vor.u32 %v1544, %v1545
      %v1548 = vsel %vm1424, %v1540, %v1547
      %v1550 = vshrl.u32 %v1394, 16
      %v1552 = vrot.slane %v1550, 7
      %v1553 = vrot.slane %v1552, 4
      %v1555 = vshrl.u32 %v1395, 16
      %v1557 = vrot.slane %v1555, 7
      %v1558 = vshll.u32 %v1395, 16
      %v1560 = vor.u32 %v1557, %v1558
      %v1561 = vsel %vm1424, %v1553, %v1560
      %v1562 = vrot.slane %v1557, 4
      %v1564 = vshrl.u32 %v1396, 16
      %v1566 = vrot.slane %v1564, 7
      %v1567 = vshll.u32 %v1396, 16
      %v1569 = vor.u32 %v1566, %v1567
      %v1570 = vsel %vm1424, %v1562, %v1569
      %v1571 = vrot.slane %v1566, 4
      %v1573 = vshrl.u32 %v1397, 16
      %v1575 = vrot.slane %v1573, 7
      %v1576 = vshll.u32 %v1397, 16
      %v1578 = vor.u32 %v1575, %v1576
      %v1579 = vsel %vm1424, %v1571, %v1578
      %v1581 = vshrl.u32 %v1398, 16
      %v1583 = vrot.slane %v1581, 7
      %v1584 = vrot.slane %v1583, 4
      %v1586 = vshrl.u32 %v1399, 16
      %v1588 = vrot.slane %v1586, 7
      %v1589 = vshll.u32 %v1399, 16
      %v1591 = vor.u32 %v1588, %v1589
      %v1592 = vsel %vm1424, %v1584, %v1591
      %v1593 = vrot.slane %v1588, 4
      %v1595 = vshrl.u32 %v1400, 16
      %v1597 = vrot.slane %v1595, 7
      %v1598 = vshll.u32 %v1400, 16
      %v1600 = vor.u32 %v1597, %v1598
      %v1601 = vsel %vm1424, %v1593, %v1600
      %v1602 = vrot.slane %v1597, 4
      %v1604 = vshrl.u32 %v1401, 16
      %v1606 = vrot.slane %v1604, 7
      %v1607 = vshll.u32 %v1401, 16
      %v1609 = vor.u32 %v1606, %v1607
      %v1610 = vsel %vm1424, %v1602, %v1609
      %v1612 = vshrl.u32 %v1402, 16
      %v1614 = vrot.slane %v1612, 7
      %v1615 = vrot.slane %v1614, 4
      %v1617 = vshrl.u32 %v1403, 16
      %v1619 = vrot.slane %v1617, 7
      %v1620 = vshll.u32 %v1403, 16
      %v1622 = vor.u32 %v1619, %v1620
      %v1623 = vsel %vm1424, %v1615, %v1622
      %v1624 = vrot.slane %v1619, 4
      %v1626 = vshrl.u32 %v1404, 16
      %v1628 = vrot.slane %v1626, 7
      %v1629 = vshll.u32 %v1404, 16
      %v1631 = vor.u32 %v1628, %v1629
      %v1632 = vsel %vm1424, %v1624, %v1631
      %v1633 = vrot.slane %v1628, 4
      %v1635 = vshrl.u32 %v1405, 16
      %v1637 = vrot.slane %v1635, 7
      %v1638 = vshll.u32 %v1405, 16
      %v1640 = vor.u32 %v1637, %v1638
      %v1641 = vsel %vm1424, %v1633, %v1640
      %v1643 = vshrl.u32 %v1406, 16
      %v1645 = vrot.slane %v1643, 7
      %v1646 = vrot.slane %v1645, 4
      %v1648 = vshrl.u32 %v1407, 16
      %v1650 = vrot.slane %v1648, 7
      %v1651 = vshll.u32 %v1407, 16
      %v1653 = vor.u32 %v1650, %v1651
      %v1654 = vsel %vm1424, %v1646, %v1653
      %v1655 = vrot.slane %v1650, 4
      %v1657 = vshrl.u32 %v1408, 16
      %v1659 = vrot.slane %v1657, 7
      %v1660 = vshll.u32 %v1408, 16
      %v1662 = vor.u32 %v1659, %v1660
      %v1663 = vsel %vm1424, %v1655, %v1662
      %v1664 = vrot.slane %v1659, 4
      %v1666 = vshrl.u32 %v1409, 16
      %v1668 = vrot.slane %v1666, 7
      %v1669 = vshll.u32 %v1409, 16
      %v1671 = vor.u32 %v1668, %v1669
      %v1672 = vsel %vm1424, %v1664, %v1671
      %v1674 = vshrl.u32 %v1410, 16
      %v1676 = vrot.slane %v1674, 7
      %v1677 = vrot.slane %v1676, 4
      %v1679 = vshrl.u32 %v1411, 16
      %v1681 = vrot.slane %v1679, 7
      %v1682 = vshll.u32 %v1411, 16
      %v1684 = vor.u32 %v1681, %v1682
      %v1685 = vsel %vm1424, %v1677, %v1684
      %v1686 = vrot.slane %v1681, 4
      %v1688 = vshrl.u32 %v1412, 16
      %v1690 = vrot.slane %v1688, 7
      %v1691 = vshll.u32 %v1412, 16
      %v1693 = vor.u32 %v1690, %v1691
      %v1694 = vsel %vm1424, %v1686, %v1693
      %v1695 = vrot.slane %v1690, 4
      %v1697 = vshrl.u32 %v1413, 16
      %v1699 = vrot.slane %v1697, 7
      %v1700 = vshll.u32 %v1413, 16
      %v1702 = vor.u32 %v1699, %v1700
      %v1703 = vsel %vm1424, %v1695, %v1702
      %v1705 = vshrl.u32 %v1414, 16
      %v1707 = vrot.slane %v1705, 7
      %v1708 = vrot.slane %v1707, 4
      %v1710 = vshrl.u32 %v1415, 16
      %v1712 = vrot.slane %v1710, 7
      %v1713 = vshll.u32 %v1415, 16
      %v1715 = vor.u32 %v1712, %v1713
      %v1716 = vsel %vm1424, %v1708, %v1715
      %v1717 = vrot.slane %v1712, 4
      %v1719 = vshrl.u32 %v1416, 16
      %v1721 = vrot.slane %v1719, 7
      %v1722 = vshll.u32 %v1416, 16
      %v1724 = vor.u32 %v1721, %v1722
      %v1725 = vsel %vm1424, %v1717, %v1724
      %v1726 = vrot.slane %v1721, 4
      %v1728 = vshrl.u32 %v1417, 16
      %v1730 = vrot.slane %v1728, 7
      %v1731 = vshll.u32 %v1417, 16
      %v1733 = vor.u32 %v1730, %v1731
      %v1734 = vsel %vm1424, %v1726, %v1733
      %v1736 = vshrl.u32 %v1418, 16
      %v1738 = vrot.slane %v1736, 7
      %v1739 = vrot.slane %v1738, 4
      %v1741 = vshrl.u32 %v1419, 16
      %v1743 = vrot.slane %v1741, 7
      %v1744 = vshll.u32 %v1419, 16
      %v1746 = vor.u32 %v1743, %v1744
      %v1747 = vsel %vm1424, %v1739, %v1746
      %v1748 = vrot.slane %v1743, 4
      %v1750 = vshrl.u32 %v1420, 16
      %v1752 = vrot.slane %v1750, 7
      %v1753 = vshll.u32 %v1420, 16
      %v1755 = vor.u32 %v1752, %v1753
      %v1756 = vsel %vm1424, %v1748, %v1755
      %v1757 = vrot.slane %v1752, 4
      %v1759 = vshrl.u32 %v1421, 16
      %v1761 = vrot.slane %v1759, 7
      %v1762 = vshll.u32 %v1421, 16
      %v1764 = vor.u32 %v1761, %v1762
      %v1765 = vsel %vm1424, %v1757, %v1764
      %vm1799 = vcmask 93184
      %1800 = vst.msk [vmem:[#allocation3] sm:$0xf] %vm1799, %v1437
      %1801 = vst.msk [vmem:[#allocation3 + $0x4] sm:$0xf] %vm1799, %v1446
      %1802 = vst.msk [vmem:[#allocation3 + $0x8] sm:$0xf] %vm1799, %v1455
      %1803 = vst.msk [vmem:[#allocation3 + $0xc] sm:$0xf] %vm1799, %v1468
      %1804 = vst.msk [vmem:[#allocation3 + $0x10] sm:$0xf] %vm1799, %v1477
      %1805 = vst.msk [vmem:[#allocation3 + $0x14] sm:$0xf] %vm1799, %v1486
      %1806 = vst.msk [vmem:[#allocation3 + $0x18] sm:$0xf] %vm1799, %v1499
      %1807 = vst.msk [vmem:[#allocation3 + $0x1c] sm:$0xf] %vm1799, %v1508
      %1808 = vst.msk [vmem:[#allocation3 + $0x20] sm:$0xf] %vm1799, %v1517
      %1809 = vst.msk [vmem:[#allocation3 + $0x24] sm:$0xf] %vm1799, %v1530
      %1810 = vst.msk [vmem:[#allocation3 + $0x28] sm:$0xf] %vm1799, %v1539
      %1811 = vst.msk [vmem:[#allocation3 + $0x2c] sm:$0xf] %vm1799, %v1548
      %1812 = vst.msk [vmem:[#allocation3 + $0x30] sm:$0xf] %vm1799, %v1561
      %1813 = vst.msk [vmem:[#allocation3 + $0x34] sm:$0xf] %vm1799, %v1570
      %1814 = vst.msk [vmem:[#allocation3 + $0x38] sm:$0xf] %vm1799, %v1579
      %1815 = vst.msk [vmem:[#allocation3 + $0x3c] sm:$0xf] %vm1799, %v1592
      %1816 = vst.msk [vmem:[#allocation3 + $0x40] sm:$0xf] %vm1799, %v1601
      %1817 = vst.msk [vmem:[#allocation3 + $0x44] sm:$0xf] %vm1799, %v1610
      %1818 = vst.msk [vmem:[#allocation3 + $0x48] sm:$0xf] %vm1799, %v1623
      %1819 = vst.msk [vmem:[#allocation3 + $0x4c] sm:$0xf] %vm1799, %v1632
      %1820 = vst.msk [vmem:[#allocation3 + $0x50] sm:$0xf] %vm1799, %v1641
      %1821 = vst.msk [vmem:[#allocation3 + $0x54] sm:$0xf] %vm1799, %v1654
      %1822 = vst.msk [vmem:[#allocation3 + $0x58] sm:$0xf] %vm1799, %v1663
      %1823 = vst.msk [vmem:[#allocation3 + $0x5c] sm:$0xf] %vm1799, %v1672
      %1824 = vst.msk [vmem:[#allocation3 + $0x60] sm:$0xf] %vm1799, %v1685
      %1825 = vst.msk [vmem:[#allocation3 + $0x64] sm:$0xf] %vm1799, %v1694
      %1826 = vst.msk [vmem:[#allocation3 + $0x68] sm:$0xf] %vm1799, %v1703
      %1827 = vst.msk [vmem:[#allocation3 + $0x6c] sm:$0xf] %vm1799, %v1716
      %1828 = vst.msk [vmem:[#allocation3 + $0x70] sm:$0xf] %vm1799, %v1725
      %1829 = vst.msk [vmem:[#allocation3 + $0x74] sm:$0xf] %vm1799, %v1734
      %1830 = vst.msk [vmem:[#allocation3 + $0x78] sm:$0xf] %vm1799, %v1747
      %1831 = vst.msk [vmem:[#allocation3 + $0x7c] sm:$0xf] %vm1799, %v1756
      %1832 = vst.msk [vmem:[#allocation3 + $0x80] sm:$0xf] %vm1799, %v1765
      %v1833 = vld [vmem:[#allocation3] sm:$0xf]
      %v1834 = vld [vmem:[#allocation3 + $0x4] sm:$0xf]
      %v1835 = vld [vmem:[#allocation3 + $0x8] sm:$0xf]
      %v1836 = vld [vmem:[#allocation3 + $0xc] sm:$0xf]
      %v1837 = vld [vmem:[#allocation3 + $0x10] sm:$0xf]
      %v1838 = vld [vmem:[#allocation3 + $0x14] sm:$0xf]
      %v1839 = vld [vmem:[#allocation3 + $0x18] sm:$0xf]
      %v1840 = vld [vmem:[#allocation3 + $0x1c] sm:$0xf]
      %v1841 = vld [vmem:[#allocation3 + $0x20] sm:$0xf]
      %v1842 = vld [vmem:[#allocation3 + $0x24] sm:$0xf]
      %v1843 = vld [vmem:[#allocation3 + $0x28] sm:$0xf]
      %v1844 = vld [vmem:[#allocation3 + $0x2c] sm:$0xf]
      %v1845 = vld [vmem:[#allocation3 + $0x30] sm:$0xf]
      %v1846 = vld [vmem:[#allocation3 + $0x34] sm:$0xf]
      %v1847 = vld [vmem:[#allocation3 + $0x38] sm:$0xf]
      %v1848 = vld [vmem:[#allocation3 + $0x3c] sm:$0xf]
      %v1849 = vld [vmem:[#allocation3 + $0x40] sm:$0xf]
      %v1850 = vld [vmem:[#allocation3 + $0x44] sm:$0xf]
      %v1851 = vld [vmem:[#allocation3 + $0x48] sm:$0xf]
      %v1852 = vld [vmem:[#allocation3 + $0x4c] sm:$0xf]
      %v1853 = vld [vmem:[#allocation3 + $0x50] sm:$0xf]
      %v1854 = vld [vmem:[#allocation3 + $0x54] sm:$0xf]
      %v1855 = vld [vmem:[#allocation3 + $0x58] sm:$0xf]
      %v1856 = vld [vmem:[#allocation3 + $0x5c] sm:$0xf]
      %v1857 = vld [vmem:[#allocation3 + $0x60] sm:$0xf]
      %v1858 = vld [vmem:[#allocation3 + $0x64] sm:$0xf]
      %v1859 = vld [vmem:[#allocation3 + $0x68] sm:$0xf]
      %v1860 = vld [vmem:[%s562] sm:$0xf]
      %v1861 = vld [vmem:[%s562 + $0x4] sm:$0x3]
      %v1889 = vunpack.c.l.b16 %v1833
      %v1890 = vunpack.c.l.b16 %v1834
      %v1891 = vunpack.c.l.b16 %v1835
      %v1892 = vunpack.c.l.b16 %v1836
      %v1893 = vunpack.c.l.b16 %v1837
      %v1894 = vunpack.c.l.b16 %v1838
      %v1895 = vunpack.c.l.b16 %v1839
      %v1896 = vunpack.c.l.b16 %v1840
      %v1897 = vunpack.c.l.b16 %v1841
      %v1898 = vunpack.c.l.b16 %v1842
      %v1899 = vunpack.c.l.b16 %v1843
      %v1900 = vunpack.c.l.b16 %v1844
      %v1901 = vunpack.c.l.b16 %v1845
      %v1902 = vunpack.c.l.b16 %v1846
      %v1903 = vunpack.c.l.b16 %v1847
      %v1904 = vunpack.c.l.b16 %v1848
      %v1905 = vunpack.c.l.b16 %v1849
      %v1906 = vunpack.c.l.b16 %v1850
      %v1907 = vunpack.c.l.b16 %v1851
      %v1908 = vunpack.c.l.b16 %v1852
      %v1909 = vunpack.c.l.b16 %v1853
      %v1910 = vunpack.c.l.b16 %v1854
      %v1911 = vunpack.c.l.b16 %v1855
      %v1912 = vunpack.c.l.b16 %v1856
      %v1913 = vunpack.c.l.b16 %v1857
      %v1914 = vunpack.c.l.b16 %v1858
      %v1915 = vunpack.c.l.b16 %v1859
      %v1916 = vpack.c.b16 %v1890, %v1889
      %v1917 = vpack.c.b16 %v1892, %v1891
      %v1918 = vpack.c.b16 %v1894, %v1893
      %v1919 = vpack.c.b16 %v1896, %v1895
      %v1920 = vpack.c.b16 %v1898, %v1897
      %v1921 = vpack.c.b16 %v1900, %v1899
      %v1922 = vpack.c.b16 %v1902, %v1901
      %v1923 = vpack.c.b16 %v1904, %v1903
      %v1924 = vpack.c.b16 %v1906, %v1905
      %v1925 = vpack.c.b16 %v1908, %v1907
      %v1926 = vpack.c.b16 %v1910, %v1909
      %v1927 = vpack.c.b16 %v1912, %v1911
      %v1928 = vpack.c.b16 %v1914, %v1913
      %v1929 = vpack.c.b16 %v1915, %v1915
      %v1932 = vunpack.c.l.b16 %v1860
      %v1933 = vunpack.c.l.b16 %v1861
      %v1934 = vpack.c.b16 %v1933, %v1932
      %vm1935 = vcmask 97280
      %v1937 = vsel %vm1935, %v1916, 0
      %v1940 = vsel %vm1935, %v1917, 0
      %v1943 = vsel %vm1935, %v1918, 0
      %v1946 = vsel %vm1935, %v1919, 0
      %v1949 = vsel %vm1935, %v1920, 0
      %v1952 = vsel %vm1935, %v1921, 0
      %v1955 = vsel %vm1935, %v1922, 0
      %v1958 = vsel %vm1935, %v1923, 0
      %v1961 = vsel %vm1935, %v1924, 0
      %v1964 = vsel %vm1935, %v1925, 0
      %v1967 = vsel %vm1935, %v1926, 0
      %v1970 = vsel %vm1935, %v1927, 0
      %v1973 = vsel %vm1935, %v1928, 0
      %v1976 = vsel %vm1935, %v1929, 0
      %vm1978 = vcmask 1045504
      %v1980 = vsel %vm1978, %v1934, 0
      %1982 = vmatprep.subr.bf16.mxu0 0
      %1983 = vmatpush1.bf16.msra.mxu0 %v1980
      %1984 = vmatprep.subr.bf16.mxu0 0
      %1985 = vmatpush1.bf16.msra.mxu0 0
      %1986 = vmatprep.subr.bf16.mxu0 0
      %1987 = vmatpush1.bf16.msra.mxu0 0
      %1988 = vmatprep.subr.bf16.mxu0 0
      %1989 = vmatpush1.bf16.msra.mxu0 0
      %1990 = vmatprep.subr.bf16.mxu0 0
      %1991 = vmatpush1.bf16.msra.mxu0 0
      %1992 = vmatprep.subr.bf16.mxu0 0
      %1993 = vmatpush1.bf16.msra.mxu0 0
      %1994 = vmatprep.subr.bf16.mxu0 0
      %1995 = vmatpush1.bf16.msra.mxu0 0
      %1996 = vmatprep.subr.bf16.mxu0 0
      %1997 = vmatpush1.bf16.msra.mxu0 0
      %1998 = vmatprep.subr.bf16.mxu0 0
      %1999 = vmatpush1.bf16.msra.mxu0 0
      %2000 = vmatprep.subr.bf16.mxu0 0
      %2001 = vmatpush1.bf16.msra.mxu0 0
      %2002 = vmatprep.subr.bf16.mxu0 0
      %2003 = vmatpush1.bf16.msra.mxu0 0
      %2004 = vmatprep.subr.bf16.mxu0 0
      %2005 = vmatpush1.bf16.msra.mxu0 0
      %2006 = vmatprep.subr.bf16.mxu0 0
      %2007 = vmatpush1.bf16.msra.mxu0 0
      %2008 = vmatprep.subr.bf16.mxu0 0
      %2009 = vmatpush1.bf16.msra.mxu0 0
      %2010 = vmatprep.subr.bf16.mxu0 0
      %2011 = vmatpush1.bf16.msra.mxu0 0
      %2012 = vmatprep.subr.bf16.mxu0 0
      %2013 = vmatpush1.bf16.msra.mxu0 0
      %2014 = vmatprep.mubr.bf16.mxu0 0
      %2015 = vmatmul.mubr.bf16.gmra.mrb[0].mxu0 %v1937
      %v2016 = vpop.f32.mrb[0].mxu0
      %v2017 = vadd.f32 0.0, %v2016
      %v2018 = vpop.f32.mrb[0].mxu0
      %v2019 = vpop.f32.mrb[0].mxu0
      %v2020 = vadd.f32 0.0, %v2019
      %v2021 = vpop.f32.mrb[0].mxu0
      %2022 = vmatprep.mubr.bf16.mxu0 0
      %2023 = vmatmul.mubr.bf16.gmra.mrb[0].mxu0 %v1940
      %v2024 = vpop.f32.mrb[0].mxu0
      %v2025 = vadd.f32 0.0, %v2024
      %v2026 = vpop.f32.mrb[0].mxu0
      %v2027 = vpop.f32.mrb[0].mxu0
      %v2028 = vadd.f32 0.0, %v2027
      %v2029 = vpop.f32.mrb[0].mxu0
      %2030 = vmatprep.mubr.bf16.mxu0 0
      %2031 = vmatmul.mubr.bf16.gmra.mrb[0].mxu0 %v1943
      %v2032 = vpop.f32.mrb[0].mxu0
      %v2033 = vadd.f32 0.0, %v2032
      %v2034 = vpop.f32.mrb[0].mxu0
      %v2035 = vpop.f32.mrb[0].mxu0
      %v2036 = vadd.f32 0.0, %v2035
      %v2037 = vpop.f32.mrb[0].mxu0
      %2038 = vmatprep.mubr.bf16.mxu0 0
      %2039 = vmatmul.mubr.bf16.gmra.mrb[0].mxu0 %v1946
      %v2040 = vpop.f32.mrb[0].mxu0
      %v2041 = vadd.f32 0.0, %v2040
      %v2042 = vpop.f32.mrb[0].mxu0
      %v2043 = vpop.f32.mrb[0].mxu0
      %v2044 = vadd.f32 0.0, %v2043
      %v2045 = vpop.f32.mrb[0].mxu0
      %2046 = vmatprep.mubr.bf16.mxu0 0
      %2047 = vmatmul.mubr.bf16.gmra.mrb[0].mxu0 %v1949
      %v2048 = vpop.f32.mrb[0].mxu0
      %v2049 = vadd.f32 0.0, %v2048
      %v2050 = vpop.f32.mrb[0].mxu0
      %v2051 = vpop.f32.mrb[0].mxu0
      %v2052 = vadd.f32 0.0, %v2051
      %v2053 = vpop.f32.mrb[0].mxu0
      %2054 = vmatprep.mubr.bf16.mxu0 0
      %2055 = vmatmul.mubr.bf16.gmra.mrb[0].mxu0 %v1952
      %v2056 = vpop.f32.mrb[0].mxu0
      %v2057 = vadd.f32 0.0, %v2056
      %v2058 = vpop.f32.mrb[0].mxu0
      %v2059 = vpop.f32.mrb[0].mxu0
      %v2060 = vadd.f32 0.0, %v2059
      %v2061 = vpop.f32.mrb[0].mxu0
      %2062 = vmatprep.mubr.bf16.mxu0 0
      %2063 = vmatmul.mubr.bf16.gmra.mrb[0].mxu0 %v1955
      %v2064 = vpop.f32.mrb[0].mxu0
      %v2065 = vadd.f32 0.0, %v2064
      %v2066 = vpop.f32.mrb[0].mxu0
      %v2067 = vpop.f32.mrb[0].mxu0
      %v2068 = vadd.f32 0.0, %v2067
      %v2069 = vpop.f32.mrb[0].mxu0
      %2070 = vmatprep.mubr.bf16.mxu0 0
      %2071 = vmatmul.mubr.bf16.gmra.mrb[0].mxu0 %v1958
      %v2072 = vpop.f32.mrb[0].mxu0
      %v2073 = vadd.f32 0.0, %v2072
      %v2074 = vpop.f32.mrb[0].mxu0
      %v2075 = vpop.f32.mrb[0].mxu0
      %v2076 = vadd.f32 0.0, %v2075
      %v2077 = vpop.f32.mrb[0].mxu0
      %2078 = vmatprep.mubr.bf16.mxu0 0
      %2079 = vmatmul.mubr.bf16.gmra.mrb[0].mxu0 %v1961
      %v2080 = vpop.f32.mrb[0].mxu0
      %v2081 = vadd.f32 0.0, %v2080
      %v2082 = vpop.f32.mrb[0].mxu0
      %v2083 = vpop.f32.mrb[0].mxu0
      %v2084 = vadd.f32 0.0, %v2083
      %v2085 = vpop.f32.mrb[0].mxu0
      %2086 = vmatprep.mubr.bf16.mxu0 0
      %2087 = vmatmul.mubr.bf16.gmra.mrb[0].mxu0 %v1964
      %v2088 = vpop.f32.mrb[0].mxu0
      %v2089 = vadd.f32 0.0, %v2088
      %v2090 = vpop.f32.mrb[0].mxu0
      %v2091 = vpop.f32.mrb[0].mxu0
      %v2092 = vadd.f32 0.0, %v2091
      %v2093 = vpop.f32.mrb[0].mxu0
      %2094 = vmatprep.mubr.bf16.mxu0 0
      %2095 = vmatmul.mubr.bf16.gmra.mrb[0].mxu0 %v1967
      %v2096 = vpop.f32.mrb[0].mxu0
      %v2097 = vadd.f32 0.0, %v2096
      %v2098 = vpop.f32.mrb[0].mxu0
      %v2099 = vpop.f32.mrb[0].mxu0
      %v2100 = vadd.f32 0.0, %v2099
      %v2101 = vpop.f32.mrb[0].mxu0
      %2102 = vmatprep.mubr.bf16.mxu0 0
      %2103 = vmatmul.mubr.bf16.gmra.mrb[0].mxu0 %v1970
      %v2104 = vpop.f32.mrb[0].mxu0
      %v2105 = vadd.f32 0.0, %v2104
      %v2106 = vpop.f32.mrb[0].mxu0
      %v2107 = vpop.f32.mrb[0].mxu0
      %v2108 = vadd.f32 0.0, %v2107
      %v2109 = vpop.f32.mrb[0].mxu0
      %2110 = vmatprep.mubr.bf16.mxu0 0
      %2111 = vmatmul.mubr.bf16.gmra.mrb[0].mxu0 %v1973
      %v2112 = vpop.f32.mrb[0].mxu0
      %v2113 = vadd.f32 0.0, %v2112
      %v2114 = vpop.f32.mrb[0].mxu0
      %v2115 = vpop.f32.mrb[0].mxu0
      %v2116 = vadd.f32 0.0, %v2115
      %v2117 = vpop.f32.mrb[0].mxu0
      %2118 = vmatprep.mubr.bf16.mxu0 0
      %2119 = vmatmul.mubr.bf16.gmra.mrb[0].mxu0 %v1976
      %v2120 = vpop.f32.mrb[0].mxu0
      %v2121 = vadd.f32 0.0, %v2120
      %v2122 = vpop.f32.mrb[0].mxu0
      %v2123 = vpop.f32.mrb[0].mxu0
      %v2124 = vpop.f32.mrb[0].mxu0
      %2125 = vdwg.mxu0
      %2126 = vst [vmem:[#allocation4] sm:$0xff] %v2017
      %2127 = vst [vmem:[#allocation4 + $0x8] sm:$0xff] %v2020
      %2128 = vst [vmem:[#allocation4 + $0x10] sm:$0xff] %v2025
      %2129 = vst [vmem:[#allocation4 + $0x18] sm:$0xff] %v2028
      %2130 = vst [vmem:[#allocation4 + $0x20] sm:$0xff] %v2033
      %2131 = vst [vmem:[#allocation4 + $0x28] sm:$0xff] %v2036
      %2132 = vst [vmem:[#allocation4 + $0x30] sm:$0xff] %v2041
      %2133 = vst [vmem:[#allocation4 + $0x38] sm:$0xff] %v2044
      %2134 = vst [vmem:[#allocation4 + $0x40] sm:$0xff] %v2049
      %2135 = vst [vmem:[#allocation4 + $0x48] sm:$0xff] %v2052
      %2136 = vst [vmem:[#allocation4 + $0x50] sm:$0xff] %v2057
      %2137 = vst [vmem:[#allocation4 + $0x58] sm:$0xff] %v2060
      %2138 = vst [vmem:[#allocation4 + $0x60] sm:$0xff] %v2065
      %2139 = vst [vmem:[#allocation4 + $0x68] sm:$0xff] %v2068
      %2140 = vst [vmem:[#allocation4 + $0x70] sm:$0xff] %v2073
      %2141 = vst [vmem:[#allocation4 + $0x78] sm:$0xff] %v2076
      %2142 = vst [vmem:[#allocation4 + $0x80] sm:$0xff] %v2081
      %2143 = vst [vmem:[#allocation4 + $0x88] sm:$0xff] %v2084
      %2144 = vst [vmem:[#allocation4 + $0x90] sm:$0xff] %v2089
      %2145 = vst [vmem:[#allocation4 + $0x98] sm:$0xff] %v2092
      %2146 = vst [vmem:[#allocation4 + $0xa0] sm:$0xff] %v2097
      %2147 = vst [vmem:[#allocation4 + $0xa8] sm:$0xff] %v2100
      %2148 = vst [vmem:[#allocation4 + $0xb0] sm:$0xff] %v2105
      %2149 = vst [vmem:[#allocation4 + $0xb8] sm:$0xff] %v2108
      %2150 = vst [vmem:[#allocation4 + $0xc0] sm:$0xff] %v2113
      %2151 = vst [vmem:[#allocation4 + $0xc8] sm:$0xff] %v2116
      %2152 = vst [vmem:[#allocation4 + $0xd0] sm:$0xff] %v2121
      %s2153 = scalar_lea.vmem [#allocation3], 12
      %v2154 = vld [vmem:[%s2153] sm:$0xf]
      %v2155 = vld [vmem:[%s2153 + $0x4] sm:$0xf]
      %v2156 = vld [vmem:[%s2153 + $0x8] sm:$0xf]
      %v2157 = vld [vmem:[%s2153 + $0xc] sm:$0xf]
      %v2158 = vld [vmem:[%s2153 + $0x10] sm:$0xf]
      %v2159 = vld [vmem:[%s2153 + $0x14] sm:$0xf]
      %v2160 = vld [vmem:[%s2153 + $0x18] sm:$0xf]
      %v2161 = vld [vmem:[%s2153 + $0x1c] sm:$0xf]
      %v2162 = vld [vmem:[%s2153 + $0x20] sm:$0xf]
      %v2163 = vld [vmem:[%s2153 + $0x24] sm:$0xf]
      %v2164 = vld [vmem:[%s2153 + $0x28] sm:$0xf]
      %v2165 = vld [vmem:[%s2153 + $0x2c] sm:$0xf]
      %v2166 = vld [vmem:[%s2153 + $0x30] sm:$0xf]
      %v2167 = vld [vmem:[%s2153 + $0x34] sm:$0xf]
      %v2168 = vld [vmem:[%s2153 + $0x38] sm:$0xf]
      %v2169 = vld [vmem:[%s2153 + $0x3c] sm:$0xf]
      %v2170 = vld [vmem:[%s2153 + $0x40] sm:$0xf]
      %v2171 = vld [vmem:[%s2153 + $0x44] sm:$0xf]
      %v2172 = vld [vmem:[%s2153 + $0x48] sm:$0xf]
      %v2173 = vld [vmem:[%s2153 + $0x4c] sm:$0xf]
      %v2174 = vld [vmem:[%s2153 + $0x50] sm:$0xf]
      %v2175 = vld [vmem:[%s2153 + $0x54] sm:$0xf]
      %v2176 = vld [vmem:[%s2153 + $0x58] sm:$0xf]
      %v2177 = vld [vmem:[%s2153 + $0x5c] sm:$0xf]
      %v2178 = vld [vmem:[%s2153 + $0x60] sm:$0xf]
      %v2179 = vld [vmem:[%s2153 + $0x64] sm:$0xf]
      %v2180 = vld [vmem:[%s2153 + $0x68] sm:$0xf]
      %s2181 = scalar_lea.vmem %s562, 8
      %v2182 = vld [vmem:[%s2181] sm:$0xf]
      %v2183 = vld [vmem:[%s2181 + $0x4] sm:$0x3]
      %v2211 = vunpack.c.l.b16 %v2154
      %v2212 = vunpack.c.l.b16 %v2155
      %v2213 = vunpack.c.l.b16 %v2156
      %v2214 = vunpack.c.l.b16 %v2157
      %v2215 = vunpack.c.l.b16 %v2158
      %v2216 = vunpack.c.l.b16 %v2159
      %v2217 = vunpack.c.l.b16 %v2160
      %v2218 = vunpack.c.l.b16 %v2161
      %v2219 = vunpack.c.l.b16 %v2162
      %v2220 = vunpack.c.l.b16 %v2163
      %v2221 = vunpack.c.l.b16 %v2164
      %v2222 = vunpack.c.l.b16 %v2165
      %v2223 = vunpack.c.l.b16 %v2166
      %v2224 = vunpack.c.l.b16 %v2167
      %v2225 = vunpack.c.l.b16 %v2168
      %v2226 = vunpack.c.l.b16 %v2169
      %v2227 = vunpack.c.l.b16 %v2170
      %v2228 = vunpack.c.l.b16 %v2171
      %v2229 = vunpack.c.l.b16 %v2172
      %v2230 = vunpack.c.l.b16 %v2173
      %v2231 = vunpack.c.l.b16 %v2174
      %v2232 = vunpack.c.l.b16 %v2175
      %v2233 = vunpack.c.l.b16 %v2176
      %v2234 = vunpack.c.l.b16 %v2177
      %v2235 = vunpack.c.l.b16 %v2178
      %v2236 = vunpack.c.l.b16 %v2179
      %v2237 = vunpack.c.l.b16 %v2180
      %v2238 = vpack.c.b16 %v2212, %v2211
      %v2239 = vpack.c.b16 %v2214, %v2213
      %v2240 = vpack.c.b16 %v2216, %v2215
      %v2241 = vpack.c.b16 %v2218, %v2217
      %v2242 = vpack.c.b16 %v2220, %v2219
      %v2243 = vpack.c.b16 %v2222, %v2221
      %v2244 = vpack.c.b16 %v2224, %v2223
      %v2245 = vpack.c.b16 %v2226, %v2225
      %v2246 = vpack.c.b16 %v2228, %v2227
      %v2247 = vpack.c.b16 %v2230, %v2229
      %v2248 = vpack.c.b16 %v2232, %v2231
      %v2249 = vpack.c.b16 %v2234, %v2233
      %v2250 = vpack.c.b16 %v2236, %v2235
      %v2251 = vpack.c.b16 %v2237, %v2237
      %v2254 = vunpack.c.l.b16 %v2182
      %v2255 = vunpack.c.l.b16 %v2183
      %v2256 = vpack.c.b16 %v2255, %v2254
      %v2258 = vsel %vm1935, %v2238, 0
      %v2261 = vsel %vm1935, %v2239, 0
      %v2264 = vsel %vm1935, %v2240, 0
      %v2267 = vsel %vm1935, %v2241, 0
      %v2270 = vsel %vm1935, %v2242, 0
      %v2273 = vsel %vm1935, %v2243, 0
      %v2276 = vsel %vm1935, %v2244, 0
      %v2279 = vsel %vm1935, %v2245, 0
      %v2282 = vsel %vm1935, %v2246, 0
      %v2285 = vsel %vm1935, %v2247, 0
      %v2288 = vsel %vm1935, %v2248, 0
      %v2291 = vsel %vm1935, %v2249, 0
      %v2294 = vsel %vm1935, %v2250, 0
      %v2297 = vsel %vm1935, %v2251, 0
      %v2300 = vsel %vm1978, %v2256, 0
      %2302 = vmatprep.subr.bf16.mxu0 0
      %2303 = vmatpush1.bf16.msra.mxu0 %v2300
      %2304 = vmatprep.subr.bf16.mxu0 0
      %2305 = vmatpush1.bf16.msra.mxu0 0
      %2306 = vmatprep.subr.bf16.mxu0 0
      %2307 = vmatpush1.bf16.msra.mxu0 0
      %2308 = vmatprep.subr.bf16.mxu0 0
      %2309 = vmatpush1.bf16.msra.mxu0 0
      %2310 = vmatprep.subr.bf16.mxu0 0
      %2311 = vmatpush1.bf16.msra.mxu0 0
      %2312 = vmatprep.subr.bf16.mxu0 0
      %2313 = vmatpush1.bf16.msra.mxu0 0
      %2314 = vmatprep.subr.bf16.mxu0 0
      %2315 = vmatpush1.bf16.msra.mxu0 0
      %2316 = vmatprep.subr.bf16.mxu0 0
      %2317 = vmatpush1.bf16.msra.mxu0 0
      %2318 = vmatprep.subr.bf16.mxu0 0
      %2319 = vmatpush1.bf16.msra.mxu0 0
      %2320 = vmatprep.subr.bf16.mxu0 0
      %2321 = vmatpush1.bf16.msra.mxu0 0
      %2322 = vmatprep.subr.bf16.mxu0 0
      %2323 = vmatpush1.bf16.msra.mxu0 0
      %2324 = vmatprep.subr.bf16.mxu0 0
      %2325 = vmatpush1.bf16.msra.mxu0 0
      %2326 = vmatprep.subr.bf16.mxu0 0
      %2327 = vmatpush1.bf16.msra.mxu0 0
      %2328 = vmatprep.subr.bf16.mxu0 0
      %2329 = vmatpush1.bf16.msra.mxu0 0
      %2330 = vmatprep.subr.bf16.mxu0 0
      %2331 = vmatpush1.bf16.msra.mxu0 0
      %2332 = vmatprep.subr.bf16.mxu0 0
      %2333 = vmatpush1.bf16.msra.mxu0 0
      %2334 = vmatprep.mubr.bf16.mxu0 0
      %2335 = vmatmul.mubr.bf16.gmra.mrb[0].mxu0 %v2258
      %v2336 = vpop.f32.mrb[0].mxu0
      %v2337 = vadd.f32 0.0, %v2336
      %v2338 = vpop.f32.mrb[0].mxu0
      %v2339 = vpop.f32.mrb[0].mxu0
      %v2340 = vadd.f32 0.0, %v2339
      %v2341 = vpop.f32.mrb[0].mxu0
      %2342 = vmatprep.mubr.bf16.mxu0 0
      %2343 = vmatmul.mubr.bf16.gmra.mrb[0].mxu0 %v2261
      %v2344 = vpop.f32.mrb[0].mxu0
      %v2345 = vadd.f32 0.0, %v2344
      %v2346 = vpop.f32.mrb[0].mxu0
      %v2347 = vpop.f32.mrb[0].mxu0
      %v2348 = vadd.f32 0.0, %v2347
      %v2349 = vpop.f32.mrb[0].mxu0
      %2350 = vmatprep.mubr.bf16.mxu0 0
      %2351 = vmatmul.mubr.bf16.gmra.mrb[0].mxu0 %v2264
      %v2352 = vpop.f32.mrb[0].mxu0
      %v2353 = vadd.f32 0.0, %v2352
      %v2354 = vpop.f32.mrb[0].mxu0
      %v2355 = vpop.f32.mrb[0].mxu0
      %v2356 = vadd.f32 0.0, %v2355
      %v2357 = vpop.f32.mrb[0].mxu0
      %2358 = vmatprep.mubr.bf16.mxu0 0
      %2359 = vmatmul.mubr.bf16.gmra.mrb[0].mxu0 %v2267
      %v2360 = vpop.f32.mrb[0].mxu0
      %v2361 = vadd.f32 0.0, %v2360
      %v2362 = vpop.f32.mrb[0].mxu0
      %v2363 = vpop.f32.mrb[0].mxu0
      %v2364 = vadd.f32 0.0, %v2363
      %v2365 = vpop.f32.mrb[0].mxu0
      %2366 = vmatprep.mubr.bf16.mxu0 0
      %2367 = vmatmul.mubr.bf16.gmra.mrb[0].mxu0 %v2270
      %v2368 = vpop.f32.mrb[0].mxu0
      %v2369 = vadd.f32 0.0, %v2368
      %v2370 = vpop.f32.mrb[0].mxu0
      %v2371 = vpop.f32.mrb[0].mxu0
      %v2372 = vadd.f32 0.0, %v2371
      %v2373 = vpop.f32.mrb[0].mxu0
      %2374 = vmatprep.mubr.bf16.mxu0 0
      %2375 = vmatmul.mubr.bf16.gmra.mrb[0].mxu0 %v2273
      %v2376 = vpop.f32.mrb[0].mxu0
      %v2377 = vadd.f32 0.0, %v2376
      %v2378 = vpop.f32.mrb[0].mxu0
      %v2379 = vpop.f32.mrb[0].mxu0
      %v2380 = vadd.f32 0.0, %v2379
      %v2381 = vpop.f32.mrb[0].mxu0
      %2382 = vmatprep.mubr.bf16.mxu0 0
      %2383 = vmatmul.mubr.bf16.gmra.mrb[0].mxu0 %v2276
      %v2384 = vpop.f32.mrb[0].mxu0
      %v2385 = vadd.f32 0.0, %v2384
      %v2386 = vpop.f32.mrb[0].mxu0
      %v2387 = vpop.f32.mrb[0].mxu0
      %v2388 = vadd.f32 0.0, %v2387
      %v2389 = vpop.f32.mrb[0].mxu0
      %2390 = vmatprep.mubr.bf16.mxu0 0
      %2391 = vmatmul.mubr.bf16.gmra.mrb[0].mxu0 %v2279
      %v2392 = vpop.f32.mrb[0].mxu0
      %v2393 = vadd.f32 0.0, %v2392
      %v2394 = vpop.f32.mrb[0].mxu0
      %v2395 = vpop.f32.mrb[0].mxu0
      %v2396 = vadd.f32 0.0, %v2395
      %v2397 = vpop.f32.mrb[0].mxu0
      %2398 = vmatprep.mubr.bf16.mxu0 0
      %2399 = vmatmul.mubr.bf16.gmra.mrb[0].mxu0 %v2282
      %v2400 = vpop.f32.mrb[0].mxu0
      %v2401 = vadd.f32 0.0, %v2400
      %v2402 = vpop.f32.mrb[0].mxu0
      %v2403 = vpop.f32.mrb[0].mxu0
      %v2404 = vadd.f32 0.0, %v2403
      %v2405 = vpop.f32.mrb[0].mxu0
      %2406 = vmatprep.mubr.bf16.mxu0 0
      %2407 = vmatmul.mubr.bf16.gmra.mrb[0].mxu0 %v2285
      %v2408 = vpop.f32.mrb[0].mxu0
      %v2409 = vadd.f32 0.0, %v2408
      %v2410 = vpop.f32.mrb[0].mxu0
      %v2411 = vpop.f32.mrb[0].mxu0
      %v2412 = vadd.f32 0.0, %v2411
      %v2413 = vpop.f32.mrb[0].mxu0
      %2414 = vmatprep.mubr.bf16.mxu0 0
      %2415 = vmatmul.mubr.bf16.gmra.mrb[0].mxu0 %v2288
      %v2416 = vpop.f32.mrb[0].mxu0
      %v2417 = vadd.f32 0.0, %v2416
      %v2418 = vpop.f32.mrb[0].mxu0
      %v2419 = vpop.f32.mrb[0].mxu0
      %v2420 = vadd.f32 0.0, %v2419
      %v2421 = vpop.f32.mrb[0].mxu0
      %2422 = vmatprep.mubr.bf16.mxu0 0
      %2423 = vmatmul.mubr.bf16.gmra.mrb[0].mxu0 %v2291
      %v2424 = vpop.f32.mrb[0].mxu0
      %v2425 = vadd.f32 0.0, %v2424
      %v2426 = vpop.f32.mrb[0].mxu0
      %v2427 = vpop.f32.mrb[0].mxu0
      %v2428 = vadd.f32 0.0, %v2427
      %v2429 = vpop.f32.mrb[0].mxu0
      %2430 = vmatprep.mubr.bf16.mxu0 0
      %2431 = vmatmul.mubr.bf16.gmra.mrb[0].mxu0 %v2294
      %v2432 = vpop.f32.mrb[0].mxu0
      %v2433 = vadd.f32 0.0, %v2432
      %v2434 = vpop.f32.mrb[0].mxu0
      %v2435 = vpop.f32.mrb[0].mxu0
      %v2436 = vadd.f32 0.0, %v2435
      %v2437 = vpop.f32.mrb[0].mxu0
      %2438 = vmatprep.mubr.bf16.mxu0 0
      %2439 = vmatmul.mubr.bf16.gmra.mrb[0].mxu0 %v2297
      %v2440 = vpop.f32.mrb[0].mxu0
      %v2441 = vadd.f32 0.0, %v2440
      %v2442 = vpop.f32.mrb[0].mxu0
      %v2443 = vpop.f32.mrb[0].mxu0
      %v2444 = vpop.f32.mrb[0].mxu0
      %2445 = vdwg.mxu0
      %v2446 = vld [vmem:[#allocation4] sm:$0xff]
      %v2447 = vld [vmem:[#allocation4 + $0x8] sm:$0xff]
      %v2448 = vld [vmem:[#allocation4 + $0x10] sm:$0xff]
      %v2449 = vld [vmem:[#allocation4 + $0x18] sm:$0xff]
      %v2450 = vld [vmem:[#allocation4 + $0x20] sm:$0xff]
      %v2451 = vld [vmem:[#allocation4 + $0x28] sm:$0xff]
      %v2452 = vld [vmem:[#allocation4 + $0x30] sm:$0xff]
      %v2453 = vld [vmem:[#allocation4 + $0x38] sm:$0xff]
      %v2454 = vld [vmem:[#allocation4 + $0x40] sm:$0xff]
      %v2455 = vld [vmem:[#allocation4 + $0x48] sm:$0xff]
      %v2456 = vld [vmem:[#allocation4 + $0x50] sm:$0xff]
      %v2457 = vld [vmem:[#allocation4 + $0x58] sm:$0xff]
      %v2458 = vld [vmem:[#allocation4 + $0x60] sm:$0xff]
      %v2459 = vld [vmem:[#allocation4 + $0x68] sm:$0xff]
      %v2460 = vld [vmem:[#allocation4 + $0x70] sm:$0xff]
      %v2461 = vld [vmem:[#allocation4 + $0x78] sm:$0xff]
      %v2462 = vld [vmem:[#allocation4 + $0x80] sm:$0xff]
      %v2463 = vld [vmem:[#allocation4 + $0x88] sm:$0xff]
      %v2464 = vld [vmem:[#allocation4 + $0x90] sm:$0xff]
      %v2465 = vld [vmem:[#allocation4 + $0x98] sm:$0xff]
      %v2466 = vld [vmem:[#allocation4 + $0xa0] sm:$0xff]
      %v2467 = vld [vmem:[#allocation4 + $0xa8] sm:$0xff]
      %v2468 = vld [vmem:[#allocation4 + $0xb0] sm:$0xff]
      %v2469 = vld [vmem:[#allocation4 + $0xb8] sm:$0xff]
      %v2470 = vld [vmem:[#allocation4 + $0xc0] sm:$0xff]
      %v2471 = vld [vmem:[#allocation4 + $0xc8] sm:$0xff]
      %v2472 = vld [vmem:[#allocation4 + $0xd0] sm:$0xff]
      %v2473 = vadd.f32 %v2446, %v2337
      %v2474 = vadd.f32 %v2447, %v2340
      %v2475 = vadd.f32 %v2448, %v2345
      %v2476 = vadd.f32 %v2449, %v2348
      %v2477 = vadd.f32 %v2450, %v2353
      %v2478 = vadd.f32 %v2451, %v2356
      %v2479 = vadd.f32 %v2452, %v2361
      %v2480 = vadd.f32 %v2453, %v2364
      %v2481 = vadd.f32 %v2454, %v2369
      %v2482 = vadd.f32 %v2455, %v2372
      %v2483 = vadd.f32 %v2456, %v2377
      %v2484 = vadd.f32 %v2457, %v2380
      %v2485 = vadd.f32 %v2458, %v2385
      %v2486 = vadd.f32 %v2459, %v2388
      %v2487 = vadd.f32 %v2460, %v2393
      %v2488 = vadd.f32 %v2461, %v2396
      %v2489 = vadd.f32 %v2462, %v2401
      %v2490 = vadd.f32 %v2463, %v2404
      %v2491 = vadd.f32 %v2464, %v2409
      %v2492 = vadd.f32 %v2465, %v2412
      %v2493 = vadd.f32 %v2466, %v2417
      %v2494 = vadd.f32 %v2467, %v2420
      %v2495 = vadd.f32 %v2468, %v2425
      %v2496 = vadd.f32 %v2469, %v2428
      %v2497 = vadd.f32 %v2470, %v2433
      %v2498 = vadd.f32 %v2471, %v2436
      %v2499 = vadd.f32 %v2472, %v2441
      %2500 = vst [vmem:[#allocation4] sm:$0xff] %v2473
      %2501 = vst [vmem:[#allocation4 + $0x8] sm:$0xff] %v2474
      %2502 = vst [vmem:[#allocation4 + $0x10] sm:$0xff] %v2475
      %2503 = vst [vmem:[#allocation4 + $0x18] sm:$0xff] %v2476
      %2504 = vst [vmem:[#allocation4 + $0x20] sm:$0xff] %v2477
      %2505 = vst [vmem:[#allocation4 + $0x28] sm:$0xff] %v2478
      %2506 = vst [vmem:[#allocation4 + $0x30] sm:$0xff] %v2479
      %2507 = vst [vmem:[#allocation4 + $0x38] sm:$0xff] %v2480
      %2508 = vst [vmem:[#allocation4 + $0x40] sm:$0xff] %v2481
      %2509 = vst [vmem:[#allocation4 + $0x48] sm:$0xff] %v2482
      %2510 = vst [vmem:[#allocation4 + $0x50] sm:$0xff] %v2483
      %2511 = vst [vmem:[#allocation4 + $0x58] sm:$0xff] %v2484
      %2512 = vst [vmem:[#allocation4 + $0x60] sm:$0xff] %v2485
      %2513 = vst [vmem:[#allocation4 + $0x68] sm:$0xff] %v2486
      %2514 = vst [vmem:[#allocation4 + $0x70] sm:$0xff] %v2487
      %2515 = vst [vmem:[#allocation4 + $0x78] sm:$0xff] %v2488
      %2516 = vst [vmem:[#allocation4 + $0x80] sm:$0xff] %v2489
      %2517 = vst [vmem:[#allocation4 + $0x88] sm:$0xff] %v2490
      %2518 = vst [vmem:[#allocation4 + $0x90] sm:$0xff] %v2491
      %2519 = vst [vmem:[#allocation4 + $0x98] sm:$0xff] %v2492
      %2520 = vst [vmem:[#allocation4 + $0xa0] sm:$0xff] %v2493
      %2521 = vst [vmem:[#allocation4 + $0xa8] sm:$0xff] %v2494
      %2522 = vst [vmem:[#allocation4 + $0xb0] sm:$0xff] %v2495
      %2523 = vst [vmem:[#allocation4 + $0xb8] sm:$0xff] %v2496
      %2524 = vst [vmem:[#allocation4 + $0xc0] sm:$0xff] %v2497
      %2525 = vst [vmem:[#allocation4 + $0xc8] sm:$0xff] %v2498
      %2526 = vst [vmem:[#allocation4 + $0xd0] sm:$0xff] %v2499
      %s2527 = scalar_lea.vmem [#allocation3], 24
      %v2528 = vld [vmem:[%s2527] sm:$0xf]
      %v2529 = vld [vmem:[%s2527 + $0x4] sm:$0xf]
      %v2530 = vld [vmem:[%s2527 + $0x8] sm:$0xf]
      %v2531 = vld [vmem:[%s2527 + $0xc] sm:$0xf]
      %v2532 = vld [vmem:[%s2527 + $0x10] sm:$0xf]
      %v2533 = vld [vmem:[%s2527 + $0x14] sm:$0xf]
      %v2534 = vld [vmem:[%s2527 + $0x18] sm:$0xf]
      %v2535 = vld [vmem:[%s2527 + $0x1c] sm:$0xf]
      %v2536 = vld [vmem:[%s2527 + $0x20] sm:$0xf]
      %v2537 = vld [vmem:[%s2527 + $0x24] sm:$0xf]
      %v2538 = vld [vmem:[%s2527 + $0x28] sm:$0xf]
      %v2539 = vld [vmem:[%s2527 + $0x2c] sm:$0xf]
      %v2540 = vld [vmem:[%s2527 + $0x30] sm:$0xf]
      %v2541 = vld [vmem:[%s2527 + $0x34] sm:$0xf]
      %v2542 = vld [vmem:[%s2527 + $0x38] sm:$0xf]
      %v2543 = vld [vmem:[%s2527 + $0x3c] sm:$0xf]
      %v2544 = vld [vmem:[%s2527 + $0x40] sm:$0xf]
      %v2545 = vld [vmem:[%s2527 + $0x44] sm:$0xf]
      %v2546 = vld [vmem:[%s2527 + $0x48] sm:$0xf]
      %v2547 = vld [vmem:[%s2527 + $0x4c] sm:$0xf]
      %v2548 = vld [vmem:[%s2527 + $0x50] sm:$0xf]
      %v2549 = vld [vmem:[%s2527 + $0x54] sm:$0xf]
      %v2550 = vld [vmem:[%s2527 + $0x58] sm:$0xf]
      %v2551 = vld [vmem:[%s2527 + $0x5c] sm:$0xf]
      %v2552 = vld [vmem:[%s2527 + $0x60] sm:$0xf]
      %v2553 = vld [vmem:[%s2527 + $0x64] sm:$0xf]
      %v2554 = vld [vmem:[%s2527 + $0x68] sm:$0xf]
      %s2555 = scalar_lea.vmem %s562, 16
      %v2556 = vld [vmem:[%s2555] sm:$0xf]
      %v2557 = vld [vmem:[%s2555 + $0x4] sm:$0x3]
      %v2585 = vunpack.c.l.b16 %v2528
      %v2586 = vunpack.c.l.b16 %v2529
      %v2587 = vunpack.c.l.b16 %v2530
      %v2588 = vunpack.c.l.b16 %v2531
      %v2589 = vunpack.c.l.b16 %v2532
      %v2590 = vunpack.c.l.b16 %v2533
      %v2591 = vunpack.c.l.b16 %v2534
      %v2592 = vunpack.c.l.b16 %v2535
      %v2593 = vunpack.c.l.b16 %v2536
      %v2594 = vunpack.c.l.b16 %v2537
      %v2595 = vunpack.c.l.b16 %v2538
      %v2596 = vunpack.c.l.b16 %v2539
      %v2597 = vunpack.c.l.b16 %v2540
      %v2598 = vunpack.c.l.b16 %v2541
      %v2599 = vunpack.c.l.b16 %v2542
      %v2600 = vunpack.c.l.b16 %v2543
      %v2601 = vunpack.c.l.b16 %v2544
      %v2602 = vunpack.c.l.b16 %v2545
      %v2603 = vunpack.c.l.b16 %v2546
      %v2604 = vunpack.c.l.b16 %v2547
      %v2605 = vunpack.c.l.b16 %v2548
      %v2606 = vunpack.c.l.b16 %v2549
      %v2607 = vunpack.c.l.b16 %v2550
      %v2608 = vunpack.c.l.b16 %v2551
      %v2609 = vunpack.c.l.b16 %v2552
      %v2610 = vunpack.c.l.b16 %v2553
      %v2611 = vunpack.c.l.b16 %v2554
      %v2612 = vpack.c.b16 %v2586, %v2585
      %v2613 = vpack.c.b16 %v2588, %v2587
      %v2614 = vpack.c.b16 %v2590, %v2589
      %v2615 = vpack.c.b16 %v2592, %v2591
      %v2616 = vpack.c.b16 %v2594, %v2593
      %v2617 = vpack.c.b16 %v2596, %v2595
      %v2618 = vpack.c.b16 %v2598, %v2597
      %v2619 = vpack.c.b16 %v2600, %v2599
      %v2620 = vpack.c.b16 %v2602, %v2601
      %v2621 = vpack.c.b16 %v2604, %v2603
      %v2622 = vpack.c.b16 %v2606, %v2605
      %v2623 = vpack.c.b16 %v2608, %v2607
      %v2624 = vpack.c.b16 %v2610, %v2609
      %v2625 = vpack.c.b16 %v2611, %v2611
      %v2628 = vunpack.c.l.b16 %v2556
      %v2629 = vunpack.c.l.b16 %v2557
      %v2630 = vpack.c.b16 %v2629, %v2628
      %v2632 = vsel %vm1935, %v2612, 0
      %v2635 = vsel %vm1935, %v2613, 0
      %v2638 = vsel %vm1935, %v2614, 0
      %v2641 = vsel %vm1935, %v2615, 0
      %v2644 = vsel %vm1935, %v2616, 0
      %v2647 = vsel %vm1935, %v2617, 0
      %v2650 = vsel %vm1935, %v2618, 0
      %v2653 = vsel %vm1935, %v2619, 0
      %v2656 = vsel %vm1935, %v2620, 0
      %v2659 = vsel %vm1935, %v2621, 0
      %v2662 = vsel %vm1935, %v2622, 0
      %v2665 = vsel %vm1935, %v2623, 0
      %v2668 = vsel %vm1935, %v2624, 0
      %v2671 = vsel %vm1935, %v2625, 0
      %v2674 = vsel %vm1978, %v2630, 0
      %2676 = vmatprep.subr.bf16.mxu0 0
      %2677 = vmatpush1.bf16.msra.mxu0 %v2674
      %2678 = vmatprep.subr.bf16.mxu0 0
      %2679 = vmatpush1.bf16.msra.mxu0 0
      %2680 = vmatprep.subr.bf16.mxu0 0
      %2681 = vmatpush1.bf16.msra.mxu0 0
      %2682 = vmatprep.subr.bf16.mxu0 0
      %2683 = vmatpush1.bf16.msra.mxu0 0
      %2684 = vmatprep.subr.bf16.mxu0 0
      %2685 = vmatpush1.bf16.msra.mxu0 0
      %2686 = vmatprep.subr.bf16.mxu0 0
      %2687 = vmatpush1.bf16.msra.mxu0 0
      %2688 = vmatprep.subr.bf16.mxu0 0
      %2689 = vmatpush1.bf16.msra.mxu0 0
      %2690 = vmatprep.subr.bf16.mxu0 0
      %2691 = vmatpush1.bf16.msra.mxu0 0
      %2692 = vmatprep.subr.bf16.mxu0 0
      %2693 = vmatpush1.bf16.msra.mxu0 0
      %2694 = vmatprep.subr.bf16.mxu0 0
      %2695 = vmatpush1.bf16.msra.mxu0 0
      %2696 = vmatprep.subr.bf16.mxu0 0
      %2697 = vmatpush1.bf16.msra.mxu0 0
      %2698 = vmatprep.subr.bf16.mxu0 0
      %2699 = vmatpush1.bf16.msra.mxu0 0
      %2700 = vmatprep.subr.bf16.mxu0 0
      %2701 = vmatpush1.bf16.msra.mxu0 0
      %2702 = vmatprep.subr.bf16.mxu0 0
      %2703 = vmatpush1.bf16.msra.mxu0 0
      %2704 = vmatprep.subr.bf16.mxu0 0
      %2705 = vmatpush1.bf16.msra.mxu0 0
      %2706 = vmatprep.subr.bf16.mxu0 0
      %2707 = vmatpush1.bf16.msra.mxu0 0
      %2708 = vmatprep.mubr.bf16.mxu0 0
      %2709 = vmatmul.mubr.bf16.gmra.mrb[0].mxu0 %v2632
      %v2710 = vpop.f32.mrb[0].mxu0
      %v2711 = vadd.f32 0.0, %v2710
      %v2712 = vpop.f32.mrb[0].mxu0
      %v2713 = vpop.f32.mrb[0].mxu0
      %v2714 = vadd.f32 0.0, %v2713
      %v2715 = vpop.f32.mrb[0].mxu0
      %2716 = vmatprep.mubr.bf16.mxu0 0
      %2717 = vmatmul.mubr.bf16.gmra.mrb[0].mxu0 %v2635
      %v2718 = vpop.f32.mrb[0].mxu0
      %v2719 = vadd.f32 0.0, %v2718
      %v2720 = vpop.f32.mrb[0].mxu0
      %v2721 = vpop.f32.mrb[0].mxu0
      %v2722 = vadd.f32 0.0, %v2721
      %v2723 = vpop.f32.mrb[0].mxu0
      %2724 = vmatprep.mubr.bf16.mxu0 0
      %2725 = vmatmul.mubr.bf16.gmra.mrb[0].mxu0 %v2638
      %v2726 = vpop.f32.mrb[0].mxu0
      %v2727 = vadd.f32 0.0, %v2726
      %v2728 = vpop.f32.mrb[0].mxu0
      %v2729 = vpop.f32.mrb[0].mxu0
      %v2730 = vadd.f32 0.0, %v2729
      %v2731 = vpop.f32.mrb[0].mxu0
      %2732 = vmatprep.mubr.bf16.mxu0 0
      %2733 = vmatmul.mubr.bf16.gmra.mrb[0].mxu0 %v2641
      %v2734 = vpop.f32.mrb[0].mxu0
      %v2735 = vadd.f32 0.0, %v2734
      %v2736 = vpop.f32.mrb[0].mxu0
      %v2737 = vpop.f32.mrb[0].mxu0
      %v2738 = vadd.f32 0.0, %v2737
      %v2739 = vpop.f32.mrb[0].mxu0
      %2740 = vmatprep.mubr.bf16.mxu0 0
      %2741 = vmatmul.mubr.bf16.gmra.mrb[0].mxu0 %v2644
      %v2742 = vpop.f32.mrb[0].mxu0
      %v2743 = vadd.f32 0.0, %v2742
      %v2744 = vpop.f32.mrb[0].mxu0
      %v2745 = vpop.f32.mrb[0].mxu0
      %v2746 = vadd.f32 0.0, %v2745
      %v2747 = vpop.f32.mrb[0].mxu0
      %2748 = vmatprep.mubr.bf16.mxu0 0
      %2749 = vmatmul.mubr.bf16.gmra.mrb[0].mxu0 %v2647
      %v2750 = vpop.f32.mrb[0].mxu0
      %v2751 = vadd.f32 0.0, %v2750
      %v2752 = vpop.f32.mrb[0].mxu0
      %v2753 = vpop.f32.mrb[0].mxu0
      %v2754 = vadd.f32 0.0, %v2753
      %v2755 = vpop.f32.mrb[0].mxu0
      %2756 = vmatprep.mubr.bf16.mxu0 0
      %2757 = vmatmul.mubr.bf16.gmra.mrb[0].mxu0 %v2650
      %v2758 = vpop.f32.mrb[0].mxu0
      %v2759 = vadd.f32 0.0, %v2758
      %v2760 = vpop.f32.mrb[0].mxu0
      %v2761 = vpop.f32.mrb[0].mxu0
      %v2762 = vadd.f32 0.0, %v2761
      %v2763 = vpop.f32.mrb[0].mxu0
      %2764 = vmatprep.mubr.bf16.mxu0 0
      %2765 = vmatmul.mubr.bf16.gmra.mrb[0].mxu0 %v2653
      %v2766 = vpop.f32.mrb[0].mxu0
      %v2767 = vadd.f32 0.0, %v2766
      %v2768 = vpop.f32.mrb[0].mxu0
      %v2769 = vpop.f32.mrb[0].mxu0
      %v2770 = vadd.f32 0.0, %v2769
      %v2771 = vpop.f32.mrb[0].mxu0
      %2772 = vmatprep.mubr.bf16.mxu0 0
      %2773 = vmatmul.mubr.bf16.gmra.mrb[0].mxu0 %v2656
      %v2774 = vpop.f32.mrb[0].mxu0
      %v2775 = vadd.f32 0.0, %v2774
      %v2776 = vpop.f32.mrb[0].mxu0
      %v2777 = vpop.f32.mrb[0].mxu0
      %v2778 = vadd.f32 0.0, %v2777
      %v2779 = vpop.f32.mrb[0].mxu0
      %2780 = vmatprep.mubr.bf16.mxu0 0
      %2781 = vmatmul.mubr.bf16.gmra.mrb[0].mxu0 %v2659
      %v2782 = vpop.f32.mrb[0].mxu0
      %v2783 = vadd.f32 0.0, %v2782
      %v2784 = vpop.f32.mrb[0].mxu0
      %v2785 = vpop.f32.mrb[0].mxu0
      %v2786 = vadd.f32 0.0, %v2785
      %v2787 = vpop.f32.mrb[0].mxu0
      %2788 = vmatprep.mubr.bf16.mxu0 0
      %2789 = vmatmul.mubr.bf16.gmra.mrb[0].mxu0 %v2662
      %v2790 = vpop.f32.mrb[0].mxu0
      %v2791 = vadd.f32 0.0, %v2790
      %v2792 = vpop.f32.mrb[0].mxu0
      %v2793 = vpop.f32.mrb[0].mxu0
      %v2794 = vadd.f32 0.0, %v2793
      %v2795 = vpop.f32.mrb[0].mxu0
      %2796 = vmatprep.mubr.bf16.mxu0 0
      %2797 = vmatmul.mubr.bf16.gmra.mrb[0].mxu0 %v2665
      %v2798 = vpop.f32.mrb[0].mxu0
      %v2799 = vadd.f32 0.0, %v2798
      %v2800 = vpop.f32.mrb[0].mxu0
      %v2801 = vpop.f32.mrb[0].mxu0
      %v2802 = vadd.f32 0.0, %v2801
      %v2803 = vpop.f32.mrb[0].mxu0
      %2804 = vmatprep.mubr.bf16.mxu0 0
      %2805 = vmatmul.mubr.bf16.gmra.mrb[0].mxu0 %v2668
      %v2806 = vpop.f32.mrb[0].mxu0
      %v2807 = vadd.f32 0.0, %v2806
      %v2808 = vpop.f32.mrb[0].mxu0
      %v2809 = vpop.f32.mrb[0].mxu0
      %v2810 = vadd.f32 0.0, %v2809
      %v2811 = vpop.f32.mrb[0].mxu0
      %2812 = vmatprep.mubr.bf16.mxu0 0
      %2813 = vmatmul.mubr.bf16.gmra.mrb[0].mxu0 %v2671
      %v2814 = vpop.f32.mrb[0].mxu0
      %v2815 = vadd.f32 0.0, %v2814
      %v2816 = vpop.f32.mrb[0].mxu0
      %v2817 = vpop.f32.mrb[0].mxu0
      %v2818 = vpop.f32.mrb[0].mxu0
      %2819 = vdwg.mxu0
      %v2820 = vld [vmem:[#allocation4] sm:$0xff]
      %v2821 = vld [vmem:[#allocation4 + $0x8] sm:$0xff]
      %v2822 = vld [vmem:[#allocation4 + $0x10] sm:$0xff]
      %v2823 = vld [vmem:[#allocation4 + $0x18] sm:$0xff]
      %v2824 = vld [vmem:[#allocation4 + $0x20] sm:$0xff]
      %v2825 = vld [vmem:[#allocation4 + $0x28] sm:$0xff]
      %v2826 = vld [vmem:[#allocation4 + $0x30] sm:$0xff]
      %v2827 = vld [vmem:[#allocation4 + $0x38] sm:$0xff]
      %v2828 = vld [vmem:[#allocation4 + $0x40] sm:$0xff]
      %v2829 = vld [vmem:[#allocation4 + $0x48] sm:$0xff]
      %v2830 = vld [vmem:[#allocation4 + $0x50] sm:$0xff]
      %v2831 = vld [vmem:[#allocation4 + $0x58] sm:$0xff]
      %v2832 = vld [vmem:[#allocation4 + $0x60] sm:$0xff]
      %v2833 = vld [vmem:[#allocation4 + $0x68] sm:$0xff]
      %v2834 = vld [vmem:[#allocation4 + $0x70] sm:$0xff]
      %v2835 = vld [vmem:[#allocation4 + $0x78] sm:$0xff]
      %v2836 = vld [vmem:[#allocation4 + $0x80] sm:$0xff]
      %v2837 = vld [vmem:[#allocation4 + $0x88] sm:$0xff]
      %v2838 = vld [vmem:[#allocation4 + $0x90] sm:$0xff]
      %v2839 = vld [vmem:[#allocation4 + $0x98] sm:$0xff]
      %v2840 = vld [vmem:[#allocation4 + $0xa0] sm:$0xff]
      %v2841 = vld [vmem:[#allocation4 + $0xa8] sm:$0xff]
      %v2842 = vld [vmem:[#allocation4 + $0xb0] sm:$0xff]
      %v2843 = vld [vmem:[#allocation4 + $0xb8] sm:$0xff]
      %v2844 = vld [vmem:[#allocation4 + $0xc0] sm:$0xff]
      %v2845 = vld [vmem:[#allocation4 + $0xc8] sm:$0xff]
      %v2846 = vld [vmem:[#allocation4 + $0xd0] sm:$0xff]
      %v2847 = vadd.f32 %v2820, %v2711
      %v2848 = vadd.f32 %v2821, %v2714
      %v2849 = vadd.f32 %v2822, %v2719
      %v2850 = vadd.f32 %v2823, %v2722
      %v2851 = vadd.f32 %v2824, %v2727
      %v2852 = vadd.f32 %v2825, %v2730
      %v2853 = vadd.f32 %v2826, %v2735
      %v2854 = vadd.f32 %v2827, %v2738
      %v2855 = vadd.f32 %v2828, %v2743
      %v2856 = vadd.f32 %v2829, %v2746
      %v2857 = vadd.f32 %v2830, %v2751
      %v2858 = vadd.f32 %v2831, %v2754
      %v2859 = vadd.f32 %v2832, %v2759
      %v2860 = vadd.f32 %v2833, %v2762
      %v2861 = vadd.f32 %v2834, %v2767
      %v2862 = vadd.f32 %v2835, %v2770
      %v2863 = vadd.f32 %v2836, %v2775
      %v2864 = vadd.f32 %v2837, %v2778
      %v2865 = vadd.f32 %v2838, %v2783
      %v2866 = vadd.f32 %v2839, %v2786
      %v2867 = vadd.f32 %v2840, %v2791
      %v2868 = vadd.f32 %v2841, %v2794
      %v2869 = vadd.f32 %v2842, %v2799
      %v2870 = vadd.f32 %v2843, %v2802
      %v2871 = vadd.f32 %v2844, %v2807
      %v2872 = vadd.f32 %v2845, %v2810
      %v2873 = vadd.f32 %v2846, %v2815
      %2874 = vst [vmem:[#allocation4] sm:$0xff] %v2847
      %2875 = vst [vmem:[#allocation4 + $0x8] sm:$0xff] %v2848
      %2876 = vst [vmem:[#allocation4 + $0x10] sm:$0xff] %v2849
      %2877 = vst [vmem:[#allocation4 + $0x18] sm:$0xff] %v2850
      %2878 = vst [vmem:[#allocation4 + $0x20] sm:$0xff] %v2851
      %2879 = vst [vmem:[#allocation4 + $0x28] sm:$0xff] %v2852
      %2880 = vst [vmem:[#allocation4 + $0x30] sm:$0xff] %v2853
      %2881 = vst [vmem:[#allocation4 + $0x38] sm:$0xff] %v2854
      %2882 = vst [vmem:[#allocation4 + $0x40] sm:$0xff] %v2855
      %2883 = vst [vmem:[#allocation4 + $0x48] sm:$0xff] %v2856
      %2884 = vst [vmem:[#allocation4 + $0x50] sm:$0xff] %v2857
      %2885 = vst [vmem:[#allocation4 + $0x58] sm:$0xff] %v2858
      %2886 = vst [vmem:[#allocation4 + $0x60] sm:$0xff] %v2859
      %2887 = vst [vmem:[#allocation4 + $0x68] sm:$0xff] %v2860
      %2888 = vst [vmem:[#allocation4 + $0x70] sm:$0xff] %v2861
      %2889 = vst [vmem:[#allocation4 + $0x78] sm:$0xff] %v2862
      %2890 = vst [vmem:[#allocation4 + $0x80] sm:$0xff] %v2863
      %2891 = vst [vmem:[#allocation4 + $0x88] sm:$0xff] %v2864
      %2892 = vst [vmem:[#allocation4 + $0x90] sm:$0xff] %v2865
      %2893 = vst [vmem:[#allocation4 + $0x98] sm:$0xff] %v2866
      %2894 = vst [vmem:[#allocation4 + $0xa0] sm:$0xff] %v2867
      %2895 = vst [vmem:[#allocation4 + $0xa8] sm:$0xff] %v2868
      %2896 = vst [vmem:[#allocation4 + $0xb0] sm:$0xff] %v2869
      %2897 = vst [vmem:[#allocation4 + $0xb8] sm:$0xff] %v2870
      %2898 = vst [vmem:[#allocation4 + $0xc0] sm:$0xff] %v2871
      %2899 = vst [vmem:[#allocation4 + $0xc8] sm:$0xff] %v2872
      %2900 = vst [vmem:[#allocation4 + $0xd0] sm:$0xff] %v2873
      %s2901 = smul.u32 %s28, 9
      %v2902 = vstv %s2901
      %v2903 = vadd.s32 %v2902, 1
      %v2904 = vadd.s32 %v2902, 2
      %v2905 = vadd.s32 %v2902, 3
      %v2906 = vadd.s32 %v2902, 4
      %v2907 = vadd.s32 %v2902, 5
      %v2908 = vadd.s32 %v2902, 6
      %v2909 = vadd.s32 %v2902, 7
      %v2910 = vadd.s32 %v2902, 8
      %v2911 = vlaneseq
      %v2912 = vshrl.u32 %v2911, 7
      %v2913 = vadd.s32 %v2912, 8
      %v2914 = vadd.s32 %v2912, 16
      %vm2915 = vcmp.ge.s32.totalorder %v2902, 1
      %vm2916 = vcmp.ge.s32.totalorder %v2903, 1
      %vm2917 = vcmp.ge.s32.totalorder %v2904, 1
      %vm2918 = vcmp.ge.s32.totalorder %v2905, 1
      %vm2919 = vcmp.ge.s32.totalorder %v2906, 1
      %vm2920 = vcmp.ge.s32.totalorder %v2907, 1
      %vm2921 = vcmp.ge.s32.totalorder %v2908, 1
      %vm2922 = vcmp.ge.s32.totalorder %v2909, 1
      %vm2923 = vcmp.ge.s32.totalorder %v2910, 1
      %vm2924 = vcmp.le.s32.totalorder %v2902, 16
      %vm2925 = vcmp.le.s32.totalorder %v2903, 16
      %vm2926 = vcmp.le.s32.totalorder %v2904, 16
      %vm2927 = vcmp.le.s32.totalorder %v2905, 16
      %vm2928 = vcmp.le.s32.totalorder %v2906, 16
      %vm2929 = vcmp.le.s32.totalorder %v2907, 16
      %vm2930 = vcmp.le.s32.totalorder %v2908, 16
      %vm2931 = vcmp.le.s32.totalorder %v2909, 16
      %vm2932 = vcmp.le.s32.totalorder %v2910, 16
      %vm2933 = vmand %vm2915, %vm2924
      %vm2934 = vmand %vm2916, %vm2925
      %vm2935 = vmand %vm2917, %vm2926
      %vm2936 = vmand %vm2918, %vm2927
      %vm2937 = vmand %vm2919, %vm2928
      %vm2938 = vmand %vm2920, %vm2929
      %vm2939 = vmand %vm2921, %vm2930
      %vm2940 = vmand %vm2922, %vm2931
      %vm2941 = vmand %vm2923, %vm2932
      %vm2942 = vcmp.ge.s32.totalorder %v2912, 1
      %vm2943 = vcmp.ge.s32.totalorder %v2913, 1
      %vm2944 = vcmp.ge.s32.totalorder %v2914, 1
      %vm2945 = vmand %vm2933, %vm2942
      %vm2946 = vmand %vm2933, %vm2943
      %vm2947 = vmand %vm2933, %vm2944
      %vm2948 = vmand %vm2934, %vm2942
      %vm2949 = vmand %vm2934, %vm2943
      %vm2950 = vmand %vm2934, %vm2944
      %vm2951 = vmand %vm2935, %vm2942
      %vm2952 = vmand %vm2935, %vm2943
      %vm2953 = vmand %vm2935, %vm2944
      %vm2954 = vmand %vm2936, %vm2942
      %vm2955 = vmand %vm2936, %vm2943
      %vm2956 = vmand %vm2936, %vm2944
      %vm2957 = vmand %vm2937, %vm2942
      %vm2958 = vmand %vm2937, %vm2943
      %vm2959 = vmand %vm2937, %vm2944
      %vm2960 = vmand %vm2938, %vm2942
      %vm2961 = vmand %vm2938, %vm2943
      %vm2962 = vmand %vm2938, %vm2944
      %vm2963 = vmand %vm2939, %vm2942
      %vm2964 = vmand %vm2939, %vm2943
      %vm2965 = vmand %vm2939, %vm2944
      %vm2966 = vmand %vm2940, %vm2942
      %vm2967 = vmand %vm2940, %vm2943
      %vm2968 = vmand %vm2940, %vm2944
      %vm2969 = vmand %vm2941, %vm2942
      %vm2970 = vmand %vm2941, %vm2943
      %vm2971 = vmand %vm2941, %vm2944
      %vm2972 = vcmp.le.s32.totalorder %v2912, 16
      %vm2973 = vcmp.le.s32.totalorder %v2913, 16
      %vm2974 = vcmp.le.s32.totalorder %v2914, 16
      %vm2975 = vmand %vm2945, %vm2972
      %vm2976 = vmand %vm2946, %vm2973
      %vm2977 = vmand %vm2947, %vm2974
      %vm2978 = vmand %vm2948, %vm2972
      %vm2979 = vmand %vm2949, %vm2973
      %vm2980 = vmand %vm2950, %vm2974
      %vm2981 = vmand %vm2951, %vm2972
      %vm2982 = vmand %vm2952, %vm2973
      %vm2983 = vmand %vm2953, %vm2974
      %vm2984 = vmand %vm2954, %vm2972
      %vm2985 = vmand %vm2955, %vm2973
      %vm2986 = vmand %vm2956, %vm2974
      %vm2987 = vmand %vm2957, %vm2972
      %vm2988 = vmand %vm2958, %vm2973
      %vm2989 = vmand %vm2959, %vm2974
      %vm2990 = vmand %vm2960, %vm2972
      %vm2991 = vmand %vm2961, %vm2973
      %vm2992 = vmand %vm2962, %vm2974
      %vm2993 = vmand %vm2963, %vm2972
      %vm2994 = vmand %vm2964, %vm2973
      %vm2995 = vmand %vm2965, %vm2974
      %vm2996 = vmand %vm2966, %vm2972
      %vm2997 = vmand %vm2967, %vm2973
      %vm2998 = vmand %vm2968, %vm2974
      %vm2999 = vmand %vm2969, %vm2972
      %vm3000 = vmand %vm2970, %vm2973
      %vm3001 = vmand %vm2971, %vm2974
      %v3002 = vld [vmem:[#allocation4] sm:$0xff]
      %v3003 = vld [vmem:[#allocation4 + $0x8] sm:$0xff]
      %v3004 = vld [vmem:[#allocation4 + $0x10] sm:$0xff]
      %v3005 = vld [vmem:[#allocation4 + $0x18] sm:$0xff]
      %v3006 = vld [vmem:[#allocation4 + $0x20] sm:$0xff]
      %v3007 = vld [vmem:[#allocation4 + $0x28] sm:$0xff]
      %v3008 = vld [vmem:[#allocation4 + $0x30] sm:$0xff]
      %v3009 = vld [vmem:[#allocation4 + $0x38] sm:$0xff]
      %v3010 = vld [vmem:[#allocation4 + $0x40] sm:$0xff]
      %v3011 = vld [vmem:[#allocation4 + $0x48] sm:$0xff]
      %v3012 = vld [vmem:[#allocation4 + $0x50] sm:$0xff]
      %v3013 = vld [vmem:[#allocation4 + $0x58] sm:$0xff]
      %v3014 = vld [vmem:[#allocation4 + $0x60] sm:$0xff]
      %v3015 = vld [vmem:[#allocation4 + $0x68] sm:$0xff]
      %v3016 = vld [vmem:[#allocation4 + $0x70] sm:$0xff]
      %v3017 = vld [vmem:[#allocation4 + $0x78] sm:$0xff]
      %v3018 = vld [vmem:[#allocation4 + $0x80] sm:$0xff]
      %v3019 = vld [vmem:[#allocation4 + $0x88] sm:$0xff]
      %v3020 = vld [vmem:[#allocation4 + $0x90] sm:$0xff]
      %v3021 = vld [vmem:[#allocation4 + $0x98] sm:$0xff]
      %v3022 = vld [vmem:[#allocation4 + $0xa0] sm:$0xff]
      %v3023 = vld [vmem:[#allocation4 + $0xa8] sm:$0xff]
      %v3024 = vld [vmem:[#allocation4 + $0xb0] sm:$0xff]
      %v3025 = vld [vmem:[#allocation4 + $0xb8] sm:$0xff]
      %v3026 = vld [vmem:[#allocation4 + $0xc0] sm:$0xff]
      %v3027 = vld [vmem:[#allocation4 + $0xc8] sm:$0xff]
      %v3028 = vld [vmem:[#allocation4 + $0xd0] sm:$0xff]
      %v3029 = vld [vmem:[%s565] sm:$0x1]
      %v3031 = vlaneseq
      %v3032 = vshrl.u32 %v3031, 7
      %v3033 = vsub.s32 0, %v3032
      %v3034 = vrot.slane %v3029, %v3033
      %v3036 = vadd.f32 %v3002, %v3034
      %v3037 = vadd.f32 %v3003, %v3034
      %v3038 = vadd.f32 %v3004, %v3034
      %v3039 = vadd.f32 %v3005, %v3034
      %v3040 = vadd.f32 %v3006, %v3034
      %v3041 = vadd.f32 %v3007, %v3034
      %v3042 = vadd.f32 %v3008, %v3034
      %v3043 = vadd.f32 %v3009, %v3034
      %v3044 = vadd.f32 %v3010, %v3034
      %v3045 = vadd.f32 %v3011, %v3034
      %v3046 = vadd.f32 %v3012, %v3034
      %v3047 = vadd.f32 %v3013, %v3034
      %v3048 = vadd.f32 %v3014, %v3034
      %v3049 = vadd.f32 %v3015, %v3034
      %v3050 = vadd.f32 %v3016, %v3034
      %v3051 = vadd.f32 %v3017, %v3034
      %v3052 = vadd.f32 %v3018, %v3034
      %v3053 = vadd.f32 %v3019, %v3034
      %v3054 = vadd.f32 %v3020, %v3034
      %v3055 = vadd.f32 %v3021, %v3034
      %v3056 = vadd.f32 %v3022, %v3034
      %v3057 = vadd.f32 %v3023, %v3034
      %v3058 = vadd.f32 %v3024, %v3034
      %v3059 = vadd.f32 %v3025, %v3034
      %v3060 = vadd.f32 %v3026, %v3034
      %v3061 = vadd.f32 %v3027, %v3034
      %v3062 = vadd.f32 %v3028, %v3034
      %v3063 = vsel %vm2975, 1, 0
      %v3064 = vsel %vm2976, 1, 0
      %v3065 = vsel %vm2977, 1, 0
      %v3066 = vsel %vm2978, 1, 0
      %v3067 = vsel %vm2979, 1, 0
      %v3068 = vsel %vm2980, 1, 0
      %v3069 = vsel %vm2981, 1, 0
      %v3070 = vsel %vm2982, 1, 0
      %v3071 = vsel %vm2983, 1, 0
      %v3072 = vsel %vm2984, 1, 0
      %v3073 = vsel %vm2985, 1, 0
      %v3074 = vsel %vm2986, 1, 0
      %v3075 = vsel %vm2987, 1, 0
      %v3076 = vsel %vm2988, 1, 0
      %v3077 = vsel %vm2989, 1, 0
      %v3078 = vsel %vm2990, 1, 0
      %v3079 = vsel %vm2991, 1, 0
      %v3080 = vsel %vm2992, 1, 0
      %v3081 = vsel %vm2993, 1, 0
      %v3082 = vsel %vm2994, 1, 0
      %v3083 = vsel %vm2995, 1, 0
      %v3084 = vsel %vm2996, 1, 0
      %v3085 = vsel %vm2997, 1, 0
      %v3086 = vsel %vm2998, 1, 0
      %v3087 = vsel %vm2999, 1, 0
      %v3088 = vsel %vm3000, 1, 0
      %v3089 = vsel %vm3001, 1, 0
      %vm3090 = vcmp.eq.s32.totalorder %v3063, 1
      %vm3091 = vcmp.eq.s32.totalorder %v3064, 1
      %vm3092 = vcmp.eq.s32.totalorder %v3065, 1
      %vm3093 = vcmp.eq.s32.totalorder %v3066, 1
      %vm3094 = vcmp.eq.s32.totalorder %v3067, 1
      %vm3095 = vcmp.eq.s32.totalorder %v3068, 1
      %vm3096 = vcmp.eq.s32.totalorder %v3069, 1
      %vm3097 = vcmp.eq.s32.totalorder %v3070, 1
      %vm3098 = vcmp.eq.s32.totalorder %v3071, 1
      %vm3099 = vcmp.eq.s32.totalorder %v3072, 1
      %vm3100 = vcmp.eq.s32.totalorder %v3073, 1
      %vm3101 = vcmp.eq.s32.totalorder %v3074, 1
      %vm3102 = vcmp.eq.s32.totalorder %v3075, 1
      %vm3103 = vcmp.eq.s32.totalorder %v3076, 1
      %vm3104 = vcmp.eq.s32.totalorder %v3077, 1
      %vm3105 = vcmp.eq.s32.totalorder %v3078, 1
      %vm3106 = vcmp.eq.s32.totalorder %v3079, 1
      %vm3107 = vcmp.eq.s32.totalorder %v3080, 1
      %vm3108 = vcmp.eq.s32.totalorder %v3081, 1
      %vm3109 = vcmp.eq.s32.totalorder %v3082, 1
      %vm3110 = vcmp.eq.s32.totalorder %v3083, 1
      %vm3111 = vcmp.eq.s32.totalorder %v3084, 1
      %vm3112 = vcmp.eq.s32.totalorder %v3085, 1
      %vm3113 = vcmp.eq.s32.totalorder %v3086, 1
      %vm3114 = vcmp.eq.s32.totalorder %v3087, 1
      %vm3115 = vcmp.eq.s32.totalorder %v3088, 1
      %vm3116 = vcmp.eq.s32.totalorder %v3089, 1
      %v3117 = vsel %vm3090, %v3036, 0.0
      %v3118 = vsel %vm3091, %v3037, 0.0
      %v3119 = vsel %vm3092, %v3038, 0.0
      %v3120 = vsel %vm3093, %v3039, 0.0
      %v3121 = vsel %vm3094, %v3040, 0.0
      %v3122 = vsel %vm3095, %v3041, 0.0
      %v3123 = vsel %vm3096, %v3042, 0.0
      %v3124 = vsel %vm3097, %v3043, 0.0
      %v3125 = vsel %vm3098, %v3044, 0.0
      %v3126 = vsel %vm3099, %v3045, 0.0
      %v3127 = vsel %vm3100, %v3046, 0.0
      %v3128 = vsel %vm3101, %v3047, 0.0
      %v3129 = vsel %vm3102, %v3048, 0.0
      %v3130 = vsel %vm3103, %v3049, 0.0
      %v3131 = vsel %vm3104, %v3050, 0.0
      %v3132 = vsel %vm3105, %v3051, 0.0
      %v3133 = vsel %vm3106, %v3052, 0.0
      %v3134 = vsel %vm3107, %v3053, 0.0
      %v3135 = vsel %vm3108, %v3054, 0.0
      %v3136 = vsel %vm3109, %v3055, 0.0
      %v3137 = vsel %vm3110, %v3056, 0.0
      %v3138 = vsel %vm3111, %v3057, 0.0
      %v3139 = vsel %vm3112, %v3058, 0.0
      %v3140 = vsel %vm3113, %v3059, 0.0
      %v3141 = vsel %vm3114, %v3060, 0.0
      %v3142 = vsel %vm3115, %v3061, 0.0
      %v3143 = vsel %vm3116, %v3062, 0.0
      %v3144 = vpack.c.bf16 %v3118, %v3117
      %v3145 = vpack.c.bf16 %v3119, %v3119
      %v3146 = vpack.c.bf16 %v3121, %v3120
      %v3147 = vpack.c.bf16 %v3122, %v3122
      %v3148 = vpack.c.bf16 %v3124, %v3123
      %v3149 = vpack.c.bf16 %v3125, %v3125
      %v3150 = vpack.c.bf16 %v3127, %v3126
      %v3151 = vpack.c.bf16 %v3128, %v3128
      %v3152 = vpack.c.bf16 %v3130, %v3129
      %v3153 = vpack.c.bf16 %v3131, %v3131
      %v3154 = vpack.c.bf16 %v3133, %v3132
      %v3155 = vpack.c.bf16 %v3134, %v3134
      %v3156 = vpack.c.bf16 %v3136, %v3135
      %v3157 = vpack.c.bf16 %v3137, %v3137
      %v3158 = vpack.c.bf16 %v3139, %v3138
      %v3159 = vpack.c.bf16 %v3140, %v3140
      %v3160 = vpack.c.bf16 %v3142, %v3141
      %v3161 = vpack.c.bf16 %v3143, %v3143
      %v3180 = vunpack.c.l.b16 %v3144
      %v3181 = vunpack.c.h.b16 %v3144
      %v3182 = vunpack.c.l.b16 %v3145
      %v3183 = vunpack.c.l.b16 %v3146
      %v3184 = vunpack.c.h.b16 %v3146
      %v3185 = vunpack.c.l.b16 %v3147
      %v3186 = vunpack.c.l.b16 %v3148
      %v3187 = vunpack.c.h.b16 %v3148
      %v3188 = vunpack.c.l.b16 %v3149
      %v3189 = vunpack.c.l.b16 %v3150
      %v3190 = vunpack.c.h.b16 %v3150
      %v3191 = vunpack.c.l.b16 %v3151
      %v3192 = vunpack.c.l.b16 %v3152
      %v3193 = vunpack.c.h.b16 %v3152
      %v3194 = vunpack.c.l.b16 %v3153
      %v3195 = vunpack.c.l.b16 %v3154
      %v3196 = vunpack.c.h.b16 %v3154
      %v3197 = vunpack.c.l.b16 %v3155
      %v3198 = vunpack.c.l.b16 %v3156
      %v3199 = vunpack.c.h.b16 %v3156
      %v3200 = vunpack.c.l.b16 %v3157
      %v3201 = vunpack.c.l.b16 %v3158
      %v3202 = vunpack.c.h.b16 %v3158
      %v3203 = vunpack.c.l.b16 %v3159
      %v3204 = vunpack.c.l.b16 %v3160
      %v3205 = vunpack.c.h.b16 %v3160
      %v3206 = vunpack.c.l.b16 %v3161
      %v3207 = vpack.c.b16 %v3180, %v3180
      %v3208 = vpack.c.b16 %v3181, %v3181
      %v3209 = vpack.c.b16 %v3182, %v3182
      %v3210 = vpack.c.b16 %v3183, %v3183
      %v3211 = vpack.c.b16 %v3184, %v3184
      %v3212 = vpack.c.b16 %v3185, %v3185
      %v3213 = vpack.c.b16 %v3186, %v3186
      %v3214 = vpack.c.b16 %v3187, %v3187
      %v3215 = vpack.c.b16 %v3188, %v3188
      %v3216 = vpack.c.b16 %v3189, %v3189
      %v3217 = vpack.c.b16 %v3190, %v3190
      %v3218 = vpack.c.b16 %v3191, %v3191
      %v3219 = vpack.c.b16 %v3192, %v3192
      %v3220 = vpack.c.b16 %v3193, %v3193
      %v3221 = vpack.c.b16 %v3194, %v3194
      %v3222 = vpack.c.b16 %v3195, %v3195
      %v3223 = vpack.c.b16 %v3196, %v3196
      %v3224 = vpack.c.b16 %v3197, %v3197
      %v3225 = vpack.c.b16 %v3198, %v3198
      %v3226 = vpack.c.b16 %v3199, %v3199
      %v3227 = vpack.c.b16 %v3200, %v3200
      %v3228 = vpack.c.b16 %v3201, %v3201
      %v3229 = vpack.c.b16 %v3202, %v3202
      %v3230 = vpack.c.b16 %v3203, %v3203
      %v3231 = vpack.c.b16 %v3204, %v3204
      %v3232 = vpack.c.b16 %v3205, %v3205
      %v3233 = vpack.c.b16 %v3206, %v3206
      %3261 = vst [vmem:[%s578] sm:$0xf] %v3207
      %3262 = vst [vmem:[%s578 + $0x4] sm:$0xf] %v3208
      %3263 = vst [vmem:[%s578 + $0x8] sm:$0xf] %v3209
      %3264 = vst [vmem:[%s578 + $0xc] sm:$0xf] %v3210
      %3265 = vst [vmem:[%s578 + $0x10] sm:$0xf] %v3211
      %3266 = vst [vmem:[%s578 + $0x14] sm:$0xf] %v3212
      %3267 = vst [vmem:[%s578 + $0x18] sm:$0xf] %v3213
      %3268 = vst [vmem:[%s578 + $0x1c] sm:$0xf] %v3214
      %3269 = vst [vmem:[%s578 + $0x20] sm:$0xf] %v3215
      %3270 = vst [vmem:[%s578 + $0x24] sm:$0xf] %v3216
      %3271 = vst [vmem:[%s578 + $0x28] sm:$0xf] %v3217
      %3272 = vst [vmem:[%s578 + $0x2c] sm:$0xf] %v3218
      %3273 = vst [vmem:[%s578 + $0x30] sm:$0xf] %v3219
      %3274 = vst [vmem:[%s578 + $0x34] sm:$0xf] %v3220
      %3275 = vst [vmem:[%s578 + $0x38] sm:$0xf] %v3221
      %3276 = vst [vmem:[%s578 + $0x3c] sm:$0xf] %v3222
      %3277 = vst [vmem:[%s578 + $0x40] sm:$0xf] %v3223
      %3278 = vst [vmem:[%s578 + $0x44] sm:$0xf] %v3224
      %3279 = vst [vmem:[%s578 + $0x48] sm:$0xf] %v3225
      %3280 = vst [vmem:[%s578 + $0x4c] sm:$0xf] %v3226
      %3281 = vst [vmem:[%s578 + $0x50] sm:$0xf] %v3227
      %3282 = vst [vmem:[%s578 + $0x54] sm:$0xf] %v3228
      %3283 = vst [vmem:[%s578 + $0x58] sm:$0xf] %v3229
      %3284 = vst [vmem:[%s578 + $0x5c] sm:$0xf] %v3230
      %3285 = vst [vmem:[%s578 + $0x60] sm:$0xf] %v3231
      %3286 = vst [vmem:[%s578 + $0x64] sm:$0xf] %v3232
      %3287 = vst [vmem:[%s578 + $0x68] sm:$0xf] %v3233
      %v3288 = vadd.f32 %v3117, %v3118
      %v3289 = vadd.f32 %v3288, %v3119
      %v3290 = vadd.f32 %v3289, %v3120
      %v3291 = vadd.f32 %v3290, %v3121
      %v3292 = vadd.f32 %v3291, %v3122
      %v3293 = vadd.f32 %v3292, %v3123
      %v3294 = vadd.f32 %v3293, %v3124
      %v3295 = vadd.f32 %v3294, %v3125
      %v3296 = vadd.f32 %v3295, %v3126
      %v3297 = vadd.f32 %v3296, %v3127
      %v3298 = vadd.f32 %v3297, %v3128
      %v3299 = vadd.f32 %v3298, %v3129
      %v3300 = vadd.f32 %v3299, %v3130
      %v3301 = vadd.f32 %v3300, %v3131
      %v3302 = vadd.f32 %v3301, %v3132
      %v3303 = vadd.f32 %v3302, %v3133
      %v3304 = vadd.f32 %v3303, %v3134
      %v3305 = vadd.f32 %v3304, %v3135
      %v3306 = vadd.f32 %v3305, %v3136
      %v3307 = vadd.f32 %v3306, %v3137
      %v3308 = vadd.f32 %v3307, %v3138
      %v3309 = vadd.f32 %v3308, %v3139
      %v3310 = vadd.f32 %v3309, %v3140
      %v3311 = vadd.f32 %v3310, %v3141
      %v3312 = vadd.f32 %v3311, %v3142
      %v3313 = vadd.f32 %v3312, %v3143
      %v3314 = vrot.slane %v3313, 4
      %v3315 = vadd.f32 %v3313, %v3314
      %v3316 = vrot.slane %v3315, 2
      %v3317 = vadd.f32 %v3315, %v3316
      %v3318 = vrot.slane %v3317, 1
      %v3319 = vadd.f32 %v3317, %v3318
      %3320 = vst [vmem:[%s589] sm:$0x1] %v3319
      %v3321 = vmul.f32 %v3117, %v3117
      %v3322 = vmul.f32 %v3118, %v3118
      %v3323 = vmul.f32 %v3119, %v3119
      %v3324 = vmul.f32 %v3120, %v3120
      %v3325 = vmul.f32 %v3121, %v3121
      %v3326 = vmul.f32 %v3122, %v3122
      %v3327 = vmul.f32 %v3123, %v3123
      %v3328 = vmul.f32 %v3124, %v3124
      %v3329 = vmul.f32 %v3125, %v3125
      %v3330 = vmul.f32 %v3126, %v3126
      %v3331 = vmul.f32 %v3127, %v3127
      %v3332 = vmul.f32 %v3128, %v3128
      %v3333 = vmul.f32 %v3129, %v3129
      %v3334 = vmul.f32 %v3130, %v3130
      %v3335 = vmul.f32 %v3131, %v3131
      %v3336 = vmul.f32 %v3132, %v3132
      %v3337 = vmul.f32 %v3133, %v3133
      %v3338 = vmul.f32 %v3134, %v3134
      %v3339 = vmul.f32 %v3135, %v3135
      %v3340 = vmul.f32 %v3136, %v3136
      %v3341 = vmul.f32 %v3137, %v3137
      %v3342 = vmul.f32 %v3138, %v3138
      %v3343 = vmul.f32 %v3139, %v3139
      %v3344 = vmul.f32 %v3140, %v3140
      %v3345 = vmul.f32 %v3141, %v3141
      %v3346 = vmul.f32 %v3142, %v3142
      %v3347 = vmul.f32 %v3143, %v3143
      %v3348 = vadd.f32 %v3321, %v3322
      %v3349 = vadd.f32 %v3348, %v3323
      %v3350 = vadd.f32 %v3349, %v3324
      %v3351 = vadd.f32 %v3350, %v3325
      %v3352 = vadd.f32 %v3351, %v3326
      %v3353 = vadd.f32 %v3352, %v3327
      %v3354 = vadd.f32 %v3353, %v3328
      %v3355 = vadd.f32 %v3354, %v3329
      %v3356 = vadd.f32 %v3355, %v3330
      %v3357 = vadd.f32 %v3356, %v3331
      %v3358 = vadd.f32 %v3357, %v3332
      %v3359 = vadd.f32 %v3358, %v3333
      %v3360 = vadd.f32 %v3359, %v3334
      %v3361 = vadd.f32 %v3360, %v3335
      %v3362 = vadd.f32 %v3361, %v3336
      %v3363 = vadd.f32 %v3362, %v3337
      %v3364 = vadd.f32 %v3363, %v3338
      %v3365 = vadd.f32 %v3364, %v3339
      %v3366 = vadd.f32 %v3365, %v3340
      %v3367 = vadd.f32 %v3366, %v3341
      %v3368 = vadd.f32 %v3367, %v3342
      %v3369 = vadd.f32 %v3368, %v3343
      %v3370 = vadd.f32 %v3369, %v3344
      %v3371 = vadd.f32 %v3370, %v3345
      %v3372 = vadd.f32 %v3371, %v3346
      %v3373 = vadd.f32 %v3372, %v3347
      %v3374 = vrot.slane %v3373, 4
      %v3375 = vadd.f32 %v3373, %v3374
      %v3376 = vrot.slane %v3375, 2
      %v3377 = vadd.f32 %v3375, %v3376
      %v3378 = vrot.slane %v3377, 1
      %v3379 = vadd.f32 %v3377, %v3378
      %3380 = vst [vmem:[%s599] sm:$0x1] %v3379
      %s3381 = smul.u32 9, %s28
      %p3382 = scmp.lt.s32.totalorder %s27, 1
      %s3383 = scalar_select %p3382, %s27, 1
      %p3384 = scmp.lt.s32.totalorder %s3381, 17
      %s3385 = scalar_select %p3384, %s3381, 17
      %p3386 = scmp.lt.s32.totalorder %s26, 0
      %s3387 = scalar_select %p3386, %s26, 0
      %s3388 = smul.addr %s3385, 3
      %s3389 = sadd.s32 %s3387, %s3388
      %s3390 = smul.addr %s3383, 54
      %s3391 = sadd.s32 %s3389, %s3390
      %s3392 = smul.addr %s3391, 4
      %s3393 = scalar_lea.vmem %s7, %s3392
      %p3394 = scmp.lt.s32.totalorder %s27, 1
      %s3395 = scalar_select %p3394, %s27, 1
      %p3396 = scmp.lt.s32.totalorder %s28, 1
      %s3397 = scalar_select %p3396, %s28, 1
      %p3398 = scmp.lt.s32.totalorder %s26, 0
      %s3399 = scalar_select %p3398, %s26, 0
      %s3400 = sadd.s32 %s3399, %s3397
      %s3401 = smul.addr %s3395, 2
      %s3402 = sadd.s32 %s3400, %s3401
      %s3403 = scalar_lea.vmem %s8, %s3402
      %p3404 = scmp.lt.s32.totalorder %s27, 1
      %s3405 = scalar_select %p3404, %s27, 1
      %p3406 = scmp.lt.s32.totalorder %s28, 1
      %s3407 = scalar_select %p3406, %s28, 1
      %p3408 = scmp.lt.s32.totalorder %s26, 0
      %s3409 = scalar_select %p3408, %s26, 0
      %s3410 = sadd.s32 %s3409, %s3407
      %s3411 = smul.addr %s3405, 2
      %s3412 = sadd.s32 %s3410, %s3411
      %s3413 = scalar_lea.vmem %s9, %s3412
      // Predicated region
      $region49: #{double_conv_forward.2} parent=47 // pred_check
        %p3414 = pneg %p256
      $region50: #{double_conv_forward.2} parent=47 // pred_check_branch
        %3416 = sbr.rel (%p3414) target = $region52
      $region51: #{double_conv_forward.2} parent=47 // pred_region
        %s3417 = smul.u32 9, %s28
      $region52: #{double_conv_forward.2} parent=47 // pred_fallthru
        _
      // Predicated region
      $region53: #{double_conv_forward.2} parent=47 // pred_check
        %p3418 = pneg %p286
      $region54: #{double_conv_forward.2} parent=47 // pred_check_branch
        %3420 = sbr.rel (%p3418) target = $region56
      $region55: #{double_conv_forward.2} parent=47 // pred_region
        _
      $region56: #{double_conv_forward.2} parent=47 // pred_fallthru
        _
      // Predicated region
      $region57: #{double_conv_forward.2} parent=47 // pred_check
        %p3421 = pneg %p316
      $region58: #{double_conv_forward.2} parent=47 // pred_check_branch
        %3423 = sbr.rel (%p3421) target = $region60
      $region59: #{double_conv_forward.2} parent=47 // pred_region
        _
      $region60: #{double_conv_forward.2} parent=47 // pred_fallthru
        _
    $region48: #{double_conv_forward.2} parent=5 // pred_fallthru
      _
    %p3424 = scmp.le.s32.totalorder 2, %s16
    // Predicated region
    $region61: #{double_conv_forward.2} parent=5 // pred_check
      %p3425 = pneg %p3424
    $region62: #{double_conv_forward.2} parent=5 // pred_check_branch
      %3427 = sbr.rel (%p3425) target = $region64
    $region63: #{double_conv_forward.2} parent=5 // pred_region
      %s3428 = ssub.s32 %s16, 2
      // Predicated region
      $region65: #{double_conv_forward.2} parent=63 // pred_check
        %p3429 = pneg %p262
      $region66: #{double_conv_forward.2} parent=63 // pred_check_branch
        %3431 = sbr.rel (%p3429) target = $region68
      $region67: #{double_conv_forward.2} parent=63 // pred_region
        %s3432 = smul.u32 9, %s31
        %p3433 = scmp.lt.s32.totalorder %s30, 1
        %s3434 = scalar_select %p3433, %s30, 1
        %p3435 = scmp.lt.s32.totalorder %s3432, 17
        %s3436 = scalar_select %p3435, %s3432, 17
        %p3437 = scmp.lt.s32.totalorder %s29, 0
        %s3438 = scalar_select %p3437, %s29, 0
        %s3439 = smul.addr %s3436, 3
        %s3440 = sadd.s32 %s3438, %s3439
        %s3441 = smul.addr %s3434, 54
        %s3442 = sadd.s32 %s3440, %s3441
        %s3443 = smul.addr %s3442, 4
        %s3444 = scalar_lea.vmem %s7, %s3443
      $region68: #{double_conv_forward.2} parent=63 // pred_fallthru
        _
      // Predicated region
      $region69: #{double_conv_forward.2} parent=63 // pred_check
        %p3445 = pneg %p292
      $region70: #{double_conv_forward.2} parent=63 // pred_check_branch
        %3447 = sbr.rel (%p3445) target = $region72
      $region71: #{double_conv_forward.2} parent=63 // pred_region
        %p3448 = scmp.lt.s32.totalorder %s30, 1
        %s3449 = scalar_select %p3448, %s30, 1
        %p3450 = scmp.lt.s32.totalorder %s31, 1
        %s3451 = scalar_select %p3450, %s31, 1
        %p3452 = scmp.lt.s32.totalorder %s29, 0
        %s3453 = scalar_select %p3452, %s29, 0
        %s3454 = sadd.s32 %s3453, %s3451
        %s3455 = smul.addr %s3449, 2
        %s3456 = sadd.s32 %s3454, %s3455
        %s3457 = scalar_lea.vmem %s8, %s3456
      $region72: #{double_conv_forward.2} parent=63 // pred_fallthru
        _
      // Predicated region
      $region73: #{double_conv_forward.2} parent=63 // pred_check
        %p3458 = pneg %p322
      $region74: #{double_conv_forward.2} parent=63 // pred_check_branch
        %3460 = sbr.rel (%p3458) target = $region76
      $region75: #{double_conv_forward.2} parent=63 // pred_region
        %p3461 = scmp.lt.s32.totalorder %s30, 1
        %s3462 = scalar_select %p3461, %s30, 1
        %p3463 = scmp.lt.s32.totalorder %s31, 1
        %s3464 = scalar_select %p3463, %s31, 1
        %p3465 = scmp.lt.s32.totalorder %s29, 0
        %s3466 = scalar_select %p3465, %s29, 0
        %s3467 = sadd.s32 %s3466, %s3464
        %s3468 = smul.addr %s3462, 2
        %s3469 = sadd.s32 %s3467, %s3468
        %s3470 = scalar_lea.vmem %s9, %s3469
      $region76: #{double_conv_forward.2} parent=63 // pred_fallthru
        _
    $region64: #{double_conv_forward.2} parent=5 // pred_fallthru
      _
  $region6: #{double_conv_forward.2} parent=0 // loop_footer
    %s20 = sadd.s32 1, %s16
  $region7: #{double_conv_forward.2} parent=0 // loop_footer_branch
    %15 = sbr.rel target = $region3
  $region8: #{double_conv_forward.2} parent=0 // loop_exit
    _

// kernel: double_conv_forward.3
$region0: #{double_conv_forward.3}
  #allocation0 [shape = 'u32[]', space=smem, size = 0x4, offset = 0x4, fixed_abs, tag = 'smem constant byte address 0x4 - core index']
  #allocation1 [shape = 'u32[144,128]{1,0:T(1,128)}', space=vmem, size = 0x12000, scoped, tag = 'internal scratch']
  #allocation2 [shape = 'bf16[11,40,128]{2,1,0:T(8,128)(2,1)}', space=vmem, size = 0x1b800, scoped, tag = 'scratch operand']
  #allocation3 [shape = 'bf16[11,24,384]{2,1,0:T(8,128)(2,1)}', space=vmem, size = 0x31800, scoped, tag = 'scratch operand']
  #allocation4 [shape = 'f32[216,128]{1,0:T(8,128)}', space=vmem, size = 0x1b000, scoped, tag = 'scratch operand']
  %s0 = inlined_call_operand.vmem [shape: bf16[2,18,24,128], index: 0, kind: input, shape index: {}, may-alias: {0,1,2}]
  %s1 = inlined_call_operand.vmem [shape: bf16[2,18,24,128], index: 1, kind: input, shape index: {}, may-alias: {0,1,2}]
  %s2 = inlined_call_operand.vmem [shape: bf16[2,18,24,128], index: 2, kind: input, shape index: {}, may-alias: {0,1,2}]
  %s3 = inlined_call_operand.vmem [shape: bf16[3,384,128], index: 3, kind: input, shape index: {}]
  %s4 = inlined_call_operand.vmem [shape: f32[1,128], index: 4, kind: input, shape index: {}]
  %s5 = inlined_call_operand.vmem [shape: f32[1,128], index: 5, kind: input, shape index: {}]
  %s6 = inlined_call_operand.vmem [shape: f32[1,128], index: 6, kind: input, shape index: {}]
  %s7 = inlined_call_operand.vmem [shape: bf16[2,18,24,128], index: 7, kind: output, shape index: {0}]
  %s8 = inlined_call_operand.vmem [shape: f32[2,2,1,128], index: 8, kind: output, shape index: {1}]
  %s9 = inlined_call_operand.vmem [shape: f32[2,2,1,128], index: 9, kind: output, shape index: {2}]
  %10 = xla_tuple %s7, %s8, %s9
  %s11 = sld [smem:[#allocation0]]
  $region77: #{double_conv_forward.3} parent=0
    _
  %s13 = ssub.s32 1, %s11
  %s14 = scalar_select 0, %s13, %s11
  loop: start=0, step=1, limit=6
  $region2: #{double_conv_forward.3} parent=0 // loop_pre_header
    _
  $region3: #{double_conv_forward.3} parent=0 // loop_header
    %s16 = sphi 0, %s20
    %p17 = scmp.ge.s32.totalorder %s16, 6
    %s23 = sphi 0, %s42
    %s24 = sphi 0, %s38
    %s25 = sphi 0, %s34
    %s26 = sphi 0, %s23
    %s27 = sphi 0, %s24
    %s28 = sphi 0, %s25
    %s29 = sphi 0, %s26
    %s30 = sphi 0, %s27
    %s31 = sphi 0, %s28
    %s47 = sphi 0, %s49
    %s50 = sphi 0, %s47
    %s51 = sphi 0, %s50
    %s67 = sphi 0, %s51
    %s83 = sphi 0, %s85
    %s86 = sphi 0, %s83
    %s87 = sphi 0, %s86
    %s103 = sphi 0, %s87
    %s119 = sphi 0, %s121
    %s122 = sphi 0, %s119
    %s123 = sphi 0, %s122
    %s139 = sphi 0, %s123
    %s145 = sphi 0, %s147
    %s148 = sphi 0, %s145
    %s149 = sphi 0, %s148
    %s165 = sphi 0, %s149
    %s171 = sphi 0, %s173
    %s174 = sphi 0, %s171
    %s175 = sphi 0, %s174
    %s191 = sphi 0, %s175
    %s195 = sphi 0, %s195
    %s197 = sphi 0, %s195
    %s198 = sphi 0, %s197
    %s212 = sphi 0, %s198
    %s216 = sphi 0, %s216
    %s218 = sphi 0, %s216
    %s219 = sphi 0, %s218
    %s233 = sphi 0, %s219
    %s243 = sphi 0, %s245
    %s246 = sphi 0, %s243
    %s247 = sphi 0, %s246
    %s263 = sphi 0, %s247
    %s273 = sphi 0, %s275
    %s276 = sphi 0, %s273
    %s277 = sphi 0, %s276
    %s293 = sphi 0, %s277
    %s303 = sphi 0, %s305
    %s306 = sphi 0, %s303
    %s307 = sphi 0, %s306
    %s323 = sphi 0, %s307
  $region4: #{double_conv_forward.3} parent=0 // loop_header_branch
    %19 = sbr.rel (%p17) target = $region8
  $region5: #{double_conv_forward.3} parent=0 // loop_body
    %s21 = ssub.s32 %s16, 1
    %s22 = ssub.s32 %s16, 2
    %s32 = sadd.s32 1, %s25
    %p33 = scmp.ge.s32.totalorder %s32, 2
    %s34 = scalar_select %p33, 0, %s32
    %s35 = sadd.s32 1, %s24
    %s36 = scalar_select %p33, %s35, %s24
    %p37 = scmp.ge.s32.totalorder %s36, 2
    %s38 = scalar_select %p37, 0, %s36
    %s39 = sadd.s32 1, %s23
    %s40 = scalar_select %p37, %s39, %s23
    %p41 = scmp.ge.s32.totalorder %s40, 1
    %s42 = scalar_select %p41, 0, %s40
    %s43 = ssub.s32 %s24, %s38
    %s44 = ssub.s32 %s25, %s34
    %s45 = sor.u32 %s43, %s44
    %p46 = scmp.eq.s32.totalorder %s45, 0
    %s48 = sadd.s32 %s47, 1
    %s49 = scalar_select %p46, %s47, %s48
    %p52 = pneg %p46
    %p53 = scmp.eq.s32.totalorder %s16, 3
    %p54 = por %p52, %p53
    %p55 = scmp.ne.s32.totalorder %s47, %s50
    %p56 = scmp.eq.s32.totalorder %s16, 0
    %p57 = por %p55, %p56
    %p58 = scmp.ne.s32.totalorder %s47, %s50
    %p59 = scmp.eq.s32.totalorder %s21, 3
    %p60 = por %p58, %p59
    %p61 = scmp.ne.s32.totalorder %s50, %s51
    %p62 = scmp.eq.s32.totalorder %s21, 0
    %p63 = por %p61, %p62
    %p64 = scmp.ne.s32.totalorder %s50, %s51
    %p65 = scmp.eq.s32.totalorder %s22, 3
    %p66 = por %p64, %p65
    %p68 = scmp.ne.s32.totalorder %s51, %s67
    %p69 = scmp.eq.s32.totalorder %s22, 0
    %p70 = por %p68, %p69
    %s71 = smul.u32 %s25, 9
    %s72 = ssub.s32 %s71, 1
    %p73 = scmp.gt.s32.totalorder %s72, 0
    %s74 = scalar_select %p73, %s72, 0
    %s75 = smul.u32 %s34, 9
    %s76 = ssub.s32 %s75, 1
    %p77 = scmp.gt.s32.totalorder %s76, 0
    %s78 = scalar_select %p77, %s76, 0
    %s79 = ssub.s32 %s24, %s38
    %s80 = ssub.s32 %s74, %s78
    %s81 = sor.u32 %s79, %s80
    %p82 = scmp.eq.s32.totalorder %s81, 0
    %s84 = sadd.s32 %s83, 1
    %s85 = scalar_select %p82, %s83, %s84
    %p88 = pneg %p82
    %p89 = scmp.eq.s32.totalorder %s16, 3
    %p90 = por %p88, %p89
    %p91 = scmp.ne.s32.totalorder %s83, %s86
    %p92 = scmp.eq.s32.totalorder %s16, 0
    %p93 = por %p91, %p92
    %p94 = scmp.ne.s32.totalorder %s83, %s86
    %p95 = scmp.eq.s32.totalorder %s21, 3
    %p96 = por %p94, %p95
    %p97 = scmp.ne.s32.totalorder %s86, %s87
    %p98 = scmp.eq.s32.totalorder %s21, 0
    %p99 = por %p97, %p98
    %p100 = scmp.ne.s32.totalorder %s86, %s87
    %p101 = scmp.eq.s32.totalorder %s22, 3
    %p102 = por %p100, %p101
    %p104 = scmp.ne.s32.totalorder %s87, %s103
    %p105 = scmp.eq.s32.totalorder %s22, 0
    %p106 = por %p104, %p105
    %s107 = smul.u32 %s25, 9
    %s108 = sadd.s32 %s107, 9
    %p109 = scmp.lt.s32.totalorder %s108, 17
    %s110 = scalar_select %p109, %s108, 17
    %s111 = smul.u32 %s34, 9
    %s112 = sadd.s32 %s111, 9
    %p113 = scmp.lt.s32.totalorder %s112, 17
    %s114 = scalar_select %p113, %s112, 17
    %s115 = ssub.s32 %s24, %s38
    %s116 = ssub.s32 %s110, %s114
    %s117 = sor.u32 %s115, %s116
    %p118 = scmp.eq.s32.totalorder %s117, 0
    %s120 = sadd.s32 %s119, 1
    %s121 = scalar_select %p118, %s119, %s120
    %p124 = pneg %p118
    %p125 = scmp.eq.s32.totalorder %s16, 3
    %p126 = por %p124, %p125
    %p127 = scmp.ne.s32.totalorder %s119, %s122
    %p128 = scmp.eq.s32.totalorder %s16, 0
    %p129 = por %p127, %p128
    %p130 = scmp.ne.s32.totalorder %s119, %s122
    %p131 = scmp.eq.s32.totalorder %s21, 3
    %p132 = por %p130, %p131
    %p133 = scmp.ne.s32.totalorder %s122, %s123
    %p134 = scmp.eq.s32.totalorder %s21, 0
    %p135 = por %p133, %p134
    %p136 = scmp.ne.s32.totalorder %s122, %s123
    %p137 = scmp.eq.s32.totalorder %s22, 3
    %p138 = por %p136, %p137
    %p140 = scmp.ne.s32.totalorder %s123, %s139
    %p141 = scmp.eq.s32.totalorder %s22, 0
    %p142 = por %p140, %p141
    %s143 = ssub.s32 %s23, %s42
    %p144 = scmp.eq.s32.totalorder %s143, 0
    %s146 = sadd.s32 %s145, 1
    %s147 = scalar_select %p144, %s145, %s146
    %p150 = pneg %p144
    %p151 = scmp.eq.s32.totalorder %s16, 3
    %p152 = por %p150, %p151
    %p153 = scmp.ne.s32.totalorder %s145, %s148
    %p154 = scmp.eq.s32.totalorder %s16, 0
    %p155 = por %p153, %p154
    %p156 = scmp.ne.s32.totalorder %s145, %s148
    %p157 = scmp.eq.s32.totalorder %s21, 3
    %p158 = por %p156, %p157
    %p159 = scmp.ne.s32.totalorder %s148, %s149
    %p160 = scmp.eq.s32.totalorder %s21, 0
    %p161 = por %p159, %p160
    %p162 = scmp.ne.s32.totalorder %s148, %s149
    %p163 = scmp.eq.s32.totalorder %s22, 3
    %p164 = por %p162, %p163
    %p166 = scmp.ne.s32.totalorder %s149, %s165
    %p167 = scmp.eq.s32.totalorder %s22, 0
    %p168 = por %p166, %p167
    %s169 = ssub.s32 %s23, %s42
    %p170 = scmp.eq.s32.totalorder %s169, 0
    %s172 = sadd.s32 %s171, 1
    %s173 = scalar_select %p170, %s171, %s172
    %p176 = pneg %p170
    %p177 = scmp.eq.s32.totalorder %s16, 3
    %p178 = por %p176, %p177
    %p179 = scmp.ne.s32.totalorder %s171, %s174
    %p180 = scmp.eq.s32.totalorder %s16, 0
    %p181 = por %p179, %p180
    %p182 = scmp.ne.s32.totalorder %s171, %s174
    %p183 = scmp.eq.s32.totalorder %s21, 3
    %p184 = por %p182, %p183
    %p185 = scmp.ne.s32.totalorder %s174, %s175
    %p186 = scmp.eq.s32.totalorder %s21, 0
    %p187 = por %p185, %p186
    %p188 = scmp.ne.s32.totalorder %s174, %s175
    %p189 = scmp.eq.s32.totalorder %s22, 3
    %p190 = por %p188, %p189
    %p192 = scmp.ne.s32.totalorder %s175, %s191
    %p193 = scmp.eq.s32.totalorder %s22, 0
    %p194 = por %p192, %p193
    %s196 = sadd.s32 %s195, 1
    %p199 = scmp.eq.s32.totalorder %s16, 3
    %p200 = scmp.ne.s32.totalorder %s195, %s197
    %p201 = scmp.eq.s32.totalorder %s16, 0
    %p202 = por %p200, %p201
    %p203 = scmp.ne.s32.totalorder %s195, %s197
    %p204 = scmp.eq.s32.totalorder %s21, 3
    %p205 = por %p203, %p204
    %p206 = scmp.ne.s32.totalorder %s197, %s198
    %p207 = scmp.eq.s32.totalorder %s21, 0
    %p208 = por %p206, %p207
    %p209 = scmp.ne.s32.totalorder %s197, %s198
    %p210 = scmp.eq.s32.totalorder %s22, 3
    %p211 = por %p209, %p210
    %p213 = scmp.ne.s32.totalorder %s198, %s212
    %p214 = scmp.eq.s32.totalorder %s22, 0
    %p215 = por %p213, %p214
    %s217 = sadd.s32 %s216, 1
    %p220 = scmp.eq.s32.totalorder %s16, 3
    %p221 = scmp.ne.s32.totalorder %s216, %s218
    %p222 = scmp.eq.s32.totalorder %s16, 0
    %p223 = por %p221, %p222
    %p224 = scmp.ne.s32.totalorder %s216, %s218
    %p225 = scmp.eq.s32.totalorder %s21, 3
    %p226 = por %p224, %p225
    %p227 = scmp.ne.s32.totalorder %s218, %s219
    %p228 = scmp.eq.s32.totalorder %s21, 0
    %p229 = por %p227, %p228
    %p230 = scmp.ne.s32.totalorder %s218, %s219
    %p231 = scmp.eq.s32.totalorder %s22, 3
    %p232 = por %p230, %p231
    %p234 = scmp.ne.s32.totalorder %s219, %s233
    %p235 = scmp.eq.s32.totalorder %s22, 0
    %p236 = por %p234, %p235
    %s237 = ssub.s32 %s24, %s38
    %s238 = ssub.s32 %s25, %s34
    %s239 = sor.u32 %s237, %s238
    %s240 = ssub.s32 %s23, %s42
    %s241 = sor.u32 %s239, %s240
    %p242 = scmp.eq.s32.totalorder %s241, 0
    %s244 = sadd.s32 %s243, 1
    %s245 = scalar_select %p242, %s243, %s244
    %p248 = pneg %p242
    %p249 = scmp.eq.s32.totalorder %s16, 3
    %p250 = por %p248, %p249
    %p251 = scmp.ne.s32.totalorder %s243, %s246
    %p252 = scmp.eq.s32.totalorder %s16, 0
    %p253 = por %p251, %p252
    %p254 = scmp.ne.s32.totalorder %s243, %s246
    %p255 = scmp.eq.s32.totalorder %s21, 3
    %p256 = por %p254, %p255
    %p257 = scmp.ne.s32.totalorder %s246, %s247
    %p258 = scmp.eq.s32.totalorder %s21, 0
    %p259 = por %p257, %p258
    %p260 = scmp.ne.s32.totalorder %s246, %s247
    %p261 = scmp.eq.s32.totalorder %s22, 3
    %p262 = por %p260, %p261
    %p264 = scmp.ne.s32.totalorder %s247, %s263
    %p265 = scmp.eq.s32.totalorder %s22, 0
    %p266 = por %p264, %p265
    %s267 = ssub.s32 %s24, %s38
    %s268 = ssub.s32 %s25, %s34
    %s269 = sor.u32 %s267, %s268
    %s270 = ssub.s32 %s23, %s42
    %s271 = sor.u32 %s269, %s270
    %p272 = scmp.eq.s32.totalorder %s271, 0
    %s274 = sadd.s32 %s273, 1
    %s275 = scalar_select %p272, %s273, %s274
    %p278 = pneg %p272
    %p279 = scmp.eq.s32.totalorder %s16, 3
    %p280 = por %p278, %p279
    %p281 = scmp.ne.s32.totalorder %s273, %s276
    %p282 = scmp.eq.s32.totalorder %s16, 0
    %p283 = por %p281, %p282
    %p284 = scmp.ne.s32.totalorder %s273, %s276
    %p285 = scmp.eq.s32.totalorder %s21, 3
    %p286 = por %p284, %p285
    %p287 = scmp.ne.s32.totalorder %s276, %s277
    %p288 = scmp.eq.s32.totalorder %s21, 0
    %p289 = por %p287, %p288
    %p290 = scmp.ne.s32.totalorder %s276, %s277
    %p291 = scmp.eq.s32.totalorder %s22, 3
    %p292 = por %p290, %p291
    %p294 = scmp.ne.s32.totalorder %s277, %s293
    %p295 = scmp.eq.s32.totalorder %s22, 0
    %p296 = por %p294, %p295
    %s297 = ssub.s32 %s24, %s38
    %s298 = ssub.s32 %s25, %s34
    %s299 = sor.u32 %s297, %s298
    %s300 = ssub.s32 %s23, %s42
    %s301 = sor.u32 %s299, %s300
    %p302 = scmp.eq.s32.totalorder %s301, 0
    %s304 = sadd.s32 %s303, 1
    %s305 = scalar_select %p302, %s303, %s304
    %p308 = pneg %p302
    %p309 = scmp.eq.s32.totalorder %s16, 3
    %p310 = por %p308, %p309
    %p311 = scmp.ne.s32.totalorder %s303, %s306
    %p312 = scmp.eq.s32.totalorder %s16, 0
    %p313 = por %p311, %p312
    %p314 = scmp.ne.s32.totalorder %s303, %s306
    %p315 = scmp.eq.s32.totalorder %s21, 3
    %p316 = por %p314, %p315
    %p317 = scmp.ne.s32.totalorder %s306, %s307
    %p318 = scmp.eq.s32.totalorder %s21, 0
    %p319 = por %p317, %p318
    %p320 = scmp.ne.s32.totalorder %s306, %s307
    %p321 = scmp.eq.s32.totalorder %s22, 3
    %p322 = por %p320, %p321
    %p324 = scmp.ne.s32.totalorder %s307, %s323
    %p325 = scmp.eq.s32.totalorder %s22, 0
    %p326 = por %p324, %p325
    %p327 = scmp.le.s32.totalorder 1, %s16
    %p328 = scmp.lt.s32.totalorder %s16, 5
    %p329 = pnand %p327, %p328
    %p330 = pneg %p329
    // Predicated region
    $region9: #{double_conv_forward.3} parent=5 // pred_check
      _
    $region10: #{double_conv_forward.3} parent=5 // pred_check_branch
      %332 = sbr.rel (%p329) target = $region12
    $region11: #{double_conv_forward.3} parent=5 // pred_region
      %s333 = ssub.s32 %s16, 1
      // Predicated region
      $region13: #{double_conv_forward.3} parent=11 // pred_check
        %p334 = pneg %p161
      $region14: #{double_conv_forward.3} parent=11 // pred_check_branch
        %336 = sbr.rel (%p334) target = $region16
      $region15: #{double_conv_forward.3} parent=11 // pred_region
        %p337 = scmp.lt.s32.totalorder %s26, 0
        %s338 = scalar_select %p337, %s26, 0
        %s339 = smul.addr %s338, 4
        %s340 = scalar_lea.vmem %s3, %s339
      $region16: #{double_conv_forward.3} parent=11 // pred_fallthru
        _
      // Predicated region
      $region17: #{double_conv_forward.3} parent=11 // pred_check
        %p341 = pneg %p187
      $region18: #{double_conv_forward.3} parent=11 // pred_check_branch
        %343 = sbr.rel (%p341) target = $region20
      $region19: #{double_conv_forward.3} parent=11 // pred_region
        %p344 = scmp.lt.s32.totalorder %s26, 0
        %s345 = scalar_select %p344, %s26, 0
        %s346 = scalar_lea.vmem %s4, %s345
      $region20: #{double_conv_forward.3} parent=11 // pred_fallthru
        _
      // Predicated region
      $region21: #{double_conv_forward.3} parent=11 // pred_check
        %p347 = pneg %p208
      $region22: #{double_conv_forward.3} parent=11 // pred_check_branch
        %349 = sbr.rel (%p347) target = $region24
      $region23: #{double_conv_forward.3} parent=11 // pred_region
        _
      $region24: #{double_conv_forward.3} parent=11 // pred_fallthru
        _
      // Predicated region
      $region25: #{double_conv_forward.3} parent=11 // pred_check
        %p350 = pneg %p229
      $region26: #{double_conv_forward.3} parent=11 // pred_check_branch
        %352 = sbr.rel (%p350) target = $region28
      $region27: #{double_conv_forward.3} parent=11 // pred_region
        _
      $region28: #{double_conv_forward.3} parent=11 // pred_fallthru
        _
    $region12: #{double_conv_forward.3} parent=5 // pred_fallthru
      _
    %p353 = scmp.lt.s32.totalorder %s16, 4
    // Predicated region
    $region29: #{double_conv_forward.3} parent=5 // pred_check
      %p354 = pneg %p353
    $region30: #{double_conv_forward.3} parent=5 // pred_check_branch
      %356 = sbr.rel (%p354) target = $region32
    $region31: #{double_conv_forward.3} parent=5 // pred_region
      // Predicated region
      $region33: #{double_conv_forward.3} parent=31 // pred_check
        %p357 = pneg %p57
      $region34: #{double_conv_forward.3} parent=31 // pred_check_branch
        %359 = sbr.rel (%p357) target = $region36
      $region35: #{double_conv_forward.3} parent=31 // pred_region
        %s360 = smul.u32 9, %s25
        %p361 = scmp.lt.s32.totalorder %s24, 1
        %s362 = scalar_select %p361, %s24, 1
        %p363 = scmp.lt.s32.totalorder %s360, 17
        %s364 = scalar_select %p363, %s360, 17
        %s365 = smul.addr %s364, 3
        %s366 = smul.addr %s362, 54
        %s367 = sadd.s32 %s365, %s366
        %s368 = smul.addr %s367, 4
        %s369 = scalar_lea.vmem %s0, %s368
        %s370 = smul.u32 9, %s25
      $region36: #{double_conv_forward.3} parent=31 // pred_fallthru
        _
      // Predicated region
      $region37: #{double_conv_forward.3} parent=31 // pred_check
        %p371 = pneg %p93
      $region38: #{double_conv_forward.3} parent=31 // pred_check_branch
        %373 = sbr.rel (%p371) target = $region40
      $region39: #{double_conv_forward.3} parent=31 // pred_region
        %s374 = smul.u32 %s25, 9
        %s375 = ssub.s32 %s374, 1
        %p376 = scmp.gt.s32.totalorder %s375, 0
        %s377 = scalar_select %p376, %s375, 0
        %p378 = scmp.lt.s32.totalorder %s24, 1
        %s379 = scalar_select %p378, %s24, 1
        %p380 = scmp.lt.s32.totalorder %s377, 17
        %s381 = scalar_select %p380, %s377, 17
        %s382 = smul.addr %s381, 3
        %s383 = smul.addr %s379, 54
        %s384 = sadd.s32 %s382, %s383
        %s385 = smul.addr %s384, 4
        %s386 = scalar_lea.vmem %s1, %s385
        %s387 = smul.u32 %s25, 9
        %s388 = ssub.s32 %s387, 1
        %p389 = scmp.gt.s32.totalorder %s388, 0
        %s390 = scalar_select %p389, %s388, 0
      $region40: #{double_conv_forward.3} parent=31 // pred_fallthru
        _
      // Predicated region
      $region41: #{double_conv_forward.3} parent=31 // pred_check
        %p391 = pneg %p129
      $region42: #{double_conv_forward.3} parent=31 // pred_check_branch
        %393 = sbr.rel (%p391) target = $region44
      $region43: #{double_conv_forward.3} parent=31 // pred_region
        %s394 = smul.u32 %s25, 9
        %s395 = sadd.s32 %s394, 9
        %p396 = scmp.lt.s32.totalorder %s395, 17
        %s397 = scalar_select %p396, %s395, 17
        %p398 = scmp.lt.s32.totalorder %s24, 1
        %s399 = scalar_select %p398, %s24, 1
        %p400 = scmp.lt.s32.totalorder %s397, 17
        %s401 = scalar_select %p400, %s397, 17
        %s402 = smul.addr %s401, 3
        %s403 = smul.addr %s399, 54
        %s404 = sadd.s32 %s402, %s403
        %s405 = smul.addr %s404, 4
        %s406 = scalar_lea.vmem %s2, %s405
        %s407 = smul.u32 %s25, 9
        %s408 = sadd.s32 %s407, 9
        %p409 = scmp.lt.s32.totalorder %s408, 17
        %s410 = scalar_select %p409, %s408, 17
      $region44: #{double_conv_forward.3} parent=31 // pred_fallthru
        _
    $region32: #{double_conv_forward.3} parent=5 // pred_fallthru
      _
    %p411 = scmp.le.s32.totalorder 1, %s16
    %p412 = scmp.lt.s32.totalorder %s16, 5
    %p413 = pnand %p411, %p412
    %p414 = pneg %p413
    // Predicated region
    $region45: #{double_conv_forward.3} parent=5 // pred_check
      _
    $region46: #{double_conv_forward.3} parent=5 // pred_check_branch
      %416 = sbr.rel (%p413) target = $region48
    $region47: #{double_conv_forward.3} parent=5 // pred_region
      %s417 = ssub.s32 %s16, 1
      %s418 = smul.u32 9, %s28
      %p419 = scmp.lt.s32.totalorder %s27, 1
      %s420 = scalar_select %p419, %s27, 1
      %p421 = scmp.lt.s32.totalorder %s418, 17
      %s422 = scalar_select %p421, %s418, 17
      %s423 = smul.addr %s422, 3
      %s424 = smul.addr %s420, 54
      %s425 = sadd.s32 %s423, %s424
      %s426 = smul.addr %s425, 4
      %s427 = scalar_lea.vmem %s0, %s426
      %p428 = pneg %p63
      %p429 = pneg %p60
      %s430 = smul.u32 %s28, 9
      %s431 = ssub.s32 %s430, 1
      %p432 = scmp.gt.s32.totalorder %s431, 0
      %s433 = scalar_select %p432, %s431, 0
      %p434 = scmp.lt.s32.totalorder %s27, 1
      %s435 = scalar_select %p434, %s27, 1
      %p436 = scmp.lt.s32.totalorder %s433, 17
      %s437 = scalar_select %p436, %s433, 17
      %s438 = smul.addr %s437, 3
      %s439 = smul.addr %s435, 54
      %s440 = sadd.s32 %s438, %s439
      %s441 = smul.addr %s440, 4
      %s442 = scalar_lea.vmem %s1, %s441
      %p443 = pneg %p99
      %p444 = pneg %p96
      %s445 = smul.u32 %s28, 9
      %s446 = sadd.s32 %s445, 9
      %p447 = scmp.lt.s32.totalorder %s446, 17
      %s448 = scalar_select %p447, %s446, 17
      %p449 = scmp.lt.s32.totalorder %s27, 1
      %s450 = scalar_select %p449, %s27, 1
      %p451 = scmp.lt.s32.totalorder %s448, 17
      %s452 = scalar_select %p451, %s448, 17
      %s453 = smul.addr %s452, 3
      %s454 = smul.addr %s450, 54
      %s455 = sadd.s32 %s453, %s454
      %s456 = smul.addr %s455, 4
      %s457 = scalar_lea.vmem %s2, %s456
      %p458 = pneg %p135
      %p459 = pneg %p132
      %p460 = scmp.lt.s32.totalorder %s26, 0
      %s461 = scalar_select %p460, %s26, 0
      %s462 = smul.addr %s461, 4
      %s463 = scalar_lea.vmem %s3, %s462
      %p464 = pneg %p161
      %p465 = pneg %p158
      %p466 = scmp.lt.s32.totalorder %s26, 0
      %s467 = scalar_select %p466, %s26, 0
      %s468 = scalar_lea.vmem %s4, %s467
      %p469 = pneg %p187
      %p470 = pneg %p184
      %p471 = pneg %p208
      %p472 = pneg %p205
      %p473 = pneg %p229
      %p474 = pneg %p226
      %p475 = pneg %p259
      %p476 = pneg %p256
      %s477 = smul.u32 9, %s28
      %p478 = scmp.lt.s32.totalorder %s27, 1
      %s479 = scalar_select %p478, %s27, 1
      %p480 = scmp.lt.s32.totalorder %s477, 17
      %s481 = scalar_select %p480, %s477, 17
      %p482 = scmp.lt.s32.totalorder %s26, 0
      %s483 = scalar_select %p482, %s26, 0
      %s484 = smul.addr %s481, 3
      %s485 = sadd.s32 %s483, %s484
      %s486 = smul.addr %s479, 54
      %s487 = sadd.s32 %s485, %s486
      %s488 = smul.addr %s487, 4
      %s489 = scalar_lea.vmem %s7, %s488
      %p490 = pneg %p289
      %p491 = pneg %p286
      %p492 = scmp.lt.s32.totalorder %s27, 1
      %s493 = scalar_select %p492, %s27, 1
      %p494 = scmp.lt.s32.totalorder %s28, 1
      %s495 = scalar_select %p494, %s28, 1
      %p496 = scmp.lt.s32.totalorder %s26, 0
      %s497 = scalar_select %p496, %s26, 0
      %s498 = sadd.s32 %s497, %s495
      %s499 = smul.addr %s493, 2
      %s500 = sadd.s32 %s498, %s499
      %s501 = scalar_lea.vmem %s8, %s500
      %p502 = pneg %p319
      %p503 = pneg %p316
      %p504 = scmp.lt.s32.totalorder %s27, 1
      %s505 = scalar_select %p504, %s27, 1
      %p506 = scmp.lt.s32.totalorder %s28, 1
      %s507 = scalar_select %p506, %s28, 1
      %p508 = scmp.lt.s32.totalorder %s26, 0
      %s509 = scalar_select %p508, %s26, 0
      %s510 = sadd.s32 %s509, %s507
      %s511 = smul.addr %s505, 2
      %s512 = sadd.s32 %s510, %s511
      %s513 = scalar_lea.vmem %s9, %s512
      %s514 = smul.u32 9, %s28
      %p515 = scmp.lt.s32.totalorder %s27, 1
      %s516 = scalar_select %p515, %s27, 1
      %p517 = scmp.lt.s32.totalorder %s514, 17
      %s518 = scalar_select %p517, %s514, 17
      %s519 = smul.addr %s518, 3
      %s520 = smul.addr %s516, 54
      %s521 = sadd.s32 %s519, %s520
      %s522 = smul.addr %s521, 4
      %s523 = scalar_lea.vmem %s0, %s522
      %s524 = smul.u32 9, %s28
      %s525 = smul.u32 %s28, 9
      %s526 = ssub.s32 %s525, 1
      %p527 = scmp.gt.s32.totalorder %s526, 0
      %s528 = scalar_select %p527, %s526, 0
      %p529 = scmp.lt.s32.totalorder %s27, 1
      %s530 = scalar_select %p529, %s27, 1
      %p531 = scmp.lt.s32.totalorder %s528, 17
      %s532 = scalar_select %p531, %s528, 17
      %s533 = smul.addr %s532, 3
      %s534 = smul.addr %s530, 54
      %s535 = sadd.s32 %s533, %s534
      %s536 = smul.addr %s535, 4
      %s537 = scalar_lea.vmem %s1, %s536
      %s538 = smul.u32 %s28, 9
      %s539 = ssub.s32 %s538, 1
      %p540 = scmp.gt.s32.totalorder %s539, 0
      %s541 = scalar_select %p540, %s539, 0
      %s542 = smul.u32 %s28, 9
      %s543 = sadd.s32 %s542, 9
      %p544 = scmp.lt.s32.totalorder %s543, 17
      %s545 = scalar_select %p544, %s543, 17
      %p546 = scmp.lt.s32.totalorder %s27, 1
      %s547 = scalar_select %p546, %s27, 1
      %p548 = scmp.lt.s32.totalorder %s545, 17
      %s549 = scalar_select %p548, %s545, 17
      %s550 = smul.addr %s549, 3
      %s551 = smul.addr %s547, 54
      %s552 = sadd.s32 %s550, %s551
      %s553 = smul.addr %s552, 4
      %s554 = scalar_lea.vmem %s2, %s553
      %s555 = smul.u32 %s28, 9
      %s556 = sadd.s32 %s555, 9
      %p557 = scmp.lt.s32.totalorder %s556, 17
      %s558 = scalar_select %p557, %s556, 17
      %p559 = scmp.lt.s32.totalorder %s26, 0
      %s560 = scalar_select %p559, %s26, 0
      %s561 = smul.addr %s560, 4
      %s562 = scalar_lea.vmem %s3, %s561
      %p563 = scmp.lt.s32.totalorder %s26, 0
      %s564 = scalar_select %p563, %s26, 0
      %s565 = scalar_lea.vmem %s4, %s564
      %s566 = smul.u32 9, %s28
      %p567 = scmp.lt.s32.totalorder %s27, 1
      %s568 = scalar_select %p567, %s27, 1
      %p569 = scmp.lt.s32.totalorder %s566, 17
      %s570 = scalar_select %p569, %s566, 17
      %p571 = scmp.lt.s32.totalorder %s26, 0
      %s572 = scalar_select %p571, %s26, 0
      %s573 = smul.addr %s570, 3
      %s574 = sadd.s32 %s572, %s573
      %s575 = smul.addr %s568, 54
      %s576 = sadd.s32 %s574, %s575
      %s577 = smul.addr %s576, 4
      %s578 = scalar_lea.vmem %s7, %s577
      %s579 = smul.u32 9, %s28
      %p580 = scmp.lt.s32.totalorder %s27, 1
      %s581 = scalar_select %p580, %s27, 1
      %p582 = scmp.lt.s32.totalorder %s28, 1
      %s583 = scalar_select %p582, %s28, 1
      %p584 = scmp.lt.s32.totalorder %s26, 0
      %s585 = scalar_select %p584, %s26, 0
      %s586 = sadd.s32 %s585, %s583
      %s587 = smul.addr %s581, 2
      %s588 = sadd.s32 %s586, %s587
      %s589 = scalar_lea.vmem %s8, %s588
      %p590 = scmp.lt.s32.totalorder %s27, 1
      %s591 = scalar_select %p590, %s27, 1
      %p592 = scmp.lt.s32.totalorder %s28, 1
      %s593 = scalar_select %p592, %s28, 1
      %p594 = scmp.lt.s32.totalorder %s26, 0
      %s595 = scalar_select %p594, %s26, 0
      %s596 = sadd.s32 %s595, %s593
      %s597 = smul.addr %s591, 2
      %s598 = sadd.s32 %s596, %s597
      %s599 = scalar_lea.vmem %s9, %s598
      %s601 = smul.u32 %s28, 9
      %s602 = ssub.s32 %s601, 1
      %v603 = vld [vmem:[%s537] sm:$0xf]
      %v604 = vld [vmem:[%s537 + $0x4] sm:$0xf]
      %v605 = vld [vmem:[%s537 + $0x8] sm:$0xf]
      %v606 = vunpack.c.l.bf16 %v603
      %v607 = vunpack.c.l.bf16 %v604
      %v608 = vunpack.c.l.bf16 %v605
      %v609 = vld [vmem:[%s5] sm:$0x1]
      %v611 = vlaneseq
      %v612 = vshrl.u32 %v611, 7
      %v613 = vsub.s32 0, %v612
      %v614 = vrot.slane %v609, %v613
      %v616 = vmul.f32 %v606, %v614
      %v617 = vmul.f32 %v607, %v614
      %v618 = vmul.f32 %v608, %v614
      %v619 = vld [vmem:[%s6] sm:$0x1]
      %v621 = vlaneseq
      %v622 = vshrl.u32 %v621, 7
      %v623 = vsub.s32 0, %v622
      %v624 = vrot.slane %v619, %v623
      %v626 = vadd.f32 %v616, %v624
      %v627 = vadd.f32 %v617, %v624
      %v628 = vadd.f32 %v618, %v624
      %v629 = vmax.f32 %v626, 0.0
      %v630 = vmax.f32 %v627, 0.0
      %v631 = vmax.f32 %v628, 0.0
      %v632 = vstv %s602
      %v633 = vlaneseq
      %v634 = vshrl.u32 %v633, 7
      %v635 = vadd.s32 %v634, 8
      %v636 = vadd.s32 %v634, 16
      %vm637 = vcmp.ge.s32.totalorder %v632, 1
      %vm638 = vcmp.le.s32.totalorder %v632, 16
      %vm639 = vmand %vm637, %vm638
      %vm640 = vcmp.ge.s32.totalorder %v634, 1
      %vm641 = vcmp.ge.s32.totalorder %v635, 1
      %vm642 = vcmp.ge.s32.totalorder %v636, 1
      %vm643 = vmand %vm639, %vm640
      %vm644 = vmand %vm639, %vm641
      %vm645 = vmand %vm639, %vm642
      %vm646 = vcmp.le.s32.totalorder %v634, 16
      %vm647 = vcmp.le.s32.totalorder %v635, 16
      %vm648 = vcmp.le.s32.totalorder %v636, 16
      %vm649 = vmand %vm643, %vm646
      %vm650 = vmand %vm644, %vm647
      %vm651 = vmand %vm645, %vm648
      %v652 = vsel %vm649, 1, 0
      %v653 = vsel %vm650, 1, 0
      %v654 = vsel %vm651, 1, 0
      %vm655 = vcmp.eq.s32.totalorder %v652, 1
      %vm656 = vcmp.eq.s32.totalorder %v653, 1
      %vm657 = vcmp.eq.s32.totalorder %v654, 1
      %v658 = vsel %vm655, %v629, 0.0
      %v659 = vsel %vm656, %v630, 0.0
      %v660 = vsel %vm657, %v631, 0.0
      %v661 = vpack.c.bf16 %v659, %v658
      %v662 = vpack.c.bf16 %v660, %v660
      %v665 = vunpack.c.l.b16 %v661
      %v666 = vunpack.c.h.b16 %v661
      %v667 = vunpack.c.l.b16 %v662
      %v668 = vpack.c.b16 %v665, %v665
      %v669 = vpack.c.b16 %v666, %v666
      %v670 = vpack.c.b16 %v667, %v667
      %674 = vst [vmem:[#allocation2 + $0x4] sm:$0xf] %v668
      %675 = vst [vmem:[#allocation2 + $0x8] sm:$0xf] %v669
      %676 = vst [vmem:[#allocation2 + $0xc] sm:$0xf] %v670
      %v677 = vld [vmem:[%s523] sm:$0xf]
      %v678 = vld [vmem:[%s523 + $0x4] sm:$0xf]
      %v679 = vld [vmem:[%s523 + $0x8] sm:$0xf]
      %v680 = vld [vmem:[%s523 + $0xc] sm:$0xf]
      %v681 = vld [vmem:[%s523 + $0x10] sm:$0xf]
      %v682 = vld [vmem:[%s523 + $0x14] sm:$0xf]
      %v683 = vld [vmem:[%s523 + $0x18] sm:$0xf]
      %v684 = vld [vmem:[%s523 + $0x1c] sm:$0xf]
      %v685 = vld [vmem:[%s523 + $0x20] sm:$0xf]
      %v686 = vld [vmem:[%s523 + $0x24] sm:$0xf]
      %v687 = vld [vmem:[%s523 + $0x28] sm:$0xf]
      %v688 = vld [vmem:[%s523 + $0x2c] sm:$0xf]
      %v689 = vld [vmem:[%s523 + $0x30] sm:$0xf]
      %v690 = vld [vmem:[%s523 + $0x34] sm:$0xf]
      %v691 = vld [vmem:[%s523 + $0x38] sm:$0xf]
      %v692 = vld [vmem:[%s523 + $0x3c] sm:$0xf]
      %v693 = vld [vmem:[%s523 + $0x40] sm:$0xf]
      %v694 = vld [vmem:[%s523 + $0x44] sm:$0xf]
      %v695 = vld [vmem:[%s523 + $0x48] sm:$0xf]
      %v696 = vld [vmem:[%s523 + $0x4c] sm:$0xf]
      %v697 = vld [vmem:[%s523 + $0x50] sm:$0xf]
      %v698 = vld [vmem:[%s523 + $0x54] sm:$0xf]
      %v699 = vld [vmem:[%s523 + $0x58] sm:$0xf]
      %v700 = vld [vmem:[%s523 + $0x5c] sm:$0xf]
      %v701 = vld [vmem:[%s523 + $0x60] sm:$0xf]
      %v702 = vld [vmem:[%s523 + $0x64] sm:$0xf]
      %v703 = vld [vmem:[%s523 + $0x68] sm:$0xf]
      %v704 = vunpack.c.l.bf16 %v677
      %v705 = vunpack.c.l.bf16 %v678
      %v706 = vunpack.c.l.bf16 %v679
      %v707 = vunpack.c.l.bf16 %v680
      %v708 = vunpack.c.l.bf16 %v681
      %v709 = vunpack.c.l.bf16 %v682
      %v710 = vunpack.c.l.bf16 %v683
      %v711 = vunpack.c.l.bf16 %v684
      %v712 = vunpack.c.l.bf16 %v685
      %v713 = vunpack.c.l.bf16 %v686
      %v714 = vunpack.c.l.bf16 %v687
      %v715 = vunpack.c.l.bf16 %v688
      %v716 = vunpack.c.l.bf16 %v689
      %v717 = vunpack.c.l.bf16 %v690
      %v718 = vunpack.c.l.bf16 %v691
      %v719 = vunpack.c.l.bf16 %v692
      %v720 = vunpack.c.l.bf16 %v693
      %v721 = vunpack.c.l.bf16 %v694
      %v722 = vunpack.c.l.bf16 %v695
      %v723 = vunpack.c.l.bf16 %v696
      %v724 = vunpack.c.l.bf16 %v697
      %v725 = vunpack.c.l.bf16 %v698
      %v726 = vunpack.c.l.bf16 %v699
      %v727 = vunpack.c.l.bf16 %v700
      %v728 = vunpack.c.l.bf16 %v701
      %v729 = vunpack.c.l.bf16 %v702
      %v730 = vunpack.c.l.bf16 %v703
      %v731 = vld [vmem:[%s5] sm:$0x1]
      %v733 = vlaneseq
      %v734 = vshrl.u32 %v733, 7
      %v735 = vsub.s32 0, %v734
      %v736 = vrot.slane %v731, %v735
      %v738 = vmul.f32 %v704, %v736
      %v739 = vmul.f32 %v705, %v736
      %v740 = vmul.f32 %v706, %v736
      %v741 = vmul.f32 %v707, %v736
      %v742 = vmul.f32 %v708, %v736
      %v743 = vmul.f32 %v709, %v736
      %v744 = vmul.f32 %v710, %v736
      %v745 = vmul.f32 %v711, %v736
      %v746 = vmul.f32 %v712, %v736
      %v747 = vmul.f32 %v713, %v736
      %v748 = vmul.f32 %v714, %v736
      %v749 = vmul.f32 %v715, %v736
      %v750 = vmul.f32 %v716, %v736
      %v751 = vmul.f32 %v717, %v736
      %v752 = vmul.f32 %v718, %v736
      %v753 = vmul.f32 %v719, %v736
      %v754 = vmul.f32 %v720, %v736
      %v755 = vmul.f32 %v721, %v736
      %v756 = vmul.f32 %v722, %v736
      %v757 = vmul.f32 %v723, %v736
      %v758 = vmul.f32 %v724, %v736
      %v759 = vmul.f32 %v725, %v736
      %v760 = vmul.f32 %v726, %v736
      %v761 = vmul.f32 %v727, %v736
      %v762 = vmul.f32 %v728, %v736
      %v763 = vmul.f32 %v729, %v736
      %v764 = vmul.f32 %v730, %v736
      %v765 = vld [vmem:[%s6] sm:$0x1]
      %v767 = vlaneseq
      %v768 = vshrl.u32 %v767, 7
      %v769 = vsub.s32 0, %v768
      %v770 = vrot.slane %v765, %v769
      %v772 = vadd.f32 %v738, %v770
      %v773 = vadd.f32 %v739, %v770
      %v774 = vadd.f32 %v740, %v770
      %v775 = vadd.f32 %v741, %v770
      %v776 = vadd.f32 %v742, %v770
      %v777 = vadd.f32 %v743, %v770
      %v778 = vadd.f32 %v744, %v770
      %v779 = vadd.f32 %v745, %v770
      %v780 = vadd.f32 %v746, %v770
      %v781 = vadd.f32 %v747, %v770
      %v782 = vadd.f32 %v748, %v770
      %v783 = vadd.f32 %v749, %v770
      %v784 = vadd.f32 %v750, %v770
      %v785 = vadd.f32 %v751, %v770
      %v786 = vadd.f32 %v752, %v770
      %v787 = vadd.f32 %v753, %v770
      %v788 = vadd.f32 %v754, %v770
      %v789 = vadd.f32 %v755, %v770
      %v790 = vadd.f32 %v756, %v770
      %v791 = vadd.f32 %v757, %v770
      %v792 = vadd.f32 %v758, %v770
      %v793 = vadd.f32 %v759, %v770
      %v794 = vadd.f32 %v760, %v770
      %v795 = vadd.f32 %v761, %v770
      %v796 = vadd.f32 %v762, %v770
      %v797 = vadd.f32 %v763, %v770
      %v798 = vadd.f32 %v764, %v770
      %v799 = vmax.f32 %v772, 0.0
      %v800 = vmax.f32 %v773, 0.0
      %v801 = vmax.f32 %v774, 0.0
      %v802 = vmax.f32 %v775, 0.0
      %v803 = vmax.f32 %v776, 0.0
      %v804 = vmax.f32 %v777, 0.0
      %v805 = vmax.f32 %v778, 0.0
      %v806 = vmax.f32 %v779, 0.0
      %v807 = vmax.f32 %v780, 0.0
      %v808 = vmax.f32 %v781, 0.0
      %v809 = vmax.f32 %v782, 0.0
      %v810 = vmax.f32 %v783, 0.0
      %v811 = vmax.f32 %v784, 0.0
      %v812 = vmax.f32 %v785, 0.0
      %v813 = vmax.f32 %v786, 0.0
      %v814 = vmax.f32 %v787, 0.0
      %v815 = vmax.f32 %v788, 0.0
      %v816 = vmax.f32 %v789, 0.0
      %v817 = vmax.f32 %v790, 0.0
      %v818 = vmax.f32 %v791, 0.0
      %v819 = vmax.f32 %v792, 0.0
      %v820 = vmax.f32 %v793, 0.0
      %v821 = vmax.f32 %v794, 0.0
      %v822 = vmax.f32 %v795, 0.0
      %v823 = vmax.f32 %v796, 0.0
      %v824 = vmax.f32 %v797, 0.0
      %v825 = vmax.f32 %v798, 0.0
      %v826 = vstv %s601
      %v827 = vadd.s32 %v826, 1
      %v828 = vadd.s32 %v826, 2
      %v829 = vadd.s32 %v826, 3
      %v830 = vadd.s32 %v826, 4
      %v831 = vadd.s32 %v826, 5
      %v832 = vadd.s32 %v826, 6
      %v833 = vadd.s32 %v826, 7
      %v834 = vadd.s32 %v826, 8
      %vm835 = vcmp.ge.s32.totalorder %v826, 1
      %vm836 = vcmp.ge.s32.totalorder %v827, 1
      %vm837 = vcmp.ge.s32.totalorder %v828, 1
      %vm838 = vcmp.ge.s32.totalorder %v829, 1
      %vm839 = vcmp.ge.s32.totalorder %v830, 1
      %vm840 = vcmp.ge.s32.totalorder %v831, 1
      %vm841 = vcmp.ge.s32.totalorder %v832, 1
      %vm842 = vcmp.ge.s32.totalorder %v833, 1
      %vm843 = vcmp.ge.s32.totalorder %v834, 1
      %vm844 = vcmp.le.s32.totalorder %v826, 16
      %vm845 = vcmp.le.s32.totalorder %v827, 16
      %vm846 = vcmp.le.s32.totalorder %v828, 16
      %vm847 = vcmp.le.s32.totalorder %v829, 16
      %vm848 = vcmp.le.s32.totalorder %v830, 16
      %vm849 = vcmp.le.s32.totalorder %v831, 16
      %vm850 = vcmp.le.s32.totalorder %v832, 16
      %vm851 = vcmp.le.s32.totalorder %v833, 16
      %vm852 = vcmp.le.s32.totalorder %v834, 16
      %vm853 = vmand %vm835, %vm844
      %vm854 = vmand %vm836, %vm845
      %vm855 = vmand %vm837, %vm846
      %vm856 = vmand %vm838, %vm847
      %vm857 = vmand %vm839, %vm848
      %vm858 = vmand %vm840, %vm849
      %vm859 = vmand %vm841, %vm850
      %vm860 = vmand %vm842, %vm851
      %vm861 = vmand %vm843, %vm852
      %vm862 = vmand %vm853, %vm640
      %vm863 = vmand %vm853, %vm641
      %vm864 = vmand %vm853, %vm642
      %vm865 = vmand %vm854, %vm640
      %vm866 = vmand %vm854, %vm641
      %vm867 = vmand %vm854, %vm642
      %vm868 = vmand %vm855, %vm640
      %vm869 = vmand %vm855, %vm641
      %vm870 = vmand %vm855, %vm642
      %vm871 = vmand %vm856, %vm640
      %vm872 = vmand %vm856, %vm641
      %vm873 = vmand %vm856, %vm642
      %vm874 = vmand %vm857, %vm640
      %vm875 = vmand %vm857, %vm641
      %vm876 = vmand %vm857, %vm642
      %vm877 = vmand %vm858, %vm640
      %vm878 = vmand %vm858, %vm641
      %vm879 = vmand %vm858, %vm642
      %vm880 = vmand %vm859, %vm640
      %vm881 = vmand %vm859, %vm641
      %vm882 = vmand %vm859, %vm642
      %vm883 = vmand %vm860, %vm640
      %vm884 = vmand %vm860, %vm641
      %vm885 = vmand %vm860, %vm642
      %vm886 = vmand %vm861, %vm640
      %vm887 = vmand %vm861, %vm641
      %vm888 = vmand %vm861, %vm642
      %vm889 = vmand %vm862, %vm646
      %vm890 = vmand %vm863, %vm647
      %vm891 = vmand %vm864, %vm648
      %vm892 = vmand %vm865, %vm646
      %vm893 = vmand %vm866, %vm647
      %vm894 = vmand %vm867, %vm648
      %vm895 = vmand %vm868, %vm646
      %vm896 = vmand %vm869, %vm647
      %vm897 = vmand %vm870, %vm648
      %vm898 = vmand %vm871, %vm646
      %vm899 = vmand %vm872, %vm647
      %vm900 = vmand %vm873, %vm648
      %vm901 = vmand %vm874, %vm646
      %vm902 = vmand %vm875, %vm647
      %vm903 = vmand %vm876, %vm648
      %vm904 = vmand %vm877, %vm646
      %vm905 = vmand %vm878, %vm647
      %vm906 = vmand %vm879, %vm648
      %vm907 = vmand %vm880, %vm646
      %vm908 = vmand %vm881, %vm647
      %vm909 = vmand %vm882, %vm648
      %vm910 = vmand %vm883, %vm646
      %vm911 = vmand %vm884, %vm647
      %vm912 = vmand %vm885, %vm648
      %vm913 = vmand %vm886, %vm646
      %vm914 = vmand %vm887, %vm647
      %vm915 = vmand %vm888, %vm648
      %v916 = vsel %vm889, 1, 0
      %v917 = vsel %vm890, 1, 0
      %v918 = vsel %vm891, 1, 0
      %v919 = vsel %vm892, 1, 0
      %v920 = vsel %vm893, 1, 0
      %v921 = vsel %vm894, 1, 0
      %v922 = vsel %vm895, 1, 0
      %v923 = vsel %vm896, 1, 0
      %v924 = vsel %vm897, 1, 0
      %v925 = vsel %vm898, 1, 0
      %v926 = vsel %vm899, 1, 0
      %v927 = vsel %vm900, 1, 0
      %v928 = vsel %vm901, 1, 0
      %v929 = vsel %vm902, 1, 0
      %v930 = vsel %vm903, 1, 0
      %v931 = vsel %vm904, 1, 0
      %v932 = vsel %vm905, 1, 0
      %v933 = vsel %vm906, 1, 0
      %v934 = vsel %vm907, 1, 0
      %v935 = vsel %vm908, 1, 0
      %v936 = vsel %vm909, 1, 0
      %v937 = vsel %vm910, 1, 0
      %v938 = vsel %vm911, 1, 0
      %v939 = vsel %vm912, 1, 0
      %v940 = vsel %vm913, 1, 0
      %v941 = vsel %vm914, 1, 0
      %v942 = vsel %vm915, 1, 0
      %vm943 = vcmp.eq.s32.totalorder %v916, 1
      %vm944 = vcmp.eq.s32.totalorder %v917, 1
      %vm945 = vcmp.eq.s32.totalorder %v918, 1
      %vm946 = vcmp.eq.s32.totalorder %v919, 1
      %vm947 = vcmp.eq.s32.totalorder %v920, 1
      %vm948 = vcmp.eq.s32.totalorder %v921, 1
      %vm949 = vcmp.eq.s32.totalorder %v922, 1
      %vm950 = vcmp.eq.s32.totalorder %v923, 1
      %vm951 = vcmp.eq.s32.totalorder %v924, 1
      %vm952 = vcmp.eq.s32.totalorder %v925, 1
      %vm953 = vcmp.eq.s32.totalorder %v926, 1
      %vm954 = vcmp.eq.s32.totalorder %v927, 1
      %vm955 = vcmp.eq.s32.totalorder %v928, 1
      %vm956 = vcmp.eq.s32.totalorder %v929, 1
      %vm957 = vcmp.eq.s32.totalorder %v930, 1
      %vm958 = vcmp.eq.s32.totalorder %v931, 1
      %vm959 = vcmp.eq.s32.totalorder %v932, 1
      %vm960 = vcmp.eq.s32.totalorder %v933, 1
      %vm961 = vcmp.eq.s32.totalorder %v934, 1
      %vm962 = vcmp.eq.s32.totalorder %v935, 1
      %vm963 = vcmp.eq.s32.totalorder %v936, 1
      %vm964 = vcmp.eq.s32.totalorder %v937, 1
      %vm965 = vcmp.eq.s32.totalorder %v938, 1
      %vm966 = vcmp.eq.s32.totalorder %v939, 1
      %vm967 = vcmp.eq.s32.totalorder %v940, 1
      %vm968 = vcmp.eq.s32.totalorder %v941, 1
      %vm969 = vcmp.eq.s32.totalorder %v942, 1
      %v970 = vsel %vm943, %v799, 0.0
      %v971 = vsel %vm944, %v800, 0.0
      %v972 = vsel %vm945, %v801, 0.0
      %v973 = vsel %vm946, %v802, 0.0
      %v974 = vsel %vm947, %v803, 0.0
      %v975 = vsel %vm948, %v804, 0.0
      %v976 = vsel %vm949, %v805, 0.0
      %v977 = vsel %vm950, %v806, 0.0
      %v978 = vsel %vm951, %v807, 0.0
      %v979 = vsel %vm952, %v808, 0.0
      %v980 = vsel %vm953, %v809, 0.0
      %v981 = vsel %vm954, %v810, 0.0
      %v982 = vsel %vm955, %v811, 0.0
      %v983 = vsel %vm956, %v812, 0.0
      %v984 = vsel %vm957, %v813, 0.0
      %v985 = vsel %vm958, %v814, 0.0
      %v986 = vsel %vm959, %v815, 0.0
      %v987 = vsel %vm960, %v816, 0.0
      %v988 = vsel %vm961, %v817, 0.0
      %v989 = vsel %vm962, %v818, 0.0
      %v990 = vsel %vm963, %v819, 0.0
      %v991 = vsel %vm964, %v820, 0.0
      %v992 = vsel %vm965, %v821, 0.0
      %v993 = vsel %vm966, %v822, 0.0
      %v994 = vsel %vm967, %v823, 0.0
      %v995 = vsel %vm968, %v824, 0.0
      %v996 = vsel %vm969, %v825, 0.0
      %v997 = vpack.c.bf16 %v971, %v970
      %v998 = vpack.c.bf16 %v972, %v972
      %v999 = vpack.c.bf16 %v974, %v973
      %v1000 = vpack.c.bf16 %v975, %v975
      %v1001 = vpack.c.bf16 %v977, %v976
      %v1002 = vpack.c.bf16 %v978, %v978
      %v1003 = vpack.c.bf16 %v980, %v979
      %v1004 = vpack.c.bf16 %v981, %v981
      %v1005 = vpack.c.bf16 %v983, %v982
      %v1006 = vpack.c.bf16 %v984, %v984
      %v1007 = vpack.c.bf16 %v986, %v985
      %v1008 = vpack.c.bf16 %v987, %v987
      %v1009 = vpack.c.bf16 %v989, %v988
      %v1010 = vpack.c.bf16 %v990, %v990
      %v1011 = vpack.c.bf16 %v992, %v991
      %v1012 = vpack.c.bf16 %v993, %v993
      %v1013 = vpack.c.bf16 %v995, %v994
      %v1014 = vpack.c.bf16 %v996, %v996
      %v1033 = vunpack.c.l.b16 %v997
      %v1034 = vunpack.c.h.b16 %v997
      %v1035 = vunpack.c.l.b16 %v998
      %v1036 = vunpack.c.l.b16 %v999
      %v1037 = vunpack.c.h.b16 %v999
      %v1038 = vunpack.c.l.b16 %v1000
      %v1039 = vunpack.c.l.b16 %v1001
      %v1040 = vunpack.c.h.b16 %v1001
      %v1041 = vunpack.c.l.b16 %v1002
      %v1042 = vunpack.c.l.b16 %v1003
      %v1043 = vunpack.c.h.b16 %v1003
      %v1044 = vunpack.c.l.b16 %v1004
      %v1045 = vunpack.c.l.b16 %v1005
      %v1046 = vunpack.c.h.b16 %v1005
      %v1047 = vunpack.c.l.b16 %v1006
      %v1048 = vunpack.c.l.b16 %v1007
      %v1049 = vunpack.c.h.b16 %v1007
      %v1050 = vunpack.c.l.b16 %v1008
      %v1051 = vunpack.c.l.b16 %v1009
      %v1052 = vunpack.c.h.b16 %v1009
      %v1053 = vunpack.c.l.b16 %v1010
      %v1054 = vunpack.c.l.b16 %v1011
      %v1055 = vunpack.c.h.b16 %v1011
      %v1056 = vunpack.c.l.b16 %v1012
      %v1057 = vunpack.c.l.b16 %v1013
      %v1058 = vunpack.c.h.b16 %v1013
      %v1059 = vunpack.c.l.b16 %v1014
      %v1060 = vpack.c.b16 %v1033, %v1033
      %v1061 = vpack.c.b16 %v1034, %v1034
      %v1062 = vpack.c.b16 %v1035, %v1035
      %v1063 = vpack.c.b16 %v1036, %v1036
      %v1064 = vpack.c.b16 %v1037, %v1037
      %v1065 = vpack.c.b16 %v1038, %v1038
      %v1066 = vpack.c.b16 %v1039, %v1039
      %v1067 = vpack.c.b16 %v1040, %v1040
      %v1068 = vpack.c.b16 %v1041, %v1041
      %v1069 = vpack.c.b16 %v1042, %v1042
      %v1070 = vpack.c.b16 %v1043, %v1043
      %v1071 = vpack.c.b16 %v1044, %v1044
      %v1072 = vpack.c.b16 %v1045, %v1045
      %v1073 = vpack.c.b16 %v1046, %v1046
      %v1074 = vpack.c.b16 %v1047, %v1047
      %v1075 = vpack.c.b16 %v1048, %v1048
      %v1076 = vpack.c.b16 %v1049, %v1049
      %v1077 = vpack.c.b16 %v1050, %v1050
      %v1078 = vpack.c.b16 %v1051, %v1051
      %v1079 = vpack.c.b16 %v1052, %v1052
      %v1080 = vpack.c.b16 %v1053, %v1053
      %v1081 = vpack.c.b16 %v1054, %v1054
      %v1082 = vpack.c.b16 %v1055, %v1055
      %v1083 = vpack.c.b16 %v1056, %v1056
      %v1084 = vpack.c.b16 %v1057, %v1057
      %v1085 = vpack.c.b16 %v1058, %v1058
      %v1086 = vpack.c.b16 %v1059, %v1059
      %s1114 = scalar_lea.vmem [#allocation2], 20
      %1115 = vst [vmem:[%s1114 + $0x4] sm:$0xf] %v1060
      %1116 = vst [vmem:[%s1114 + $0x8] sm:$0xf] %v1061
      %1117 = vst [vmem:[%s1114 + $0xc] sm:$0xf] %v1062
      %1118 = vst [vmem:[%s1114 + $0x18] sm:$0xf] %v1063
      %1119 = vst [vmem:[%s1114 + $0x1c] sm:$0xf] %v1064
      %1120 = vst [vmem:[%s1114 + $0x20] sm:$0xf] %v1065
      %1121 = vst [vmem:[%s1114 + $0x2c] sm:$0xf] %v1066
      %1122 = vst [vmem:[%s1114 + $0x30] sm:$0xf] %v1067
      %1123 = vst [vmem:[%s1114 + $0x34] sm:$0xf] %v1068
      %1124 = vst [vmem:[%s1114 + $0x40] sm:$0xf] %v1069
      %1125 = vst [vmem:[%s1114 + $0x44] sm:$0xf] %v1070
      %1126 = vst [vmem:[%s1114 + $0x48] sm:$0xf] %v1071
      %1127 = vst [vmem:[%s1114 + $0x54] sm:$0xf] %v1072
      %1128 = vst [vmem:[%s1114 + $0x58] sm:$0xf] %v1073
      %1129 = vst [vmem:[%s1114 + $0x5c] sm:$0xf] %v1074
      %1130 = vst [vmem:[%s1114 + $0x68] sm:$0xf] %v1075
      %1131 = vst [vmem:[%s1114 + $0x6c] sm:$0xf] %v1076
      %1132 = vst [vmem:[%s1114 + $0x70] sm:$0xf] %v1077
      %1133 = vst [vmem:[%s1114 + $0x7c] sm:$0xf] %v1078
      %1134 = vst [vmem:[%s1114 + $0x80] sm:$0xf] %v1079
      %1135 = vst [vmem:[%s1114 + $0x84] sm:$0xf] %v1080
      %1136 = vst [vmem:[%s1114 + $0x90] sm:$0xf] %v1081
      %1137 = vst [vmem:[%s1114 + $0x94] sm:$0xf] %v1082
      %1138 = vst [vmem:[%s1114 + $0x98] sm:$0xf] %v1083
      %1139 = vst [vmem:[%s1114 + $0xa4] sm:$0xf] %v1084
      %1140 = vst [vmem:[%s1114 + $0xa8] sm:$0xf] %v1085
      %1141 = vst [vmem:[%s1114 + $0xac] sm:$0xf] %v1086
      %v1142 = vld [vmem:[%s554] sm:$0xf]
      %v1143 = vld [vmem:[%s554 + $0x4] sm:$0xf]
      %v1144 = vld [vmem:[%s554 + $0x8] sm:$0xf]
      %s1145 = sadd.s32 %s601, 9
      %v1146 = vunpack.c.l.bf16 %v1142
      %v1147 = vunpack.c.l.bf16 %v1143
      %v1148 = vunpack.c.l.bf16 %v1144
      %v1149 = vld [vmem:[%s5] sm:$0x1]
      %v1151 = vlaneseq
      %v1152 = vshrl.u32 %v1151, 7
      %v1153 = vsub.s32 0, %v1152
      %v1154 = vrot.slane %v1149, %v1153
      %v1156 = vmul.f32 %v1146, %v1154
      %v1157 = vmul.f32 %v1147, %v1154
      %v1158 = vmul.f32 %v1148, %v1154
      %v1159 = vld [vmem:[%s6] sm:$0x1]
      %v1161 = vlaneseq
      %v1162 = vshrl.u32 %v1161, 7
      %v1163 = vsub.s32 0, %v1162
      %v1164 = vrot.slane %v1159, %v1163
      %v1166 = vadd.f32 %v1156, %v1164
      %v1167 = vadd.f32 %v1157, %v1164
      %v1168 = vadd.f32 %v1158, %v1164
      %v1169 = vmax.f32 %v1166, 0.0
      %v1170 = vmax.f32 %v1167, 0.0
      %v1171 = vmax.f32 %v1168, 0.0
      %v1172 = vstv %s1145
      %vm1173 = vcmp.ge.s32.totalorder %v1172, 1
      %vm1174 = vcmp.le.s32.totalorder %v1172, 16
      %vm1175 = vmand %vm1173, %vm1174
      %vm1176 = vmand %vm1175, %vm640
      %vm1177 = vmand %vm1175, %vm641
      %vm1178 = vmand %vm1175, %vm642
      %vm1179 = vmand %vm1176, %vm646
      %vm1180 = vmand %vm1177, %vm647
      %vm1181 = vmand %vm1178, %vm648
      %v1182 = vsel %vm1179, 1, 0
      %v1183 = vsel %vm1180, 1, 0
      %v1184 = vsel %vm1181, 1, 0
      %vm1185 = vcmp.eq.s32.totalorder %v1182, 1
      %vm1186 = vcmp.eq.s32.totalorder %v1183, 1
      %vm1187 = vcmp.eq.s32.totalorder %v1184, 1
      %v1188 = vsel %vm1185, %v1169, 0.0
      %v1189 = vsel %vm1186, %v1170, 0.0
      %v1190 = vsel %vm1187, %v1171, 0.0
      %v1191 = vpack.c.bf16 %v1189, %v1188
      %v1192 = vpack.c.bf16 %v1190, %v1190
      %v1195 = vunpack.c.l.b16 %v1191
      %v1196 = vunpack.c.h.b16 %v1191
      %v1197 = vunpack.c.l.b16 %v1192
      %v1198 = vpack.c.b16 %v1195, %v1195
      %v1199 = vpack.c.b16 %v1196, %v1196
      %v1200 = vpack.c.b16 %v1197, %v1197
      %s1204 = scalar_lea.vmem [#allocation2], 200
      %1205 = vst [vmem:[%s1204 + $0x4] sm:$0xf] %v1198
      %1206 = vst [vmem:[%s1204 + $0x8] sm:$0xf] %v1199
      %1207 = vst [vmem:[%s1204 + $0xc] sm:$0xf] %v1200
      %v1208 = vld [vmem:[#allocation2] sm:$0x8]
      %v1209 = vld [vmem:[#allocation2 + $0x4] sm:$0xf]
      %v1210 = vld [vmem:[#allocation2 + $0x8] sm:$0xf]
      %v1211 = vld [vmem:[#allocation2 + $0xc] sm:$0xf]
      %v1212 = vld [vmem:[#allocation2 + $0x14] sm:$0x8]
      %v1213 = vld [vmem:[#allocation2 + $0x18] sm:$0xf]
      %v1214 = vld [vmem:[#allocation2 + $0x1c] sm:$0xf]
      %v1215 = vld [vmem:[#allocation2 + $0x20] sm:$0xf]
      %v1216 = vld [vmem:[#allocation2 + $0x28] sm:$0x8]
      %v1217 = vld [vmem:[#allocation2 + $0x2c] sm:$0xf]
      %v1218 = vld [vmem:[#allocation2 + $0x30] sm:$0xf]
      %v1219 = vld [vmem:[#allocation2 + $0x34] sm:$0xf]
      %v1220 = vld [vmem:[#allocation2 + $0x3c] sm:$0x8]
      %v1221 = vld [vmem:[#allocation2 + $0x40] sm:$0xf]
      %v1222 = vld [vmem:[#allocation2 + $0x44] sm:$0xf]
      %v1223 = vld [vmem:[#allocation2 + $0x48] sm:$0xf]
      %v1224 = vld [vmem:[#allocation2 + $0x50] sm:$0x8]
      %v1225 = vld [vmem:[#allocation2 + $0x54] sm:$0xf]
      %v1226 = vld [vmem:[#allocation2 + $0x58] sm:$0xf]
      %v1227 = vld [vmem:[#allocation2 + $0x5c] sm:$0xf]
      %v1228 = vld [vmem:[#allocation2 + $0x64] sm:$0x8]
      %v1229 = vld [vmem:[#allocation2 + $0x68] sm:$0xf]
      %v1230 = vld [vmem:[#allocation2 + $0x6c] sm:$0xf]
      %v1231 = vld [vmem:[#allocation2 + $0x70] sm:$0xf]
      %v1232 = vld [vmem:[#allocation2 + $0x78] sm:$0x8]
      %v1233 = vld [vmem:[#allocation2 + $0x7c] sm:$0xf]
      %v1234 = vld [vmem:[#allocation2 + $0x80] sm:$0xf]
      %v1235 = vld [vmem:[#allocation2 + $0x84] sm:$0xf]
      %v1236 = vld [vmem:[#allocation2 + $0x8c] sm:$0x8]
      %v1237 = vld [vmem:[#allocation2 + $0x90] sm:$0xf]
      %v1238 = vld [vmem:[#allocation2 + $0x94] sm:$0xf]
      %v1239 = vld [vmem:[#allocation2 + $0x98] sm:$0xf]
      %v1240 = vld [vmem:[#allocation2 + $0xa0] sm:$0x8]
      %v1241 = vld [vmem:[#allocation2 + $0xa4] sm:$0xf]
      %v1242 = vld [vmem:[#allocation2 + $0xa8] sm:$0xf]
      %v1243 = vld [vmem:[#allocation2 + $0xac] sm:$0xf]
      %v1244 = vld [vmem:[#allocation2 + $0xb4] sm:$0x8]
      %v1245 = vld [vmem:[#allocation2 + $0xb8] sm:$0xf]
      %v1246 = vld [vmem:[#allocation2 + $0xbc] sm:$0xf]
      %v1247 = vld [vmem:[#allocation2 + $0xc0] sm:$0xf]
      %v1248 = vld [vmem:[#allocation2 + $0xc8] sm:$0x8]
      %v1249 = vld [vmem:[#allocation2 + $0xcc] sm:$0xf]
      %v1250 = vld [vmem:[#allocation2 + $0xd0] sm:$0xf]
      %v1251 = vld [vmem:[#allocation2 + $0xd4] sm:$0xf]
      %v1252 = vld [vmem:[#allocation2 + $0x4] sm:$0xf]
      %v1253 = vld [vmem:[#allocation2 + $0x8] sm:$0xf]
      %v1254 = vld [vmem:[#allocation2 + $0xc] sm:$0xf]
      %v1255 = vld [vmem:[#allocation2 + $0x10] sm:$0x1]
      %v1256 = vld [vmem:[#allocation2 + $0x18] sm:$0xf]
      %v1257 = vld [vmem:[#allocation2 + $0x1c] sm:$0xf]
      %v1258 = vld [vmem:[#allocation2 + $0x20] sm:$0xf]
      %v1259 = vld [vmem:[#allocation2 + $0x24] sm:$0x1]
      %v1260 = vld [vmem:[#allocation2 + $0x2c] sm:$0xf]
      %v1261 = vld [vmem:[#allocation2 + $0x30] sm:$0xf]
      %v1262 = vld [vmem:[#allocation2 + $0x34] sm:$0xf]
      %v1263 = vld [vmem:[#allocation2 + $0x38] sm:$0x1]
      %v1264 = vld [vmem:[#allocation2 + $0x40] sm:$0xf]
      %v1265 = vld [vmem:[#allocation2 + $0x44] sm:$0xf]
      %v1266 = vld [vmem:[#allocation2 + $0x48] sm:$0xf]
      %v1267 = vld [vmem:[#allocation2 + $0x4c] sm:$0x1]
      %v1268 = vld [vmem:[#allocation2 + $0x54] sm:$0xf]
      %v1269 = vld [vmem:[#allocation2 + $0x58] sm:$0xf]
      %v1270 = vld [vmem:[#allocation2 + $0x5c] sm:$0xf]
      %v1271 = vld [vmem:[#allocation2 + $0x60] sm:$0x1]
      %v1272 = vld [vmem:[#allocation2 + $0x68] sm:$0xf]
      %v1273 = vld [vmem:[#allocation2 + $0x6c] sm:$0xf]
      %v1274 = vld [vmem:[#allocation2 + $0x70] sm:$0xf]
      %v1275 = vld [vmem:[#allocation2 + $0x74] sm:$0x1]
      %v1276 = vld [vmem:[#allocation2 + $0x7c] sm:$0xf]
      %v1277 = vld [vmem:[#allocation2 + $0x80] sm:$0xf]
      %v1278 = vld [vmem:[#allocation2 + $0x84] sm:$0xf]
      %v1279 = vld [vmem:[#allocation2 + $0x88] sm:$0x1]
      %v1280 = vld [vmem:[#allocation2 + $0x90] sm:$0xf]
      %v1281 = vld [vmem:[#allocation2 + $0x94] sm:$0xf]
      %v1282 = vld [vmem:[#allocation2 + $0x98] sm:$0xf]
      %v1283 = vld [vmem:[#allocation2 + $0x9c] sm:$0x1]
      %v1284 = vld [vmem:[#allocation2 + $0xa4] sm:$0xf]
      %v1285 = vld [vmem:[#allocation2 + $0xa8] sm:$0xf]
      %v1286 = vld [vmem:[#allocation2 + $0xac] sm:$0xf]
      %v1287 = vld [vmem:[#allocation2 + $0xb0] sm:$0x1]
      %v1288 = vld [vmem:[#allocation2 + $0xb8] sm:$0xf]
      %v1289 = vld [vmem:[#allocation2 + $0xbc] sm:$0xf]
      %v1290 = vld [vmem:[#allocation2 + $0xc0] sm:$0xf]
      %v1291 = vld [vmem:[#allocation2 + $0xc4] sm:$0x1]
      %v1292 = vld [vmem:[#allocation2 + $0xcc] sm:$0xf]
      %v1293 = vld [vmem:[#allocation2 + $0xd0] sm:$0xf]
      %v1294 = vld [vmem:[#allocation2 + $0xd4] sm:$0xf]
      %v1295 = vld [vmem:[#allocation2 + $0xd8] sm:$0x1]
      %v1340 = vunpack.c.l.b16 %v1208
      %v1341 = vunpack.c.l.b16 %v1209
      %v1342 = vunpack.c.l.b16 %v1210
      %v1343 = vunpack.c.l.b16 %v1211
      %v1344 = vunpack.c.l.b16 %v1212
      %v1345 = vunpack.c.l.b16 %v1213
      %v1346 = vunpack.c.l.b16 %v1214
      %v1347 = vunpack.c.l.b16 %v1215
      %v1348 = vunpack.c.l.b16 %v1216
      %v1349 = vunpack.c.l.b16 %v1217
      %v1350 = vunpack.c.l.b16 %v1218
      %v1351 = vunpack.c.l.b16 %v1219
      %v1352 = vunpack.c.l.b16 %v1220
      %v1353 = vunpack.c.l.b16 %v1221
      %v1354 = vunpack.c.l.b16 %v1222
      %v1355 = vunpack.c.l.b16 %v1223
      %v1356 = vunpack.c.l.b16 %v1224
      %v1357 = vunpack.c.l.b16 %v1225
      %v1358 = vunpack.c.l.b16 %v1226
      %v1359 = vunpack.c.l.b16 %v1227
      %v1360 = vunpack.c.l.b16 %v1228
      %v1361 = vunpack.c.l.b16 %v1229
      %v1362 = vunpack.c.l.b16 %v1230
      %v1363 = vunpack.c.l.b16 %v1231
      %v1364 = vunpack.c.l.b16 %v1232
      %v1365 = vunpack.c.l.b16 %v1233
      %v1366 = vunpack.c.l.b16 %v1234
      %v1367 = vunpack.c.l.b16 %v1235
      %v1368 = vunpack.c.l.b16 %v1236
      %v1369 = vunpack.c.l.b16 %v1237
      %v1370 = vunpack.c.l.b16 %v1238
      %v1371 = vunpack.c.l.b16 %v1239
      %v1372 = vunpack.c.l.b16 %v1240
      %v1373 = vunpack.c.l.b16 %v1241
      %v1374 = vunpack.c.l.b16 %v1242
      %v1375 = vunpack.c.l.b16 %v1243
      %v1376 = vunpack.c.l.b16 %v1244
      %v1377 = vunpack.c.l.b16 %v1245
      %v1378 = vunpack.c.l.b16 %v1246
      %v1379 = vunpack.c.l.b16 %v1247
      %v1380 = vunpack.c.l.b16 %v1248
      %v1381 = vunpack.c.l.b16 %v1249
      %v1382 = vunpack.c.l.b16 %v1250
      %v1383 = vunpack.c.l.b16 %v1251
      %v1384 = vpack.c.b16 %v1342, %v1341
      %v1385 = vpack.c.b16 %v1343, %v1343
      %v1386 = vpack.c.b16 %v1346, %v1345
      %v1387 = vpack.c.b16 %v1347, %v1347
      %v1388 = vpack.c.b16 %v1350, %v1349
      %v1389 = vpack.c.b16 %v1351, %v1351
      %v1390 = vpack.c.b16 %v1354, %v1353
      %v1391 = vpack.c.b16 %v1355, %v1355
      %v1392 = vpack.c.b16 %v1358, %v1357
      %v1393 = vpack.c.b16 %v1359, %v1359
      %v1394 = vpack.c.b16 %v1362, %v1361
      %v1395 = vpack.c.b16 %v1363, %v1363
      %v1396 = vpack.c.b16 %v1366, %v1365
      %v1397 = vpack.c.b16 %v1367, %v1367
      %v1398 = vpack.c.b16 %v1370, %v1369
      %v1399 = vpack.c.b16 %v1371, %v1371
      %v1400 = vpack.c.b16 %v1374, %v1373
      %v1401 = vpack.c.b16 %v1375, %v1375
      %v1402 = vpack.c.b16 %v1378, %v1377
      %v1403 = vpack.c.b16 %v1379, %v1379
      %v1404 = vpack.c.b16 %v1382, %v1381
      %v1405 = vpack.c.b16 %v1383, %v1383
      %vm1406 = vsmask.f32 3328
      %v1408 = vshrl.u32 %v1384, 16
      %v1410 = vrot.slane %v1408, 4
      %v1411 = vshll.u32 %v1384, 16
      %v1413 = vrot.slane %v1411, 5
      %v1414 = vor.u32 %v1410, %v1413
      %v1416 = vshrl.u32 %v1385, 16
      %v1418 = vrot.slane %v1416, 4
      %v1419 = vshll.u32 %v1385, 16
      %v1421 = vrot.slane %v1419, 5
      %v1422 = vor.u32 %v1418, %v1421
      %v1423 = vsel %vm1406, %v1414, %v1422
      %v1425 = vshrl.u32 %v1386, 16
      %v1427 = vrot.slane %v1425, 4
      %v1428 = vshll.u32 %v1386, 16
      %v1430 = vrot.slane %v1428, 5
      %v1431 = vor.u32 %v1427, %v1430
      %v1433 = vshrl.u32 %v1387, 16
      %v1435 = vrot.slane %v1433, 4
      %v1436 = vshll.u32 %v1387, 16
      %v1438 = vrot.slane %v1436, 5
      %v1439 = vor.u32 %v1435, %v1438
      %v1440 = vsel %vm1406, %v1431, %v1439
      %v1442 = vshrl.u32 %v1388, 16
      %v1444 = vrot.slane %v1442, 4
      %v1445 = vshll.u32 %v1388, 16
      %v1447 = vrot.slane %v1445, 5
      %v1448 = vor.u32 %v1444, %v1447
      %v1450 = vshrl.u32 %v1389, 16
      %v1452 = vrot.slane %v1450, 4
      %v1453 = vshll.u32 %v1389, 16
      %v1455 = vrot.slane %v1453, 5
      %v1456 = vor.u32 %v1452, %v1455
      %v1457 = vsel %vm1406, %v1448, %v1456
      %v1459 = vshrl.u32 %v1390, 16
      %v1461 = vrot.slane %v1459, 4
      %v1462 = vshll.u32 %v1390, 16
      %v1464 = vrot.slane %v1462, 5
      %v1465 = vor.u32 %v1461, %v1464
      %v1467 = vshrl.u32 %v1391, 16
      %v1469 = vrot.slane %v1467, 4
      %v1470 = vshll.u32 %v1391, 16
      %v1472 = vrot.slane %v1470, 5
      %v1473 = vor.u32 %v1469, %v1472
      %v1474 = vsel %vm1406, %v1465, %v1473
      %v1476 = vshrl.u32 %v1392, 16
      %v1478 = vrot.slane %v1476, 4
      %v1479 = vshll.u32 %v1392, 16
      %v1481 = vrot.slane %v1479, 5
      %v1482 = vor.u32 %v1478, %v1481
      %v1484 = vshrl.u32 %v1393, 16
      %v1486 = vrot.slane %v1484, 4
      %v1487 = vshll.u32 %v1393, 16
      %v1489 = vrot.slane %v1487, 5
      %v1490 = vor.u32 %v1486, %v1489
      %v1491 = vsel %vm1406, %v1482, %v1490
      %v1493 = vshrl.u32 %v1394, 16
      %v1495 = vrot.slane %v1493, 4
      %v1496 = vshll.u32 %v1394, 16
      %v1498 = vrot.slane %v1496, 5
      %v1499 = vor.u32 %v1495, %v1498
      %v1501 = vshrl.u32 %v1395, 16
      %v1503 = vrot.slane %v1501, 4
      %v1504 = vshll.u32 %v1395, 16
      %v1506 = vrot.slane %v1504, 5
      %v1507 = vor.u32 %v1503, %v1506
      %v1508 = vsel %vm1406, %v1499, %v1507
      %v1510 = vshrl.u32 %v1396, 16
      %v1512 = vrot.slane %v1510, 4
      %v1513 = vshll.u32 %v1396, 16
      %v1515 = vrot.slane %v1513, 5
      %v1516 = vor.u32 %v1512, %v1515
      %v1518 = vshrl.u32 %v1397, 16
      %v1520 = vrot.slane %v1518, 4
      %v1521 = vshll.u32 %v1397, 16
      %v1523 = vrot.slane %v1521, 5
      %v1524 = vor.u32 %v1520, %v1523
      %v1525 = vsel %vm1406, %v1516, %v1524
      %v1527 = vshrl.u32 %v1398, 16
      %v1529 = vrot.slane %v1527, 4
      %v1530 = vshll.u32 %v1398, 16
      %v1532 = vrot.slane %v1530, 5
      %v1533 = vor.u32 %v1529, %v1532
      %v1535 = vshrl.u32 %v1399, 16
      %v1537 = vrot.slane %v1535, 4
      %v1538 = vshll.u32 %v1399, 16
      %v1540 = vrot.slane %v1538, 5
      %v1541 = vor.u32 %v1537, %v1540
      %v1542 = vsel %vm1406, %v1533, %v1541
      %v1544 = vshrl.u32 %v1400, 16
      %v1546 = vrot.slane %v1544, 4
      %v1547 = vshll.u32 %v1400, 16
      %v1549 = vrot.slane %v1547, 5
      %v1550 = vor.u32 %v1546, %v1549
      %v1552 = vshrl.u32 %v1401, 16
      %v1554 = vrot.slane %v1552, 4
      %v1555 = vshll.u32 %v1401, 16
      %v1557 = vrot.slane %v1555, 5
      %v1558 = vor.u32 %v1554, %v1557
      %v1559 = vsel %vm1406, %v1550, %v1558
      %v1561 = vshrl.u32 %v1402, 16
      %v1563 = vrot.slane %v1561, 4
      %v1564 = vshll.u32 %v1402, 16
      %v1566 = vrot.slane %v1564, 5
      %v1567 = vor.u32 %v1563, %v1566
      %v1569 = vshrl.u32 %v1403, 16
      %v1571 = vrot.slane %v1569, 4
      %v1572 = vshll.u32 %v1403, 16
      %v1574 = vrot.slane %v1572, 5
      %v1575 = vor.u32 %v1571, %v1574
      %v1576 = vsel %vm1406, %v1567, %v1575
      %v1578 = vshrl.u32 %v1404, 16
      %v1580 = vrot.slane %v1578, 4
      %v1581 = vshll.u32 %v1404, 16
      %v1583 = vrot.slane %v1581, 5
      %v1584 = vor.u32 %v1580, %v1583
      %v1586 = vshrl.u32 %v1405, 16
      %v1588 = vrot.slane %v1586, 4
      %v1589 = vshll.u32 %v1405, 16
      %v1591 = vrot.slane %v1589, 5
      %v1592 = vor.u32 %v1588, %v1591
      %v1593 = vsel %vm1406, %v1584, %v1592
      %v1638 = vunpack.c.l.b16 %v1252
      %v1639 = vunpack.c.l.b16 %v1253
      %v1640 = vunpack.c.l.b16 %v1254
      %v1641 = vunpack.c.l.b16 %v1255
      %v1642 = vunpack.c.l.b16 %v1256
      %v1643 = vunpack.c.l.b16 %v1257
      %v1644 = vunpack.c.l.b16 %v1258
      %v1645 = vunpack.c.l.b16 %v1259
      %v1646 = vunpack.c.l.b16 %v1260
      %v1647 = vunpack.c.l.b16 %v1261
      %v1648 = vunpack.c.l.b16 %v1262
      %v1649 = vunpack.c.l.b16 %v1263
      %v1650 = vunpack.c.l.b16 %v1264
      %v1651 = vunpack.c.l.b16 %v1265
      %v1652 = vunpack.c.l.b16 %v1266
      %v1653 = vunpack.c.l.b16 %v1267
      %v1654 = vunpack.c.l.b16 %v1268
      %v1655 = vunpack.c.l.b16 %v1269
      %v1656 = vunpack.c.l.b16 %v1270
      %v1657 = vunpack.c.l.b16 %v1271
      %v1658 = vunpack.c.l.b16 %v1272
      %v1659 = vunpack.c.l.b16 %v1273
      %v1660 = vunpack.c.l.b16 %v1274
      %v1661 = vunpack.c.l.b16 %v1275
      %v1662 = vunpack.c.l.b16 %v1276
      %v1663 = vunpack.c.l.b16 %v1277
      %v1664 = vunpack.c.l.b16 %v1278
      %v1665 = vunpack.c.l.b16 %v1279
      %v1666 = vunpack.c.l.b16 %v1280
      %v1667 = vunpack.c.l.b16 %v1281
      %v1668 = vunpack.c.l.b16 %v1282
      %v1669 = vunpack.c.l.b16 %v1283
      %v1670 = vunpack.c.l.b16 %v1284
      %v1671 = vunpack.c.l.b16 %v1285
      %v1672 = vunpack.c.l.b16 %v1286
      %v1673 = vunpack.c.l.b16 %v1287
      %v1674 = vunpack.c.l.b16 %v1288
      %v1675 = vunpack.c.l.b16 %v1289
      %v1676 = vunpack.c.l.b16 %v1290
      %v1677 = vunpack.c.l.b16 %v1291
      %v1678 = vunpack.c.l.b16 %v1292
      %v1679 = vunpack.c.l.b16 %v1293
      %v1680 = vunpack.c.l.b16 %v1294
      %v1681 = vunpack.c.l.b16 %v1295
      %v1682 = vpack.c.b16 %v1639, %v1638
      %v1683 = vpack.c.b16 %v1641, %v1640
      %v1684 = vpack.c.b16 %v1643, %v1642
      %v1685 = vpack.c.b16 %v1645, %v1644
      %v1686 = vpack.c.b16 %v1647, %v1646
      %v1687 = vpack.c.b16 %v1649, %v1648
      %v1688 = vpack.c.b16 %v1651, %v1650
      %v1689 = vpack.c.b16 %v1653, %v1652
      %v1690 = vpack.c.b16 %v1655, %v1654
      %v1691 = vpack.c.b16 %v1657, %v1656
      %v1692 = vpack.c.b16 %v1659, %v1658
      %v1693 = vpack.c.b16 %v1661, %v1660
      %v1694 = vpack.c.b16 %v1663, %v1662
      %v1695 = vpack.c.b16 %v1665, %v1664
      %v1696 = vpack.c.b16 %v1667, %v1666
      %v1697 = vpack.c.b16 %v1669, %v1668
      %v1698 = vpack.c.b16 %v1671, %v1670
      %v1699 = vpack.c.b16 %v1673, %v1672
      %v1700 = vpack.c.b16 %v1675, %v1674
      %v1701 = vpack.c.b16 %v1677, %v1676
      %v1702 = vpack.c.b16 %v1679, %v1678
      %v1703 = vpack.c.b16 %v1681, %v1680
      %vm1704 = vcmask 1042432
      %v1705 = vrot.slane %v1682, 5
      %v1706 = vrot.slane %v1683, 5
      %v1707 = vsel %vm1704, %v1705, %v1706
      %v1708 = vrot.slane %v1684, 5
      %v1709 = vrot.slane %v1685, 5
      %v1710 = vsel %vm1704, %v1708, %v1709
      %v1711 = vrot.slane %v1686, 5
      %v1712 = vrot.slane %v1687, 5
      %v1713 = vsel %vm1704, %v1711, %v1712
      %v1714 = vrot.slane %v1688, 5
      %v1715 = vrot.slane %v1689, 5
      %v1716 = vsel %vm1704, %v1714, %v1715
      %v1717 = vrot.slane %v1690, 5
      %v1718 = vrot.slane %v1691, 5
      %v1719 = vsel %vm1704, %v1717, %v1718
      %v1720 = vrot.slane %v1692, 5
      %v1721 = vrot.slane %v1693, 5
      %v1722 = vsel %vm1704, %v1720, %v1721
      %v1723 = vrot.slane %v1694, 5
      %v1724 = vrot.slane %v1695, 5
      %v1725 = vsel %vm1704, %v1723, %v1724
      %v1726 = vrot.slane %v1696, 5
      %v1727 = vrot.slane %v1697, 5
      %v1728 = vsel %vm1704, %v1726, %v1727
      %v1729 = vrot.slane %v1698, 5
      %v1730 = vrot.slane %v1699, 5
      %v1731 = vsel %vm1704, %v1729, %v1730
      %v1732 = vrot.slane %v1700, 5
      %v1733 = vrot.slane %v1701, 5
      %v1734 = vsel %vm1704, %v1732, %v1733
      %v1735 = vrot.slane %v1702, 5
      %v1736 = vrot.slane %v1703, 5
      %v1737 = vsel %vm1704, %v1735, %v1736
      %v1738 = vunpack.c.l.b16 %v1414
      %v1739 = vunpack.c.l.b16 %v1705
      %v1740 = vunpack.c.h.b16 %v1414
      %v1741 = vunpack.c.h.b16 %v1705
      %v1742 = vunpack.c.l.b16 %v1423
      %v1743 = vunpack.c.l.b16 %v1707
      %v1744 = vunpack.c.h.b16 %v1423
      %v1745 = vunpack.c.h.b16 %v1707
      %v1746 = vunpack.c.l.b16 %v1431
      %v1747 = vunpack.c.l.b16 %v1708
      %v1748 = vunpack.c.h.b16 %v1431
      %v1749 = vunpack.c.h.b16 %v1708
      %v1750 = vunpack.c.l.b16 %v1440
      %v1751 = vunpack.c.l.b16 %v1710
      %v1752 = vunpack.c.h.b16 %v1440
      %v1753 = vunpack.c.h.b16 %v1710
      %v1754 = vunpack.c.l.b16 %v1448
      %v1755 = vunpack.c.l.b16 %v1711
      %v1756 = vunpack.c.h.b16 %v1448
      %v1757 = vunpack.c.h.b16 %v1711
      %v1758 = vunpack.c.l.b16 %v1457
      %v1759 = vunpack.c.l.b16 %v1713
      %v1760 = vunpack.c.h.b16 %v1457
      %v1761 = vunpack.c.h.b16 %v1713
      %v1762 = vunpack.c.l.b16 %v1465
      %v1763 = vunpack.c.l.b16 %v1714
      %v1764 = vunpack.c.h.b16 %v1465
      %v1765 = vunpack.c.h.b16 %v1714
      %v1766 = vunpack.c.l.b16 %v1474
      %v1767 = vunpack.c.l.b16 %v1716
      %v1768 = vunpack.c.h.b16 %v1474
      %v1769 = vunpack.c.h.b16 %v1716
      %v1770 = vunpack.c.l.b16 %v1482
      %v1771 = vunpack.c.l.b16 %v1717
      %v1772 = vunpack.c.h.b16 %v1482
      %v1773 = vunpack.c.h.b16 %v1717
      %v1774 = vunpack.c.l.b16 %v1491
      %v1775 = vunpack.c.l.b16 %v1719
      %v1776 = vunpack.c.h.b16 %v1491
      %v1777 = vunpack.c.h.b16 %v1719
      %v1778 = vunpack.c.l.b16 %v1499
      %v1779 = vunpack.c.l.b16 %v1720
      %v1780 = vunpack.c.h.b16 %v1499
      %v1781 = vunpack.c.h.b16 %v1720
      %v1782 = vunpack.c.l.b16 %v1508
      %v1783 = vunpack.c.l.b16 %v1722
      %v1784 = vunpack.c.h.b16 %v1508
      %v1785 = vunpack.c.h.b16 %v1722
      %v1786 = vunpack.c.l.b16 %v1516
      %v1787 = vunpack.c.l.b16 %v1723
      %v1788 = vunpack.c.h.b16 %v1516
      %v1789 = vunpack.c.h.b16 %v1723
      %v1790 = vunpack.c.l.b16 %v1525
      %v1791 = vunpack.c.l.b16 %v1725
      %v1792 = vunpack.c.h.b16 %v1525
      %v1793 = vunpack.c.h.b16 %v1725
      %v1794 = vunpack.c.l.b16 %v1533
      %v1795 = vunpack.c.l.b16 %v1726
      %v1796 = vunpack.c.h.b16 %v1533
      %v1797 = vunpack.c.h.b16 %v1726
      %v1798 = vunpack.c.l.b16 %v1542
      %v1799 = vunpack.c.l.b16 %v1728
      %v1800 = vunpack.c.h.b16 %v1542
      %v1801 = vunpack.c.h.b16 %v1728
      %v1802 = vunpack.c.l.b16 %v1550
      %v1803 = vunpack.c.l.b16 %v1729
      %v1804 = vunpack.c.h.b16 %v1550
      %v1805 = vunpack.c.h.b16 %v1729
      %v1806 = vunpack.c.l.b16 %v1559
      %v1807 = vunpack.c.l.b16 %v1731
      %v1808 = vunpack.c.h.b16 %v1559
      %v1809 = vunpack.c.h.b16 %v1731
      %v1810 = vunpack.c.l.b16 %v1567
      %v1811 = vunpack.c.l.b16 %v1732
      %v1812 = vunpack.c.h.b16 %v1567
      %v1813 = vunpack.c.h.b16 %v1732
      %v1814 = vunpack.c.l.b16 %v1576
      %v1815 = vunpack.c.l.b16 %v1734
      %v1816 = vunpack.c.h.b16 %v1576
      %v1817 = vunpack.c.h.b16 %v1734
      %v1818 = vunpack.c.l.b16 %v1584
      %v1819 = vunpack.c.l.b16 %v1735
      %v1820 = vunpack.c.h.b16 %v1584
      %v1821 = vunpack.c.h.b16 %v1735
      %v1822 = vunpack.c.l.b16 %v1593
      %v1823 = vunpack.c.l.b16 %v1737
      %v1824 = vunpack.c.h.b16 %v1593
      %v1825 = vunpack.c.h.b16 %v1737
      %v1826 = vpack.c.b16 %v1738, %v1340
      %v1827 = vpack.c.b16 %v1739, %v1739
      %v1828 = vpack.c.b16 %v1740, %v1341
      %v1829 = vpack.c.b16 %v1741, %v1741
      %v1830 = vpack.c.b16 %v1742, %v1342
      %v1831 = vpack.c.b16 %v1743, %v1743
      %v1832 = vpack.c.b16 %v1744, %v1343
      %v1833 = vpack.c.b16 %v1745, %v1745
      %v1834 = vpack.c.b16 %v1746, %v1344
      %v1835 = vpack.c.b16 %v1747, %v1747
      %v1836 = vpack.c.b16 %v1748, %v1345
      %v1837 = vpack.c.b16 %v1749, %v1749
      %v1838 = vpack.c.b16 %v1750, %v1346
      %v1839 = vpack.c.b16 %v1751, %v1751
      %v1840 = vpack.c.b16 %v1752, %v1347
      %v1841 = vpack.c.b16 %v1753, %v1753
      %v1842 = vpack.c.b16 %v1754, %v1348
      %v1843 = vpack.c.b16 %v1755, %v1755
      %v1844 = vpack.c.b16 %v1756, %v1349
      %v1845 = vpack.c.b16 %v1757, %v1757
      %v1846 = vpack.c.b16 %v1758, %v1350
      %v1847 = vpack.c.b16 %v1759, %v1759
      %v1848 = vpack.c.b16 %v1760, %v1351
      %v1849 = vpack.c.b16 %v1761, %v1761
      %v1850 = vpack.c.b16 %v1762, %v1352
      %v1851 = vpack.c.b16 %v1763, %v1763
      %v1852 = vpack.c.b16 %v1764, %v1353
      %v1853 = vpack.c.b16 %v1765, %v1765
      %v1854 = vpack.c.b16 %v1766, %v1354
      %v1855 = vpack.c.b16 %v1767, %v1767
      %v1856 = vpack.c.b16 %v1768, %v1355
      %v1857 = vpack.c.b16 %v1769, %v1769
      %v1858 = vpack.c.b16 %v1770, %v1356
      %v1859 = vpack.c.b16 %v1771, %v1771
      %v1860 = vpack.c.b16 %v1772, %v1357
      %v1861 = vpack.c.b16 %v1773, %v1773
      %v1862 = vpack.c.b16 %v1774, %v1358
      %v1863 = vpack.c.b16 %v1775, %v1775
      %v1864 = vpack.c.b16 %v1776, %v1359
      %v1865 = vpack.c.b16 %v1777, %v1777
      %v1866 = vpack.c.b16 %v1778, %v1360
      %v1867 = vpack.c.b16 %v1779, %v1779
      %v1868 = vpack.c.b16 %v1780, %v1361
      %v1869 = vpack.c.b16 %v1781, %v1781
      %v1870 = vpack.c.b16 %v1782, %v1362
      %v1871 = vpack.c.b16 %v1783, %v1783
      %v1872 = vpack.c.b16 %v1784, %v1363
      %v1873 = vpack.c.b16 %v1785, %v1785
      %v1874 = vpack.c.b16 %v1786, %v1364
      %v1875 = vpack.c.b16 %v1787, %v1787
      %v1876 = vpack.c.b16 %v1788, %v1365
      %v1877 = vpack.c.b16 %v1789, %v1789
      %v1878 = vpack.c.b16 %v1790, %v1366
      %v1879 = vpack.c.b16 %v1791, %v1791
      %v1880 = vpack.c.b16 %v1792, %v1367
      %v1881 = vpack.c.b16 %v1793, %v1793
      %v1882 = vpack.c.b16 %v1794, %v1368
      %v1883 = vpack.c.b16 %v1795, %v1795
      %v1884 = vpack.c.b16 %v1796, %v1369
      %v1885 = vpack.c.b16 %v1797, %v1797
      %v1886 = vpack.c.b16 %v1798, %v1370
      %v1887 = vpack.c.b16 %v1799, %v1799
      %v1888 = vpack.c.b16 %v1800, %v1371
      %v1889 = vpack.c.b16 %v1801, %v1801
      %v1890 = vpack.c.b16 %v1802, %v1372
      %v1891 = vpack.c.b16 %v1803, %v1803
      %v1892 = vpack.c.b16 %v1804, %v1373
      %v1893 = vpack.c.b16 %v1805, %v1805
      %v1894 = vpack.c.b16 %v1806, %v1374
      %v1895 = vpack.c.b16 %v1807, %v1807
      %v1896 = vpack.c.b16 %v1808, %v1375
      %v1897 = vpack.c.b16 %v1809, %v1809
      %v1898 = vpack.c.b16 %v1810, %v1376
      %v1899 = vpack.c.b16 %v1811, %v1811
      %v1900 = vpack.c.b16 %v1812, %v1377
      %v1901 = vpack.c.b16 %v1813, %v1813
      %v1902 = vpack.c.b16 %v1814, %v1378
      %v1903 = vpack.c.b16 %v1815, %v1815
      %v1904 = vpack.c.b16 %v1816, %v1379
      %v1905 = vpack.c.b16 %v1817, %v1817
      %v1906 = vpack.c.b16 %v1818, %v1380
      %v1907 = vpack.c.b16 %v1819, %v1819
      %v1908 = vpack.c.b16 %v1820, %v1381
      %v1909 = vpack.c.b16 %v1821, %v1821
      %v1910 = vpack.c.b16 %v1822, %v1382
      %v1911 = vpack.c.b16 %v1823, %v1823
      %v1912 = vpack.c.b16 %v1824, %v1383
      %v1913 = vpack.c.b16 %v1825, %v1825
      %vm1914 = vsmask.f32 256
      %vm1915 = vsmask.f32 4368
      %vm1916 = vmor %vm1914, %vm1915
      %v1918 = vshrl.u32 %v1826, 16
      %v1920 = vrot.slane %v1918, 7
      %v1921 = vrot.slane %v1920, 4
      %v1923 = vshrl.u32 %v1828, 16
      %v1925 = vrot.slane %v1923, 7
      %v1926 = vshll.u32 %v1828, 16
      %v1928 = vor.u32 %v1925, %v1926
      %v1929 = vsel %vm1916, %v1921, %v1928
      %v1931 = vshrl.u32 %v1827, 16
      %v1933 = vrot.slane %v1931, 7
      %v1934 = vrot.slane %v1933, 4
      %v1936 = vshrl.u32 %v1829, 16
      %v1938 = vrot.slane %v1936, 7
      %v1939 = vshll.u32 %v1829, 16
      %v1941 = vor.u32 %v1938, %v1939
      %v1942 = vsel %vm1916, %v1934, %v1941
      %v1943 = vrot.slane %v1925, 4
      %v1945 = vshrl.u32 %v1830, 16
      %v1947 = vrot.slane %v1945, 7
      %v1948 = vshll.u32 %v1830, 16
      %v1950 = vor.u32 %v1947, %v1948
      %v1951 = vsel %vm1916, %v1943, %v1950
      %v1952 = vrot.slane %v1938, 4
      %v1954 = vshrl.u32 %v1831, 16
      %v1956 = vrot.slane %v1954, 7
      %v1957 = vshll.u32 %v1831, 16
      %v1959 = vor.u32 %v1956, %v1957
      %v1960 = vsel %vm1916, %v1952, %v1959
      %v1961 = vrot.slane %v1947, 4
      %v1963 = vshrl.u32 %v1832, 16
      %v1965 = vrot.slane %v1963, 7
      %v1966 = vshll.u32 %v1832, 16
      %v1968 = vor.u32 %v1965, %v1966
      %v1969 = vsel %vm1916, %v1961, %v1968
      %v1970 = vrot.slane %v1956, 4
      %v1972 = vshrl.u32 %v1833, 16
      %v1974 = vrot.slane %v1972, 7
      %v1975 = vshll.u32 %v1833, 16
      %v1977 = vor.u32 %v1974, %v1975
      %v1978 = vsel %vm1916, %v1970, %v1977
      %v1980 = vshrl.u32 %v1834, 16
      %v1982 = vrot.slane %v1980, 7
      %v1983 = vrot.slane %v1982, 4
      %v1985 = vshrl.u32 %v1836, 16
      %v1987 = vrot.slane %v1985, 7
      %v1988 = vshll.u32 %v1836, 16
      %v1990 = vor.u32 %v1987, %v1988
      %v1991 = vsel %vm1916, %v1983, %v1990
      %v1993 = vshrl.u32 %v1835, 16
      %v1995 = vrot.slane %v1993, 7
      %v1996 = vrot.slane %v1995, 4
      %v1998 = vshrl.u32 %v1837, 16
      %v2000 = vrot.slane %v1998, 7
      %v2001 = vshll.u32 %v1837, 16
      %v2003 = vor.u32 %v2000, %v2001
      %v2004 = vsel %vm1916, %v1996, %v2003
      %v2005 = vrot.slane %v1987, 4
      %v2007 = vshrl.u32 %v1838, 16
      %v2009 = vrot.slane %v2007, 7
      %v2010 = vshll.u32 %v1838, 16
      %v2012 = vor.u32 %v2009, %v2010
      %v2013 = vsel %vm1916, %v2005, %v2012
      %v2014 = vrot.slane %v2000, 4
      %v2016 = vshrl.u32 %v1839, 16
      %v2018 = vrot.slane %v2016, 7
      %v2019 = vshll.u32 %v1839, 16
      %v2021 = vor.u32 %v2018, %v2019
      %v2022 = vsel %vm1916, %v2014, %v2021
      %v2023 = vrot.slane %v2009, 4
      %v2025 = vshrl.u32 %v1840, 16
      %v2027 = vrot.slane %v2025, 7
      %v2028 = vshll.u32 %v1840, 16
      %v2030 = vor.u32 %v2027, %v2028
      %v2031 = vsel %vm1916, %v2023, %v2030
      %v2032 = vrot.slane %v2018, 4
      %v2034 = vshrl.u32 %v1841, 16
      %v2036 = vrot.slane %v2034, 7
      %v2037 = vshll.u32 %v1841, 16
      %v2039 = vor.u32 %v2036, %v2037
      %v2040 = vsel %vm1916, %v2032, %v2039
      %v2042 = vshrl.u32 %v1842, 16
      %v2044 = vrot.slane %v2042, 7
      %v2045 = vrot.slane %v2044, 4
      %v2047 = vshrl.u32 %v1844, 16
      %v2049 = vrot.slane %v2047, 7
      %v2050 = vshll.u32 %v1844, 16
      %v2052 = vor.u32 %v2049, %v2050
      %v2053 = vsel %vm1916, %v2045, %v2052
      %v2055 = vshrl.u32 %v1843, 16
      %v2057 = vrot.slane %v2055, 7
      %v2058 = vrot.slane %v2057, 4
      %v2060 = vshrl.u32 %v1845, 16
      %v2062 = vrot.slane %v2060, 7
      %v2063 = vshll.u32 %v1845, 16
      %v2065 = vor.u32 %v2062, %v2063
      %v2066 = vsel %vm1916, %v2058, %v2065
      %v2067 = vrot.slane %v2049, 4
      %v2069 = vshrl.u32 %v1846, 16
      %v2071 = vrot.slane %v2069, 7
      %v2072 = vshll.u32 %v1846, 16
      %v2074 = vor.u32 %v2071, %v2072
      %v2075 = vsel %vm1916, %v2067, %v2074
      %v2076 = vrot.slane %v2062, 4
      %v2078 = vshrl.u32 %v1847, 16
      %v2080 = vrot.slane %v2078, 7
      %v2081 = vshll.u32 %v1847, 16
      %v2083 = vor.u32 %v2080, %v2081
      %v2084 = vsel %vm1916, %v2076, %v2083
      %v2085 = vrot.slane %v2071, 4
      %v2087 = vshrl.u32 %v1848, 16
      %v2089 = vrot.slane %v2087, 7
      %v2090 = vshll.u32 %v1848, 16
      %v2092 = vor.u32 %v2089, %v2090
      %v2093 = vsel %vm1916, %v2085, %v2092
      %v2094 = vrot.slane %v2080, 4
      %v2096 = vshrl.u32 %v1849, 16
      %v2098 = vrot.slane %v2096, 7
      %v2099 = vshll.u32 %v1849, 16
      %v2101 = vor.u32 %v2098, %v2099
      %v2102 = vsel %vm1916, %v2094, %v2101
      %v2104 = vshrl.u32 %v1850, 16
      %v2106 = vrot.slane %v2104, 7
      %v2107 = vrot.slane %v2106, 4
      %v2109 = vshrl.u32 %v1852, 16
      %v2111 = vrot.slane %v2109, 7
      %v2112 = vshll.u32 %v1852, 16
      %v2114 = vor.u32 %v2111, %v2112
      %v2115 = vsel %vm1916, %v2107, %v2114
      %v2117 = vshrl.u32 %v1851, 16
      %v2119 = vrot.slane %v2117, 7
      %v2120 = vrot.slane %v2119, 4
      %v2122 = vshrl.u32 %v1853, 16
      %v2124 = vrot.slane %v2122, 7
      %v2125 = vshll.u32 %v1853, 16
      %v2127 = vor.u32 %v2124, %v2125
      %v2128 = vsel %vm1916, %v2120, %v2127
      %v2129 = vrot.slane %v2111, 4
      %v2131 = vshrl.u32 %v1854, 16
      %v2133 = vrot.slane %v2131, 7
      %v2134 = vshll.u32 %v1854, 16
      %v2136 = vor.u32 %v2133, %v2134
      %v2137 = vsel %vm1916, %v2129, %v2136
      %v2138 = vrot.slane %v2124, 4
      %v2140 = vshrl.u32 %v1855, 16
      %v2142 = vrot.slane %v2140, 7
      %v2143 = vshll.u32 %v1855, 16
      %v2145 = vor.u32 %v2142, %v2143
      %v2146 = vsel %vm1916, %v2138, %v2145
      %v2147 = vrot.slane %v2133, 4
      %v2149 = vshrl.u32 %v1856, 16
      %v2151 = vrot.slane %v2149, 7
      %v2152 = vshll.u32 %v1856, 16
      %v2154 = vor.u32 %v2151, %v2152
      %v2155 = vsel %vm1916, %v2147, %v2154
      %v2156 = vrot.slane %v2142, 4
      %v2158 = vshrl.u32 %v1857, 16
      %v2160 = vrot.slane %v2158, 7
      %v2161 = vshll.u32 %v1857, 16
      %v2163 = vor.u32 %v2160, %v2161
      %v2164 = vsel %vm1916, %v2156, %v2163
      %v2166 = vshrl.u32 %v1858, 16
      %v2168 = vrot.slane %v2166, 7
      %v2169 = vrot.slane %v2168, 4
      %v2171 = vshrl.u32 %v1860, 16
      %v2173 = vrot.slane %v2171, 7
      %v2174 = vshll.u32 %v1860, 16
      %v2176 = vor.u32 %v2173, %v2174
      %v2177 = vsel %vm1916, %v2169, %v2176
      %v2179 = vshrl.u32 %v1859, 16
      %v2181 = vrot.slane %v2179, 7
      %v2182 = vrot.slane %v2181, 4
      %v2184 = vshrl.u32 %v1861, 16
      %v2186 = vrot.slane %v2184, 7
      %v2187 = vshll.u32 %v1861, 16
      %v2189 = vor.u32 %v2186, %v2187
      %v2190 = vsel %vm1916, %v2182, %v2189
      %v2191 = vrot.slane %v2173, 4
      %v2193 = vshrl.u32 %v1862, 16
      %v2195 = vrot.slane %v2193, 7
      %v2196 = vshll.u32 %v1862, 16
      %v2198 = vor.u32 %v2195, %v2196
      %v2199 = vsel %vm1916, %v2191, %v2198
      %v2200 = vrot.slane %v2186, 4
      %v2202 = vshrl.u32 %v1863, 16
      %v2204 = vrot.slane %v2202, 7
      %v2205 = vshll.u32 %v1863, 16
      %v2207 = vor.u32 %v2204, %v2205
      %v2208 = vsel %vm1916, %v2200, %v2207
      %v2209 = vrot.slane %v2195, 4
      %v2211 = vshrl.u32 %v1864, 16
      %v2213 = vrot.slane %v2211, 7
      %v2214 = vshll.u32 %v1864, 16
      %v2216 = vor.u32 %v2213, %v2214
      %v2217 = vsel %vm1916, %v2209, %v2216
      %v2218 = vrot.slane %v2204, 4
      %v2220 = vshrl.u32 %v1865, 16
      %v2222 = vrot.slane %v2220, 7
      %v2223 = vshll.u32 %v1865, 16
      %v2225 = vor.u32 %v2222, %v2223
      %v2226 = vsel %vm1916, %v2218, %v2225
      %v2228 = vshrl.u32 %v1866, 16
      %v2230 = vrot.slane %v2228, 7
      %v2231 = vrot.slane %v2230, 4
      %v2233 = vshrl.u32 %v1868, 16
      %v2235 = vrot.slane %v2233, 7
      %v2236 = vshll.u32 %v1868, 16
      %v2238 = vor.u32 %v2235, %v2236
      %v2239 = vsel %vm1916, %v2231, %v2238
      %v2241 = vshrl.u32 %v1867, 16
      %v2243 = vrot.slane %v2241, 7
      %v2244 = vrot.slane %v2243, 4
      %v2246 = vshrl.u32 %v1869, 16
      %v2248 = vrot.slane %v2246, 7
      %v2249 = vshll.u32 %v1869, 16
      %v2251 = vor.u32 %v2248, %v2249
      %v2252 = vsel %vm1916, %v2244, %v2251
      %v2253 = vrot.slane %v2235, 4
      %v2255 = vshrl.u32 %v1870, 16
      %v2257 = vrot.slane %v2255, 7
      %v2258 = vshll.u32 %v1870, 16
      %v2260 = vor.u32 %v2257, %v2258
      %v2261 = vsel %vm1916, %v2253, %v2260
      %v2262 = vrot.slane %v2248, 4
      %v2264 = vshrl.u32 %v1871, 16
      %v2266 = vrot.slane %v2264, 7
      %v2267 = vshll.u32 %v1871, 16
      %v2269 = vor.u32 %v2266, %v2267
      %v2270 = vsel %vm1916, %v2262, %v2269
      %v2271 = vrot.slane %v2257, 4
      %v2273 = vshrl.u32 %v1872, 16
      %v2275 = vrot.slane %v2273, 7
      %v2276 = vshll.u32 %v1872, 16
      %v2278 = vor.u32 %v2275, %v2276
      %v2279 = vsel %vm1916, %v2271, %v2278
      %v2280 = vrot.slane %v2266, 4
      %v2282 = vshrl.u32 %v1873, 16
      %v2284 = vrot.slane %v2282, 7
      %v2285 = vshll.u32 %v1873, 16
      %v2287 = vor.u32 %v2284, %v2285
      %v2288 = vsel %vm1916, %v2280, %v2287
      %v2290 = vshrl.u32 %v1874, 16
      %v2292 = vrot.slane %v2290, 7
      %v2293 = vrot.slane %v2292, 4
      %v2295 = vshrl.u32 %v1876, 16
      %v2297 = vrot.slane %v2295, 7
      %v2298 = vshll.u32 %v1876, 16
      %v2300 = vor.u32 %v2297, %v2298
      %v2301 = vsel %vm1916, %v2293, %v2300
      %v2303 = vshrl.u32 %v1875, 16
      %v2305 = vrot.slane %v2303, 7
      %v2306 = vrot.slane %v2305, 4
      %v2308 = vshrl.u32 %v1877, 16
      %v2310 = vrot.slane %v2308, 7
      %v2311 = vshll.u32 %v1877, 16
      %v2313 = vor.u32 %v2310, %v2311
      %v2314 = vsel %vm1916, %v2306, %v2313
      %v2315 = vrot.slane %v2297, 4
      %v2317 = vshrl.u32 %v1878, 16
      %v2319 = vrot.slane %v2317, 7
      %v2320 = vshll.u32 %v1878, 16
      %v2322 = vor.u32 %v2319, %v2320
      %v2323 = vsel %vm1916, %v2315, %v2322
      %v2324 = vrot.slane %v2310, 4
      %v2326 = vshrl.u32 %v1879, 16
      %v2328 = vrot.slane %v2326, 7
      %v2329 = vshll.u32 %v1879, 16
      %v2331 = vor.u32 %v2328, %v2329
      %v2332 = vsel %vm1916, %v2324, %v2331
      %v2333 = vrot.slane %v2319, 4
      %v2335 = vshrl.u32 %v1880, 16
      %v2337 = vrot.slane %v2335, 7
      %v2338 = vshll.u32 %v1880, 16
      %v2340 = vor.u32 %v2337, %v2338
      %v2341 = vsel %vm1916, %v2333, %v2340
      %v2342 = vrot.slane %v2328, 4
      %v2344 = vshrl.u32 %v1881, 16
      %v2346 = vrot.slane %v2344, 7
      %v2347 = vshll.u32 %v1881, 16
      %v2349 = vor.u32 %v2346, %v2347
      %v2350 = vsel %vm1916, %v2342, %v2349
      %v2352 = vshrl.u32 %v1882, 16
      %v2354 = vrot.slane %v2352, 7
      %v2355 = vrot.slane %v2354, 4
      %v2357 = vshrl.u32 %v1884, 16
      %v2359 = vrot.slane %v2357, 7
      %v2360 = vshll.u32 %v1884, 16
      %v2362 = vor.u32 %v2359, %v2360
      %v2363 = vsel %vm1916, %v2355, %v2362
      %v2365 = vshrl.u32 %v1883, 16
      %v2367 = vrot.slane %v2365, 7
      %v2368 = vrot.slane %v2367, 4
      %v2370 = vshrl.u32 %v1885, 16
      %v2372 = vrot.slane %v2370, 7
      %v2373 = vshll.u32 %v1885, 16
      %v2375 = vor.u32 %v2372, %v2373
      %v2376 = vsel %vm1916, %v2368, %v2375
      %v2377 = vrot.slane %v2359, 4
      %v2379 = vshrl.u32 %v1886, 16
      %v2381 = vrot.slane %v2379, 7
      %v2382 = vshll.u32 %v1886, 16
      %v2384 = vor.u32 %v2381, %v2382
      %v2385 = vsel %vm1916, %v2377, %v2384
      %v2386 = vrot.slane %v2372, 4
      %v2388 = vshrl.u32 %v1887, 16
      %v2390 = vrot.slane %v2388, 7
      %v2391 = vshll.u32 %v1887, 16
      %v2393 = vor.u32 %v2390, %v2391
      %v2394 = vsel %vm1916, %v2386, %v2393
      %v2395 = vrot.slane %v2381, 4
      %v2397 = vshrl.u32 %v1888, 16
      %v2399 = vrot.slane %v2397, 7
      %v2400 = vshll.u32 %v1888, 16
      %v2402 = vor.u32 %v2399, %v2400
      %v2403 = vsel %vm1916, %v2395, %v2402
      %v2404 = vrot.slane %v2390, 4
      %v2406 = vshrl.u32 %v1889, 16
      %v2408 = vrot.slane %v2406, 7
      %v2409 = vshll.u32 %v1889, 16
      %v2411 = vor.u32 %v2408, %v2409
      %v2412 = vsel %vm1916, %v2404, %v2411
      %v2414 = vshrl.u32 %v1890, 16
      %v2416 = vrot.slane %v2414, 7
      %v2417 = vrot.slane %v2416, 4
      %v2419 = vshrl.u32 %v1892, 16
      %v2421 = vrot.slane %v2419, 7
      %v2422 = vshll.u32 %v1892, 16
      %v2424 = vor.u32 %v2421, %v2422
      %v2425 = vsel %vm1916, %v2417, %v2424
      %v2427 = vshrl.u32 %v1891, 16
      %v2429 = vrot.slane %v2427, 7
      %v2430 = vrot.slane %v2429, 4
      %v2432 = vshrl.u32 %v1893, 16
      %v2434 = vrot.slane %v2432, 7
      %v2435 = vshll.u32 %v1893, 16
      %v2437 = vor.u32 %v2434, %v2435
      %v2438 = vsel %vm1916, %v2430, %v2437
      %v2439 = vrot.slane %v2421, 4
      %v2441 = vshrl.u32 %v1894, 16
      %v2443 = vrot.slane %v2441, 7
      %v2444 = vshll.u32 %v1894, 16
      %v2446 = vor.u32 %v2443, %v2444
      %v2447 = vsel %vm1916, %v2439, %v2446
      %v2448 = vrot.slane %v2434, 4
      %v2450 = vshrl.u32 %v1895, 16
      %v2452 = vrot.slane %v2450, 7
      %v2453 = vshll.u32 %v1895, 16
      %v2455 = vor.u32 %v2452, %v2453
      %v2456 = vsel %vm1916, %v2448, %v2455
      %v2457 = vrot.slane %v2443, 4
      %v2459 = vshrl.u32 %v1896, 16
      %v2461 = vrot.slane %v2459, 7
      %v2462 = vshll.u32 %v1896, 16
      %v2464 = vor.u32 %v2461, %v2462
      %v2465 = vsel %vm1916, %v2457, %v2464
      %v2466 = vrot.slane %v2452, 4
      %v2468 = vshrl.u32 %v1897, 16
      %v2470 = vrot.slane %v2468, 7
      %v2471 = vshll.u32 %v1897, 16
      %v2473 = vor.u32 %v2470, %v2471
      %v2474 = vsel %vm1916, %v2466, %v2473
      %v2476 = vshrl.u32 %v1898, 16
      %v2478 = vrot.slane %v2476, 7
      %v2479 = vrot.slane %v2478, 4
      %v2481 = vshrl.u32 %v1900, 16
      %v2483 = vrot.slane %v2481, 7
      %v2484 = vshll.u32 %v1900, 16
      %v2486 = vor.u32 %v2483, %v2484
      %v2487 = vsel %vm1916, %v2479, %v2486
      %v2489 = vshrl.u32 %v1899, 16
      %v2491 = vrot.slane %v2489, 7
      %v2492 = vrot.slane %v2491, 4
      %v2494 = vshrl.u32 %v1901, 16
      %v2496 = vrot.slane %v2494, 7
      %v2497 = vshll.u32 %v1901, 16
      %v2499 = vor.u32 %v2496, %v2497
      %v2500 = vsel %vm1916, %v2492, %v2499
      %v2501 = vrot.slane %v2483, 4
      %v2503 = vshrl.u32 %v1902, 16
      %v2505 = vrot.slane %v2503, 7
      %v2506 = vshll.u32 %v1902, 16
      %v2508 = vor.u32 %v2505, %v2506
      %v2509 = vsel %vm1916, %v2501, %v2508
      %v2510 = vrot.slane %v2496, 4
      %v2512 = vshrl.u32 %v1903, 16
      %v2514 = vrot.slane %v2512, 7
      %v2515 = vshll.u32 %v1903, 16
      %v2517 = vor.u32 %v2514, %v2515
      %v2518 = vsel %vm1916, %v2510, %v2517
      %v2519 = vrot.slane %v2505, 4
      %v2521 = vshrl.u32 %v1904, 16
      %v2523 = vrot.slane %v2521, 7
      %v2524 = vshll.u32 %v1904, 16
      %v2526 = vor.u32 %v2523, %v2524
      %v2527 = vsel %vm1916, %v2519, %v2526
      %v2528 = vrot.slane %v2514, 4
      %v2530 = vshrl.u32 %v1905, 16
      %v2532 = vrot.slane %v2530, 7
      %v2533 = vshll.u32 %v1905, 16
      %v2535 = vor.u32 %v2532, %v2533
      %v2536 = vsel %vm1916, %v2528, %v2535
      %v2538 = vshrl.u32 %v1906, 16
      %v2540 = vrot.slane %v2538, 7
      %v2541 = vrot.slane %v2540, 4
      %v2543 = vshrl.u32 %v1908, 16
      %v2545 = vrot.slane %v2543, 7
      %v2546 = vshll.u32 %v1908, 16
      %v2548 = vor.u32 %v2545, %v2546
      %v2549 = vsel %vm1916, %v2541, %v2548
      %v2551 = vshrl.u32 %v1907, 16
      %v2553 = vrot.slane %v2551, 7
      %v2554 = vrot.slane %v2553, 4
      %v2556 = vshrl.u32 %v1909, 16
      %v2558 = vrot.slane %v2556, 7
      %v2559 = vshll.u32 %v1909, 16
      %v2561 = vor.u32 %v2558, %v2559
      %v2562 = vsel %vm1916, %v2554, %v2561
      %v2563 = vrot.slane %v2545, 4
      %v2565 = vshrl.u32 %v1910, 16
      %v2567 = vrot.slane %v2565, 7
      %v2568 = vshll.u32 %v1910, 16
      %v2570 = vor.u32 %v2567, %v2568
      %v2571 = vsel %vm1916, %v2563, %v2570
      %v2572 = vrot.slane %v2558, 4
      %v2574 = vshrl.u32 %v1911, 16
      %v2576 = vrot.slane %v2574, 7
      %v2577 = vshll.u32 %v1911, 16
      %v2579 = vor.u32 %v2576, %v2577
      %v2580 = vsel %vm1916, %v2572, %v2579
      %v2581 = vrot.slane %v2567, 4
      %v2583 = vshrl.u32 %v1912, 16
      %v2585 = vrot.slane %v2583, 7
      %v2586 = vshll.u32 %v1912, 16
      %v2588 = vor.u32 %v2585, %v2586
      %v2589 = vsel %vm1916, %v2581, %v2588
      %v2590 = vrot.slane %v2576, 4
      %v2592 = vshrl.u32 %v1913, 16
      %v2594 = vrot.slane %v2592, 7
      %v2595 = vshll.u32 %v1913, 16
      %v2597 = vor.u32 %v2594, %v2595
      %v2598 = vsel %vm1916, %v2590, %v2597
      %2665 = vst [vmem:[#allocation3] sm:$0xff] %v1929
      %2666 = vst [vmem:[#allocation3 + $0x8] sm:$0xf] %v1942
      %2667 = vst [vmem:[#allocation3 + $0xc] sm:$0xff] %v1951
      %2668 = vst [vmem:[#allocation3 + $0x14] sm:$0xf] %v1960
      %2669 = vst [vmem:[#allocation3 + $0x18] sm:$0xff] %v1969
      %2670 = vst [vmem:[#allocation3 + $0x20] sm:$0xf] %v1978
      %2671 = vst [vmem:[#allocation3 + $0x24] sm:$0xff] %v1991
      %2672 = vst [vmem:[#allocation3 + $0x2c] sm:$0xf] %v2004
      %2673 = vst [vmem:[#allocation3 + $0x30] sm:$0xff] %v2013
      %2674 = vst [vmem:[#allocation3 + $0x38] sm:$0xf] %v2022
      %2675 = vst [vmem:[#allocation3 + $0x3c] sm:$0xff] %v2031
      %2676 = vst [vmem:[#allocation3 + $0x44] sm:$0xf] %v2040
      %2677 = vst [vmem:[#allocation3 + $0x48] sm:$0xff] %v2053
      %2678 = vst [vmem:[#allocation3 + $0x50] sm:$0xf] %v2066
      %2679 = vst [vmem:[#allocation3 + $0x54] sm:$0xff] %v2075
      %2680 = vst [vmem:[#allocation3 + $0x5c] sm:$0xf] %v2084
      %2681 = vst [vmem:[#allocation3 + $0x60] sm:$0xff] %v2093
      %2682 = vst [vmem:[#allocation3 + $0x68] sm:$0xf] %v2102
      %2683 = vst [vmem:[#allocation3 + $0x6c] sm:$0xff] %v2115
      %2684 = vst [vmem:[#allocation3 + $0x74] sm:$0xf] %v2128
      %2685 = vst [vmem:[#allocation3 + $0x78] sm:$0xff] %v2137
      %2686 = vst [vmem:[#allocation3 + $0x80] sm:$0xf] %v2146
      %2687 = vst [vmem:[#allocation3 + $0x84] sm:$0xff] %v2155
      %2688 = vst [vmem:[#allocation3 + $0x8c] sm:$0xf] %v2164
      %2689 = vst [vmem:[#allocation3 + $0x90] sm:$0xff] %v2177
      %2690 = vst [vmem:[#allocation3 + $0x98] sm:$0xf] %v2190
      %2691 = vst [vmem:[#allocation3 + $0x9c] sm:$0xff] %v2199
      %2692 = vst [vmem:[#allocation3 + $0xa4] sm:$0xf] %v2208
      %2693 = vst [vmem:[#allocation3 + $0xa8] sm:$0xff] %v2217
      %2694 = vst [vmem:[#allocation3 + $0xb0] sm:$0xf] %v2226
      %2695 = vst [vmem:[#allocation3 + $0xb4] sm:$0xff] %v2239
      %2696 = vst [vmem:[#allocation3 + $0xbc] sm:$0xf] %v2252
      %2697 = vst [vmem:[#allocation3 + $0xc0] sm:$0xff] %v2261
      %2698 = vst [vmem:[#allocation3 + $0xc8] sm:$0xf] %v2270
      %2699 = vst [vmem:[#allocation3 + $0xcc] sm:$0xff] %v2279
      %2700 = vst [vmem:[#allocation3 + $0xd4] sm:$0xf] %v2288
      %2701 = vst [vmem:[#allocation3 + $0xd8] sm:$0xff] %v2301
      %2702 = vst [vmem:[#allocation3 + $0xe0] sm:$0xf] %v2314
      %2703 = vst [vmem:[#allocation3 + $0xe4] sm:$0xff] %v2323
      %2704 = vst [vmem:[#allocation3 + $0xec] sm:$0xf] %v2332
      %2705 = vst [vmem:[#allocation3 + $0xf0] sm:$0xff] %v2341
      %2706 = vst [vmem:[#allocation3 + $0xf8] sm:$0xf] %v2350
      %2707 = vst [vmem:[#allocation3 + $0xfc] sm:$0xff] %v2363
      %2708 = vst [vmem:[#allocation3 + $0x104] sm:$0xf] %v2376
      %2709 = vst [vmem:[#allocation3 + $0x108] sm:$0xff] %v2385
      %2710 = vst [vmem:[#allocation3 + $0x110] sm:$0xf] %v2394
      %2711 = vst [vmem:[#allocation3 + $0x114] sm:$0xff] %v2403
      %2712 = vst [vmem:[#allocation3 + $0x11c] sm:$0xf] %v2412
      %2713 = vst [vmem:[#allocation3 + $0x120] sm:$0xff] %v2425
      %2714 = vst [vmem:[#allocation3 + $0x128] sm:$0xf] %v2438
      %2715 = vst [vmem:[#allocation3 + $0x12c] sm:$0xff] %v2447
      %2716 = vst [vmem:[#allocation3 + $0x134] sm:$0xf] %v2456
      %2717 = vst [vmem:[#allocation3 + $0x138] sm:$0xff] %v2465
      %2718 = vst [vmem:[#allocation3 + $0x140] sm:$0xf] %v2474
      %2719 = vst [vmem:[#allocation3 + $0x144] sm:$0xff] %v2487
      %2720 = vst [vmem:[#allocation3 + $0x14c] sm:$0xf] %v2500
      %2721 = vst [vmem:[#allocation3 + $0x150] sm:$0xff] %v2509
      %2722 = vst [vmem:[#allocation3 + $0x158] sm:$0xf] %v2518
      %2723 = vst [vmem:[#allocation3 + $0x15c] sm:$0xff] %v2527
      %2724 = vst [vmem:[#allocation3 + $0x164] sm:$0xf] %v2536
      %2725 = vst [vmem:[#allocation3 + $0x168] sm:$0xff] %v2549
      %2726 = vst [vmem:[#allocation3 + $0x170] sm:$0xf] %v2562
      %2727 = vst [vmem:[#allocation3 + $0x174] sm:$0xff] %v2571
      %2728 = vst [vmem:[#allocation3 + $0x17c] sm:$0xf] %v2580
      %2729 = vst [vmem:[#allocation3 + $0x180] sm:$0xff] %v2589
      %2730 = vst [vmem:[#allocation3 + $0x188] sm:$0xf] %v2598
      %v2731 = vld [vmem:[#allocation3] sm:$0xff]
      %v2732 = vld [vmem:[#allocation3 + $0x8] sm:$0xf]
      %v2733 = vld [vmem:[#allocation3 + $0xc] sm:$0xff]
      %v2734 = vld [vmem:[#allocation3 + $0x14] sm:$0xf]
      %v2735 = vld [vmem:[#allocation3 + $0x18] sm:$0xff]
      %v2736 = vld [vmem:[#allocation3 + $0x20] sm:$0xf]
      %v2737 = vld [vmem:[#allocation3 + $0x24] sm:$0xff]
      %v2738 = vld [vmem:[#allocation3 + $0x2c] sm:$0xf]
      %v2739 = vld [vmem:[#allocation3 + $0x30] sm:$0xff]
      %v2740 = vld [vmem:[#allocation3 + $0x38] sm:$0xf]
      %v2741 = vld [vmem:[#allocation3 + $0x3c] sm:$0xff]
      %v2742 = vld [vmem:[#allocation3 + $0x44] sm:$0xf]
      %v2743 = vld [vmem:[#allocation3 + $0x48] sm:$0xff]
      %v2744 = vld [vmem:[#allocation3 + $0x50] sm:$0xf]
      %v2745 = vld [vmem:[#allocation3 + $0x54] sm:$0xff]
      %v2746 = vld [vmem:[#allocation3 + $0x5c] sm:$0xf]
      %v2747 = vld [vmem:[#allocation3 + $0x60] sm:$0xff]
      %v2748 = vld [vmem:[#allocation3 + $0x68] sm:$0xf]
      %v2749 = vld [vmem:[#allocation3 + $0x6c] sm:$0xff]
      %v2750 = vld [vmem:[#allocation3 + $0x74] sm:$0xf]
      %v2751 = vld [vmem:[#allocation3 + $0x78] sm:$0xff]
      %v2752 = vld [vmem:[#allocation3 + $0x80] sm:$0xf]
      %v2753 = vld [vmem:[#allocation3 + $0x84] sm:$0xff]
      %v2754 = vld [vmem:[#allocation3 + $0x8c] sm:$0xf]
      %v2755 = vld [vmem:[#allocation3 + $0x90] sm:$0xff]
      %v2756 = vld [vmem:[#allocation3 + $0x98] sm:$0xf]
      %v2757 = vld [vmem:[#allocation3 + $0x9c] sm:$0xff]
      %v2758 = vld [vmem:[#allocation3 + $0xa4] sm:$0xf]
      %v2759 = vld [vmem:[#allocation3 + $0xa8] sm:$0xff]
      %v2760 = vld [vmem:[#allocation3 + $0xb0] sm:$0xf]
      %v2761 = vld [vmem:[#allocation3 + $0xb4] sm:$0xff]
      %v2762 = vld [vmem:[#allocation3 + $0xbc] sm:$0xf]
      %v2763 = vld [vmem:[#allocation3 + $0xc0] sm:$0xff]
      %v2764 = vld [vmem:[#allocation3 + $0xc8] sm:$0xf]
      %v2765 = vld [vmem:[#allocation3 + $0xcc] sm:$0xff]
      %v2766 = vld [vmem:[#allocation3 + $0xd4] sm:$0xf]
      %v2767 = vld [vmem:[#allocation3 + $0xd8] sm:$0xff]
      %v2768 = vld [vmem:[#allocation3 + $0xe0] sm:$0xf]
      %v2769 = vld [vmem:[#allocation3 + $0xe4] sm:$0xff]
      %v2770 = vld [vmem:[#allocation3 + $0xec] sm:$0xf]
      %v2771 = vld [vmem:[#allocation3 + $0xf0] sm:$0xff]
      %v2772 = vld [vmem:[#allocation3 + $0xf8] sm:$0xf]
      %v2773 = vld [vmem:[#allocation3 + $0xfc] sm:$0xff]
      %v2774 = vld [vmem:[#allocation3 + $0x104] sm:$0xf]
      %v2775 = vld [vmem:[#allocation3 + $0x108] sm:$0xff]
      %v2776 = vld [vmem:[#allocation3 + $0x110] sm:$0xf]
      %v2777 = vld [vmem:[#allocation3 + $0x114] sm:$0xff]
      %v2778 = vld [vmem:[#allocation3 + $0x11c] sm:$0xf]
      %v2779 = vld [vmem:[#allocation3 + $0x120] sm:$0xff]
      %v2780 = vld [vmem:[#allocation3 + $0x128] sm:$0xf]
      %v2781 = vld [vmem:[#allocation3 + $0x12c] sm:$0xff]
      %v2782 = vld [vmem:[#allocation3 + $0x134] sm:$0xf]
      %v2783 = vld [vmem:[#allocation3 + $0x138] sm:$0xff]
      %v2784 = vld [vmem:[#allocation3 + $0x140] sm:$0xf]
      %v2785 = vld [vmem:[%s562] sm:$0xf]
      %v2786 = vld [vmem:[%s562 + $0x4] sm:$0xf]
      %v2787 = vld [vmem:[%s562 + $0x8] sm:$0xf]
      %v2788 = vld [vmem:[%s562 + $0xc] sm:$0xf]
      %v2789 = vld [vmem:[%s562 + $0x10] sm:$0xf]
      %v2790 = vld [vmem:[%s562 + $0x14] sm:$0xf]
      %v2791 = vld [vmem:[%s562 + $0x18] sm:$0xf]
      %v2792 = vld [vmem:[%s562 + $0x1c] sm:$0xf]
      %v2793 = vld [vmem:[%s562 + $0x20] sm:$0xf]
      %v2794 = vld [vmem:[%s562 + $0x24] sm:$0xf]
      %v2795 = vld [vmem:[%s562 + $0x28] sm:$0xf]
      %v2796 = vld [vmem:[%s562 + $0x2c] sm:$0xf]
      %v2797 = vld [vmem:[%s562 + $0x30] sm:$0xf]
      %v2798 = vld [vmem:[%s562 + $0x34] sm:$0xf]
      %v2799 = vld [vmem:[%s562 + $0x38] sm:$0xf]
      %v2800 = vld [vmem:[%s562 + $0x3c] sm:$0xf]
      %v2801 = vld [vmem:[%s562 + $0x40] sm:$0xf]
      %v2802 = vld [vmem:[%s562 + $0x44] sm:$0xf]
      %v2803 = vld [vmem:[%s562 + $0x48] sm:$0xf]
      %v2804 = vld [vmem:[%s562 + $0x4c] sm:$0xf]
      %v2805 = vld [vmem:[%s562 + $0x50] sm:$0xf]
      %v2806 = vld [vmem:[%s562 + $0x54] sm:$0xf]
      %v2807 = vld [vmem:[%s562 + $0x58] sm:$0xf]
      %v2808 = vld [vmem:[%s562 + $0x5c] sm:$0xf]
      %v2809 = vld [vmem:[%s562 + $0x60] sm:$0xf]
      %v2810 = vld [vmem:[%s562 + $0x64] sm:$0xf]
      %v2811 = vld [vmem:[%s562 + $0x68] sm:$0xf]
      %v2812 = vld [vmem:[%s562 + $0x6c] sm:$0xf]
      %v2813 = vld [vmem:[%s562 + $0x70] sm:$0xf]
      %v2814 = vld [vmem:[%s562 + $0x74] sm:$0xf]
      %v2815 = vld [vmem:[%s562 + $0x78] sm:$0xf]
      %v2816 = vld [vmem:[%s562 + $0x7c] sm:$0xf]
      %v2817 = vld [vmem:[%s562 + $0x80] sm:$0xf]
      %v2818 = vld [vmem:[%s562 + $0x84] sm:$0xf]
      %v2819 = vld [vmem:[%s562 + $0x88] sm:$0xf]
      %v2820 = vld [vmem:[%s562 + $0x8c] sm:$0xf]
      %v2821 = vld [vmem:[%s562 + $0x90] sm:$0xf]
      %v2822 = vld [vmem:[%s562 + $0x94] sm:$0xf]
      %v2823 = vld [vmem:[%s562 + $0x98] sm:$0xf]
      %v2824 = vld [vmem:[%s562 + $0x9c] sm:$0xf]
      %v2825 = vld [vmem:[%s562 + $0xa0] sm:$0xf]
      %v2826 = vld [vmem:[%s562 + $0xa4] sm:$0xf]
      %v2827 = vld [vmem:[%s562 + $0xa8] sm:$0xf]
      %v2828 = vld [vmem:[%s562 + $0xac] sm:$0xf]
      %v2829 = vld [vmem:[%s562 + $0xb0] sm:$0xf]
      %v2830 = vld [vmem:[%s562 + $0xb4] sm:$0xf]
      %v2831 = vld [vmem:[%s562 + $0xb8] sm:$0xf]
      %v2832 = vld [vmem:[%s562 + $0xbc] sm:$0xf]
      %v2887 = vunpack.c.l.b16 %v2731
      %v2888 = vunpack.c.h.b16 %v2731
      %v2889 = vunpack.c.l.b16 %v2732
      %v2890 = vunpack.c.l.b16 %v2733
      %v2891 = vunpack.c.h.b16 %v2733
      %v2892 = vunpack.c.l.b16 %v2734
      %v2893 = vunpack.c.l.b16 %v2735
      %v2894 = vunpack.c.h.b16 %v2735
      %v2895 = vunpack.c.l.b16 %v2736
      %v2896 = vunpack.c.l.b16 %v2737
      %v2897 = vunpack.c.h.b16 %v2737
      %v2898 = vunpack.c.l.b16 %v2738
      %v2899 = vunpack.c.l.b16 %v2739
      %v2900 = vunpack.c.h.b16 %v2739
      %v2901 = vunpack.c.l.b16 %v2740
      %v2902 = vunpack.c.l.b16 %v2741
      %v2903 = vunpack.c.h.b16 %v2741
      %v2904 = vunpack.c.l.b16 %v2742
      %v2905 = vunpack.c.l.b16 %v2743
      %v2906 = vunpack.c.h.b16 %v2743
      %v2907 = vunpack.c.l.b16 %v2744
      %v2908 = vunpack.c.l.b16 %v2745
      %v2909 = vunpack.c.h.b16 %v2745
      %v2910 = vunpack.c.l.b16 %v2746
      %v2911 = vunpack.c.l.b16 %v2747
      %v2912 = vunpack.c.h.b16 %v2747
      %v2913 = vunpack.c.l.b16 %v2748
      %v2914 = vunpack.c.l.b16 %v2749
      %v2915 = vunpack.c.h.b16 %v2749
      %v2916 = vunpack.c.l.b16 %v2750
      %v2917 = vunpack.c.l.b16 %v2751
      %v2918 = vunpack.c.h.b16 %v2751
      %v2919 = vunpack.c.l.b16 %v2752
      %v2920 = vunpack.c.l.b16 %v2753
      %v2921 = vunpack.c.h.b16 %v2753
      %v2922 = vunpack.c.l.b16 %v2754
      %v2923 = vunpack.c.l.b16 %v2755
      %v2924 = vunpack.c.h.b16 %v2755
      %v2925 = vunpack.c.l.b16 %v2756
      %v2926 = vunpack.c.l.b16 %v2757
      %v2927 = vunpack.c.h.b16 %v2757
      %v2928 = vunpack.c.l.b16 %v2758
      %v2929 = vunpack.c.l.b16 %v2759
      %v2930 = vunpack.c.h.b16 %v2759
      %v2931 = vunpack.c.l.b16 %v2760
      %v2932 = vunpack.c.l.b16 %v2761
      %v2933 = vunpack.c.h.b16 %v2761
      %v2934 = vunpack.c.l.b16 %v2762
      %v2935 = vunpack.c.l.b16 %v2763
      %v2936 = vunpack.c.h.b16 %v2763
      %v2937 = vunpack.c.l.b16 %v2764
      %v2938 = vunpack.c.l.b16 %v2765
      %v2939 = vunpack.c.h.b16 %v2765
      %v2940 = vunpack.c.l.b16 %v2766
      %v2941 = vunpack.c.l.b16 %v2767
      %v2942 = vunpack.c.h.b16 %v2767
      %v2943 = vunpack.c.l.b16 %v2768
      %v2944 = vunpack.c.l.b16 %v2769
      %v2945 = vunpack.c.h.b16 %v2769
      %v2946 = vunpack.c.l.b16 %v2770
      %v2947 = vunpack.c.l.b16 %v2771
      %v2948 = vunpack.c.h.b16 %v2771
      %v2949 = vunpack.c.l.b16 %v2772
      %v2950 = vunpack.c.l.b16 %v2773
      %v2951 = vunpack.c.h.b16 %v2773
      %v2952 = vunpack.c.l.b16 %v2774
      %v2953 = vunpack.c.l.b16 %v2775
      %v2954 = vunpack.c.h.b16 %v2775
      %v2955 = vunpack.c.l.b16 %v2776
      %v2956 = vunpack.c.l.b16 %v2777
      %v2957 = vunpack.c.h.b16 %v2777
      %v2958 = vunpack.c.l.b16 %v2778
      %v2959 = vunpack.c.l.b16 %v2779
      %v2960 = vunpack.c.h.b16 %v2779
      %v2961 = vunpack.c.l.b16 %v2780
      %v2962 = vunpack.c.l.b16 %v2781
      %v2963 = vunpack.c.h.b16 %v2781
      %v2964 = vunpack.c.l.b16 %v2782
      %v2965 = vunpack.c.l.b16 %v2783
      %v2966 = vunpack.c.h.b16 %v2783
      %v2967 = vunpack.c.l.b16 %v2784
      %v2968 = vpack.c.b16 %v2890, %v2887
      %v2969 = vpack.c.b16 %v2891, %v2888
      %v2970 = vpack.c.b16 %v2892, %v2889
      %v2971 = vpack.c.b16 %v2896, %v2893
      %v2972 = vpack.c.b16 %v2897, %v2894
      %v2973 = vpack.c.b16 %v2898, %v2895
      %v2974 = vpack.c.b16 %v2902, %v2899
      %v2975 = vpack.c.b16 %v2903, %v2900
      %v2976 = vpack.c.b16 %v2904, %v2901
      %v2977 = vpack.c.b16 %v2908, %v2905
      %v2978 = vpack.c.b16 %v2909, %v2906
      %v2979 = vpack.c.b16 %v2910, %v2907
      %v2980 = vpack.c.b16 %v2914, %v2911
      %v2981 = vpack.c.b16 %v2915, %v2912
      %v2982 = vpack.c.b16 %v2916, %v2913
      %v2983 = vpack.c.b16 %v2920, %v2917
      %v2984 = vpack.c.b16 %v2921, %v2918
      %v2985 = vpack.c.b16 %v2922, %v2919
      %v2986 = vpack.c.b16 %v2926, %v2923
      %v2987 = vpack.c.b16 %v2927, %v2924
      %v2988 = vpack.c.b16 %v2928, %v2925
      %v2989 = vpack.c.b16 %v2932, %v2929
      %v2990 = vpack.c.b16 %v2933, %v2930
      %v2991 = vpack.c.b16 %v2934, %v2931
      %v2992 = vpack.c.b16 %v2938, %v2935
      %v2993 = vpack.c.b16 %v2939, %v2936
      %v2994 = vpack.c.b16 %v2940, %v2937
      %v2995 = vpack.c.b16 %v2944, %v2941
      %v2996 = vpack.c.b16 %v2945, %v2942
      %v2997 = vpack.c.b16 %v2946, %v2943
      %v2998 = vpack.c.b16 %v2950, %v2947
      %v2999 = vpack.c.b16 %v2951, %v2948
      %v3000 = vpack.c.b16 %v2952, %v2949
      %v3001 = vpack.c.b16 %v2956, %v2953
      %v3002 = vpack.c.b16 %v2957, %v2954
      %v3003 = vpack.c.b16 %v2958, %v2955
      %v3004 = vpack.c.b16 %v2962, %v2959
      %v3005 = vpack.c.b16 %v2963, %v2960
      %v3006 = vpack.c.b16 %v2964, %v2961
      %v3007 = vpack.c.b16 %v2965, %v2965
      %v3008 = vpack.c.b16 %v2966, %v2966
      %v3009 = vpack.c.b16 %v2967, %v2967
      %v3100 = vunpack.c.l.b16 %v2785
      %v3101 = vunpack.c.l.b16 %v2786
      %v3102 = vunpack.c.l.b16 %v2787
      %v3103 = vunpack.c.l.b16 %v2788
      %v3104 = vunpack.c.l.b16 %v2789
      %v3105 = vunpack.c.l.b16 %v2790
      %v3106 = vunpack.c.l.b16 %v2791
      %v3107 = vunpack.c.l.b16 %v2792
      %v3108 = vunpack.c.l.b16 %v2793
      %v3109 = vunpack.c.l.b16 %v2794
      %v3110 = vunpack.c.l.b16 %v2795
      %v3111 = vunpack.c.l.b16 %v2796
      %v3112 = vunpack.c.l.b16 %v2797
      %v3113 = vunpack.c.l.b16 %v2798
      %v3114 = vunpack.c.l.b16 %v2799
      %v3115 = vunpack.c.l.b16 %v2800
      %v3116 = vunpack.c.l.b16 %v2801
      %v3117 = vunpack.c.l.b16 %v2802
      %v3118 = vunpack.c.l.b16 %v2803
      %v3119 = vunpack.c.l.b16 %v2804
      %v3120 = vunpack.c.l.b16 %v2805
      %v3121 = vunpack.c.l.b16 %v2806
      %v3122 = vunpack.c.l.b16 %v2807
      %v3123 = vunpack.c.l.b16 %v2808
      %v3124 = vunpack.c.l.b16 %v2809
      %v3125 = vunpack.c.l.b16 %v2810
      %v3126 = vunpack.c.l.b16 %v2811
      %v3127 = vunpack.c.l.b16 %v2812
      %v3128 = vunpack.c.l.b16 %v2813
      %v3129 = vunpack.c.l.b16 %v2814
      %v3130 = vunpack.c.l.b16 %v2815
      %v3131 = vunpack.c.l.b16 %v2816
      %v3132 = vunpack.c.l.b16 %v2817
      %v3133 = vunpack.c.l.b16 %v2818
      %v3134 = vunpack.c.l.b16 %v2819
      %v3135 = vunpack.c.l.b16 %v2820
      %v3136 = vunpack.c.l.b16 %v2821
      %v3137 = vunpack.c.l.b16 %v2822
      %v3138 = vunpack.c.l.b16 %v2823
      %v3139 = vunpack.c.l.b16 %v2824
      %v3140 = vunpack.c.l.b16 %v2825
      %v3141 = vunpack.c.l.b16 %v2826
      %v3142 = vunpack.c.l.b16 %v2827
      %v3143 = vunpack.c.l.b16 %v2828
      %v3144 = vunpack.c.l.b16 %v2829
      %v3145 = vunpack.c.l.b16 %v2830
      %v3146 = vunpack.c.l.b16 %v2831
      %v3147 = vunpack.c.l.b16 %v2832
      %v3148 = vpack.c.b16 %v3101, %v3100
      %v3149 = vpack.c.b16 %v3103, %v3102
      %v3150 = vpack.c.b16 %v3105, %v3104
      %v3151 = vpack.c.b16 %v3107, %v3106
      %v3152 = vpack.c.b16 %v3109, %v3108
      %v3153 = vpack.c.b16 %v3111, %v3110
      %v3154 = vpack.c.b16 %v3113, %v3112
      %v3155 = vpack.c.b16 %v3115, %v3114
      %v3156 = vpack.c.b16 %v3117, %v3116
      %v3157 = vpack.c.b16 %v3119, %v3118
      %v3158 = vpack.c.b16 %v3121, %v3120
      %v3159 = vpack.c.b16 %v3123, %v3122
      %v3160 = vpack.c.b16 %v3125, %v3124
      %v3161 = vpack.c.b16 %v3127, %v3126
      %v3162 = vpack.c.b16 %v3129, %v3128
      %v3163 = vpack.c.b16 %v3131, %v3130
      %v3164 = vpack.c.b16 %v3133, %v3132
      %v3165 = vpack.c.b16 %v3135, %v3134
      %v3166 = vpack.c.b16 %v3137, %v3136
      %v3167 = vpack.c.b16 %v3139, %v3138
      %v3168 = vpack.c.b16 %v3141, %v3140
      %v3169 = vpack.c.b16 %v3143, %v3142
      %v3170 = vpack.c.b16 %v3145, %v3144
      %v3171 = vpack.c.b16 %v3147, %v3146
      %3196 = vmatprep.subr.bf16.mxu0 0
      %3197 = vmatpush1.bf16.msra.mxu0 %v3148
      %3198 = vmatprep.subr.bf16.mxu0 0
      %3199 = vmatpush1.bf16.msra.mxu0 %v3149
      %3200 = vmatprep.subr.bf16.mxu0 0
      %3201 = vmatpush1.bf16.msra.mxu0 %v3150
      %3202 = vmatprep.subr.bf16.mxu0 0
      %3203 = vmatpush1.bf16.msra.mxu0 %v3151
      %3204 = vmatprep.subr.bf16.mxu0 0
      %3205 = vmatpush1.bf16.msra.mxu0 %v3152
      %3206 = vmatprep.subr.bf16.mxu0 0
      %3207 = vmatpush1.bf16.msra.mxu0 %v3153
      %3208 = vmatprep.subr.bf16.mxu0 0
      %3209 = vmatpush1.bf16.msra.mxu0 %v3154
      %3210 = vmatprep.subr.bf16.mxu0 0
      %3211 = vmatpush1.bf16.msra.mxu0 %v3155
      %3212 = vmatprep.subr.bf16.mxu0 0
      %3213 = vmatpush1.bf16.msra.mxu0 %v3156
      %3214 = vmatprep.subr.bf16.mxu0 0
      %3215 = vmatpush1.bf16.msra.mxu0 %v3157
      %3216 = vmatprep.subr.bf16.mxu0 0
      %3217 = vmatpush1.bf16.msra.mxu0 %v3158
      %3218 = vmatprep.subr.bf16.mxu0 0
      %3219 = vmatpush1.bf16.msra.mxu0 %v3159
      %3220 = vmatprep.subr.bf16.mxu0 0
      %3221 = vmatpush1.bf16.msra.mxu0 %v3160
      %3222 = vmatprep.subr.bf16.mxu0 0
      %3223 = vmatpush1.bf16.msra.mxu0 %v3161
      %3224 = vmatprep.subr.bf16.mxu0 0
      %3225 = vmatpush1.bf16.msra.mxu0 %v3162
      %3226 = vmatprep.subr.bf16.mxu0 0
      %3227 = vmatpush1.bf16.msra.mxu0 %v3163
      %3228 = vmatprep.mubr.bf16.mxu0 %v2969
      %3229 = vmatmul.mubr.bf16.gmra.mrb[0].mxu0 %v2968
      %v3230 = vpop.f32.mrb[0].mxu0
      %v3231 = vadd.f32 0.0, %v3230
      %v3232 = vpop.f32.mrb[0].mxu0
      %v3233 = vpop.f32.mrb[0].mxu0
      %v3234 = vadd.f32 0.0, %v3233
      %v3235 = vpop.f32.mrb[0].mxu0
      %3236 = vmatprep.mubr.bf16.mxu0 %v2972
      %3237 = vmatmul.mubr.bf16.gmra.mrb[0].mxu0 %v2971
      %v3238 = vpop.f32.mrb[0].mxu0
      %v3239 = vadd.f32 0.0, %v3238
      %v3240 = vpop.f32.mrb[0].mxu0
      %v3241 = vpop.f32.mrb[0].mxu0
      %v3242 = vadd.f32 0.0, %v3241
      %v3243 = vpop.f32.mrb[0].mxu0
      %3244 = vmatprep.mubr.bf16.mxu0 %v2975
      %3245 = vmatmul.mubr.bf16.gmra.mrb[0].mxu0 %v2974
      %v3246 = vpop.f32.mrb[0].mxu0
      %v3247 = vadd.f32 0.0, %v3246
      %v3248 = vpop.f32.mrb[0].mxu0
      %v3249 = vpop.f32.mrb[0].mxu0
      %v3250 = vadd.f32 0.0, %v3249
      %v3251 = vpop.f32.mrb[0].mxu0
      %3252 = vmatprep.mubr.bf16.mxu0 %v2978
      %3253 = vmatmul.mubr.bf16.gmra.mrb[0].mxu0 %v2977
      %v3254 = vpop.f32.mrb[0].mxu0
      %v3255 = vadd.f32 0.0, %v3254
      %v3256 = vpop.f32.mrb[0].mxu0
      %v3257 = vpop.f32.mrb[0].mxu0
      %v3258 = vadd.f32 0.0, %v3257
      %v3259 = vpop.f32.mrb[0].mxu0
      %3260 = vmatprep.mubr.bf16.mxu0 %v2981
      %3261 = vmatmul.mubr.bf16.gmra.mrb[0].mxu0 %v2980
      %v3262 = vpop.f32.mrb[0].mxu0
      %v3263 = vadd.f32 0.0, %v3262
      %v3264 = vpop.f32.mrb[0].mxu0
      %v3265 = vpop.f32.mrb[0].mxu0
      %v3266 = vadd.f32 0.0, %v3265
      %v3267 = vpop.f32.mrb[0].mxu0
      %3268 = vmatprep.mubr.bf16.mxu0 %v2984
      %3269 = vmatmul.mubr.bf16.gmra.mrb[0].mxu0 %v2983
      %v3270 = vpop.f32.mrb[0].mxu0
      %v3271 = vadd.f32 0.0, %v3270
      %v3272 = vpop.f32.mrb[0].mxu0
      %v3273 = vpop.f32.mrb[0].mxu0
      %v3274 = vadd.f32 0.0, %v3273
      %v3275 = vpop.f32.mrb[0].mxu0
      %3276 = vmatprep.mubr.bf16.mxu0 %v2987
      %3277 = vmatmul.mubr.bf16.gmra.mrb[0].mxu0 %v2986
      %v3278 = vpop.f32.mrb[0].mxu0
      %v3279 = vadd.f32 0.0, %v3278
      %v3280 = vpop.f32.mrb[0].mxu0
      %v3281 = vpop.f32.mrb[0].mxu0
      %v3282 = vadd.f32 0.0, %v3281
      %v3283 = vpop.f32.mrb[0].mxu0
      %3284 = vmatprep.mubr.bf16.mxu0 %v2990
      %3285 = vmatmul.mubr.bf16.gmra.mrb[0].mxu0 %v2989
      %v3286 = vpop.f32.mrb[0].mxu0
      %v3287 = vadd.f32 0.0, %v3286
      %v3288 = vpop.f32.mrb[0].mxu0
      %v3289 = vpop.f32.mrb[0].mxu0
      %v3290 = vadd.f32 0.0, %v3289
      %v3291 = vpop.f32.mrb[0].mxu0
      %3292 = vmatprep.mubr.bf16.mxu0 %v2993
      %3293 = vmatmul.mubr.bf16.gmra.mrb[0].mxu0 %v2992
      %v3294 = vpop.f32.mrb[0].mxu0
      %v3295 = vadd.f32 0.0, %v3294
      %v3296 = vpop.f32.mrb[0].mxu0
      %v3297 = vpop.f32.mrb[0].mxu0
      %v3298 = vadd.f32 0.0, %v3297
      %v3299 = vpop.f32.mrb[0].mxu0
      %3300 = vmatprep.mubr.bf16.mxu0 %v2996
      %3301 = vmatmul.mubr.bf16.gmra.mrb[0].mxu0 %v2995
      %v3302 = vpop.f32.mrb[0].mxu0
      %v3303 = vadd.f32 0.0, %v3302
      %v3304 = vpop.f32.mrb[0].mxu0
      %v3305 = vpop.f32.mrb[0].mxu0
      %v3306 = vadd.f32 0.0, %v3305
      %v3307 = vpop.f32.mrb[0].mxu0
      %3308 = vmatprep.mubr.bf16.mxu0 %v2999
      %3309 = vmatmul.mubr.bf16.gmra.mrb[0].mxu0 %v2998
      %v3310 = vpop.f32.mrb[0].mxu0
      %v3311 = vadd.f32 0.0, %v3310
      %v3312 = vpop.f32.mrb[0].mxu0
      %v3313 = vpop.f32.mrb[0].mxu0
      %v3314 = vadd.f32 0.0, %v3313
      %v3315 = vpop.f32.mrb[0].mxu0
      %3316 = vmatprep.mubr.bf16.mxu0 %v3002
      %3317 = vmatmul.mubr.bf16.gmra.mrb[0].mxu0 %v3001
      %v3318 = vpop.f32.mrb[0].mxu0
      %v3319 = vadd.f32 0.0, %v3318
      %v3320 = vpop.f32.mrb[0].mxu0
      %v3321 = vpop.f32.mrb[0].mxu0
      %v3322 = vadd.f32 0.0, %v3321
      %v3323 = vpop.f32.mrb[0].mxu0
      %3324 = vmatprep.mubr.bf16.mxu0 %v3005
      %3325 = vmatmul.mubr.bf16.gmra.mrb[0].mxu0 %v3004
      %v3326 = vpop.f32.mrb[0].mxu0
      %v3327 = vadd.f32 0.0, %v3326
      %v3328 = vpop.f32.mrb[0].mxu0
      %v3329 = vpop.f32.mrb[0].mxu0
      %v3330 = vadd.f32 0.0, %v3329
      %v3331 = vpop.f32.mrb[0].mxu0
      %3332 = vmatprep.mubr.bf16.mxu0 %v3008
      %3333 = vmatmul.mubr.bf16.gmra.mrb[0].mxu0 %v3007
      %v3334 = vpop.f32.mrb[0].mxu0
      %v3335 = vadd.f32 0.0, %v3334
      %v3336 = vpop.f32.mrb[0].mxu0
      %v3337 = vpop.f32.mrb[0].mxu0
      %v3338 = vpop.f32.mrb[0].mxu0
      %3339 = vdwg.mxu0
      %3340 = vmatprep.subr.bf16.mxu0 0
      %3341 = vmatpush1.bf16.msra.mxu0 %v3164
      %3342 = vmatprep.subr.bf16.mxu0 0
      %3343 = vmatpush1.bf16.msra.mxu0 %v3165
      %3344 = vmatprep.subr.bf16.mxu0 0
      %3345 = vmatpush1.bf16.msra.mxu0 %v3166
      %3346 = vmatprep.subr.bf16.mxu0 0
      %3347 = vmatpush1.bf16.msra.mxu0 %v3167
      %3348 = vmatprep.subr.bf16.mxu0 0
      %3349 = vmatpush1.bf16.msra.mxu0 %v3168
      %3350 = vmatprep.subr.bf16.mxu0 0
      %3351 = vmatpush1.bf16.msra.mxu0 %v3169
      %3352 = vmatprep.subr.bf16.mxu0 0
      %3353 = vmatpush1.bf16.msra.mxu0 %v3170
      %3354 = vmatprep.subr.bf16.mxu0 0
      %3355 = vmatpush1.bf16.msra.mxu0 %v3171
      %3356 = vmatprep.subr.bf16.mxu0 0
      %3357 = vmatpush1.bf16.msra.mxu0 0
      %3358 = vmatprep.subr.bf16.mxu0 0
      %3359 = vmatpush1.bf16.msra.mxu0 0
      %3360 = vmatprep.subr.bf16.mxu0 0
      %3361 = vmatpush1.bf16.msra.mxu0 0
      %3362 = vmatprep.subr.bf16.mxu0 0
      %3363 = vmatpush1.bf16.msra.mxu0 0
      %3364 = vmatprep.subr.bf16.mxu0 0
      %3365 = vmatpush1.bf16.msra.mxu0 0
      %3366 = vmatprep.subr.bf16.mxu0 0
      %3367 = vmatpush1.bf16.msra.mxu0 0
      %3368 = vmatprep.subr.bf16.mxu0 0
      %3369 = vmatpush1.bf16.msra.mxu0 0
      %3370 = vmatprep.subr.bf16.mxu0 0
      %3371 = vmatpush1.bf16.msra.mxu0 0
      %3372 = vmatprep.mubr.bf16.mxu0 0
      %3373 = vmatmul.mubr.bf16.gmra.mrb[0].mxu0 %v2970
      %v3374 = vpop.f32.mrb[0].mxu0
      %v3375 = vadd.f32 %v3231, %v3374
      %v3376 = vpop.f32.mrb[0].mxu0
      %v3377 = vpop.f32.mrb[0].mxu0
      %v3378 = vadd.f32 %v3234, %v3377
      %v3379 = vpop.f32.mrb[0].mxu0
      %3380 = vmatprep.mubr.bf16.mxu0 0
      %3381 = vmatmul.mubr.bf16.gmra.mrb[0].mxu0 %v2973
      %v3382 = vpop.f32.mrb[0].mxu0
      %v3383 = vadd.f32 %v3239, %v3382
      %v3384 = vpop.f32.mrb[0].mxu0
      %v3385 = vpop.f32.mrb[0].mxu0
      %v3386 = vadd.f32 %v3242, %v3385
      %v3387 = vpop.f32.mrb[0].mxu0
      %3388 = vmatprep.mubr.bf16.mxu0 0
      %3389 = vmatmul.mubr.bf16.gmra.mrb[0].mxu0 %v2976
      %v3390 = vpop.f32.mrb[0].mxu0
      %v3391 = vadd.f32 %v3247, %v3390
      %v3392 = vpop.f32.mrb[0].mxu0
      %v3393 = vpop.f32.mrb[0].mxu0
      %v3394 = vadd.f32 %v3250, %v3393
      %v3395 = vpop.f32.mrb[0].mxu0
      %3396 = vmatprep.mubr.bf16.mxu0 0
      %3397 = vmatmul.mubr.bf16.gmra.mrb[0].mxu0 %v2979
      %v3398 = vpop.f32.mrb[0].mxu0
      %v3399 = vadd.f32 %v3255, %v3398
      %v3400 = vpop.f32.mrb[0].mxu0
      %v3401 = vpop.f32.mrb[0].mxu0
      %v3402 = vadd.f32 %v3258, %v3401
      %v3403 = vpop.f32.mrb[0].mxu0
      %3404 = vmatprep.mubr.bf16.mxu0 0
      %3405 = vmatmul.mubr.bf16.gmra.mrb[0].mxu0 %v2982
      %v3406 = vpop.f32.mrb[0].mxu0
      %v3407 = vadd.f32 %v3263, %v3406
      %v3408 = vpop.f32.mrb[0].mxu0
      %v3409 = vpop.f32.mrb[0].mxu0
      %v3410 = vadd.f32 %v3266, %v3409
      %v3411 = vpop.f32.mrb[0].mxu0
      %3412 = vmatprep.mubr.bf16.mxu0 0
      %3413 = vmatmul.mubr.bf16.gmra.mrb[0].mxu0 %v2985
      %v3414 = vpop.f32.mrb[0].mxu0
      %v3415 = vadd.f32 %v3271, %v3414
      %v3416 = vpop.f32.mrb[0].mxu0
      %v3417 = vpop.f32.mrb[0].mxu0
      %v3418 = vadd.f32 %v3274, %v3417
      %v3419 = vpop.f32.mrb[0].mxu0
      %3420 = vmatprep.mubr.bf16.mxu0 0
      %3421 = vmatmul.mubr.bf16.gmra.mrb[0].mxu0 %v2988
      %v3422 = vpop.f32.mrb[0].mxu0
      %v3423 = vadd.f32 %v3279, %v3422
      %v3424 = vpop.f32.mrb[0].mxu0
      %v3425 = vpop.f32.mrb[0].mxu0
      %v3426 = vadd.f32 %v3282, %v3425
      %v3427 = vpop.f32.mrb[0].mxu0
      %3428 = vmatprep.mubr.bf16.mxu0 0
      %3429 = vmatmul.mubr.bf16.gmra.mrb[0].mxu0 %v2991
      %v3430 = vpop.f32.mrb[0].mxu0
      %v3431 = vadd.f32 %v3287, %v3430
      %v3432 = vpop.f32.mrb[0].mxu0
      %v3433 = vpop.f32.mrb[0].mxu0
      %v3434 = vadd.f32 %v3290, %v3433
      %v3435 = vpop.f32.mrb[0].mxu0
      %3436 = vmatprep.mubr.bf16.mxu0 0
      %3437 = vmatmul.mubr.bf16.gmra.mrb[0].mxu0 %v2994
      %v3438 = vpop.f32.mrb[0].mxu0
      %v3439 = vadd.f32 %v3295, %v3438
      %v3440 = vpop.f32.mrb[0].mxu0
      %v3441 = vpop.f32.mrb[0].mxu0
      %v3442 = vadd.f32 %v3298, %v3441
      %v3443 = vpop.f32.mrb[0].mxu0
      %3444 = vmatprep.mubr.bf16.mxu0 0
      %3445 = vmatmul.mubr.bf16.gmra.mrb[0].mxu0 %v2997
      %v3446 = vpop.f32.mrb[0].mxu0
      %v3447 = vadd.f32 %v3303, %v3446
      %v3448 = vpop.f32.mrb[0].mxu0
      %v3449 = vpop.f32.mrb[0].mxu0
      %v3450 = vadd.f32 %v3306, %v3449
      %v3451 = vpop.f32.mrb[0].mxu0
      %3452 = vmatprep.mubr.bf16.mxu0 0
      %3453 = vmatmul.mubr.bf16.gmra.mrb[0].mxu0 %v3000
      %v3454 = vpop.f32.mrb[0].mxu0
      %v3455 = vadd.f32 %v3311, %v3454
      %v3456 = vpop.f32.mrb[0].mxu0
      %v3457 = vpop.f32.mrb[0].mxu0
      %v3458 = vadd.f32 %v3314, %v3457
      %v3459 = vpop.f32.mrb[0].mxu0
      %3460 = vmatprep.mubr.bf16.mxu0 0
      %3461 = vmatmul.mubr.bf16.gmra.mrb[0].mxu0 %v3003
      %v3462 = vpop.f32.mrb[0].mxu0
      %v3463 = vadd.f32 %v3319, %v3462
      %v3464 = vpop.f32.mrb[0].mxu0
      %v3465 = vpop.f32.mrb[0].mxu0
      %v3466 = vadd.f32 %v3322, %v3465
      %v3467 = vpop.f32.mrb[0].mxu0
      %3468 = vmatprep.mubr.bf16.mxu0 0
      %3469 = vmatmul.mubr.bf16.gmra.mrb[0].mxu0 %v3006
      %v3470 = vpop.f32.mrb[0].mxu0
      %v3471 = vadd.f32 %v3327, %v3470
      %v3472 = vpop.f32.mrb[0].mxu0
      %v3473 = vpop.f32.mrb[0].mxu0
      %v3474 = vadd.f32 %v3330, %v3473
      %v3475 = vpop.f32.mrb[0].mxu0
      %3476 = vmatprep.mubr.bf16.mxu0 0
      %3477 = vmatmul.mubr.bf16.gmra.mrb[0].mxu0 %v3009
      %v3478 = vpop.f32.mrb[0].mxu0
      %v3479 = vadd.f32 %v3335, %v3478
      %v3480 = vpop.f32.mrb[0].mxu0
      %v3481 = vpop.f32.mrb[0].mxu0
      %v3482 = vpop.f32.mrb[0].mxu0
      %3483 = vdwg.mxu0
      %3484 = vst [vmem:[#allocation4] sm:$0xff] %v3375
      %3485 = vst [vmem:[#allocation4 + $0x8] sm:$0xff] %v3378
      %3486 = vst [vmem:[#allocation4 + $0x10] sm:$0xff] %v3383
      %3487 = vst [vmem:[#allocation4 + $0x18] sm:$0xff] %v3386
      %3488 = vst [vmem:[#allocation4 + $0x20] sm:$0xff] %v3391
      %3489 = vst [vmem:[#allocation4 + $0x28] sm:$0xff] %v3394
      %3490 = vst [vmem:[#allocation4 + $0x30] sm:$0xff] %v3399
      %3491 = vst [vmem:[#allocation4 + $0x38] sm:$0xff] %v3402
      %3492 = vst [vmem:[#allocation4 + $0x40] sm:$0xff] %v3407
      %3493 = vst [vmem:[#allocation4 + $0x48] sm:$0xff] %v3410
      %3494 = vst [vmem:[#allocation4 + $0x50] sm:$0xff] %v3415
      %3495 = vst [vmem:[#allocation4 + $0x58] sm:$0xff] %v3418
      %3496 = vst [vmem:[#allocation4 + $0x60] sm:$0xff] %v3423
      %3497 = vst [vmem:[#allocation4 + $0x68] sm:$0xff] %v3426
      %3498 = vst [vmem:[#allocation4 + $0x70] sm:$0xff] %v3431
      %3499 = vst [vmem:[#allocation4 + $0x78] sm:$0xff] %v3434
      %3500 = vst [vmem:[#allocation4 + $0x80] sm:$0xff] %v3439
      %3501 = vst [vmem:[#allocation4 + $0x88] sm:$0xff] %v3442
      %3502 = vst [vmem:[#allocation4 + $0x90] sm:$0xff] %v3447
      %3503 = vst [vmem:[#allocation4 + $0x98] sm:$0xff] %v3450
      %3504 = vst [vmem:[#allocation4 + $0xa0] sm:$0xff] %v3455
      %3505 = vst [vmem:[#allocation4 + $0xa8] sm:$0xff] %v3458
      %3506 = vst [vmem:[#allocation4 + $0xb0] sm:$0xff] %v3463
      %3507 = vst [vmem:[#allocation4 + $0xb8] sm:$0xff] %v3466
      %3508 = vst [vmem:[#allocation4 + $0xc0] sm:$0xff] %v3471
      %3509 = vst [vmem:[#allocation4 + $0xc8] sm:$0xff] %v3474
      %3510 = vst [vmem:[#allocation4 + $0xd0] sm:$0xff] %v3479
      %s3511 = scalar_lea.vmem [#allocation3], 36
      %v3512 = vld [vmem:[%s3511] sm:$0xff]
      %v3513 = vld [vmem:[%s3511 + $0x8] sm:$0xf]
      %v3514 = vld [vmem:[%s3511 + $0xc] sm:$0xff]
      %v3515 = vld [vmem:[%s3511 + $0x14] sm:$0xf]
      %v3516 = vld [vmem:[%s3511 + $0x18] sm:$0xff]
      %v3517 = vld [vmem:[%s3511 + $0x20] sm:$0xf]
      %v3518 = vld [vmem:[%s3511 + $0x24] sm:$0xff]
      %v3519 = vld [vmem:[%s3511 + $0x2c] sm:$0xf]
      %v3520 = vld [vmem:[%s3511 + $0x30] sm:$0xff]
      %v3521 = vld [vmem:[%s3511 + $0x38] sm:$0xf]
      %v3522 = vld [vmem:[%s3511 + $0x3c] sm:$0xff]
      %v3523 = vld [vmem:[%s3511 + $0x44] sm:$0xf]
      %v3524 = vld [vmem:[%s3511 + $0x48] sm:$0xff]
      %v3525 = vld [vmem:[%s3511 + $0x50] sm:$0xf]
      %v3526 = vld [vmem:[%s3511 + $0x54] sm:$0xff]
      %v3527 = vld [vmem:[%s3511 + $0x5c] sm:$0xf]
      %v3528 = vld [vmem:[%s3511 + $0x60] sm:$0xff]
      %v3529 = vld [vmem:[%s3511 + $0x68] sm:$0xf]
      %v3530 = vld [vmem:[%s3511 + $0x6c] sm:$0xff]
      %v3531 = vld [vmem:[%s3511 + $0x74] sm:$0xf]
      %v3532 = vld [vmem:[%s3511 + $0x78] sm:$0xff]
      %v3533 = vld [vmem:[%s3511 + $0x80] sm:$0xf]
      %v3534 = vld [vmem:[%s3511 + $0x84] sm:$0xff]
      %v3535 = vld [vmem:[%s3511 + $0x8c] sm:$0xf]
      %v3536 = vld [vmem:[%s3511 + $0x90] sm:$0xff]
      %v3537 = vld [vmem:[%s3511 + $0x98] sm:$0xf]
      %v3538 = vld [vmem:[%s3511 + $0x9c] sm:$0xff]
      %v3539 = vld [vmem:[%s3511 + $0xa4] sm:$0xf]
      %v3540 = vld [vmem:[%s3511 + $0xa8] sm:$0xff]
      %v3541 = vld [vmem:[%s3511 + $0xb0] sm:$0xf]
      %v3542 = vld [vmem:[%s3511 + $0xb4] sm:$0xff]
      %v3543 = vld [vmem:[%s3511 + $0xbc] sm:$0xf]
      %v3544 = vld [vmem:[%s3511 + $0xc0] sm:$0xff]
      %v3545 = vld [vmem:[%s3511 + $0xc8] sm:$0xf]
      %v3546 = vld [vmem:[%s3511 + $0xcc] sm:$0xff]
      %v3547 = vld [vmem:[%s3511 + $0xd4] sm:$0xf]
      %v3548 = vld [vmem:[%s3511 + $0xd8] sm:$0xff]
      %v3549 = vld [vmem:[%s3511 + $0xe0] sm:$0xf]
      %v3550 = vld [vmem:[%s3511 + $0xe4] sm:$0xff]
      %v3551 = vld [vmem:[%s3511 + $0xec] sm:$0xf]
      %v3552 = vld [vmem:[%s3511 + $0xf0] sm:$0xff]
      %v3553 = vld [vmem:[%s3511 + $0xf8] sm:$0xf]
      %v3554 = vld [vmem:[%s3511 + $0xfc] sm:$0xff]
      %v3555 = vld [vmem:[%s3511 + $0x104] sm:$0xf]
      %v3556 = vld [vmem:[%s3511 + $0x108] sm:$0xff]
      %v3557 = vld [vmem:[%s3511 + $0x110] sm:$0xf]
      %v3558 = vld [vmem:[%s3511 + $0x114] sm:$0xff]
      %v3559 = vld [vmem:[%s3511 + $0x11c] sm:$0xf]
      %v3560 = vld [vmem:[%s3511 + $0x120] sm:$0xff]
      %v3561 = vld [vmem:[%s3511 + $0x128] sm:$0xf]
      %v3562 = vld [vmem:[%s3511 + $0x12c] sm:$0xff]
      %v3563 = vld [vmem:[%s3511 + $0x134] sm:$0xf]
      %v3564 = vld [vmem:[%s3511 + $0x138] sm:$0xff]
      %v3565 = vld [vmem:[%s3511 + $0x140] sm:$0xf]
      %s3566 = scalar_lea.vmem %s562, 192
      %v3567 = vld [vmem:[%s3566] sm:$0xf]
      %v3568 = vld [vmem:[%s3566 + $0x4] sm:$0xf]
      %v3569 = vld [vmem:[%s3566 + $0x8] sm:$0xf]
      %v3570 = vld [vmem:[%s3566 + $0xc] sm:$0xf]
      %v3571 = vld [vmem:[%s3566 + $0x10] sm:$0xf]
      %v3572 = vld [vmem:[%s3566 + $0x14] sm:$0xf]
      %v3573 = vld [vmem:[%s3566 + $0x18] sm:$0xf]
      %v3574 = vld [vmem:[%s3566 + $0x1c] sm:$0xf]
      %v3575 = vld [vmem:[%s3566 + $0x20] sm:$0xf]
      %v3576 = vld [vmem:[%s3566 + $0x24] sm:$0xf]
      %v3577 = vld [vmem:[%s3566 + $0x28] sm:$0xf]
      %v3578 = vld [vmem:[%s3566 + $0x2c] sm:$0xf]
      %v3579 = vld [vmem:[%s3566 + $0x30] sm:$0xf]
      %v3580 = vld [vmem:[%s3566 + $0x34] sm:$0xf]
      %v3581 = vld [vmem:[%s3566 + $0x38] sm:$0xf]
      %v3582 = vld [vmem:[%s3566 + $0x3c] sm:$0xf]
      %v3583 = vld [vmem:[%s3566 + $0x40] sm:$0xf]
      %v3584 = vld [vmem:[%s3566 + $0x44] sm:$0xf]
      %v3585 = vld [vmem:[%s3566 + $0x48] sm:$0xf]
      %v3586 = vld [vmem:[%s3566 + $0x4c] sm:$0xf]
      %v3587 = vld [vmem:[%s3566 + $0x50] sm:$0xf]
      %v3588 = vld [vmem:[%s3566 + $0x54] sm:$0xf]
      %v3589 = vld [vmem:[%s3566 + $0x58] sm:$0xf]
      %v3590 = vld [vmem:[%s3566 + $0x5c] sm:$0xf]
      %v3591 = vld [vmem:[%s3566 + $0x60] sm:$0xf]
      %v3592 = vld [vmem:[%s3566 + $0x64] sm:$0xf]
      %v3593 = vld [vmem:[%s3566 + $0x68] sm:$0xf]
      %v3594 = vld [vmem:[%s3566 + $0x6c] sm:$0xf]
      %v3595 = vld [vmem:[%s3566 + $0x70] sm:$0xf]
      %v3596 = vld [vmem:[%s3566 + $0x74] sm:$0xf]
      %v3597 = vld [vmem:[%s3566 + $0x78] sm:$0xf]
      %v3598 = vld [vmem:[%s3566 + $0x7c] sm:$0xf]
      %v3599 = vld [vmem:[%s3566 + $0x80] sm:$0xf]
      %v3600 = vld [vmem:[%s3566 + $0x84] sm:$0xf]
      %v3601 = vld [vmem:[%s3566 + $0x88] sm:$0xf]
      %v3602 = vld [vmem:[%s3566 + $0x8c] sm:$0xf]
      %v3603 = vld [vmem:[%s3566 + $0x90] sm:$0xf]
      %v3604 = vld [vmem:[%s3566 + $0x94] sm:$0xf]
      %v3605 = vld [vmem:[%s3566 + $0x98] sm:$0xf]
      %v3606 = vld [vmem:[%s3566 + $0x9c] sm:$0xf]
      %v3607 = vld [vmem:[%s3566 + $0xa0] sm:$0xf]
      %v3608 = vld [vmem:[%s3566 + $0xa4] sm:$0xf]
      %v3609 = vld [vmem:[%s3566 + $0xa8] sm:$0xf]
      %v3610 = vld [vmem:[%s3566 + $0xac] sm:$0xf]
      %v3611 = vld [vmem:[%s3566 + $0xb0] sm:$0xf]
      %v3612 = vld [vmem:[%s3566 + $0xb4] sm:$0xf]
      %v3613 = vld [vmem:[%s3566 + $0xb8] sm:$0xf]
      %v3614 = vld [vmem:[%s3566 + $0xbc] sm:$0xf]
      %v3669 = vunpack.c.l.b16 %v3512
      %v3670 = vunpack.c.h.b16 %v3512
      %v3671 = vunpack.c.l.b16 %v3513
      %v3672 = vunpack.c.l.b16 %v3514
      %v3673 = vunpack.c.h.b16 %v3514
      %v3674 = vunpack.c.l.b16 %v3515
      %v3675 = vunpack.c.l.b16 %v3516
      %v3676 = vunpack.c.h.b16 %v3516
      %v3677 = vunpack.c.l.b16 %v3517
      %v3678 = vunpack.c.l.b16 %v3518
      %v3679 = vunpack.c.h.b16 %v3518
      %v3680 = vunpack.c.l.b16 %v3519
      %v3681 = vunpack.c.l.b16 %v3520
      %v3682 = vunpack.c.h.b16 %v3520
      %v3683 = vunpack.c.l.b16 %v3521
      %v3684 = vunpack.c.l.b16 %v3522
      %v3685 = vunpack.c.h.b16 %v3522
      %v3686 = vunpack.c.l.b16 %v3523
      %v3687 = vunpack.c.l.b16 %v3524
      %v3688 = vunpack.c.h.b16 %v3524
      %v3689 = vunpack.c.l.b16 %v3525
      %v3690 = vunpack.c.l.b16 %v3526
      %v3691 = vunpack.c.h.b16 %v3526
      %v3692 = vunpack.c.l.b16 %v3527
      %v3693 = vunpack.c.l.b16 %v3528
      %v3694 = vunpack.c.h.b16 %v3528
      %v3695 = vunpack.c.l.b16 %v3529
      %v3696 = vunpack.c.l.b16 %v3530
      %v3697 = vunpack.c.h.b16 %v3530
      %v3698 = vunpack.c.l.b16 %v3531
      %v3699 = vunpack.c.l.b16 %v3532
      %v3700 = vunpack.c.h.b16 %v3532
      %v3701 = vunpack.c.l.b16 %v3533
      %v3702 = vunpack.c.l.b16 %v3534
      %v3703 = vunpack.c.h.b16 %v3534
      %v3704 = vunpack.c.l.b16 %v3535
      %v3705 = vunpack.c.l.b16 %v3536
      %v3706 = vunpack.c.h.b16 %v3536
      %v3707 = vunpack.c.l.b16 %v3537
      %v3708 = vunpack.c.l.b16 %v3538
      %v3709 = vunpack.c.h.b16 %v3538
      %v3710 = vunpack.c.l.b16 %v3539
      %v3711 = vunpack.c.l.b16 %v3540
      %v3712 = vunpack.c.h.b16 %v3540
      %v3713 = vunpack.c.l.b16 %v3541
      %v3714 = vunpack.c.l.b16 %v3542
      %v3715 = vunpack.c.h.b16 %v3542
      %v3716 = vunpack.c.l.b16 %v3543
      %v3717 = vunpack.c.l.b16 %v3544
      %v3718 = vunpack.c.h.b16 %v3544
      %v3719 = vunpack.c.l.b16 %v3545
      %v3720 = vunpack.c.l.b16 %v3546
      %v3721 = vunpack.c.h.b16 %v3546
      %v3722 = vunpack.c.l.b16 %v3547
      %v3723 = vunpack.c.l.b16 %v3548
      %v3724 = vunpack.c.h.b16 %v3548
      %v3725 = vunpack.c.l.b16 %v3549
      %v3726 = vunpack.c.l.b16 %v3550
      %v3727 = vunpack.c.h.b16 %v3550
      %v3728 = vunpack.c.l.b16 %v3551
      %v3729 = vunpack.c.l.b16 %v3552
      %v3730 = vunpack.c.h.b16 %v3552
      %v3731 = vunpack.c.l.b16 %v3553
      %v3732 = vunpack.c.l.b16 %v3554
      %v3733 = vunpack.c.h.b16 %v3554
      %v3734 = vunpack.c.l.b16 %v3555
      %v3735 = vunpack.c.l.b16 %v3556
      %v3736 = vunpack.c.h.b16 %v3556
      %v3737 = vunpack.c.l.b16 %v3557
      %v3738 = vunpack.c.l.b16 %v3558
      %v3739 = vunpack.c.h.b16 %v3558
      %v3740 = vunpack.c.l.b16 %v3559
      %v3741 = vunpack.c.l.b16 %v3560
      %v3742 = vunpack.c.h.b16 %v3560
      %v3743 = vunpack.c.l.b16 %v3561
      %v3744 = vunpack.c.l.b16 %v3562
      %v3745 = vunpack.c.h.b16 %v3562
      %v3746 = vunpack.c.l.b16 %v3563
      %v3747 = vunpack.c.l.b16 %v3564
      %v3748 = vunpack.c.h.b16 %v3564
      %v3749 = vunpack.c.l.b16 %v3565
      %v3750 = vpack.c.b16 %v3672, %v3669
      %v3751 = vpack.c.b16 %v3673, %v3670
      %v3752 = vpack.c.b16 %v3674, %v3671
      %v3753 = vpack.c.b16 %v3678, %v3675
      %v3754 = vpack.c.b16 %v3679, %v3676
      %v3755 = vpack.c.b16 %v3680, %v3677
      %v3756 = vpack.c.b16 %v3684, %v3681
      %v3757 = vpack.c.b16 %v3685, %v3682
      %v3758 = vpack.c.b16 %v3686, %v3683
      %v3759 = vpack.c.b16 %v3690, %v3687
      %v3760 = vpack.c.b16 %v3691, %v3688
      %v3761 = vpack.c.b16 %v3692, %v3689
      %v3762 = vpack.c.b16 %v3696, %v3693
      %v3763 = vpack.c.b16 %v3697, %v3694
      %v3764 = vpack.c.b16 %v3698, %v3695
      %v3765 = vpack.c.b16 %v3702, %v3699
      %v3766 = vpack.c.b16 %v3703, %v3700
      %v3767 = vpack.c.b16 %v3704, %v3701
      %v3768 = vpack.c.b16 %v3708, %v3705
      %v3769 = vpack.c.b16 %v3709, %v3706
      %v3770 = vpack.c.b16 %v3710, %v3707
      %v3771 = vpack.c.b16 %v3714, %v3711
      %v3772 = vpack.c.b16 %v3715, %v3712
      %v3773 = vpack.c.b16 %v3716, %v3713
      %v3774 = vpack.c.b16 %v3720, %v3717
      %v3775 = vpack.c.b16 %v3721, %v3718
      %v3776 = vpack.c.b16 %v3722, %v3719
      %v3777 = vpack.c.b16 %v3726, %v3723
      %v3778 = vpack.c.b16 %v3727, %v3724
      %v3779 = vpack.c.b16 %v3728, %v3725
      %v3780 = vpack.c.b16 %v3732, %v3729
      %v3781 = vpack.c.b16 %v3733, %v3730
      %v3782 = vpack.c.b16 %v3734, %v3731
      %v3783 = vpack.c.b16 %v3738, %v3735
      %v3784 = vpack.c.b16 %v3739, %v3736
      %v3785 = vpack.c.b16 %v3740, %v3737
      %v3786 = vpack.c.b16 %v3744, %v3741
      %v3787 = vpack.c.b16 %v3745, %v3742
      %v3788 = vpack.c.b16 %v3746, %v3743
      %v3789 = vpack.c.b16 %v3747, %v3747
      %v3790 = vpack.c.b16 %v3748, %v3748
      %v3791 = vpack.c.b16 %v3749, %v3749
      %v3882 = vunpack.c.l.b16 %v3567
      %v3883 = vunpack.c.l.b16 %v3568
      %v3884 = vunpack.c.l.b16 %v3569
      %v3885 = vunpack.c.l.b16 %v3570
      %v3886 = vunpack.c.l.b16 %v3571
      %v3887 = vunpack.c.l.b16 %v3572
      %v3888 = vunpack.c.l.b16 %v3573
      %v3889 = vunpack.c.l.b16 %v3574
      %v3890 = vunpack.c.l.b16 %v3575
      %v3891 = vunpack.c.l.b16 %v3576
      %v3892 = vunpack.c.l.b16 %v3577
      %v3893 = vunpack.c.l.b16 %v3578
      %v3894 = vunpack.c.l.b16 %v3579
      %v3895 = vunpack.c.l.b16 %v3580
      %v3896 = vunpack.c.l.b16 %v3581
      %v3897 = vunpack.c.l.b16 %v3582
      %v3898 = vunpack.c.l.b16 %v3583
      %v3899 = vunpack.c.l.b16 %v3584
      %v3900 = vunpack.c.l.b16 %v3585
      %v3901 = vunpack.c.l.b16 %v3586
      %v3902 = vunpack.c.l.b16 %v3587
      %v3903 = vunpack.c.l.b16 %v3588
      %v3904 = vunpack.c.l.b16 %v3589
      %v3905 = vunpack.c.l.b16 %v3590
      %v3906 = vunpack.c.l.b16 %v3591
      %v3907 = vunpack.c.l.b16 %v3592
      %v3908 = vunpack.c.l.b16 %v3593
      %v3909 = vunpack.c.l.b16 %v3594
      %v3910 = vunpack.c.l.b16 %v3595
      %v3911 = vunpack.c.l.b16 %v3596
      %v3912 = vunpack.c.l.b16 %v3597
      %v3913 = vunpack.c.l.b16 %v3598
      %v3914 = vunpack.c.l.b16 %v3599
      %v3915 = vunpack.c.l.b16 %v3600
      %v3916 = vunpack.c.l.b16 %v3601
      %v3917 = vunpack.c.l.b16 %v3602
      %v3918 = vunpack.c.l.b16 %v3603
      %v3919 = vunpack.c.l.b16 %v3604
      %v3920 = vunpack.c.l.b16 %v3605
      %v3921 = vunpack.c.l.b16 %v3606
      %v3922 = vunpack.c.l.b16 %v3607
      %v3923 = vunpack.c.l.b16 %v3608
      %v3924 = vunpack.c.l.b16 %v3609
      %v3925 = vunpack.c.l.b16 %v3610
      %v3926 = vunpack.c.l.b16 %v3611
      %v3927 = vunpack.c.l.b16 %v3612
      %v3928 = vunpack.c.l.b16 %v3613
      %v3929 = vunpack.c.l.b16 %v3614
      %v3930 = vpack.c.b16 %v3883, %v3882
      %v3931 = vpack.c.b16 %v3885, %v3884
      %v3932 = vpack.c.b16 %v3887, %v3886
      %v3933 = vpack.c.b16 %v3889, %v3888
      %v3934 = vpack.c.b16 %v3891, %v3890
      %v3935 = vpack.c.b16 %v3893, %v3892
      %v3936 = vpack.c.b16 %v3895, %v3894
      %v3937 = vpack.c.b16 %v3897, %v3896
      %v3938 = vpack.c.b16 %v3899, %v3898
      %v3939 = vpack.c.b16 %v3901, %v3900
      %v3940 = vpack.c.b16 %v3903, %v3902
      %v3941 = vpack.c.b16 %v3905, %v3904
      %v3942 = vpack.c.b16 %v3907, %v3906
      %v3943 = vpack.c.b16 %v3909, %v3908
      %v3944 = vpack.c.b16 %v3911, %v3910
      %v3945 = vpack.c.b16 %v3913, %v3912
      %v3946 = vpack.c.b16 %v3915, %v3914
      %v3947 = vpack.c.b16 %v3917, %v3916
      %v3948 = vpack.c.b16 %v3919, %v3918
      %v3949 = vpack.c.b16 %v3921, %v3920
      %v3950 = vpack.c.b16 %v3923, %v3922
      %v3951 = vpack.c.b16 %v3925, %v3924
      %v3952 = vpack.c.b16 %v3927, %v3926
      %v3953 = vpack.c.b16 %v3929, %v3928
      %3978 = vmatprep.subr.bf16.mxu0 0
      %3979 = vmatpush1.bf16.msra.mxu0 %v3930
      %3980 = vmatprep.subr.bf16.mxu0 0
      %3981 = vmatpush1.bf16.msra.mxu0 %v3931
      %3982 = vmatprep.subr.bf16.mxu0 0
      %3983 = vmatpush1.bf16.msra.mxu0 %v3932
      %3984 = vmatprep.subr.bf16.mxu0 0
      %3985 = vmatpush1.bf16.msra.mxu0 %v3933
      %3986 = vmatprep.subr.bf16.mxu0 0
      %3987 = vmatpush1.bf16.msra.mxu0 %v3934
      %3988 = vmatprep.subr.bf16.mxu0 0
      %3989 = vmatpush1.bf16.msra.mxu0 %v3935
      %3990 = vmatprep.subr.bf16.mxu0 0
      %3991 = vmatpush1.bf16.msra.mxu0 %v3936
      %3992 = vmatprep.subr.bf16.mxu0 0
      %3993 = vmatpush1.bf16.msra.mxu0 %v3937
      %3994 = vmatprep.subr.bf16.mxu0 0
      %3995 = vmatpush1.bf16.msra.mxu0 %v3938
      %3996 = vmatprep.subr.bf16.mxu0 0
      %3997 = vmatpush1.bf16.msra.mxu0 %v3939
      %3998 = vmatprep.subr.bf16.mxu0 0
      %3999 = vmatpush1.bf16.msra.mxu0 %v3940
      %4000 = vmatprep.subr.bf16.mxu0 0
      %4001 = vmatpush1.bf16.msra.mxu0 %v3941
      %4002 = vmatprep.subr.bf16.mxu0 0
      %4003 = vmatpush1.bf16.msra.mxu0 %v3942
      %4004 = vmatprep.subr.bf16.mxu0 0
      %4005 = vmatpush1.bf16.msra.mxu0 %v3943
      %4006 = vmatprep.subr.bf16.mxu0 0
      %4007 = vmatpush1.bf16.msra.mxu0 %v3944
      %4008 = vmatprep.subr.bf16.mxu0 0
      %4009 = vmatpush1.bf16.msra.mxu0 %v3945
      %4010 = vmatprep.mubr.bf16.mxu0 %v3751
      %4011 = vmatmul.mubr.bf16.gmra.mrb[0].mxu0 %v3750
      %v4012 = vpop.f32.mrb[0].mxu0
      %v4013 = vadd.f32 0.0, %v4012
      %v4014 = vpop.f32.mrb[0].mxu0
      %v4015 = vpop.f32.mrb[0].mxu0
      %v4016 = vadd.f32 0.0, %v4015
      %v4017 = vpop.f32.mrb[0].mxu0
      %4018 = vmatprep.mubr.bf16.mxu0 %v3754
      %4019 = vmatmul.mubr.bf16.gmra.mrb[0].mxu0 %v3753
      %v4020 = vpop.f32.mrb[0].mxu0
      %v4021 = vadd.f32 0.0, %v4020
      %v4022 = vpop.f32.mrb[0].mxu0
      %v4023 = vpop.f32.mrb[0].mxu0
      %v4024 = vadd.f32 0.0, %v4023
      %v4025 = vpop.f32.mrb[0].mxu0
      %4026 = vmatprep.mubr.bf16.mxu0 %v3757
      %4027 = vmatmul.mubr.bf16.gmra.mrb[0].mxu0 %v3756
      %v4028 = vpop.f32.mrb[0].mxu0
      %v4029 = vadd.f32 0.0, %v4028
      %v4030 = vpop.f32.mrb[0].mxu0
      %v4031 = vpop.f32.mrb[0].mxu0
      %v4032 = vadd.f32 0.0, %v4031
      %v4033 = vpop.f32.mrb[0].mxu0
      %4034 = vmatprep.mubr.bf16.mxu0 %v3760
      %4035 = vmatmul.mubr.bf16.gmra.mrb[0].mxu0 %v3759
      %v4036 = vpop.f32.mrb[0].mxu0
      %v4037 = vadd.f32 0.0, %v4036
      %v4038 = vpop.f32.mrb[0].mxu0
      %v4039 = vpop.f32.mrb[0].mxu0
      %v4040 = vadd.f32 0.0, %v4039
      %v4041 = vpop.f32.mrb[0].mxu0
      %4042 = vmatprep.mubr.bf16.mxu0 %v3763
      %4043 = vmatmul.mubr.bf16.gmra.mrb[0].mxu0 %v3762
      %v4044 = vpop.f32.mrb[0].mxu0
      %v4045 = vadd.f32 0.0, %v4044
      %v4046 = vpop.f32.mrb[0].mxu0
      %v4047 = vpop.f32.mrb[0].mxu0
      %v4048 = vadd.f32 0.0, %v4047
      %v4049 = vpop.f32.mrb[0].mxu0
      %4050 = vmatprep.mubr.bf16.mxu0 %v3766
      %4051 = vmatmul.mubr.bf16.gmra.mrb[0].mxu0 %v3765
      %v4052 = vpop.f32.mrb[0].mxu0
      %v4053 = vadd.f32 0.0, %v4052
      %v4054 = vpop.f32.mrb[0].mxu0
      %v4055 = vpop.f32.mrb[0].mxu0
      %v4056 = vadd.f32 0.0, %v4055
      %v4057 = vpop.f32.mrb[0].mxu0
      %4058 = vmatprep.mubr.bf16.mxu0 %v3769
      %4059 = vmatmul.mubr.bf16.gmra.mrb[0].mxu0 %v3768
      %v4060 = vpop.f32.mrb[0].mxu0
      %v4061 = vadd.f32 0.0, %v4060
      %v4062 = vpop.f32.mrb[0].mxu0
      %v4063 = vpop.f32.mrb[0].mxu0
      %v4064 = vadd.f32 0.0, %v4063
      %v4065 = vpop.f32.mrb[0].mxu0
      %4066 = vmatprep.mubr.bf16.mxu0 %v3772
      %4067 = vmatmul.mubr.bf16.gmra.mrb[0].mxu0 %v3771
      %v4068 = vpop.f32.mrb[0].mxu0
      %v4069 = vadd.f32 0.0, %v4068
      %v4070 = vpop.f32.mrb[0].mxu0
      %v4071 = vpop.f32.mrb[0].mxu0
      %v4072 = vadd.f32 0.0, %v4071
      %v4073 = vpop.f32.mrb[0].mxu0
      %4074 = vmatprep.mubr.bf16.mxu0 %v3775
      %4075 = vmatmul.mubr.bf16.gmra.mrb[0].mxu0 %v3774
      %v4076 = vpop.f32.mrb[0].mxu0
      %v4077 = vadd.f32 0.0, %v4076
      %v4078 = vpop.f32.mrb[0].mxu0
      %v4079 = vpop.f32.mrb[0].mxu0
      %v4080 = vadd.f32 0.0, %v4079
      %v4081 = vpop.f32.mrb[0].mxu0
      %4082 = vmatprep.mubr.bf16.mxu0 %v3778
      %4083 = vmatmul.mubr.bf16.gmra.mrb[0].mxu0 %v3777
      %v4084 = vpop.f32.mrb[0].mxu0
      %v4085 = vadd.f32 0.0, %v4084
      %v4086 = vpop.f32.mrb[0].mxu0
      %v4087 = vpop.f32.mrb[0].mxu0
      %v4088 = vadd.f32 0.0, %v4087
      %v4089 = vpop.f32.mrb[0].mxu0
      %4090 = vmatprep.mubr.bf16.mxu0 %v3781
      %4091 = vmatmul.mubr.bf16.gmra.mrb[0].mxu0 %v3780
      %v4092 = vpop.f32.mrb[0].mxu0
      %v4093 = vadd.f32 0.0, %v4092
      %v4094 = vpop.f32.mrb[0].mxu0
      %v4095 = vpop.f32.mrb[0].mxu0
      %v4096 = vadd.f32 0.0, %v4095
      %v4097 = vpop.f32.mrb[0].mxu0
      %4098 = vmatprep.mubr.bf16.mxu0 %v3784
      %4099 = vmatmul.mubr.bf16.gmra.mrb[0].mxu0 %v3783
      %v4100 = vpop.f32.mrb[0].mxu0
      %v4101 = vadd.f32 0.0, %v4100
      %v4102 = vpop.f32.mrb[0].mxu0
      %v4103 = vpop.f32.mrb[0].mxu0
      %v4104 = vadd.f32 0.0, %v4103
      %v4105 = vpop.f32.mrb[0].mxu0
      %4106 = vmatprep.mubr.bf16.mxu0 %v3787
      %4107 = vmatmul.mubr.bf16.gmra.mrb[0].mxu0 %v3786
      %v4108 = vpop.f32.mrb[0].mxu0
      %v4109 = vadd.f32 0.0, %v4108
      %v4110 = vpop.f32.mrb[0].mxu0
      %v4111 = vpop.f32.mrb[0].mxu0
      %v4112 = vadd.f32 0.0, %v4111
      %v4113 = vpop.f32.mrb[0].mxu0
      %4114 = vmatprep.mubr.bf16.mxu0 %v3790
      %4115 = vmatmul.mubr.bf16.gmra.mrb[0].mxu0 %v3789
      %v4116 = vpop.f32.mrb[0].mxu0
      %v4117 = vadd.f32 0.0, %v4116
      %v4118 = vpop.f32.mrb[0].mxu0
      %v4119 = vpop.f32.mrb[0].mxu0
      %v4120 = vpop.f32.mrb[0].mxu0
      %4121 = vdwg.mxu0
      %4122 = vmatprep.subr.bf16.mxu0 0
      %4123 = vmatpush1.bf16.msra.mxu0 %v3946
      %4124 = vmatprep.subr.bf16.mxu0 0
      %4125 = vmatpush1.bf16.msra.mxu0 %v3947
      %4126 = vmatprep.subr.bf16.mxu0 0
      %4127 = vmatpush1.bf16.msra.mxu0 %v3948
      %4128 = vmatprep.subr.bf16.mxu0 0
      %4129 = vmatpush1.bf16.msra.mxu0 %v3949
      %4130 = vmatprep.subr.bf16.mxu0 0
      %4131 = vmatpush1.bf16.msra.mxu0 %v3950
      %4132 = vmatprep.subr.bf16.mxu0 0
      %4133 = vmatpush1.bf16.msra.mxu0 %v3951
      %4134 = vmatprep.subr.bf16.mxu0 0
      %4135 = vmatpush1.bf16.msra.mxu0 %v3952
      %4136 = vmatprep.subr.bf16.mxu0 0
      %4137 = vmatpush1.bf16.msra.mxu0 %v3953
      %4138 = vmatprep.subr.bf16.mxu0 0
      %4139 = vmatpush1.bf16.msra.mxu0 0
      %4140 = vmatprep.subr.bf16.mxu0 0
      %4141 = vmatpush1.bf16.msra.mxu0 0
      %4142 = vmatprep.subr.bf16.mxu0 0
      %4143 = vmatpush1.bf16.msra.mxu0 0
      %4144 = vmatprep.subr.bf16.mxu0 0
      %4145 = vmatpush1.bf16.msra.mxu0 0
      %4146 = vmatprep.subr.bf16.mxu0 0
      %4147 = vmatpush1.bf16.msra.mxu0 0
      %4148 = vmatprep.subr.bf16.mxu0 0
      %4149 = vmatpush1.bf16.msra.mxu0 0
      %4150 = vmatprep.subr.bf16.mxu0 0
      %4151 = vmatpush1.bf16.msra.mxu0 0
      %4152 = vmatprep.subr.bf16.mxu0 0
      %4153 = vmatpush1.bf16.msra.mxu0 0
      %4154 = vmatprep.mubr.bf16.mxu0 0
      %4155 = vmatmul.mubr.bf16.gmra.mrb[0].mxu0 %v3752
      %v4156 = vpop.f32.mrb[0].mxu0
      %v4157 = vadd.f32 %v4013, %v4156
      %v4158 = vpop.f32.mrb[0].mxu0
      %v4159 = vpop.f32.mrb[0].mxu0
      %v4160 = vadd.f32 %v4016, %v4159
      %v4161 = vpop.f32.mrb[0].mxu0
      %4162 = vmatprep.mubr.bf16.mxu0 0
      %4163 = vmatmul.mubr.bf16.gmra.mrb[0].mxu0 %v3755
      %v4164 = vpop.f32.mrb[0].mxu0
      %v4165 = vadd.f32 %v4021, %v4164
      %v4166 = vpop.f32.mrb[0].mxu0
      %v4167 = vpop.f32.mrb[0].mxu0
      %v4168 = vadd.f32 %v4024, %v4167
      %v4169 = vpop.f32.mrb[0].mxu0
      %4170 = vmatprep.mubr.bf16.mxu0 0
      %4171 = vmatmul.mubr.bf16.gmra.mrb[0].mxu0 %v3758
      %v4172 = vpop.f32.mrb[0].mxu0
      %v4173 = vadd.f32 %v4029, %v4172
      %v4174 = vpop.f32.mrb[0].mxu0
      %v4175 = vpop.f32.mrb[0].mxu0
      %v4176 = vadd.f32 %v4032, %v4175
      %v4177 = vpop.f32.mrb[0].mxu0
      %4178 = vmatprep.mubr.bf16.mxu0 0
      %4179 = vmatmul.mubr.bf16.gmra.mrb[0].mxu0 %v3761
      %v4180 = vpop.f32.mrb[0].mxu0
      %v4181 = vadd.f32 %v4037, %v4180
      %v4182 = vpop.f32.mrb[0].mxu0
      %v4183 = vpop.f32.mrb[0].mxu0
      %v4184 = vadd.f32 %v4040, %v4183
      %v4185 = vpop.f32.mrb[0].mxu0
      %4186 = vmatprep.mubr.bf16.mxu0 0
      %4187 = vmatmul.mubr.bf16.gmra.mrb[0].mxu0 %v3764
      %v4188 = vpop.f32.mrb[0].mxu0
      %v4189 = vadd.f32 %v4045, %v4188
      %v4190 = vpop.f32.mrb[0].mxu0
      %v4191 = vpop.f32.mrb[0].mxu0
      %v4192 = vadd.f32 %v4048, %v4191
      %v4193 = vpop.f32.mrb[0].mxu0
      %4194 = vmatprep.mubr.bf16.mxu0 0
      %4195 = vmatmul.mubr.bf16.gmra.mrb[0].mxu0 %v3767
      %v4196 = vpop.f32.mrb[0].mxu0
      %v4197 = vadd.f32 %v4053, %v4196
      %v4198 = vpop.f32.mrb[0].mxu0
      %v4199 = vpop.f32.mrb[0].mxu0
      %v4200 = vadd.f32 %v4056, %v4199
      %v4201 = vpop.f32.mrb[0].mxu0
      %4202 = vmatprep.mubr.bf16.mxu0 0
      %4203 = vmatmul.mubr.bf16.gmra.mrb[0].mxu0 %v3770
      %v4204 = vpop.f32.mrb[0].mxu0
      %v4205 = vadd.f32 %v4061, %v4204
      %v4206 = vpop.f32.mrb[0].mxu0
      %v4207 = vpop.f32.mrb[0].mxu0
      %v4208 = vadd.f32 %v4064, %v4207
      %v4209 = vpop.f32.mrb[0].mxu0
      %4210 = vmatprep.mubr.bf16.mxu0 0
      %4211 = vmatmul.mubr.bf16.gmra.mrb[0].mxu0 %v3773
      %v4212 = vpop.f32.mrb[0].mxu0
      %v4213 = vadd.f32 %v4069, %v4212
      %v4214 = vpop.f32.mrb[0].mxu0
      %v4215 = vpop.f32.mrb[0].mxu0
      %v4216 = vadd.f32 %v4072, %v4215
      %v4217 = vpop.f32.mrb[0].mxu0
      %4218 = vmatprep.mubr.bf16.mxu0 0
      %4219 = vmatmul.mubr.bf16.gmra.mrb[0].mxu0 %v3776
      %v4220 = vpop.f32.mrb[0].mxu0
      %v4221 = vadd.f32 %v4077, %v4220
      %v4222 = vpop.f32.mrb[0].mxu0
      %v4223 = vpop.f32.mrb[0].mxu0
      %v4224 = vadd.f32 %v4080, %v4223
      %v4225 = vpop.f32.mrb[0].mxu0
      %4226 = vmatprep.mubr.bf16.mxu0 0
      %4227 = vmatmul.mubr.bf16.gmra.mrb[0].mxu0 %v3779
      %v4228 = vpop.f32.mrb[0].mxu0
      %v4229 = vadd.f32 %v4085, %v4228
      %v4230 = vpop.f32.mrb[0].mxu0
      %v4231 = vpop.f32.mrb[0].mxu0
      %v4232 = vadd.f32 %v4088, %v4231
      %v4233 = vpop.f32.mrb[0].mxu0
      %4234 = vmatprep.mubr.bf16.mxu0 0
      %4235 = vmatmul.mubr.bf16.gmra.mrb[0].mxu0 %v3782
      %v4236 = vpop.f32.mrb[0].mxu0
      %v4237 = vadd.f32 %v4093, %v4236
      %v4238 = vpop.f32.mrb[0].mxu0
      %v4239 = vpop.f32.mrb[0].mxu0
      %v4240 = vadd.f32 %v4096, %v4239
      %v4241 = vpop.f32.mrb[0].mxu0
      %4242 = vmatprep.mubr.bf16.mxu0 0
      %4243 = vmatmul.mubr.bf16.gmra.mrb[0].mxu0 %v3785
      %v4244 = vpop.f32.mrb[0].mxu0
      %v4245 = vadd.f32 %v4101, %v4244
      %v4246 = vpop.f32.mrb[0].mxu0
      %v4247 = vpop.f32.mrb[0].mxu0
      %v4248 = vadd.f32 %v4104, %v4247
      %v4249 = vpop.f32.mrb[0].mxu0
      %4250 = vmatprep.mubr.bf16.mxu0 0
      %4251 = vmatmul.mubr.bf16.gmra.mrb[0].mxu0 %v3788
      %v4252 = vpop.f32.mrb[0].mxu0
      %v4253 = vadd.f32 %v4109, %v4252
      %v4254 = vpop.f32.mrb[0].mxu0
      %v4255 = vpop.f32.mrb[0].mxu0
      %v4256 = vadd.f32 %v4112, %v4255
      %v4257 = vpop.f32.mrb[0].mxu0
      %4258 = vmatprep.mubr.bf16.mxu0 0
      %4259 = vmatmul.mubr.bf16.gmra.mrb[0].mxu0 %v3791
      %v4260 = vpop.f32.mrb[0].mxu0
      %v4261 = vadd.f32 %v4117, %v4260
      %v4262 = vpop.f32.mrb[0].mxu0
      %v4263 = vpop.f32.mrb[0].mxu0
      %v4264 = vpop.f32.mrb[0].mxu0
      %4265 = vdwg.mxu0
      %v4266 = vld [vmem:[#allocation4] sm:$0xff]
      %v4267 = vld [vmem:[#allocation4 + $0x8] sm:$0xff]
      %v4268 = vld [vmem:[#allocation4 + $0x10] sm:$0xff]
      %v4269 = vld [vmem:[#allocation4 + $0x18] sm:$0xff]
      %v4270 = vld [vmem:[#allocation4 + $0x20] sm:$0xff]
      %v4271 = vld [vmem:[#allocation4 + $0x28] sm:$0xff]
      %v4272 = vld [vmem:[#allocation4 + $0x30] sm:$0xff]
      %v4273 = vld [vmem:[#allocation4 + $0x38] sm:$0xff]
      %v4274 = vld [vmem:[#allocation4 + $0x40] sm:$0xff]
      %v4275 = vld [vmem:[#allocation4 + $0x48] sm:$0xff]
      %v4276 = vld [vmem:[#allocation4 + $0x50] sm:$0xff]
      %v4277 = vld [vmem:[#allocation4 + $0x58] sm:$0xff]
      %v4278 = vld [vmem:[#allocation4 + $0x60] sm:$0xff]
      %v4279 = vld [vmem:[#allocation4 + $0x68] sm:$0xff]
      %v4280 = vld [vmem:[#allocation4 + $0x70] sm:$0xff]
      %v4281 = vld [vmem:[#allocation4 + $0x78] sm:$0xff]
      %v4282 = vld [vmem:[#allocation4 + $0x80] sm:$0xff]
      %v4283 = vld [vmem:[#allocation4 + $0x88] sm:$0xff]
      %v4284 = vld [vmem:[#allocation4 + $0x90] sm:$0xff]
      %v4285 = vld [vmem:[#allocation4 + $0x98] sm:$0xff]
      %v4286 = vld [vmem:[#allocation4 + $0xa0] sm:$0xff]
      %v4287 = vld [vmem:[#allocation4 + $0xa8] sm:$0xff]
      %v4288 = vld [vmem:[#allocation4 + $0xb0] sm:$0xff]
      %v4289 = vld [vmem:[#allocation4 + $0xb8] sm:$0xff]
      %v4290 = vld [vmem:[#allocation4 + $0xc0] sm:$0xff]
      %v4291 = vld [vmem:[#allocation4 + $0xc8] sm:$0xff]
      %v4292 = vld [vmem:[#allocation4 + $0xd0] sm:$0xff]
      %v4293 = vadd.f32 %v4266, %v4157
      %v4294 = vadd.f32 %v4267, %v4160
      %v4295 = vadd.f32 %v4268, %v4165
      %v4296 = vadd.f32 %v4269, %v4168
      %v4297 = vadd.f32 %v4270, %v4173
      %v4298 = vadd.f32 %v4271, %v4176
      %v4299 = vadd.f32 %v4272, %v4181
      %v4300 = vadd.f32 %v4273, %v4184
      %v4301 = vadd.f32 %v4274, %v4189
      %v4302 = vadd.f32 %v4275, %v4192
      %v4303 = vadd.f32 %v4276, %v4197
      %v4304 = vadd.f32 %v4277, %v4200
      %v4305 = vadd.f32 %v4278, %v4205
      %v4306 = vadd.f32 %v4279, %v4208
      %v4307 = vadd.f32 %v4280, %v4213
      %v4308 = vadd.f32 %v4281, %v4216
      %v4309 = vadd.f32 %v4282, %v4221
      %v4310 = vadd.f32 %v4283, %v4224
      %v4311 = vadd.f32 %v4284, %v4229
      %v4312 = vadd.f32 %v4285, %v4232
      %v4313 = vadd.f32 %v4286, %v4237
      %v4314 = vadd.f32 %v4287, %v4240
      %v4315 = vadd.f32 %v4288, %v4245
      %v4316 = vadd.f32 %v4289, %v4248
      %v4317 = vadd.f32 %v4290, %v4253
      %v4318 = vadd.f32 %v4291, %v4256
      %v4319 = vadd.f32 %v4292, %v4261
      %4320 = vst [vmem:[#allocation4] sm:$0xff] %v4293
      %4321 = vst [vmem:[#allocation4 + $0x8] sm:$0xff] %v4294
      %4322 = vst [vmem:[#allocation4 + $0x10] sm:$0xff] %v4295
      %4323 = vst [vmem:[#allocation4 + $0x18] sm:$0xff] %v4296
      %4324 = vst [vmem:[#allocation4 + $0x20] sm:$0xff] %v4297
      %4325 = vst [vmem:[#allocation4 + $0x28] sm:$0xff] %v4298
      %4326 = vst [vmem:[#allocation4 + $0x30] sm:$0xff] %v4299
      %4327 = vst [vmem:[#allocation4 + $0x38] sm:$0xff] %v4300
      %4328 = vst [vmem:[#allocation4 + $0x40] sm:$0xff] %v4301
      %4329 = vst [vmem:[#allocation4 + $0x48] sm:$0xff] %v4302
      %4330 = vst [vmem:[#allocation4 + $0x50] sm:$0xff] %v4303
      %4331 = vst [vmem:[#allocation4 + $0x58] sm:$0xff] %v4304
      %4332 = vst [vmem:[#allocation4 + $0x60] sm:$0xff] %v4305
      %4333 = vst [vmem:[#allocation4 + $0x68] sm:$0xff] %v4306
      %4334 = vst [vmem:[#allocation4 + $0x70] sm:$0xff] %v4307
      %4335 = vst [vmem:[#allocation4 + $0x78] sm:$0xff] %v4308
      %4336 = vst [vmem:[#allocation4 + $0x80] sm:$0xff] %v4309
      %4337 = vst [vmem:[#allocation4 + $0x88] sm:$0xff] %v4310
      %4338 = vst [vmem:[#allocation4 + $0x90] sm:$0xff] %v4311
      %4339 = vst [vmem:[#allocation4 + $0x98] sm:$0xff] %v4312
      %4340 = vst [vmem:[#allocation4 + $0xa0] sm:$0xff] %v4313
      %4341 = vst [vmem:[#allocation4 + $0xa8] sm:$0xff] %v4314
      %4342 = vst [vmem:[#allocation4 + $0xb0] sm:$0xff] %v4315
      %4343 = vst [vmem:[#allocation4 + $0xb8] sm:$0xff] %v4316
      %4344 = vst [vmem:[#allocation4 + $0xc0] sm:$0xff] %v4317
      %4345 = vst [vmem:[#allocation4 + $0xc8] sm:$0xff] %v4318
      %4346 = vst [vmem:[#allocation4 + $0xd0] sm:$0xff] %v4319
      %s4347 = scalar_lea.vmem [#allocation3], 72
      %v4348 = vld [vmem:[%s4347] sm:$0xff]
      %v4349 = vld [vmem:[%s4347 + $0x8] sm:$0xf]
      %v4350 = vld [vmem:[%s4347 + $0xc] sm:$0xff]
      %v4351 = vld [vmem:[%s4347 + $0x14] sm:$0xf]
      %v4352 = vld [vmem:[%s4347 + $0x18] sm:$0xff]
      %v4353 = vld [vmem:[%s4347 + $0x20] sm:$0xf]
      %v4354 = vld [vmem:[%s4347 + $0x24] sm:$0xff]
      %v4355 = vld [vmem:[%s4347 + $0x2c] sm:$0xf]
      %v4356 = vld [vmem:[%s4347 + $0x30] sm:$0xff]
      %v4357 = vld [vmem:[%s4347 + $0x38] sm:$0xf]
      %v4358 = vld [vmem:[%s4347 + $0x3c] sm:$0xff]
      %v4359 = vld [vmem:[%s4347 + $0x44] sm:$0xf]
      %v4360 = vld [vmem:[%s4347 + $0x48] sm:$0xff]
      %v4361 = vld [vmem:[%s4347 + $0x50] sm:$0xf]
      %v4362 = vld [vmem:[%s4347 + $0x54] sm:$0xff]
      %v4363 = vld [vmem:[%s4347 + $0x5c] sm:$0xf]
      %v4364 = vld [vmem:[%s4347 + $0x60] sm:$0xff]
      %v4365 = vld [vmem:[%s4347 + $0x68] sm:$0xf]
      %v4366 = vld [vmem:[%s4347 + $0x6c] sm:$0xff]
      %v4367 = vld [vmem:[%s4347 + $0x74] sm:$0xf]
      %v4368 = vld [vmem:[%s4347 + $0x78] sm:$0xff]
      %v4369 = vld [vmem:[%s4347 + $0x80] sm:$0xf]
      %v4370 = vld [vmem:[%s4347 + $0x84] sm:$0xff]
      %v4371 = vld [vmem:[%s4347 + $0x8c] sm:$0xf]
      %v4372 = vld [vmem:[%s4347 + $0x90] sm:$0xff]
      %v4373 = vld [vmem:[%s4347 + $0x98] sm:$0xf]
      %v4374 = vld [vmem:[%s4347 + $0x9c] sm:$0xff]
      %v4375 = vld [vmem:[%s4347 + $0xa4] sm:$0xf]
      %v4376 = vld [vmem:[%s4347 + $0xa8] sm:$0xff]
      %v4377 = vld [vmem:[%s4347 + $0xb0] sm:$0xf]
      %v4378 = vld [vmem:[%s4347 + $0xb4] sm:$0xff]
      %v4379 = vld [vmem:[%s4347 + $0xbc] sm:$0xf]
      %v4380 = vld [vmem:[%s4347 + $0xc0] sm:$0xff]
      %v4381 = vld [vmem:[%s4347 + $0xc8] sm:$0xf]
      %v4382 = vld [vmem:[%s4347 + $0xcc] sm:$0xff]
      %v4383 = vld [vmem:[%s4347 + $0xd4] sm:$0xf]
      %v4384 = vld [vmem:[%s4347 + $0xd8] sm:$0xff]
      %v4385 = vld [vmem:[%s4347 + $0xe0] sm:$0xf]
      %v4386 = vld [vmem:[%s4347 + $0xe4] sm:$0xff]
      %v4387 = vld [vmem:[%s4347 + $0xec] sm:$0xf]
      %v4388 = vld [vmem:[%s4347 + $0xf0] sm:$0xff]
      %v4389 = vld [vmem:[%s4347 + $0xf8] sm:$0xf]
      %v4390 = vld [vmem:[%s4347 + $0xfc] sm:$0xff]
      %v4391 = vld [vmem:[%s4347 + $0x104] sm:$0xf]
      %v4392 = vld [vmem:[%s4347 + $0x108] sm:$0xff]
      %v4393 = vld [vmem:[%s4347 + $0x110] sm:$0xf]
      %v4394 = vld [vmem:[%s4347 + $0x114] sm:$0xff]
      %v4395 = vld [vmem:[%s4347 + $0x11c] sm:$0xf]
      %v4396 = vld [vmem:[%s4347 + $0x120] sm:$0xff]
      %v4397 = vld [vmem:[%s4347 + $0x128] sm:$0xf]
      %v4398 = vld [vmem:[%s4347 + $0x12c] sm:$0xff]
      %v4399 = vld [vmem:[%s4347 + $0x134] sm:$0xf]
      %v4400 = vld [vmem:[%s4347 + $0x138] sm:$0xff]
      %v4401 = vld [vmem:[%s4347 + $0x140] sm:$0xf]
      %s4402 = scalar_lea.vmem %s562, 384
      %v4403 = vld [vmem:[%s4402] sm:$0xf]
      %v4404 = vld [vmem:[%s4402 + $0x4] sm:$0xf]
      %v4405 = vld [vmem:[%s4402 + $0x8] sm:$0xf]
      %v4406 = vld [vmem:[%s4402 + $0xc] sm:$0xf]
      %v4407 = vld [vmem:[%s4402 + $0x10] sm:$0xf]
      %v4408 = vld [vmem:[%s4402 + $0x14] sm:$0xf]
      %v4409 = vld [vmem:[%s4402 + $0x18] sm:$0xf]
      %v4410 = vld [vmem:[%s4402 + $0x1c] sm:$0xf]
      %v4411 = vld [vmem:[%s4402 + $0x20] sm:$0xf]
      %v4412 = vld [vmem:[%s4402 + $0x24] sm:$0xf]
      %v4413 = vld [vmem:[%s4402 + $0x28] sm:$0xf]
      %v4414 = vld [vmem:[%s4402 + $0x2c] sm:$0xf]
      %v4415 = vld [vmem:[%s4402 + $0x30] sm:$0xf]
      %v4416 = vld [vmem:[%s4402 + $0x34] sm:$0xf]
      %v4417 = vld [vmem:[%s4402 + $0x38] sm:$0xf]
      %v4418 = vld [vmem:[%s4402 + $0x3c] sm:$0xf]
      %v4419 = vld [vmem:[%s4402 + $0x40] sm:$0xf]
      %v4420 = vld [vmem:[%s4402 + $0x44] sm:$0xf]
      %v4421 = vld [vmem:[%s4402 + $0x48] sm:$0xf]
      %v4422 = vld [vmem:[%s4402 + $0x4c] sm:$0xf]
      %v4423 = vld [vmem:[%s4402 + $0x50] sm:$0xf]
      %v4424 = vld [vmem:[%s4402 + $0x54] sm:$0xf]
      %v4425 = vld [vmem:[%s4402 + $0x58] sm:$0xf]
      %v4426 = vld [vmem:[%s4402 + $0x5c] sm:$0xf]
      %v4427 = vld [vmem:[%s4402 + $0x60] sm:$0xf]
      %v4428 = vld [vmem:[%s4402 + $0x64] sm:$0xf]
      %v4429 = vld [vmem:[%s4402 + $0x68] sm:$0xf]
      %v4430 = vld [vmem:[%s4402 + $0x6c] sm:$0xf]
      %v4431 = vld [vmem:[%s4402 + $0x70] sm:$0xf]
      %v4432 = vld [vmem:[%s4402 + $0x74] sm:$0xf]
      %v4433 = vld [vmem:[%s4402 + $0x78] sm:$0xf]
      %v4434 = vld [vmem:[%s4402 + $0x7c] sm:$0xf]
      %v4435 = vld [vmem:[%s4402 + $0x80] sm:$0xf]
      %v4436 = vld [vmem:[%s4402 + $0x84] sm:$0xf]
      %v4437 = vld [vmem:[%s4402 + $0x88] sm:$0xf]
      %v4438 = vld [vmem:[%s4402 + $0x8c] sm:$0xf]
      %v4439 = vld [vmem:[%s4402 + $0x90] sm:$0xf]
      %v4440 = vld [vmem:[%s4402 + $0x94] sm:$0xf]
      %v4441 = vld [vmem:[%s4402 + $0x98] sm:$0xf]
      %v4442 = vld [vmem:[%s4402 + $0x9c] sm:$0xf]
      %v4443 = vld [vmem:[%s4402 + $0xa0] sm:$0xf]
      %v4444 = vld [vmem:[%s4402 + $0xa4] sm:$0xf]
      %v4445 = vld [vmem:[%s4402 + $0xa8] sm:$0xf]
      %v4446 = vld [vmem:[%s4402 + $0xac] sm:$0xf]
      %v4447 = vld [vmem:[%s4402 + $0xb0] sm:$0xf]
      %v4448 = vld [vmem:[%s4402 + $0xb4] sm:$0xf]
      %v4449 = vld [vmem:[%s4402 + $0xb8] sm:$0xf]
      %v4450 = vld [vmem:[%s4402 + $0xbc] sm:$0xf]
      %v4505 = vunpack.c.l.b16 %v4348
      %v4506 = vunpack.c.h.b16 %v4348
      %v4507 = vunpack.c.l.b16 %v4349
      %v4508 = vunpack.c.l.b16 %v4350
      %v4509 = vunpack.c.h.b16 %v4350
      %v4510 = vunpack.c.l.b16 %v4351
      %v4511 = vunpack.c.l.b16 %v4352
      %v4512 = vunpack.c.h.b16 %v4352
      %v4513 = vunpack.c.l.b16 %v4353
      %v4514 = vunpack.c.l.b16 %v4354
      %v4515 = vunpack.c.h.b16 %v4354
      %v4516 = vunpack.c.l.b16 %v4355
      %v4517 = vunpack.c.l.b16 %v4356
      %v4518 = vunpack.c.h.b16 %v4356
      %v4519 = vunpack.c.l.b16 %v4357
      %v4520 = vunpack.c.l.b16 %v4358
      %v4521 = vunpack.c.h.b16 %v4358
      %v4522 = vunpack.c.l.b16 %v4359
      %v4523 = vunpack.c.l.b16 %v4360
      %v4524 = vunpack.c.h.b16 %v4360
      %v4525 = vunpack.c.l.b16 %v4361
      %v4526 = vunpack.c.l.b16 %v4362
      %v4527 = vunpack.c.h.b16 %v4362
      %v4528 = vunpack.c.l.b16 %v4363
      %v4529 = vunpack.c.l.b16 %v4364
      %v4530 = vunpack.c.h.b16 %v4364
      %v4531 = vunpack.c.l.b16 %v4365
      %v4532 = vunpack.c.l.b16 %v4366
      %v4533 = vunpack.c.h.b16 %v4366
      %v4534 = vunpack.c.l.b16 %v4367
      %v4535 = vunpack.c.l.b16 %v4368
      %v4536 = vunpack.c.h.b16 %v4368
      %v4537 = vunpack.c.l.b16 %v4369
      %v4538 = vunpack.c.l.b16 %v4370
      %v4539 = vunpack.c.h.b16 %v4370
      %v4540 = vunpack.c.l.b16 %v4371
      %v4541 = vunpack.c.l.b16 %v4372
      %v4542 = vunpack.c.h.b16 %v4372
      %v4543 = vunpack.c.l.b16 %v4373
      %v4544 = vunpack.c.l.b16 %v4374
      %v4545 = vunpack.c.h.b16 %v4374
      %v4546 = vunpack.c.l.b16 %v4375
      %v4547 = vunpack.c.l.b16 %v4376
      %v4548 = vunpack.c.h.b16 %v4376
      %v4549 = vunpack.c.l.b16 %v4377
      %v4550 = vunpack.c.l.b16 %v4378
      %v4551 = vunpack.c.h.b16 %v4378
      %v4552 = vunpack.c.l.b16 %v4379
      %v4553 = vunpack.c.l.b16 %v4380
      %v4554 = vunpack.c.h.b16 %v4380
      %v4555 = vunpack.c.l.b16 %v4381
      %v4556 = vunpack.c.l.b16 %v4382
      %v4557 = vunpack.c.h.b16 %v4382
      %v4558 = vunpack.c.l.b16 %v4383
      %v4559 = vunpack.c.l.b16 %v4384
      %v4560 = vunpack.c.h.b16 %v4384
      %v4561 = vunpack.c.l.b16 %v4385
      %v4562 = vunpack.c.l.b16 %v4386
      %v4563 = vunpack.c.h.b16 %v4386
      %v4564 = vunpack.c.l.b16 %v4387
      %v4565 = vunpack.c.l.b16 %v4388
      %v4566 = vunpack.c.h.b16 %v4388
      %v4567 = vunpack.c.l.b16 %v4389
      %v4568 = vunpack.c.l.b16 %v4390
      %v4569 = vunpack.c.h.b16 %v4390
      %v4570 = vunpack.c.l.b16 %v4391
      %v4571 = vunpack.c.l.b16 %v4392
      %v4572 = vunpack.c.h.b16 %v4392
      %v4573 = vunpack.c.l.b16 %v4393
      %v4574 = vunpack.c.l.b16 %v4394
      %v4575 = vunpack.c.h.b16 %v4394
      %v4576 = vunpack.c.l.b16 %v4395
      %v4577 = vunpack.c.l.b16 %v4396
      %v4578 = vunpack.c.h.b16 %v4396
      %v4579 = vunpack.c.l.b16 %v4397
      %v4580 = vunpack.c.l.b16 %v4398
      %v4581 = vunpack.c.h.b16 %v4398
      %v4582 = vunpack.c.l.b16 %v4399
      %v4583 = vunpack.c.l.b16 %v4400
      %v4584 = vunpack.c.h.b16 %v4400
      %v4585 = vunpack.c.l.b16 %v4401
      %v4586 = vpack.c.b16 %v4508, %v4505
      %v4587 = vpack.c.b16 %v4509, %v4506
      %v4588 = vpack.c.b16 %v4510, %v4507
      %v4589 = vpack.c.b16 %v4514, %v4511
      %v4590 = vpack.c.b16 %v4515, %v4512
      %v4591 = vpack.c.b16 %v4516, %v4513
      %v4592 = vpack.c.b16 %v4520, %v4517
      %v4593 = vpack.c.b16 %v4521, %v4518
      %v4594 = vpack.c.b16 %v4522, %v4519
      %v4595 = vpack.c.b16 %v4526, %v4523
      %v4596 = vpack.c.b16 %v4527, %v4524
      %v4597 = vpack.c.b16 %v4528, %v4525
      %v4598 = vpack.c.b16 %v4532, %v4529
      %v4599 = vpack.c.b16 %v4533, %v4530
      %v4600 = vpack.c.b16 %v4534, %v4531
      %v4601 = vpack.c.b16 %v4538, %v4535
      %v4602 = vpack.c.b16 %v4539, %v4536
      %v4603 = vpack.c.b16 %v4540, %v4537
      %v4604 = vpack.c.b16 %v4544, %v4541
      %v4605 = vpack.c.b16 %v4545, %v4542
      %v4606 = vpack.c.b16 %v4546, %v4543
      %v4607 = vpack.c.b16 %v4550, %v4547
      %v4608 = vpack.c.b16 %v4551, %v4548
      %v4609 = vpack.c.b16 %v4552, %v4549
      %v4610 = vpack.c.b16 %v4556, %v4553
      %v4611 = vpack.c.b16 %v4557, %v4554
      %v4612 = vpack.c.b16 %v4558, %v4555
      %v4613 = vpack.c.b16 %v4562, %v4559
      %v4614 = vpack.c.b16 %v4563, %v4560
      %v4615 = vpack.c.b16 %v4564, %v4561
      %v4616 = vpack.c.b16 %v4568, %v4565
      %v4617 = vpack.c.b16 %v4569, %v4566
      %v4618 = vpack.c.b16 %v4570, %v4567
      %v4619 = vpack.c.b16 %v4574, %v4571
      %v4620 = vpack.c.b16 %v4575, %v4572
      %v4621 = vpack.c.b16 %v4576, %v4573
      %v4622 = vpack.c.b16 %v4580, %v4577
      %v4623 = vpack.c.b16 %v4581, %v4578
      %v4624 = vpack.c.b16 %v4582, %v4579
      %v4625 = vpack.c.b16 %v4583, %v4583
      %v4626 = vpack.c.b16 %v4584, %v4584
      %v4627 = vpack.c.b16 %v4585, %v4585
      %v4718 = vunpack.c.l.b16 %v4403
      %v4719 = vunpack.c.l.b16 %v4404
      %v4720 = vunpack.c.l.b16 %v4405
      %v4721 = vunpack.c.l.b16 %v4406
      %v4722 = vunpack.c.l.b16 %v4407
      %v4723 = vunpack.c.l.b16 %v4408
      %v4724 = vunpack.c.l.b16 %v4409
      %v4725 = vunpack.c.l.b16 %v4410
      %v4726 = vunpack.c.l.b16 %v4411
      %v4727 = vunpack.c.l.b16 %v4412
      %v4728 = vunpack.c.l.b16 %v4413
      %v4729 = vunpack.c.l.b16 %v4414
      %v4730 = vunpack.c.l.b16 %v4415
      %v4731 = vunpack.c.l.b16 %v4416
      %v4732 = vunpack.c.l.b16 %v4417
      %v4733 = vunpack.c.l.b16 %v4418
      %v4734 = vunpack.c.l.b16 %v4419
      %v4735 = vunpack.c.l.b16 %v4420
      %v4736 = vunpack.c.l.b16 %v4421
      %v4737 = vunpack.c.l.b16 %v4422
      %v4738 = vunpack.c.l.b16 %v4423
      %v4739 = vunpack.c.l.b16 %v4424
      %v4740 = vunpack.c.l.b16 %v4425
      %v4741 = vunpack.c.l.b16 %v4426
      %v4742 = vunpack.c.l.b16 %v4427
      %v4743 = vunpack.c.l.b16 %v4428
      %v4744 = vunpack.c.l.b16 %v4429
      %v4745 = vunpack.c.l.b16 %v4430
      %v4746 = vunpack.c.l.b16 %v4431
      %v4747 = vunpack.c.l.b16 %v4432
      %v4748 = vunpack.c.l.b16 %v4433
      %v4749 = vunpack.c.l.b16 %v4434
      %v4750 = vunpack.c.l.b16 %v4435
      %v4751 = vunpack.c.l.b16 %v4436
      %v4752 = vunpack.c.l.b16 %v4437
      %v4753 = vunpack.c.l.b16 %v4438
      %v4754 = vunpack.c.l.b16 %v4439
      %v4755 = vunpack.c.l.b16 %v4440
      %v4756 = vunpack.c.l.b16 %v4441
      %v4757 = vunpack.c.l.b16 %v4442
      %v4758 = vunpack.c.l.b16 %v4443
      %v4759 = vunpack.c.l.b16 %v4444
      %v4760 = vunpack.c.l.b16 %v4445
      %v4761 = vunpack.c.l.b16 %v4446
      %v4762 = vunpack.c.l.b16 %v4447
      %v4763 = vunpack.c.l.b16 %v4448
      %v4764 = vunpack.c.l.b16 %v4449
      %v4765 = vunpack.c.l.b16 %v4450
      %v4766 = vpack.c.b16 %v4719, %v4718
      %v4767 = vpack.c.b16 %v4721, %v4720
      %v4768 = vpack.c.b16 %v4723, %v4722
      %v4769 = vpack.c.b16 %v4725, %v4724
      %v4770 = vpack.c.b16 %v4727, %v4726
      %v4771 = vpack.c.b16 %v4729, %v4728
      %v4772 = vpack.c.b16 %v4731, %v4730
      %v4773 = vpack.c.b16 %v4733, %v4732
      %v4774 = vpack.c.b16 %v4735, %v4734
      %v4775 = vpack.c.b16 %v4737, %v4736
      %v4776 = vpack.c.b16 %v4739, %v4738
      %v4777 = vpack.c.b16 %v4741, %v4740
      %v4778 = vpack.c.b16 %v4743, %v4742
      %v4779 = vpack.c.b16 %v4745, %v4744
      %v4780 = vpack.c.b16 %v4747, %v4746
      %v4781 = vpack.c.b16 %v4749, %v4748
      %v4782 = vpack.c.b16 %v4751, %v4750
      %v4783 = vpack.c.b16 %v4753, %v4752
      %v4784 = vpack.c.b16 %v4755, %v4754
      %v4785 = vpack.c.b16 %v4757, %v4756
      %v4786 = vpack.c.b16 %v4759, %v4758
      %v4787 = vpack.c.b16 %v4761, %v4760
      %v4788 = vpack.c.b16 %v4763, %v4762
      %v4789 = vpack.c.b16 %v4765, %v4764
      %4814 = vmatprep.subr.bf16.mxu0 0
      %4815 = vmatpush1.bf16.msra.mxu0 %v4766
      %4816 = vmatprep.subr.bf16.mxu0 0
      %4817 = vmatpush1.bf16.msra.mxu0 %v4767
      %4818 = vmatprep.subr.bf16.mxu0 0
      %4819 = vmatpush1.bf16.msra.mxu0 %v4768
      %4820 = vmatprep.subr.bf16.mxu0 0
      %4821 = vmatpush1.bf16.msra.mxu0 %v4769
      %4822 = vmatprep.subr.bf16.mxu0 0
      %4823 = vmatpush1.bf16.msra.mxu0 %v4770
      %4824 = vmatprep.subr.bf16.mxu0 0
      %4825 = vmatpush1.bf16.msra.mxu0 %v4771
      %4826 = vmatprep.subr.bf16.mxu0 0
      %4827 = vmatpush1.bf16.msra.mxu0 %v4772
      %4828 = vmatprep.subr.bf16.mxu0 0
      %4829 = vmatpush1.bf16.msra.mxu0 %v4773
      %4830 = vmatprep.subr.bf16.mxu0 0
      %4831 = vmatpush1.bf16.msra.mxu0 %v4774
      %4832 = vmatprep.subr.bf16.mxu0 0
      %4833 = vmatpush1.bf16.msra.mxu0 %v4775
      %4834 = vmatprep.subr.bf16.mxu0 0
      %4835 = vmatpush1.bf16.msra.mxu0 %v4776
      %4836 = vmatprep.subr.bf16.mxu0 0
      %4837 = vmatpush1.bf16.msra.mxu0 %v4777
      %4838 = vmatprep.subr.bf16.mxu0 0
      %4839 = vmatpush1.bf16.msra.mxu0 %v4778
      %4840 = vmatprep.subr.bf16.mxu0 0
      %4841 = vmatpush1.bf16.msra.mxu0 %v4779
      %4842 = vmatprep.subr.bf16.mxu0 0
      %4843 = vmatpush1.bf16.msra.mxu0 %v4780
      %4844 = vmatprep.subr.bf16.mxu0 0
      %4845 = vmatpush1.bf16.msra.mxu0 %v4781
      %4846 = vmatprep.mubr.bf16.mxu0 %v4587
      %4847 = vmatmul.mubr.bf16.gmra.mrb[0].mxu0 %v4586
      %v4848 = vpop.f32.mrb[0].mxu0
      %v4849 = vadd.f32 0.0, %v4848
      %v4850 = vpop.f32.mrb[0].mxu0
      %v4851 = vpop.f32.mrb[0].mxu0
      %v4852 = vadd.f32 0.0, %v4851
      %v4853 = vpop.f32.mrb[0].mxu0
      %4854 = vmatprep.mubr.bf16.mxu0 %v4590
      %4855 = vmatmul.mubr.bf16.gmra.mrb[0].mxu0 %v4589
      %v4856 = vpop.f32.mrb[0].mxu0
      %v4857 = vadd.f32 0.0, %v4856
      %v4858 = vpop.f32.mrb[0].mxu0
      %v4859 = vpop.f32.mrb[0].mxu0
      %v4860 = vadd.f32 0.0, %v4859
      %v4861 = vpop.f32.mrb[0].mxu0
      %4862 = vmatprep.mubr.bf16.mxu0 %v4593
      %4863 = vmatmul.mubr.bf16.gmra.mrb[0].mxu0 %v4592
      %v4864 = vpop.f32.mrb[0].mxu0
      %v4865 = vadd.f32 0.0, %v4864
      %v4866 = vpop.f32.mrb[0].mxu0
      %v4867 = vpop.f32.mrb[0].mxu0
      %v4868 = vadd.f32 0.0, %v4867
      %v4869 = vpop.f32.mrb[0].mxu0
      %4870 = vmatprep.mubr.bf16.mxu0 %v4596
      %4871 = vmatmul.mubr.bf16.gmra.mrb[0].mxu0 %v4595
      %v4872 = vpop.f32.mrb[0].mxu0
      %v4873 = vadd.f32 0.0, %v4872
      %v4874 = vpop.f32.mrb[0].mxu0
      %v4875 = vpop.f32.mrb[0].mxu0
      %v4876 = vadd.f32 0.0, %v4875
      %v4877 = vpop.f32.mrb[0].mxu0
      %4878 = vmatprep.mubr.bf16.mxu0 %v4599
      %4879 = vmatmul.mubr.bf16.gmra.mrb[0].mxu0 %v4598
      %v4880 = vpop.f32.mrb[0].mxu0
      %v4881 = vadd.f32 0.0, %v4880
      %v4882 = vpop.f32.mrb[0].mxu0
      %v4883 = vpop.f32.mrb[0].mxu0
      %v4884 = vadd.f32 0.0, %v4883
      %v4885 = vpop.f32.mrb[0].mxu0
      %4886 = vmatprep.mubr.bf16.mxu0 %v4602
      %4887 = vmatmul.mubr.bf16.gmra.mrb[0].mxu0 %v4601
      %v4888 = vpop.f32.mrb[0].mxu0
      %v4889 = vadd.f32 0.0, %v4888
      %v4890 = vpop.f32.mrb[0].mxu0
      %v4891 = vpop.f32.mrb[0].mxu0
      %v4892 = vadd.f32 0.0, %v4891
      %v4893 = vpop.f32.mrb[0].mxu0
      %4894 = vmatprep.mubr.bf16.mxu0 %v4605
      %4895 = vmatmul.mubr.bf16.gmra.mrb[0].mxu0 %v4604
      %v4896 = vpop.f32.mrb[0].mxu0
      %v4897 = vadd.f32 0.0, %v4896
      %v4898 = vpop.f32.mrb[0].mxu0
      %v4899 = vpop.f32.mrb[0].mxu0
      %v4900 = vadd.f32 0.0, %v4899
      %v4901 = vpop.f32.mrb[0].mxu0
      %4902 = vmatprep.mubr.bf16.mxu0 %v4608
      %4903 = vmatmul.mubr.bf16.gmra.mrb[0].mxu0 %v4607
      %v4904 = vpop.f32.mrb[0].mxu0
      %v4905 = vadd.f32 0.0, %v4904
      %v4906 = vpop.f32.mrb[0].mxu0
      %v4907 = vpop.f32.mrb[0].mxu0
      %v4908 = vadd.f32 0.0, %v4907
      %v4909 = vpop.f32.mrb[0].mxu0
      %4910 = vmatprep.mubr.bf16.mxu0 %v4611
      %4911 = vmatmul.mubr.bf16.gmra.mrb[0].mxu0 %v4610
      %v4912 = vpop.f32.mrb[0].mxu0
      %v4913 = vadd.f32 0.0, %v4912
      %v4914 = vpop.f32.mrb[0].mxu0
      %v4915 = vpop.f32.mrb[0].mxu0
      %v4916 = vadd.f32 0.0, %v4915
      %v4917 = vpop.f32.mrb[0].mxu0
      %4918 = vmatprep.mubr.bf16.mxu0 %v4614
      %4919 = vmatmul.mubr.bf16.gmra.mrb[0].mxu0 %v4613
      %v4920 = vpop.f32.mrb[0].mxu0
      %v4921 = vadd.f32 0.0, %v4920
      %v4922 = vpop.f32.mrb[0].mxu0
      %v4923 = vpop.f32.mrb[0].mxu0
      %v4924 = vadd.f32 0.0, %v4923
      %v4925 = vpop.f32.mrb[0].mxu0
      %4926 = vmatprep.mubr.bf16.mxu0 %v4617
      %4927 = vmatmul.mubr.bf16.gmra.mrb[0].mxu0 %v4616
      %v4928 = vpop.f32.mrb[0].mxu0
      %v4929 = vadd.f32 0.0, %v4928
      %v4930 = vpop.f32.mrb[0].mxu0
      %v4931 = vpop.f32.mrb[0].mxu0
      %v4932 = vadd.f32 0.0, %v4931
      %v4933 = vpop.f32.mrb[0].mxu0
      %4934 = vmatprep.mubr.bf16.mxu0 %v4620
      %4935 = vmatmul.mubr.bf16.gmra.mrb[0].mxu0 %v4619
      %v4936 = vpop.f32.mrb[0].mxu0
      %v4937 = vadd.f32 0.0, %v4936
      %v4938 = vpop.f32.mrb[0].mxu0
      %v4939 = vpop.f32.mrb[0].mxu0
      %v4940 = vadd.f32 0.0, %v4939
      %v4941 = vpop.f32.mrb[0].mxu0
      %4942 = vmatprep.mubr.bf16.mxu0 %v4623
      %4943 = vmatmul.mubr.bf16.gmra.mrb[0].mxu0 %v4622
      %v4944 = vpop.f32.mrb[0].mxu0
      %v4945 = vadd.f32 0.0, %v4944
      %v4946 = vpop.f32.mrb[0].mxu0
      %v4947 = vpop.f32.mrb[0].mxu0
      %v4948 = vadd.f32 0.0, %v4947
      %v4949 = vpop.f32.mrb[0].mxu0
      %4950 = vmatprep.mubr.bf16.mxu0 %v4626
      %4951 = vmatmul.mubr.bf16.gmra.mrb[0].mxu0 %v4625
      %v4952 = vpop.f32.mrb[0].mxu0
      %v4953 = vadd.f32 0.0, %v4952
      %v4954 = vpop.f32.mrb[0].mxu0
      %v4955 = vpop.f32.mrb[0].mxu0
      %v4956 = vpop.f32.mrb[0].mxu0
      %4957 = vdwg.mxu0
      %4958 = vmatprep.subr.bf16.mxu0 0
      %4959 = vmatpush1.bf16.msra.mxu0 %v4782
      %4960 = vmatprep.subr.bf16.mxu0 0
      %4961 = vmatpush1.bf16.msra.mxu0 %v4783
      %4962 = vmatprep.subr.bf16.mxu0 0
      %4963 = vmatpush1.bf16.msra.mxu0 %v4784
      %4964 = vmatprep.subr.bf16.mxu0 0
      %4965 = vmatpush1.bf16.msra.mxu0 %v4785
      %4966 = vmatprep.subr.bf16.mxu0 0
      %4967 = vmatpush1.bf16.msra.mxu0 %v4786
      %4968 = vmatprep.subr.bf16.mxu0 0
      %4969 = vmatpush1.bf16.msra.mxu0 %v4787
      %4970 = vmatprep.subr.bf16.mxu0 0
      %4971 = vmatpush1.bf16.msra.mxu0 %v4788
      %4972 = vmatprep.subr.bf16.mxu0 0
      %4973 = vmatpush1.bf16.msra.mxu0 %v4789
      %4974 = vmatprep.subr.bf16.mxu0 0
      %4975 = vmatpush1.bf16.msra.mxu0 0
      %4976 = vmatprep.subr.bf16.mxu0 0
      %4977 = vmatpush1.bf16.msra.mxu0 0
      %4978 = vmatprep.subr.bf16.mxu0 0
      %4979 = vmatpush1.bf16.msra.mxu0 0
      %4980 = vmatprep.subr.bf16.mxu0 0
      %4981 = vmatpush1.bf16.msra.mxu0 0
      %4982 = vmatprep.subr.bf16.mxu0 0
      %4983 = vmatpush1.bf16.msra.mxu0 0
      %4984 = vmatprep.subr.bf16.mxu0 0
      %4985 = vmatpush1.bf16.msra.mxu0 0
      %4986 = vmatprep.subr.bf16.mxu0 0
      %4987 = vmatpush1.bf16.msra.mxu0 0
      %4988 = vmatprep.subr.bf16.mxu0 0
      %4989 = vmatpush1.bf16.msra.mxu0 0
      %4990 = vmatprep.mubr.bf16.mxu0 0
      %4991 = vmatmul.mubr.bf16.gmra.mrb[0].mxu0 %v4588
      %v4992 = vpop.f32.mrb[0].mxu0
      %v4993 = vadd.f32 %v4849, %v4992
      %v4994 = vpop.f32.mrb[0].mxu0
      %v4995 = vpop.f32.mrb[0].mxu0
      %v4996 = vadd.f32 %v4852, %v4995
      %v4997 = vpop.f32.mrb[0].mxu0
      %4998 = vmatprep.mubr.bf16.mxu0 0
      %4999 = vmatmul.mubr.bf16.gmra.mrb[0].mxu0 %v4591
      %v5000 = vpop.f32.mrb[0].mxu0
      %v5001 = vadd.f32 %v4857, %v5000
      %v5002 = vpop.f32.mrb[0].mxu0
      %v5003 = vpop.f32.mrb[0].mxu0
      %v5004 = vadd.f32 %v4860, %v5003
      %v5005 = vpop.f32.mrb[0].mxu0
      %5006 = vmatprep.mubr.bf16.mxu0 0
      %5007 = vmatmul.mubr.bf16.gmra.mrb[0].mxu0 %v4594
      %v5008 = vpop.f32.mrb[0].mxu0
      %v5009 = vadd.f32 %v4865, %v5008
      %v5010 = vpop.f32.mrb[0].mxu0
      %v5011 = vpop.f32.mrb[0].mxu0
      %v5012 = vadd.f32 %v4868, %v5011
      %v5013 = vpop.f32.mrb[0].mxu0
      %5014 = vmatprep.mubr.bf16.mxu0 0
      %5015 = vmatmul.mubr.bf16.gmra.mrb[0].mxu0 %v4597
      %v5016 = vpop.f32.mrb[0].mxu0
      %v5017 = vadd.f32 %v4873, %v5016
      %v5018 = vpop.f32.mrb[0].mxu0
      %v5019 = vpop.f32.mrb[0].mxu0
      %v5020 = vadd.f32 %v4876, %v5019
      %v5021 = vpop.f32.mrb[0].mxu0
      %5022 = vmatprep.mubr.bf16.mxu0 0
      %5023 = vmatmul.mubr.bf16.gmra.mrb[0].mxu0 %v4600
      %v5024 = vpop.f32.mrb[0].mxu0
      %v5025 = vadd.f32 %v4881, %v5024
      %v5026 = vpop.f32.mrb[0].mxu0
      %v5027 = vpop.f32.mrb[0].mxu0
      %v5028 = vadd.f32 %v4884, %v5027
      %v5029 = vpop.f32.mrb[0].mxu0
      %5030 = vmatprep.mubr.bf16.mxu0 0
      %5031 = vmatmul.mubr.bf16.gmra.mrb[0].mxu0 %v4603
      %v5032 = vpop.f32.mrb[0].mxu0
      %v5033 = vadd.f32 %v4889, %v5032
      %v5034 = vpop.f32.mrb[0].mxu0
      %v5035 = vpop.f32.mrb[0].mxu0
      %v5036 = vadd.f32 %v4892, %v5035
      %v5037 = vpop.f32.mrb[0].mxu0
      %5038 = vmatprep.mubr.bf16.mxu0 0
      %5039 = vmatmul.mubr.bf16.gmra.mrb[0].mxu0 %v4606
      %v5040 = vpop.f32.mrb[0].mxu0
      %v5041 = vadd.f32 %v4897, %v5040
      %v5042 = vpop.f32.mrb[0].mxu0
      %v5043 = vpop.f32.mrb[0].mxu0
      %v5044 = vadd.f32 %v4900, %v5043
      %v5045 = vpop.f32.mrb[0].mxu0
      %5046 = vmatprep.mubr.bf16.mxu0 0
      %5047 = vmatmul.mubr.bf16.gmra.mrb[0].mxu0 %v4609
      %v5048 = vpop.f32.mrb[0].mxu0
      %v5049 = vadd.f32 %v4905, %v5048
      %v5050 = vpop.f32.mrb[0].mxu0
      %v5051 = vpop.f32.mrb[0].mxu0
      %v5052 = vadd.f32 %v4908, %v5051
      %v5053 = vpop.f32.mrb[0].mxu0
      %5054 = vmatprep.mubr.bf16.mxu0 0
      %5055 = vmatmul.mubr.bf16.gmra.mrb[0].mxu0 %v4612
      %v5056 = vpop.f32.mrb[0].mxu0
      %v5057 = vadd.f32 %v4913, %v5056
      %v5058 = vpop.f32.mrb[0].mxu0
      %v5059 = vpop.f32.mrb[0].mxu0
      %v5060 = vadd.f32 %v4916, %v5059
      %v5061 = vpop.f32.mrb[0].mxu0
      %5062 = vmatprep.mubr.bf16.mxu0 0
      %5063 = vmatmul.mubr.bf16.gmra.mrb[0].mxu0 %v4615
      %v5064 = vpop.f32.mrb[0].mxu0
      %v5065 = vadd.f32 %v4921, %v5064
      %v5066 = vpop.f32.mrb[0].mxu0
      %v5067 = vpop.f32.mrb[0].mxu0
      %v5068 = vadd.f32 %v4924, %v5067
      %v5069 = vpop.f32.mrb[0].mxu0
      %5070 = vmatprep.mubr.bf16.mxu0 0
      %5071 = vmatmul.mubr.bf16.gmra.mrb[0].mxu0 %v4618
      %v5072 = vpop.f32.mrb[0].mxu0
      %v5073 = vadd.f32 %v4929, %v5072
      %v5074 = vpop.f32.mrb[0].mxu0
      %v5075 = vpop.f32.mrb[0].mxu0
      %v5076 = vadd.f32 %v4932, %v5075
      %v5077 = vpop.f32.mrb[0].mxu0
      %5078 = vmatprep.mubr.bf16.mxu0 0
      %5079 = vmatmul.mubr.bf16.gmra.mrb[0].mxu0 %v4621
      %v5080 = vpop.f32.mrb[0].mxu0
      %v5081 = vadd.f32 %v4937, %v5080
      %v5082 = vpop.f32.mrb[0].mxu0
      %v5083 = vpop.f32.mrb[0].mxu0
      %v5084 = vadd.f32 %v4940, %v5083
      %v5085 = vpop.f32.mrb[0].mxu0
      %5086 = vmatprep.mubr.bf16.mxu0 0
      %5087 = vmatmul.mubr.bf16.gmra.mrb[0].mxu0 %v4624
      %v5088 = vpop.f32.mrb[0].mxu0
      %v5089 = vadd.f32 %v4945, %v5088
      %v5090 = vpop.f32.mrb[0].mxu0
      %v5091 = vpop.f32.mrb[0].mxu0
      %v5092 = vadd.f32 %v4948, %v5091
      %v5093 = vpop.f32.mrb[0].mxu0
      %5094 = vmatprep.mubr.bf16.mxu0 0
      %5095 = vmatmul.mubr.bf16.gmra.mrb[0].mxu0 %v4627
      %v5096 = vpop.f32.mrb[0].mxu0
      %v5097 = vadd.f32 %v4953, %v5096
      %v5098 = vpop.f32.mrb[0].mxu0
      %v5099 = vpop.f32.mrb[0].mxu0
      %v5100 = vpop.f32.mrb[0].mxu0
      %5101 = vdwg.mxu0
      %v5102 = vld [vmem:[#allocation4] sm:$0xff]
      %v5103 = vld [vmem:[#allocation4 + $0x8] sm:$0xff]
      %v5104 = vld [vmem:[#allocation4 + $0x10] sm:$0xff]
      %v5105 = vld [vmem:[#allocation4 + $0x18] sm:$0xff]
      %v5106 = vld [vmem:[#allocation4 + $0x20] sm:$0xff]
      %v5107 = vld [vmem:[#allocation4 + $0x28] sm:$0xff]
      %v5108 = vld [vmem:[#allocation4 + $0x30] sm:$0xff]
      %v5109 = vld [vmem:[#allocation4 + $0x38] sm:$0xff]
      %v5110 = vld [vmem:[#allocation4 + $0x40] sm:$0xff]
      %v5111 = vld [vmem:[#allocation4 + $0x48] sm:$0xff]
      %v5112 = vld [vmem:[#allocation4 + $0x50] sm:$0xff]
      %v5113 = vld [vmem:[#allocation4 + $0x58] sm:$0xff]
      %v5114 = vld [vmem:[#allocation4 + $0x60] sm:$0xff]
      %v5115 = vld [vmem:[#allocation4 + $0x68] sm:$0xff]
      %v5116 = vld [vmem:[#allocation4 + $0x70] sm:$0xff]
      %v5117 = vld [vmem:[#allocation4 + $0x78] sm:$0xff]
      %v5118 = vld [vmem:[#allocation4 + $0x80] sm:$0xff]
      %v5119 = vld [vmem:[#allocation4 + $0x88] sm:$0xff]
      %v5120 = vld [vmem:[#allocation4 + $0x90] sm:$0xff]
      %v5121 = vld [vmem:[#allocation4 + $0x98] sm:$0xff]
      %v5122 = vld [vmem:[#allocation4 + $0xa0] sm:$0xff]
      %v5123 = vld [vmem:[#allocation4 + $0xa8] sm:$0xff]
      %v5124 = vld [vmem:[#allocation4 + $0xb0] sm:$0xff]
      %v5125 = vld [vmem:[#allocation4 + $0xb8] sm:$0xff]
      %v5126 = vld [vmem:[#allocation4 + $0xc0] sm:$0xff]
      %v5127 = vld [vmem:[#allocation4 + $0xc8] sm:$0xff]
      %v5128 = vld [vmem:[#allocation4 + $0xd0] sm:$0xff]
      %v5129 = vadd.f32 %v5102, %v4993
      %v5130 = vadd.f32 %v5103, %v4996
      %v5131 = vadd.f32 %v5104, %v5001
      %v5132 = vadd.f32 %v5105, %v5004
      %v5133 = vadd.f32 %v5106, %v5009
      %v5134 = vadd.f32 %v5107, %v5012
      %v5135 = vadd.f32 %v5108, %v5017
      %v5136 = vadd.f32 %v5109, %v5020
      %v5137 = vadd.f32 %v5110, %v5025
      %v5138 = vadd.f32 %v5111, %v5028
      %v5139 = vadd.f32 %v5112, %v5033
      %v5140 = vadd.f32 %v5113, %v5036
      %v5141 = vadd.f32 %v5114, %v5041
      %v5142 = vadd.f32 %v5115, %v5044
      %v5143 = vadd.f32 %v5116, %v5049
      %v5144 = vadd.f32 %v5117, %v5052
      %v5145 = vadd.f32 %v5118, %v5057
      %v5146 = vadd.f32 %v5119, %v5060
      %v5147 = vadd.f32 %v5120, %v5065
      %v5148 = vadd.f32 %v5121, %v5068
      %v5149 = vadd.f32 %v5122, %v5073
      %v5150 = vadd.f32 %v5123, %v5076
      %v5151 = vadd.f32 %v5124, %v5081
      %v5152 = vadd.f32 %v5125, %v5084
      %v5153 = vadd.f32 %v5126, %v5089
      %v5154 = vadd.f32 %v5127, %v5092
      %v5155 = vadd.f32 %v5128, %v5097
      %5156 = vst [vmem:[#allocation4] sm:$0xff] %v5129
      %5157 = vst [vmem:[#allocation4 + $0x8] sm:$0xff] %v5130
      %5158 = vst [vmem:[#allocation4 + $0x10] sm:$0xff] %v5131
      %5159 = vst [vmem:[#allocation4 + $0x18] sm:$0xff] %v5132
      %5160 = vst [vmem:[#allocation4 + $0x20] sm:$0xff] %v5133
      %5161 = vst [vmem:[#allocation4 + $0x28] sm:$0xff] %v5134
      %5162 = vst [vmem:[#allocation4 + $0x30] sm:$0xff] %v5135
      %5163 = vst [vmem:[#allocation4 + $0x38] sm:$0xff] %v5136
      %5164 = vst [vmem:[#allocation4 + $0x40] sm:$0xff] %v5137
      %5165 = vst [vmem:[#allocation4 + $0x48] sm:$0xff] %v5138
      %5166 = vst [vmem:[#allocation4 + $0x50] sm:$0xff] %v5139
      %5167 = vst [vmem:[#allocation4 + $0x58] sm:$0xff] %v5140
      %5168 = vst [vmem:[#allocation4 + $0x60] sm:$0xff] %v5141
      %5169 = vst [vmem:[#allocation4 + $0x68] sm:$0xff] %v5142
      %5170 = vst [vmem:[#allocation4 + $0x70] sm:$0xff] %v5143
      %5171 = vst [vmem:[#allocation4 + $0x78] sm:$0xff] %v5144
      %5172 = vst [vmem:[#allocation4 + $0x80] sm:$0xff] %v5145
      %5173 = vst [vmem:[#allocation4 + $0x88] sm:$0xff] %v5146
      %5174 = vst [vmem:[#allocation4 + $0x90] sm:$0xff] %v5147
      %5175 = vst [vmem:[#allocation4 + $0x98] sm:$0xff] %v5148
      %5176 = vst [vmem:[#allocation4 + $0xa0] sm:$0xff] %v5149
      %5177 = vst [vmem:[#allocation4 + $0xa8] sm:$0xff] %v5150
      %5178 = vst [vmem:[#allocation4 + $0xb0] sm:$0xff] %v5151
      %5179 = vst [vmem:[#allocation4 + $0xb8] sm:$0xff] %v5152
      %5180 = vst [vmem:[#allocation4 + $0xc0] sm:$0xff] %v5153
      %5181 = vst [vmem:[#allocation4 + $0xc8] sm:$0xff] %v5154
      %5182 = vst [vmem:[#allocation4 + $0xd0] sm:$0xff] %v5155
      %v5183 = vld [vmem:[#allocation4] sm:$0xff]
      %v5184 = vld [vmem:[#allocation4 + $0x8] sm:$0xff]
      %v5185 = vld [vmem:[#allocation4 + $0x10] sm:$0xff]
      %v5186 = vld [vmem:[#allocation4 + $0x18] sm:$0xff]
      %v5187 = vld [vmem:[#allocation4 + $0x20] sm:$0xff]
      %v5188 = vld [vmem:[#allocation4 + $0x28] sm:$0xff]
      %v5189 = vld [vmem:[#allocation4 + $0x30] sm:$0xff]
      %v5190 = vld [vmem:[#allocation4 + $0x38] sm:$0xff]
      %v5191 = vld [vmem:[#allocation4 + $0x40] sm:$0xff]
      %v5192 = vld [vmem:[#allocation4 + $0x48] sm:$0xff]
      %v5193 = vld [vmem:[#allocation4 + $0x50] sm:$0xff]
      %v5194 = vld [vmem:[#allocation4 + $0x58] sm:$0xff]
      %v5195 = vld [vmem:[#allocation4 + $0x60] sm:$0xff]
      %v5196 = vld [vmem:[#allocation4 + $0x68] sm:$0xff]
      %v5197 = vld [vmem:[#allocation4 + $0x70] sm:$0xff]
      %v5198 = vld [vmem:[#allocation4 + $0x78] sm:$0xff]
      %v5199 = vld [vmem:[#allocation4 + $0x80] sm:$0xff]
      %v5200 = vld [vmem:[#allocation4 + $0x88] sm:$0xff]
      %v5201 = vld [vmem:[#allocation4 + $0x90] sm:$0xff]
      %v5202 = vld [vmem:[#allocation4 + $0x98] sm:$0xff]
      %v5203 = vld [vmem:[#allocation4 + $0xa0] sm:$0xff]
      %v5204 = vld [vmem:[#allocation4 + $0xa8] sm:$0xff]
      %v5205 = vld [vmem:[#allocation4 + $0xb0] sm:$0xff]
      %v5206 = vld [vmem:[#allocation4 + $0xb8] sm:$0xff]
      %v5207 = vld [vmem:[#allocation4 + $0xc0] sm:$0xff]
      %v5208 = vld [vmem:[#allocation4 + $0xc8] sm:$0xff]
      %v5209 = vld [vmem:[#allocation4 + $0xd0] sm:$0xff]
      %v5210 = vld [vmem:[%s565] sm:$0x1]
      %v5212 = vlaneseq
      %v5213 = vshrl.u32 %v5212, 7
      %v5214 = vsub.s32 0, %v5213
      %v5215 = vrot.slane %v5210, %v5214
      %v5217 = vadd.f32 %v5183, %v5215
      %v5218 = vadd.f32 %v5184, %v5215
      %v5219 = vadd.f32 %v5185, %v5215
      %v5220 = vadd.f32 %v5186, %v5215
      %v5221 = vadd.f32 %v5187, %v5215
      %v5222 = vadd.f32 %v5188, %v5215
      %v5223 = vadd.f32 %v5189, %v5215
      %v5224 = vadd.f32 %v5190, %v5215
      %v5225 = vadd.f32 %v5191, %v5215
      %v5226 = vadd.f32 %v5192, %v5215
      %v5227 = vadd.f32 %v5193, %v5215
      %v5228 = vadd.f32 %v5194, %v5215
      %v5229 = vadd.f32 %v5195, %v5215
      %v5230 = vadd.f32 %v5196, %v5215
      %v5231 = vadd.f32 %v5197, %v5215
      %v5232 = vadd.f32 %v5198, %v5215
      %v5233 = vadd.f32 %v5199, %v5215
      %v5234 = vadd.f32 %v5200, %v5215
      %v5235 = vadd.f32 %v5201, %v5215
      %v5236 = vadd.f32 %v5202, %v5215
      %v5237 = vadd.f32 %v5203, %v5215
      %v5238 = vadd.f32 %v5204, %v5215
      %v5239 = vadd.f32 %v5205, %v5215
      %v5240 = vadd.f32 %v5206, %v5215
      %v5241 = vadd.f32 %v5207, %v5215
      %v5242 = vadd.f32 %v5208, %v5215
      %v5243 = vadd.f32 %v5209, %v5215
      %v5244 = vsel %vm943, %v5217, 0.0
      %v5245 = vsel %vm944, %v5218, 0.0
      %v5246 = vsel %vm945, %v5219, 0.0
      %v5247 = vsel %vm946, %v5220, 0.0
      %v5248 = vsel %vm947, %v5221, 0.0
      %v5249 = vsel %vm948, %v5222, 0.0
      %v5250 = vsel %vm949, %v5223, 0.0
      %v5251 = vsel %vm950, %v5224, 0.0
      %v5252 = vsel %vm951, %v5225, 0.0
      %v5253 = vsel %vm952, %v5226, 0.0
      %v5254 = vsel %vm953, %v5227, 0.0
      %v5255 = vsel %vm954, %v5228, 0.0
      %v5256 = vsel %vm955, %v5229, 0.0
      %v5257 = vsel %vm956, %v5230, 0.0
      %v5258 = vsel %vm957, %v5231, 0.0
      %v5259 = vsel %vm958, %v5232, 0.0
      %v5260 = vsel %vm959, %v5233, 0.0
      %v5261 = vsel %vm960, %v5234, 0.0
      %v5262 = vsel %vm961, %v5235, 0.0
      %v5263 = vsel %vm962, %v5236, 0.0
      %v5264 = vsel %vm963, %v5237, 0.0
      %v5265 = vsel %vm964, %v5238, 0.0
      %v5266 = vsel %vm965, %v5239, 0.0
      %v5267 = vsel %vm966, %v5240, 0.0
      %v5268 = vsel %vm967, %v5241, 0.0
      %v5269 = vsel %vm968, %v5242, 0.0
      %v5270 = vsel %vm969, %v5243, 0.0
      %v5271 = vpack.c.bf16 %v5245, %v5244
      %v5272 = vpack.c.bf16 %v5246, %v5246
      %v5273 = vpack.c.bf16 %v5248, %v5247
      %v5274 = vpack.c.bf16 %v5249, %v5249
      %v5275 = vpack.c.bf16 %v5251, %v5250
      %v5276 = vpack.c.bf16 %v5252, %v5252
      %v5277 = vpack.c.bf16 %v5254, %v5253
      %v5278 = vpack.c.bf16 %v5255, %v5255
      %v5279 = vpack.c.bf16 %v5257, %v5256
      %v5280 = vpack.c.bf16 %v5258, %v5258
      %v5281 = vpack.c.bf16 %v5260, %v5259
      %v5282 = vpack.c.bf16 %v5261, %v5261
      %v5283 = vpack.c.bf16 %v5263, %v5262
      %v5284 = vpack.c.bf16 %v5264, %v5264
      %v5285 = vpack.c.bf16 %v5266, %v5265
      %v5286 = vpack.c.bf16 %v5267, %v5267
      %v5287 = vpack.c.bf16 %v5269, %v5268
      %v5288 = vpack.c.bf16 %v5270, %v5270
      %v5307 = vunpack.c.l.b16 %v5271
      %v5308 = vunpack.c.h.b16 %v5271
      %v5309 = vunpack.c.l.b16 %v5272
      %v5310 = vunpack.c.l.b16 %v5273
      %v5311 = vunpack.c.h.b16 %v5273
      %v5312 = vunpack.c.l.b16 %v5274
      %v5313 = vunpack.c.l.b16 %v5275
      %v5314 = vunpack.c.h.b16 %v5275
      %v5315 = vunpack.c.l.b16 %v5276
      %v5316 = vunpack.c.l.b16 %v5277
      %v5317 = vunpack.c.h.b16 %v5277
      %v5318 = vunpack.c.l.b16 %v5278
      %v5319 = vunpack.c.l.b16 %v5279
      %v5320 = vunpack.c.h.b16 %v5279
      %v5321 = vunpack.c.l.b16 %v5280
      %v5322 = vunpack.c.l.b16 %v5281
      %v5323 = vunpack.c.h.b16 %v5281
      %v5324 = vunpack.c.l.b16 %v5282
      %v5325 = vunpack.c.l.b16 %v5283
      %v5326 = vunpack.c.h.b16 %v5283
      %v5327 = vunpack.c.l.b16 %v5284
      %v5328 = vunpack.c.l.b16 %v5285
      %v5329 = vunpack.c.h.b16 %v5285
      %v5330 = vunpack.c.l.b16 %v5286
      %v5331 = vunpack.c.l.b16 %v5287
      %v5332 = vunpack.c.h.b16 %v5287
      %v5333 = vunpack.c.l.b16 %v5288
      %v5334 = vpack.c.b16 %v5307, %v5307
      %v5335 = vpack.c.b16 %v5308, %v5308
      %v5336 = vpack.c.b16 %v5309, %v5309
      %v5337 = vpack.c.b16 %v5310, %v5310
      %v5338 = vpack.c.b16 %v5311, %v5311
      %v5339 = vpack.c.b16 %v5312, %v5312
      %v5340 = vpack.c.b16 %v5313, %v5313
      %v5341 = vpack.c.b16 %v5314, %v5314
      %v5342 = vpack.c.b16 %v5315, %v5315
      %v5343 = vpack.c.b16 %v5316, %v5316
      %v5344 = vpack.c.b16 %v5317, %v5317
      %v5345 = vpack.c.b16 %v5318, %v5318
      %v5346 = vpack.c.b16 %v5319, %v5319
      %v5347 = vpack.c.b16 %v5320, %v5320
      %v5348 = vpack.c.b16 %v5321, %v5321
      %v5349 = vpack.c.b16 %v5322, %v5322
      %v5350 = vpack.c.b16 %v5323, %v5323
      %v5351 = vpack.c.b16 %v5324, %v5324
      %v5352 = vpack.c.b16 %v5325, %v5325
      %v5353 = vpack.c.b16 %v5326, %v5326
      %v5354 = vpack.c.b16 %v5327, %v5327
      %v5355 = vpack.c.b16 %v5328, %v5328
      %v5356 = vpack.c.b16 %v5329, %v5329
      %v5357 = vpack.c.b16 %v5330, %v5330
      %v5358 = vpack.c.b16 %v5331, %v5331
      %v5359 = vpack.c.b16 %v5332, %v5332
      %v5360 = vpack.c.b16 %v5333, %v5333
      %5388 = vst [vmem:[%s578] sm:$0xf] %v5334
      %5389 = vst [vmem:[%s578 + $0x4] sm:$0xf] %v5335
      %5390 = vst [vmem:[%s578 + $0x8] sm:$0xf] %v5336
      %5391 = vst [vmem:[%s578 + $0xc] sm:$0xf] %v5337
      %5392 = vst [vmem:[%s578 + $0x10] sm:$0xf] %v5338
      %5393 = vst [vmem:[%s578 + $0x14] sm:$0xf] %v5339
      %5394 = vst [vmem:[%s578 + $0x18] sm:$0xf] %v5340
      %5395 = vst [vmem:[%s578 + $0x1c] sm:$0xf] %v5341
      %5396 = vst [vmem:[%s578 + $0x20] sm:$0xf] %v5342
      %5397 = vst [vmem:[%s578 + $0x24] sm:$0xf] %v5343
      %5398 = vst [vmem:[%s578 + $0x28] sm:$0xf] %v5344
      %5399 = vst [vmem:[%s578 + $0x2c] sm:$0xf] %v5345
      %5400 = vst [vmem:[%s578 + $0x30] sm:$0xf] %v5346
      %5401 = vst [vmem:[%s578 + $0x34] sm:$0xf] %v5347
      %5402 = vst [vmem:[%s578 + $0x38] sm:$0xf] %v5348
      %5403 = vst [vmem:[%s578 + $0x3c] sm:$0xf] %v5349
      %5404 = vst [vmem:[%s578 + $0x40] sm:$0xf] %v5350
      %5405 = vst [vmem:[%s578 + $0x44] sm:$0xf] %v5351
      %5406 = vst [vmem:[%s578 + $0x48] sm:$0xf] %v5352
      %5407 = vst [vmem:[%s578 + $0x4c] sm:$0xf] %v5353
      %5408 = vst [vmem:[%s578 + $0x50] sm:$0xf] %v5354
      %5409 = vst [vmem:[%s578 + $0x54] sm:$0xf] %v5355
      %5410 = vst [vmem:[%s578 + $0x58] sm:$0xf] %v5356
      %5411 = vst [vmem:[%s578 + $0x5c] sm:$0xf] %v5357
      %5412 = vst [vmem:[%s578 + $0x60] sm:$0xf] %v5358
      %5413 = vst [vmem:[%s578 + $0x64] sm:$0xf] %v5359
      %5414 = vst [vmem:[%s578 + $0x68] sm:$0xf] %v5360
      %v5415 = vadd.f32 %v5244, %v5245
      %v5416 = vadd.f32 %v5415, %v5246
      %v5417 = vadd.f32 %v5416, %v5247
      %v5418 = vadd.f32 %v5417, %v5248
      %v5419 = vadd.f32 %v5418, %v5249
      %v5420 = vadd.f32 %v5419, %v5250
      %v5421 = vadd.f32 %v5420, %v5251
      %v5422 = vadd.f32 %v5421, %v5252
      %v5423 = vadd.f32 %v5422, %v5253
      %v5424 = vadd.f32 %v5423, %v5254
      %v5425 = vadd.f32 %v5424, %v5255
      %v5426 = vadd.f32 %v5425, %v5256
      %v5427 = vadd.f32 %v5426, %v5257
      %v5428 = vadd.f32 %v5427, %v5258
      %v5429 = vadd.f32 %v5428, %v5259
      %v5430 = vadd.f32 %v5429, %v5260
      %v5431 = vadd.f32 %v5430, %v5261
      %v5432 = vadd.f32 %v5431, %v5262
      %v5433 = vadd.f32 %v5432, %v5263
      %v5434 = vadd.f32 %v5433, %v5264
      %v5435 = vadd.f32 %v5434, %v5265
      %v5436 = vadd.f32 %v5435, %v5266
      %v5437 = vadd.f32 %v5436, %v5267
      %v5438 = vadd.f32 %v5437, %v5268
      %v5439 = vadd.f32 %v5438, %v5269
      %v5440 = vadd.f32 %v5439, %v5270
      %v5441 = vrot.slane %v5440, 4
      %v5442 = vadd.f32 %v5440, %v5441
      %v5443 = vrot.slane %v5442, 2
      %v5444 = vadd.f32 %v5442, %v5443
      %v5445 = vrot.slane %v5444, 1
      %v5446 = vadd.f32 %v5444, %v5445
      %5447 = vst [vmem:[%s589] sm:$0x1] %v5446
      %v5448 = vmul.f32 %v5244, %v5244
      %v5449 = vmul.f32 %v5245, %v5245
      %v5450 = vmul.f32 %v5246, %v5246
      %v5451 = vmul.f32 %v5247, %v5247
      %v5452 = vmul.f32 %v5248, %v5248
      %v5453 = vmul.f32 %v5249, %v5249
      %v5454 = vmul.f32 %v5250, %v5250
      %v5455 = vmul.f32 %v5251, %v5251
      %v5456 = vmul.f32 %v5252, %v5252
      %v5457 = vmul.f32 %v5253, %v5253
      %v5458 = vmul.f32 %v5254, %v5254
      %v5459 = vmul.f32 %v5255, %v5255
      %v5460 = vmul.f32 %v5256, %v5256
      %v5461 = vmul.f32 %v5257, %v5257
      %v5462 = vmul.f32 %v5258, %v5258
      %v5463 = vmul.f32 %v5259, %v5259
      %v5464 = vmul.f32 %v5260, %v5260
      %v5465 = vmul.f32 %v5261, %v5261
      %v5466 = vmul.f32 %v5262, %v5262
      %v5467 = vmul.f32 %v5263, %v5263
      %v5468 = vmul.f32 %v5264, %v5264
      %v5469 = vmul.f32 %v5265, %v5265
      %v5470 = vmul.f32 %v5266, %v5266
      %v5471 = vmul.f32 %v5267, %v5267
      %v5472 = vmul.f32 %v5268, %v5268
      %v5473 = vmul.f32 %v5269, %v5269
      %v5474 = vmul.f32 %v5270, %v5270
      %v5475 = vadd.f32 %v5448, %v5449
      %v5476 = vadd.f32 %v5475, %v5450
      %v5477 = vadd.f32 %v5476, %v5451
      %v5478 = vadd.f32 %v5477, %v5452
      %v5479 = vadd.f32 %v5478, %v5453
      %v5480 = vadd.f32 %v5479, %v5454
      %v5481 = vadd.f32 %v5480, %v5455
      %v5482 = vadd.f32 %v5481, %v5456
      %v5483 = vadd.f32 %v5482, %v5457
      %v5484 = vadd.f32 %v5483, %v5458
      %v5485 = vadd.f32 %v5484, %v5459
      %v5486 = vadd.f32 %v5485, %v5460
      %v5487 = vadd.f32 %v5486, %v5461
      %v5488 = vadd.f32 %v5487, %v5462
      %v5489 = vadd.f32 %v5488, %v5463
      %v5490 = vadd.f32 %v5489, %v5464
      %v5491 = vadd.f32 %v5490, %v5465
      %v5492 = vadd.f32 %v5491, %v5466
      %v5493 = vadd.f32 %v5492, %v5467
      %v5494 = vadd.f32 %v5493, %v5468
      %v5495 = vadd.f32 %v5494, %v5469
      %v5496 = vadd.f32 %v5495, %v5470
      %v5497 = vadd.f32 %v5496, %v5471
      %v5498 = vadd.f32 %v5497, %v5472
      %v5499 = vadd.f32 %v5498, %v5473
      %v5500 = vadd.f32 %v5499, %v5474
      %v5501 = vrot.slane %v5500, 4
      %v5502 = vadd.f32 %v5500, %v5501
      %v5503 = vrot.slane %v5502, 2
      %v5504 = vadd.f32 %v5502, %v5503
      %v5505 = vrot.slane %v5504, 1
      %v5506 = vadd.f32 %v5504, %v5505
      %5507 = vst [vmem:[%s599] sm:$0x1] %v5506
      %s5508 = smul.u32 9, %s28
      %p5509 = scmp.lt.s32.totalorder %s27, 1
      %s5510 = scalar_select %p5509, %s27, 1
      %p5511 = scmp.lt.s32.totalorder %s5508, 17
      %s5512 = scalar_select %p5511, %s5508, 17
      %p5513 = scmp.lt.s32.totalorder %s26, 0
      %s5514 = scalar_select %p5513, %s26, 0
      %s5515 = smul.addr %s5512, 3
      %s5516 = sadd.s32 %s5514, %s5515
      %s5517 = smul.addr %s5510, 54
      %s5518 = sadd.s32 %s5516, %s5517
      %s5519 = smul.addr %s5518, 4
      %s5520 = scalar_lea.vmem %s7, %s5519
      %p5521 = scmp.lt.s32.totalorder %s27, 1
      %s5522 = scalar_select %p5521, %s27, 1
      %p5523 = scmp.lt.s32.totalorder %s28, 1
      %s5524 = scalar_select %p5523, %s28, 1
      %p5525 = scmp.lt.s32.totalorder %s26, 0
      %s5526 = scalar_select %p5525, %s26, 0
      %s5527 = sadd.s32 %s5526, %s5524
      %s5528 = smul.addr %s5522, 2
      %s5529 = sadd.s32 %s5527, %s5528
      %s5530 = scalar_lea.vmem %s8, %s5529
      %p5531 = scmp.lt.s32.totalorder %s27, 1
      %s5532 = scalar_select %p5531, %s27, 1
      %p5533 = scmp.lt.s32.totalorder %s28, 1
      %s5534 = scalar_select %p5533, %s28, 1
      %p5535 = scmp.lt.s32.totalorder %s26, 0
      %s5536 = scalar_select %p5535, %s26, 0
      %s5537 = sadd.s32 %s5536, %s5534
      %s5538 = smul.addr %s5532, 2
      %s5539 = sadd.s32 %s5537, %s5538
      %s5540 = scalar_lea.vmem %s9, %s5539
      // Predicated region
      $region49: #{double_conv_forward.3} parent=47 // pred_check
        %p5541 = pneg %p256
      $region50: #{double_conv_forward.3} parent=47 // pred_check_branch
        %5543 = sbr.rel (%p5541) target = $region52
      $region51: #{double_conv_forward.3} parent=47 // pred_region
        %s5544 = smul.u32 9, %s28
      $region52: #{double_conv_forward.3} parent=47 // pred_fallthru
        _
      // Predicated region
      $region53: #{double_conv_forward.3} parent=47 // pred_check
        %p5545 = pneg %p286
      $region54: #{double_conv_forward.3} parent=47 // pred_check_branch
        %5547 = sbr.rel (%p5545) target = $region56
      $region55: #{double_conv_forward.3} parent=47 // pred_region
        _
      $region56: #{double_conv_forward.3} parent=47 // pred_fallthru
        _
      // Predicated region
      $region57: #{double_conv_forward.3} parent=47 // pred_check
        %p5548 = pneg %p316
      $region58: #{double_conv_forward.3} parent=47 // pred_check_branch
        %5550 = sbr.rel (%p5548) target = $region60
      $region59: #{double_conv_forward.3} parent=47 // pred_region
        _
      $region60: #{double_conv_forward.3} parent=47 // pred_fallthru
        _
    $region48: #{double_conv_forward.3} parent=5 // pred_fallthru
      _
    %p5551 = scmp.le.s32.totalorder 2, %s16
    // Predicated region
    $region61: #{double_conv_forward.3} parent=5 // pred_check
      %p5552 = pneg %p5551
    $region62: #{double_conv_forward.3} parent=5 // pred_check_branch
      %5554 = sbr.rel (%p5552) target = $region64
    $region63: #{double_conv_forward.3} parent=5 // pred_region
      %s5555 = ssub.s32 %s16, 2
      // Predicated region
      $region65: #{double_conv_forward.3} parent=63 // pred_check
        %p5556 = pneg %p262
      $region66: #{double_conv_forward.3} parent=63 // pred_check_branch
        %5558 = sbr.rel (%p5556) target = $region68
      $region67: #{double_conv_forward.3} parent=63 // pred_region
        %s5559 = smul.u32 9, %s31
        %p5560 = scmp.lt.s32.totalorder %s30, 1
        %s5561 = scalar_select %p5560, %s30, 1
        %p5562 = scmp.lt.s32.totalorder %s5559, 17
        %s5563 = scalar_select %p5562, %s5559, 17
        %p5564 = scmp.lt.s32.totalorder %s29, 0
        %s5565 = scalar_select %p5564, %s29, 0
        %s5566 = smul.addr %s5563, 3
        %s5567 = sadd.s32 %s5565, %s5566
        %s5568 = smul.addr %s5561, 54
        %s5569 = sadd.s32 %s5567, %s5568
        %s5570 = smul.addr %s5569, 4
        %s5571 = scalar_lea.vmem %s7, %s5570
      $region68: #{double_conv_forward.3} parent=63 // pred_fallthru
        _
      // Predicated region
      $region69: #{double_conv_forward.3} parent=63 // pred_check
        %p5572 = pneg %p292
      $region70: #{double_conv_forward.3} parent=63 // pred_check_branch
        %5574 = sbr.rel (%p5572) target = $region72
      $region71: #{double_conv_forward.3} parent=63 // pred_region
        %p5575 = scmp.lt.s32.totalorder %s30, 1
        %s5576 = scalar_select %p5575, %s30, 1
        %p5577 = scmp.lt.s32.totalorder %s31, 1
        %s5578 = scalar_select %p5577, %s31, 1
        %p5579 = scmp.lt.s32.totalorder %s29, 0
        %s5580 = scalar_select %p5579, %s29, 0
        %s5581 = sadd.s32 %s5580, %s5578
        %s5582 = smul.addr %s5576, 2
        %s5583 = sadd.s32 %s5581, %s5582
        %s5584 = scalar_lea.vmem %s8, %s5583
      $region72: #{double_conv_forward.3} parent=63 // pred_fallthru
        _
      // Predicated region
      $region73: #{double_conv_forward.3} parent=63 // pred_check
        %p5585 = pneg %p322
      $region74: #{double_conv_forward.3} parent=63 // pred_check_branch
        %5587 = sbr.rel (%p5585) target = $region76
      $region75: #{double_conv_forward.3} parent=63 // pred_region
        %p5588 = scmp.lt.s32.totalorder %s30, 1
        %s5589 = scalar_select %p5588, %s30, 1
        %p5590 = scmp.lt.s32.totalorder %s31, 1
        %s5591 = scalar_select %p5590, %s31, 1
        %p5592 = scmp.lt.s32.totalorder %s29, 0
        %s5593 = scalar_select %p5592, %s29, 0
        %s5594 = sadd.s32 %s5593, %s5591
        %s5595 = smul.addr %s5589, 2
        %s5596 = sadd.s32 %s5594, %s5595
        %s5597 = scalar_lea.vmem %s9, %s5596
      $region76: #{double_conv_forward.3} parent=63 // pred_fallthru
        _
    $region64: #{double_conv_forward.3} parent=5 // pred_fallthru
      _
  $region6: #{double_conv_forward.3} parent=0 // loop_footer
    %s20 = sadd.s32 1, %s16
  $region7: #{double_conv_forward.3} parent=0 // loop_footer_branch
    %15 = sbr.rel target = $region3
  $region8: #{double_conv_forward.3} parent=0 // loop_exit
    _

</llo_original>
